<compile_context>
chip_gen: v5e
topology: v5e:2x2
jax: 0.10.0
libtpu: 0.0.40
codegen_flags: <defaults>
</compile_context>

<pallas_src>
import math

import jax
import jax.numpy as jnp
from jax.experimental import pallas as pl
from jax.experimental.pallas import tpu as pltpu


# Padded-activation scratch dtype.  f32 is the proven-safe choice for the
# misaligned (offset 7/9) W-slices; bf16 halves the slice bandwidth / scratch
# footprint (review item 4) once packed odd-offset slices are known-good.
SCRATCH_DTYPE = jnp.float32


# -----------------------------------------------------------------------------
# Fused per-level kernel: shared layer-0 + cls tower + bbox tower + head convs
# -----------------------------------------------------------------------------
def _make_level_kernel(H, W, C, num_convs, groups, Kc, A, GW,
                       centerness_on_reg, apply_bbox_relu,
                       scratch_dtype=SCRATCH_DTYPE, eps=1e-5):
    """Kernel operating on one image of one FPN level.

    Inputs (refs):
      x:              (H, W, C)             f32 feature map
      cls/box tower:  w (num_convs, 9C, C)  bf16, b/gamma/beta (num_convs,1,C) f32
      cls head group: w (9C, GW) bf16, b (1, GW) f32   [cls_logits | shape | pad]
      box head group: w (9C, GW) bf16, b (1, GW) f32   [ctr | stride*scale*bbox | pad]
    Output:
      o: (H*W, 2*GW) f32 lane-dense slab  (cls half | box half)
    Scratch:
      pad_ref: (H+2, W+16, C) persistent padded-activation buffer.
    """
    HW = H * W
    Wp = W + 16                    # 8-col zero halo on each side -> center tap aligned
    f32 = jnp.float32
    bf16 = jnp.bfloat16

    def zero_halo(pad_ref):
        # Re-zeroed every grid step: VMEM scratch is not zero-initialised, and
        # with "parallel" batch semantics each TensorCore owns its own scratch
        # (a program_id==0 guard would be wrong on v7x megacore).
        zrow = jnp.zeros((1, Wp, C), scratch_dtype)
        pad_ref[0:1, :, :] = zrow
        pad_ref[H + 1:H + 2, :, :] = zrow
        zcol = jnp.zeros((H, 8, C), scratch_dtype)
        pad_ref[1:H + 1, 0:8, :] = zcol
        pad_ref[1:H + 1, 8 + W:Wp, :] = zcol

    def write_interior(pad_ref, act_hwc):
        # act_hwc: (H, W, C).  Halo rows/cols stay zero.
        pad_ref[1:H + 1, 8:8 + W, :] = act_hwc.astype(scratch_dtype)

    def build_patch(pad_ref):
        # (HW, 9C) bf16 im2col patch.  The dw shifts are loaded once each
        # (only 2 of 3 are sublane-misaligned); the dh shifts are cheap
        # outer-axis slices of those values; a single reshape at the end.
        shifted = [pad_ref[:, 7 + dw:7 + dw + W, :].astype(bf16)
                   for dw in range(3)]                         # (H+2, W, C) each
        taps = [shifted[dw][dh:dh + H]                          # (H, W, C)
                for dh in range(3) for dw in range(3)]          # (dh, dw) tap-major
        return jnp.concatenate(taps, axis=-1).reshape(HW, 9 * C)

    def gn_relu(acc, gamma, beta):
        # acc: (HW, C) f32.  GroupNorm(groups, C) statistics over (HW, C/groups),
        # two-pass (mean then centered square) for stability; math stays f32.
        n = HW * (C // groups)
        ch_sum = jnp.sum(acc, axis=0, keepdims=True)            # (1, C)
        if C == groups:                                         # group size 1
            mean = ch_sum / n
        else:
            cg = C // groups
            gsum = jnp.sum(ch_sum.reshape(1, groups, cg), axis=2, keepdims=True)
            mean = jnp.broadcast_to(gsum / n, (1, groups, cg)).reshape(1, C)
        d = acc - mean
        ch_ss = jnp.sum(d * d, axis=0, keepdims=True)           # (1, C)
        if C == groups:
            var = ch_ss / n
        else:
            cg = C // groups
            gss = jnp.sum(ch_ss.reshape(1, groups, cg), axis=2, keepdims=True)
            var = jnp.broadcast_to(gss / n, (1, groups, cg)).reshape(1, C)
        y = d * jax.lax.rsqrt(var + eps) * gamma + beta
        return jnp.maximum(y, 0.0)

    def finish_tower(pad_ref, act0, tw, tb, gm, bt):
        # act0: (HW, C) f32 layer-0 activation (already GN+ReLU'ed).
        # Runs the remaining conv->GN->ReLU layers, returns head-ready patch.
        write_interior(pad_ref, act0.reshape(H, W, C))
        for i in range(1, num_convs):                 # static unroll (num_convs small)
            patch = build_patch(pad_ref)
            acc = jnp.dot(patch, tw[i], preferred_element_type=f32) + tb[i]
            write_interior(pad_ref, gn_relu(acc, gm[i], bt[i]).reshape(H, W, C))
        return build_patch(pad_ref)

    def kernel(x_ref,
               ctw, ctb, cgm, cbt,          # cls tower
               btw, btb, bgm, bbt,          # bbox tower
               wch, bch,                    # fused cls-side heads
               wbh, bbh,                    # fused box-side heads
               o_ref, pad_ref):
        zero_halo(pad_ref)

        # ---- shared layer 0: one pad + one im2col, two MXU dots ----
        write_interior(pad_ref, x_ref[...])
        patch0 = build_patch(pad_ref)
        acc0_c = jnp.dot(patch0, ctw[0], preferred_element_type=f32) + ctb[0]
        acc0_b = jnp.dot(patch0, btw[0], preferred_element_type=f32) + btb[0]
        act0_c = gn_relu(acc0_c, cgm[0], cbt[0])
        act0_b = gn_relu(acc0_b, bgm[0], bbt[0])     # stays resident while cls runs

        # (1, GW) column masks — broadcast in the where, no (HW, GW) iota.
        col = jax.lax.broadcasted_iota(jnp.int32, (1, GW), 1)

        # ---- cls tower + fused {cls_logits, shape_logits[, centerness]} ----
        cls_patch = finish_tower(pad_ref, act0_c, ctw, ctb, cgm, cbt)
        cls_acc = jnp.dot(cls_patch, wch[...], preferred_element_type=f32) + bch[...]
        sig_mask = (col >= Kc) & (col < Kc + A)      # sigmoid on shape-logit cols only
        cls_slab = jnp.where(sig_mask, jax.nn.sigmoid(cls_acc), cls_acc)

        # ---- bbox tower + fused {[centerness,] stride*scale*bbox_pred} ----
        box_patch = finish_tower(pad_ref, act0_b, btw, btb, bgm, bbt)
        box_acc = jnp.dot(box_patch, wbh[...], preferred_element_type=f32) + bbh[...]
        if apply_bbox_relu:                          # norm_reg_targets path
            start = 1 if centerness_on_reg else 0
            relu_mask = (col >= start) & (col < start + 4 * A)
            box_slab = jnp.where(relu_mask, jnp.maximum(box_acc, 0.0), box_acc)
        else:
            box_slab = box_acc

        o_ref[...] = jnp.concatenate([cls_slab, box_slab], axis=-1)

    return kernel


def _fcos_level_pallas(feat, cls_tower, box_tower, wch, bch, wbh, bbh, *,
                       num_convs, groups, Kc, A, GW,
                       centerness_on_reg, apply_bbox_relu):
    """Run the fused per-level kernel.  feat: (N, H, W, C) f32.
    Returns the (N, H*W, 2*GW) f32 output slab."""
    N, H, W, C = feat.shape
    HW = H * W
    K9 = 9 * C
    kernel = _make_level_kernel(H, W, C, num_convs, groups, Kc, A, GW,
                                centerness_on_reg, apply_bbox_relu)
    ctw, ctb, cgm, cbt = cls_tower
    btw, btb, bgm, bbt = box_tower

    def bcast_spec(shape):
        # Grid-invariant weights/biases.  Production knob (review item): add
        # pipeline_mode=pl.Buffered(1) to drop the second (never-refetched)
        # pipeline buffer and free VMEM for larger spatial tiles.
        nd = len(shape)
        return pl.BlockSpec(shape, lambda n, _nd=nd: (0,) * _nd)

    in_specs = [
        pl.BlockSpec((None, H, W, C), lambda n: (n, 0, 0, 0)),
        bcast_spec((num_convs, K9, C)), bcast_spec((num_convs, 1, C)),
        bcast_spec((num_convs, 1, C)), bcast_spec((num_convs, 1, C)),
        bcast_spec((num_convs, K9, C)), bcast_spec((num_convs, 1, C)),
        bcast_spec((num_convs, 1, C)), bcast_spec((num_convs, 1, C)),
        bcast_spec((K9, GW)), bcast_spec((1, GW)),
        bcast_spec((K9, GW)), bcast_spec((1, GW)),
    ]
    out_spec = pl.BlockSpec((None, HW, 2 * GW), lambda n: (n, 0, 0))

    # Per-step VMEM budget (double-buffered I/O + weights, scratch, transients).
    sdt_bytes = jnp.dtype(SCRATCH_DTYPE).itemsize
    vmem_est = (
        2 * (H * W * C * 4) + 2 * (HW * 2 * GW * 4)                  # in/out blocks
        + 2 * (2 * (num_convs * K9 * C * 2 + 3 * num_convs * C * 4)  # tower weights
               + 2 * (K9 * GW * 2 + GW * 4))                         # fused head weights
        + (H + 2) * (W + 16) * C * sdt_bytes                         # padded scratch
        + 3 * HW * K9 * 2 + 6 * HW * C * 4 + 2 * HW * GW * 4)        # patches/acts
    vmem_limit = None
    if vmem_est > 24 * 1024 * 1024:
        # Cap at v7x physical VMEM (64 MiB/TC); v5e/v6e have 128 MiB.
        vmem_limit = min(int(vmem_est + (8 << 20)), 64 * 1024 * 1024)

    return pl.pallas_call(
        kernel,
        out_shape=jax.ShapeDtypeStruct((N, HW, 2 * GW), jnp.float32),
        grid_spec=pltpu.PrefetchScalarGridSpec(
            num_scalar_prefetch=0, grid=(N,),
            in_specs=in_specs, out_specs=out_spec,
            scratch_shapes=[pltpu.VMEM((H + 2, W + 16, C), SCRATCH_DTYPE)]),
        compiler_params=pltpu.CompilerParams(
            # batch -> both TCs on v7x (only fills both cores when N >= 2; at
            # N = 1 the spatial row-block axis would have to be the parallel one).
            dimension_semantics=("parallel",),
            vmem_limit_bytes=vmem_limit),
    )(feat, ctw, ctb, cgm, cbt, btw, btb, bgm, bbt, wch, bch, wbh, bbh)


# -----------------------------------------------------------------------------
# Host-side weight preparation (done once per forward, tiny)
# -----------------------------------------------------------------------------
def _flat3x3(w):
    # (3, 3, Cin, Cout) -> (9*Cin, Cout); row order (dh, dw, cin) matches the
    # kernel's im2col column order.
    return w.reshape(-1, w.shape[-1])


def _pad_cols(x, width):
    pad = width - x.shape[-1]
    if pad == 0:
        return x
    return jnp.concatenate([x, jnp.zeros(x.shape[:-1] + (pad,), x.dtype)], axis=-1)


def _stack_tower(layers):
    tw = jnp.stack([_flat3x3(w) for (w, b, g, bt) in layers]).astype(jnp.bfloat16)
    tb = jnp.stack([b.reshape(1, -1) for (w, b, g, bt) in layers]).astype(jnp.float32)
    gm = jnp.stack([g.reshape(1, -1) for (w, b, g, bt) in layers]).astype(jnp.float32)
    be = jnp.stack([bt.reshape(1, -1) for (w, b, g, bt) in layers]).astype(jnp.float32)
    return tw, tb, gm, be


# -----------------------------------------------------------------------------
# FCOSAnchorHead forward (fused Pallas kernel per level, JAX glue)
# -----------------------------------------------------------------------------
def fcos_anchor_head_forward(features, params, fpn_strides, num_classes,
                             num_anchors, norm_reg_targets=True,
                             centerness_on_reg=True, groups=32):
    C = features[0].shape[-1]
    assert C % groups == 0, "GroupNorm(32, C) requires C % 32 == 0"
    assert all(float(s) > 0 for s in fpn_strides), "FPN strides must be positive"
    num_convs = len(params["cls_tower"])
    A = num_anchors
    Kc = num_classes * A

    cls_cols = Kc + A + (0 if centerness_on_reg else 1)
    box_cols = 4 * A + (1 if centerness_on_reg else 0)
    GW = ((max(cls_cols, box_cols) + 63) // 64) * 64      # slab half-width

    # Shared (level-independent) fused weights.
    cls_tower = _stack_tower(params["cls_tower"])
    box_tower = _stack_tower(params["bbox_tower"])
    w_cls, b_cls = params["cls_logits"]
    w_shp, b_shp = params["shape_logits"]
    w_ctr, b_ctr = params["centerness"]
    w_bb, b_bb = params["bbox_pred"]

    cls_head_w = [_flat3x3(w_cls), _flat3x3(w_shp)]
    cls_head_b = [b_cls, b_shp]
    if not centerness_on_reg:
        cls_head_w.append(_flat3x3(w_ctr))
        cls_head_b.append(b_ctr)
    wch = _pad_cols(jnp.concatenate(cls_head_w, axis=1), GW).astype(jnp.bfloat16)
    bch = _pad_cols(jnp.concatenate(cls_head_b).reshape(1, -1), GW).astype(jnp.float32)

    logits, bbox_reg, centerness, shape_logits = [], [], [], []
    for l, feat in enumerate(features):
        N, H, W, _ = feat.shape

        # Fold Scale (and fpn_stride when norm_reg_targets) into bbox weights.
        # The reference computes relu(scale*(Wx+b)) * stride: scale is applied
        # BEFORE the ReLU, so folding it into the conv weights is exact for any
        # sign of scale; the post-ReLU stride multiply folds too because
        # stride > 0 (stride*relu(y) == relu(stride*y)).
        s = params["scales"][l] * (float(fpn_strides[l]) if norm_reg_targets else 1.0)
        box_head_w = ([_flat3x3(w_ctr)] if centerness_on_reg else []) + [s * _flat3x3(w_bb)]
        box_head_b = ([b_ctr] if centerness_on_reg else []) + [s * b_bb]
        wbh = _pad_cols(jnp.concatenate(box_head_w, axis=1), GW).astype(jnp.bfloat16)
        bbh = _pad_cols(jnp.concatenate(box_head_b).reshape(1, -1), GW).astype(jnp.float32)

        slab = _fcos_level_pallas(
            feat, cls_tower, box_tower, wch, bch, wbh, bbh,
            num_convs=num_convs, groups=groups, Kc=Kc, A=A, GW=GW,
            centerness_on_reg=centerness_on_reg,
            apply_bbox_relu=norm_reg_targets)                 # (N, HW, 2*GW)

        cls_o = slab[:, :, 0:Kc].reshape(N, H, W, Kc)
        shp_o = slab[:, :, Kc:Kc + A].reshape(N, H, W, A)
        if centerness_on_reg:
            ctr_o = slab[:, :, GW:GW + 1].reshape(N, H, W, 1)
            bb_o = slab[:, :, GW + 1:GW + 1 + 4 * A].reshape(N, H, W, 4 * A)
        else:
            ctr_o = slab[:, :, Kc + A:Kc + A + 1].reshape(N, H, W, 1)
            bb_o = slab[:, :, GW:GW + 4 * A].reshape(N, H, W, 4 * A)

        logits.append(cls_o)
        shape_logits.append(shp_o)
        centerness.append(ctr_o)
        bbox_reg.append(bb_o)
    return logits, bbox_reg, centerness, shape_logits


# -----------------------------------------------------------------------------
# JAX glue mirroring the module's helpers
# -----------------------------------------------------------------------------
def compute_locations(shapes, strides):
    locs = []
    for (h, w), s in zip(shapes, strides):
        sx = jnp.arange(w, dtype=jnp.float32) * s + s // 2
        sy = jnp.arange(h, dtype=jnp.float32) * s + s // 2
        yy, xx = jnp.meshgrid(sy, sx, indexing="ij")
        locs.append(jnp.stack([xx.reshape(-1), yy.reshape(-1)], axis=1))
    return locs


def make_anchors(locations, stride, num_anchors):
    """Synthetic detectron2-style cell anchors, location-major (H*W*A, 4) XYXY."""
    sizes = [4.0 * stride, 8.0 * stride]
    ratios = [0.5, 2.0]
    base = []
    for s in sizes:
        for r in ratios:
            w = s * math.sqrt(1.0 / r)
            h = s * math.sqrt(r)
            base.append([-w / 2.0, -h / 2.0, w / 2.0, h / 2.0])
    base = jnp.asarray(base[:num_anchors], jnp.float32)            # (A, 4)
    ctr = jnp.concatenate([locations, locations], axis=1)          # (HW, 4)
    return (ctr[:, None, :] + base[None, :, :]).reshape(-1, 4)     # (HW*A, 4)


def get_anchor_offsets(locations, anchors, num_anchors):
    outs = []
    for loc, anc in zip(locations, anchors):
        loc_r = jnp.repeat(loc, num_anchors, axis=0)               # repeat(1,A).view(-1,2)
        lt = loc_r - anc[:, 0:2]
        rb = anc[:, 2:4] - loc_r
        outs.append(jnp.concatenate([lt, rb], axis=1))
    return outs


def permute_and_concat(box_cls, box_reg, center_score, shape_cls,
                       num_classes, num_anchors):
    def flat(xs, K):
        return jnp.concatenate([x.reshape(x.shape[0], -1, K) for x in xs], axis=1)
    bc = flat(box_cls, num_classes).reshape(-1, num_classes)
    br = flat(box_reg, 4).reshape(-1, 4)
    cs = flat(center_score, 1).reshape(-1)
    sc = flat(shape_cls, num_anchors).reshape(-1, num_anchors)
    return bc, br, cs, sc


def softmax_rows(x):
    # Reference `softmax` helper (exp / rowsum).  Kept in plain JAX: a (R, 4)
    # last dim gives ~3% lane utilization in a Pallas kernel and XLA fuses it.
    e = jnp.exp(x)
    return e / jnp.sum(e, axis=1, keepdims=True)


# -----------------------------------------------------------------------------
# Deterministic parameter init (matches the module's init scheme)
# -----------------------------------------------------------------------------
def init_params(key, in_channels, num_classes, num_anchors, num_convs,
                num_levels, prior_prob=0.01):
    keys = iter(jax.random.split(key, 64))

    def conv(cin, cout, bias_val=0.0):
        w = 0.01 * jax.random.normal(next(keys), (3, 3, cin, cout), jnp.float32)
        b = jnp.full((cout,), bias_val, jnp.float32)
        return w, b

    def tower():
        layers = []
        for _ in range(num_convs):
            w, b = conv(in_channels, in_channels)
            gamma = jnp.ones((in_channels,), jnp.float32)
            beta = jnp.zeros((in_channels,), jnp.float32)
            layers.append((w, b, gamma, beta))
        return layers

    bias_value = -math.log((1.0 - prior_prob) / prior_prob)
    return dict(
        cls_tower=tower(),
        bbox_tower=tower(),
        cls_logits=conv(in_channels, num_classes * num_anchors, bias_value),
        bbox_pred=conv(in_channels, 4 * num_anchors),
        centerness=conv(in_channels, 1),
        shape_logits=conv(in_channels, num_anchors, bias_value),
        scales=[jnp.float32(1.0) for _ in range(num_levels)],
    )


# -----------------------------------------------------------------------------
# Main
# -----------------------------------------------------------------------------
if __name__ == "__main__":
    # Small synthetic config.
    N = 2
    C = 32                      # in_channels (multiple of 32 for GroupNorm(32, C))
    NUM_CLASSES = 8
    NUM_ANCHORS = 4
    NUM_CONVS = 2
    LEVEL_SHAPES = [(16, 16), (8, 8)]
    FPN_STRIDES = [8, 16]

    key = jax.random.PRNGKey(0)
    k_feat, k_param = jax.random.split(key)
    fkeys = jax.random.split(k_feat, len(LEVEL_SHAPES))

    # Backbone outputs are synthesized; PyTorch reference is NCHW -> we use NHWC.
    features_nchw = [jax.random.normal(fkeys[i], (N, C, h, w), jnp.float32)
                     for i, (h, w) in enumerate(LEVEL_SHAPES)]
    features = [jnp.transpose(f, (0, 2, 3, 1)) for f in features_nchw]  # NHWC

    params = init_params(k_param, C, NUM_CLASSES, NUM_ANCHORS, NUM_CONVS,
                         len(LEVEL_SHAPES))

    # Head forward (one fused Pallas kernel per FPN level).
    box_cls, box_reg, ctr_sco, shape_cls = fcos_anchor_head_forward(
        features, params, FPN_STRIDES, NUM_CLASSES, NUM_ANCHORS,
        norm_reg_targets=True, centerness_on_reg=True)

    # Locations / anchors / anchor offsets (JAX glue).
    locations = compute_locations(LEVEL_SHAPES, FPN_STRIDES)
    anchors = [make_anchors(loc, s, NUM_ANCHORS)
               for loc, s in zip(locations, FPN_STRIDES)]
    anchor_offsets = get_anchor_offsets(locations, anchors, NUM_ANCHORS)
    anchor_targets = jnp.stack(
        [jnp.concatenate(anchor_offsets, axis=0) for _ in range(N)])

    # permute_and_concat + shape-logit softmax (plain JAX, see softmax_rows).
    p_cls, p_reg, p_ctr, p_shape = permute_and_concat(
        box_cls, box_reg, ctr_sco, shape_cls, NUM_CLASSES, NUM_ANCHORS)
    p_shape_softmax = softmax_rows(p_shape)

    outs = (box_cls, box_reg, ctr_sco, shape_cls,
            p_cls, p_reg, p_ctr, p_shape_softmax, anchor_targets)
    jax.block_until_ready(outs)

    # Light sanity checks on shapes.
    total = sum(h * w for h, w in LEVEL_SHAPES)
    assert p_cls.shape == (N * total * NUM_ANCHORS, NUM_CLASSES)
    assert p_reg.shape == (N * total * NUM_ANCHORS, 4)
    assert p_ctr.shape == (N * total,)
    assert p_shape_softmax.shape == (N * total, NUM_ANCHORS)
    assert anchor_targets.shape == (N, total * NUM_ANCHORS, 4)
    for l, (h, w) in enumerate(LEVEL_SHAPES):
        assert box_cls[l].shape == (N, h, w, NUM_CLASSES * NUM_ANCHORS)
        assert box_reg[l].shape == (N, h, w, 4 * NUM_ANCHORS)
        assert ctr_sco[l].shape == (N, h, w, 1)
        assert shape_cls[l].shape == (N, h, w, NUM_ANCHORS)

    print("KERNEL_OK")
</pallas_src>

<mosaic_0001>
module attributes {stable_mosaic.version = 11 : i64} {
  func.func @kernel(%arg0: i32, %arg1: memref<1x16x16x32xf32, #tpu.memory_space<vmem>>, %arg2: memref<2x288x32xbf16, #tpu.memory_space<vmem>>, %arg3: memref<2x1x32xf32, #tpu.memory_space<vmem>>, %arg4: memref<2x1x32xf32, #tpu.memory_space<vmem>>, %arg5: memref<2x1x32xf32, #tpu.memory_space<vmem>>, %arg6: memref<2x288x32xbf16, #tpu.memory_space<vmem>>, %arg7: memref<2x1x32xf32, #tpu.memory_space<vmem>>, %arg8: memref<2x1x32xf32, #tpu.memory_space<vmem>>, %arg9: memref<2x1x32xf32, #tpu.memory_space<vmem>>, %arg10: memref<288x64xbf16, #tpu.memory_space<vmem>>, %arg11: memref<1x64xf32, #tpu.memory_space<vmem>>, %arg12: memref<288x64xbf16, #tpu.memory_space<vmem>>, %arg13: memref<1x64xf32, #tpu.memory_space<vmem>>, %arg14: memref<1x256x128xf32, #tpu.memory_space<vmem>>, %arg15: memref<18x32x32xf32, #tpu.memory_space<vmem>>) attributes {dimension_semantics = [#tpu.dimension_semantics<parallel>], iteration_bounds = array<i64: 2>, scalar_prefetch = 0 : i64, scratch_operands = 1 : i64, tpu.core_type = #tpu.core_type<tc>, window_params = [{transform_indices = @transform_0, window_bounds = array<i64: 1, 16, 16, 32>}, {pipeline_mode = #tpu.pipeline_mode<synchronous>, transform_indices = @transform_1, window_bounds = array<i64: 2, 288, 32>}, {pipeline_mode = #tpu.pipeline_mode<synchronous>, transform_indices = @transform_2, window_bounds = array<i64: 2, 1, 32>}, {pipeline_mode = #tpu.pipeline_mode<synchronous>, transform_indices = @transform_3, window_bounds = array<i64: 2, 1, 32>}, {pipeline_mode = #tpu.pipeline_mode<synchronous>, transform_indices = @transform_4, window_bounds = array<i64: 2, 1, 32>}, {pipeline_mode = #tpu.pipeline_mode<synchronous>, transform_indices = @transform_5, window_bounds = array<i64: 2, 288, 32>}, {pipeline_mode = #tpu.pipeline_mode<synchronous>, transform_indices = @transform_6, window_bounds = array<i64: 2, 1, 32>}, {pipeline_mode = #tpu.pipeline_mode<synchronous>, transform_indices = @transform_7, window_bounds = array<i64: 2, 1, 32>}, {pipeline_mode = #tpu.pipeline_mode<synchronous>, transform_indices = @transform_8, window_bounds = array<i64: 2, 1, 32>}, {pipeline_mode = #tpu.pipeline_mode<synchronous>, transform_indices = @transform_9, window_bounds = array<i64: 288, 64>}, {pipeline_mode = #tpu.pipeline_mode<synchronous>, transform_indices = @transform_10, window_bounds = array<i64: 1, 64>}, {pipeline_mode = #tpu.pipeline_mode<synchronous>, transform_indices = @transform_11, window_bounds = array<i64: 288, 64>}, {pipeline_mode = #tpu.pipeline_mode<synchronous>, transform_indices = @transform_12, window_bounds = array<i64: 1, 64>}, {transform_indices = @transform_13, window_bounds = array<i64: 1, 256, 128>}]} {
    %cst = arith.constant 0.000000e+00 : f32
    %0 = vector.broadcast %cst : f32 to vector<1x32x32xf32>
    %c0 = arith.constant 0 : index
    %c0_0 = arith.constant 0 : index
    %c0_1 = arith.constant 0 : index
    %1 = vector.load %arg15[%c0, %c0_0, %c0_1] : memref<18x32x32xf32, #tpu.memory_space<vmem>>, vector<1x32x32xf32>
    tpu.vector_store %arg15[%c0, %c0_0, %c0_1], %0 {strides = array<i32>} : memref<18x32x32xf32, #tpu.memory_space<vmem>>, vector<1x32x32xf32>,
    %c17 = arith.constant 17 : index
    %c0_2 = arith.constant 0 : index
    %c0_3 = arith.constant 0 : index
    %2 = vector.load %arg15[%c17, %c0_2, %c0_3] : memref<18x32x32xf32, #tpu.memory_space<vmem>>, vector<1x32x32xf32>
    tpu.vector_store %arg15[%c17, %c0_2, %c0_3], %0 {strides = array<i32>} : memref<18x32x32xf32, #tpu.memory_space<vmem>>, vector<1x32x32xf32>,
    %cst_4 = arith.constant 0.000000e+00 : f32
    %3 = vector.broadcast %cst_4 : f32 to vector<16x8x32xf32>
    %c1 = arith.constant 1 : index
    %c0_5 = arith.constant 0 : index
    %c0_6 = arith.constant 0 : index
    %4 = vector.load %arg15[%c1, %c0_5, %c0_6] : memref<18x32x32xf32, #tpu.memory_space<vmem>>, vector<16x8x32xf32>
    tpu.vector_store %arg15[%c1, %c0_5, %c0_6], %3 {strides = array<i32>} : memref<18x32x32xf32, #tpu.memory_space<vmem>>, vector<16x8x32xf32>,
    %c1_7 = arith.constant 1 : index
    %c24 = arith.constant 24 : index
    %c0_8 = arith.constant 0 : index
    %5 = vector.load %arg15[%c1_7, %c24, %c0_8] : memref<18x32x32xf32, #tpu.memory_space<vmem>>, vector<16x8x32xf32>
    tpu.vector_store %arg15[%c1_7, %c24, %c0_8], %3 {strides = array<i32>} : memref<18x32x32xf32, #tpu.memory_space<vmem>>, vector<16x8x32xf32>,
    %c0_9 = arith.constant 0 : index
    %c0_10 = arith.constant 0 : index
    %c0_11 = arith.constant 0 : index
    %c0_12 = arith.constant 0 : index
    %6 = vector.load %arg1[%c0_9, %c0_10, %c0_11, %c0_12] : memref<1x16x16x32xf32, #tpu.memory_space<vmem>>, vector<1x16x16x32xf32>
    %7 = vector.shape_cast %6 : vector<1x16x16x32xf32> to vector<16x16x32xf32>
    %c1_13 = arith.constant 1 : index
    %c8 = arith.constant 8 : index
    %c0_14 = arith.constant 0 : index
    %8 = vector.load %arg15[%c1_13, %c8, %c0_14] : memref<18x32x32xf32, #tpu.memory_space<vmem>>, vector<16x16x32xf32>
    tpu.vector_store %arg15[%c1_13, %c8, %c0_14], %7 {strides = array<i32>} : memref<18x32x32xf32, #tpu.memory_space<vmem>>, vector<16x16x32xf32>,
    %c0_15 = arith.constant 0 : index
    %c7 = arith.constant 7 : index
    %c0_16 = arith.constant 0 : index
    %9 = vector.load %arg15[%c0_15, %c7, %c0_16] : memref<18x32x32xf32, #tpu.memory_space<vmem>>, vector<18x16x32xf32>
    %10 = arith.truncf %9 : vector<18x16x32xf32> to vector<18x16x32xbf16>
    %c0_17 = arith.constant 0 : index
    %c8_18 = arith.constant 8 : index
    %c0_19 = arith.constant 0 : index
    %11 = vector.load %arg15[%c0_17, %c8_18, %c0_19] : memref<18x32x32xf32, #tpu.memory_space<vmem>>, vector<18x16x32xf32>
    %12 = arith.truncf %11 : vector<18x16x32xf32> to vector<18x16x32xbf16>
    %c0_20 = arith.constant 0 : index
    %c9 = arith.constant 9 : index
    %c0_21 = arith.constant 0 : index
    %13 = vector.load %arg15[%c0_20, %c9, %c0_21] : memref<18x32x32xf32, #tpu.memory_space<vmem>>, vector<18x16x32xf32>
    %14 = arith.truncf %13 : vector<18x16x32xf32> to vector<18x16x32xbf16>
    %15 = vector.extract_strided_slice %10 {offsets = [0, 0, 0], sizes = [16, 16, 32], strides = [1, 1, 1]} : vector<18x16x32xbf16> to vector<16x16x32xbf16>
    %16 = vector.extract_strided_slice %12 {offsets = [0, 0, 0], sizes = [16, 16, 32], strides = [1, 1, 1]} : vector<18x16x32xbf16> to vector<16x16x32xbf16>
    %17 = vector.extract_strided_slice %14 {offsets = [0, 0, 0], sizes = [16, 16, 32], strides = [1, 1, 1]} : vector<18x16x32xbf16> to vector<16x16x32xbf16>
    %18 = vector.extract_strided_slice %10 {offsets = [1, 0, 0], sizes = [16, 16, 32], strides = [1, 1, 1]} : vector<18x16x32xbf16> to vector<16x16x32xbf16>
    %19 = vector.extract_strided_slice %12 {offsets = [1, 0, 0], sizes = [16, 16, 32], strides = [1, 1, 1]} : vector<18x16x32xbf16> to vector<16x16x32xbf16>
    %20 = vector.extract_strided_slice %14 {offsets = [1, 0, 0], sizes = [16, 16, 32], strides = [1, 1, 1]} : vector<18x16x32xbf16> to vector<16x16x32xbf16>
    %21 = vector.extract_strided_slice %10 {offsets = [2, 0, 0], sizes = [16, 16, 32], strides = [1, 1, 1]} : vector<18x16x32xbf16> to vector<16x16x32xbf16>
    %22 = vector.extract_strided_slice %12 {offsets = [2, 0, 0], sizes = [16, 16, 32], strides = [1, 1, 1]} : vector<18x16x32xbf16> to vector<16x16x32xbf16>
    %23 = vector.extract_strided_slice %14 {offsets = [2, 0, 0], sizes = [16, 16, 32], strides = [1, 1, 1]} : vector<18x16x32xbf16> to vector<16x16x32xbf16>
    %24 = tpu.concatenate %15, %16, %17, %18, %19, %20, %21, %22, %23 in 2 : vector<16x16x32xbf16>, vector<16x16x32xbf16>, vector<16x16x32xbf16>, vector<16x16x32xbf16>, vector<16x16x32xbf16>, vector<16x16x32xbf16>, vector<16x16x32xbf16>, vector<16x16x32xbf16>, vector<16x16x32xbf16> -> vector<16x16x288xbf16>
    %25 = vector.shape_cast %24 : vector<16x16x288xbf16> to vector<256x288xbf16>
    %c0_22 = arith.constant 0 : index
    %c0_23 = arith.constant 0 : index
    %c0_24 = arith.constant 0 : index
    %26 = vector.load %arg2[%c0_22, %c0_23, %c0_24] : memref<2x288x32xbf16, #tpu.memory_space<vmem>>, vector<1x288x32xbf16>
    %27 = vector.shape_cast %26 : vector<1x288x32xbf16> to vector<288x32xbf16>
    %cst_25 = arith.constant dense<0.000000e+00> : vector<256x32xf32>
    %28 = tpu.matmul %25, %27, %cst_25 {dimension_numbers = #tpu.dot_dimension_numbers<[1], [0], [0], [1], [0, 0, 1, 1], [], []>} : vector<256x288xbf16>, vector<288x32xbf16>, vector<256x32xf32> -> vector<256x32xf32>
    %c0_26 = arith.constant 0 : index
    %c0_27 = arith.constant 0 : index
    %c0_28 = arith.constant 0 : index
    %29 = vector.load %arg3[%c0_26, %c0_27, %c0_28] : memref<2x1x32xf32, #tpu.memory_space<vmem>>, vector<1x1x32xf32>
    %30 = vector.shape_cast %29 : vector<1x1x32xf32> to vector<1x32xf32>
    %31 = vector.broadcast %30 : vector<1x32xf32> to vector<256x32xf32>
    %32 = arith.addf %28, %31 : vector<256x32xf32>
    %c0_29 = arith.constant 0 : index
    %c0_30 = arith.constant 0 : index
    %c0_31 = arith.constant 0 : index
    %33 = vector.load %arg6[%c0_29, %c0_30, %c0_31] : memref<2x288x32xbf16, #tpu.memory_space<vmem>>, vector<1x288x32xbf16>
    %34 = vector.shape_cast %33 : vector<1x288x32xbf16> to vector<288x32xbf16>
    %cst_32 = arith.constant dense<0.000000e+00> : vector<256x32xf32>
    %35 = tpu.matmul %25, %34, %cst_32 {dimension_numbers = #tpu.dot_dimension_numbers<[1], [0], [0], [1], [0, 0, 1, 1], [], []>} : vector<256x288xbf16>, vector<288x32xbf16>, vector<256x32xf32> -> vector<256x32xf32>
    %c0_33 = arith.constant 0 : index
    %c0_34 = arith.constant 0 : index
    %c0_35 = arith.constant 0 : index
    %36 = vector.load %arg7[%c0_33, %c0_34, %c0_35] : memref<2x1x32xf32, #tpu.memory_space<vmem>>, vector<1x1x32xf32>
    %37 = vector.shape_cast %36 : vector<1x1x32xf32> to vector<1x32xf32>
    %38 = vector.broadcast %37 : vector<1x32xf32> to vector<256x32xf32>
    %39 = arith.addf %35, %38 : vector<256x32xf32>
    %c0_36 = arith.constant 0 : index
    %c0_37 = arith.constant 0 : index
    %c0_38 = arith.constant 0 : index
    %40 = vector.load %arg4[%c0_36, %c0_37, %c0_38] : memref<2x1x32xf32, #tpu.memory_space<vmem>>, vector<1x1x32xf32>
    %41 = vector.shape_cast %40 : vector<1x1x32xf32> to vector<1x32xf32>
    %c0_39 = arith.constant 0 : index
    %c0_40 = arith.constant 0 : index
    %c0_41 = arith.constant 0 : index
    %42 = vector.load %arg5[%c0_39, %c0_40, %c0_41] : memref<2x1x32xf32, #tpu.memory_space<vmem>>, vector<1x1x32xf32>
    %43 = vector.shape_cast %42 : vector<1x1x32xf32> to vector<1x32xf32>
    %cst_42 = arith.constant dense<0.000000e+00> : vector<32xf32>
    %44 = vector.multi_reduction <add>, %32, %cst_42 [0] : vector<256x32xf32> to vector<32xf32>
    %45 = vector.shape_cast %44 : vector<32xf32> to vector<1x32xf32>
    %cst_43 = arith.constant 2.560000e+02 : f32
    %46 = vector.broadcast %cst_43 : f32 to vector<1x32xf32>
    %47 = arith.divf %45, %46 : vector<1x32xf32>
    %48 = vector.broadcast %47 : vector<1x32xf32> to vector<256x32xf32>
    %49 = arith.subf %32, %48 : vector<256x32xf32>
    %50 = arith.mulf %49, %49 : vector<256x32xf32>
    %cst_44 = arith.constant dense<0.000000e+00> : vector<32xf32>
    %51 = vector.multi_reduction <add>, %50, %cst_44 [0] : vector<256x32xf32> to vector<32xf32>
    %52 = vector.shape_cast %51 : vector<32xf32> to vector<1x32xf32>
    %cst_45 = arith.constant 2.560000e+02 : f32
    %53 = vector.broadcast %cst_45 : f32 to vector<1x32xf32>
    %54 = arith.divf %52, %53 : vector<1x32xf32>
    %cst_46 = arith.constant 9.99999974E-6 : f32
    %55 = vector.broadcast %cst_46 : f32 to vector<1x32xf32>
    %56 = arith.addf %54, %55 : vector<1x32xf32>
    %57 = math.rsqrt %56 : vector<1x32xf32>
    %58 = vector.broadcast %57 : vector<1x32xf32> to vector<256x32xf32>
    %59 = arith.mulf %49, %58 : vector<256x32xf32>
    %60 = vector.broadcast %41 : vector<1x32xf32> to vector<256x32xf32>
    %61 = arith.mulf %59, %60 : vector<256x32xf32>
    %62 = vector.broadcast %43 : vector<1x32xf32> to vector<256x32xf32>
    %63 = arith.addf %61, %62 : vector<256x32xf32>
    %cst_47 = arith.constant 0.000000e+00 : f32
    %64 = vector.broadcast %cst_47 : f32 to vector<256x32xf32>
    %65 = arith.maximumf %63, %64 : vector<256x32xf32>
    %c0_48 = arith.constant 0 : index
    %c0_49 = arith.constant 0 : index
    %c0_50 = arith.constant 0 : index
    %66 = vector.load %arg8[%c0_48, %c0_49, %c0_50] : memref<2x1x32xf32, #tpu.memory_space<vmem>>, vector<1x1x32xf32>
    %67 = vector.shape_cast %66 : vector<1x1x32xf32> to vector<1x32xf32>
    %c0_51 = arith.constant 0 : index
    %c0_52 = arith.constant 0 : index
    %c0_53 = arith.constant 0 : index
    %68 = vector.load %arg9[%c0_51, %c0_52, %c0_53] : memref<2x1x32xf32, #tpu.memory_space<vmem>>, vector<1x1x32xf32>
    %69 = vector.shape_cast %68 : vector<1x1x32xf32> to vector<1x32xf32>
    %cst_54 = arith.constant dense<0.000000e+00> : vector<32xf32>
    %70 = vector.multi_reduction <add>, %39, %cst_54 [0] : vector<256x32xf32> to vector<32xf32>
    %71 = vector.shape_cast %70 : vector<32xf32> to vector<1x32xf32>
    %cst_55 = arith.constant 2.560000e+02 : f32
    %72 = vector.broadcast %cst_55 : f32 to vector<1x32xf32>
    %73 = arith.divf %71, %72 : vector<1x32xf32>
    %74 = vector.broadcast %73 : vector<1x32xf32> to vector<256x32xf32>
    %75 = arith.subf %39, %74 : vector<256x32xf32>
    %76 = arith.mulf %75, %75 : vector<256x32xf32>
    %cst_56 = arith.constant dense<0.000000e+00> : vector<32xf32>
    %77 = vector.multi_reduction <add>, %76, %cst_56 [0] : vector<256x32xf32> to vector<32xf32>
    %78 = vector.shape_cast %77 : vector<32xf32> to vector<1x32xf32>
    %cst_57 = arith.constant 2.560000e+02 : f32
    %79 = vector.broadcast %cst_57 : f32 to vector<1x32xf32>
    %80 = arith.divf %78, %79 : vector<1x32xf32>
    %cst_58 = arith.constant 9.99999974E-6 : f32
    %81 = vector.broadcast %cst_58 : f32 to vector<1x32xf32>
    %82 = arith.addf %80, %81 : vector<1x32xf32>
    %83 = math.rsqrt %82 : vector<1x32xf32>
    %84 = vector.broadcast %83 : vector<1x32xf32> to vector<256x32xf32>
    %85 = arith.mulf %75, %84 : vector<256x32xf32>
    %86 = vector.broadcast %67 : vector<1x32xf32> to vector<256x32xf32>
    %87 = arith.mulf %85, %86 : vector<256x32xf32>
    %88 = vector.broadcast %69 : vector<1x32xf32> to vector<256x32xf32>
    %89 = arith.addf %87, %88 : vector<256x32xf32>
    %cst_59 = arith.constant 0.000000e+00 : f32
    %90 = vector.broadcast %cst_59 : f32 to vector<256x32xf32>
    %91 = arith.maximumf %89, %90 : vector<256x32xf32>
    %92 = tpu.iota {dimensions = array<i32: 1>} : vector<1x64xi32>
    %93 = vector.shape_cast %65 : vector<256x32xf32> to vector<16x16x32xf32>
    %c1_60 = arith.constant 1 : index
    %c8_61 = arith.constant 8 : index
    %c0_62 = arith.constant 0 : index
    %94 = vector.load %arg15[%c1_60, %c8_61, %c0_62] : memref<18x32x32xf32, #tpu.memory_space<vmem>>, vector<16x16x32xf32>
    tpu.vector_store %arg15[%c1_60, %c8_61, %c0_62], %93 {strides = array<i32>} : memref<18x32x32xf32, #tpu.memory_space<vmem>>, vector<16x16x32xf32>,
    %c0_63 = arith.constant 0 : index
    %c7_64 = arith.constant 7 : index
    %c0_65 = arith.constant 0 : index
    %95 = vector.load %arg15[%c0_63, %c7_64, %c0_65] : memref<18x32x32xf32, #tpu.memory_space<vmem>>, vector<18x16x32xf32>
    %96 = arith.truncf %95 : vector<18x16x32xf32> to vector<18x16x32xbf16>
    %c0_66 = arith.constant 0 : index
    %c8_67 = arith.constant 8 : index
    %c0_68 = arith.constant 0 : index
    %97 = vector.load %arg15[%c0_66, %c8_67, %c0_68] : memref<18x32x32xf32, #tpu.memory_space<vmem>>, vector<18x16x32xf32>
    %98 = arith.truncf %97 : vector<18x16x32xf32> to vector<18x16x32xbf16>
    %c0_69 = arith.constant 0 : index
    %c9_70 = arith.constant 9 : index
    %c0_71 = arith.constant 0 : index
    %99 = vector.load %arg15[%c0_69, %c9_70, %c0_71] : memref<18x32x32xf32, #tpu.memory_space<vmem>>, vector<18x16x32xf32>
    %100 = arith.truncf %99 : vector<18x16x32xf32> to vector<18x16x32xbf16>
    %101 = vector.extract_strided_slice %96 {offsets = [0, 0, 0], sizes = [16, 16, 32], strides = [1, 1, 1]} : vector<18x16x32xbf16> to vector<16x16x32xbf16>
    %102 = vector.extract_strided_slice %98 {offsets = [0, 0, 0], sizes = [16, 16, 32], strides = [1, 1, 1]} : vector<18x16x32xbf16> to vector<16x16x32xbf16>
    %103 = vector.extract_strided_slice %100 {offsets = [0, 0, 0], sizes = [16, 16, 32], strides = [1, 1, 1]} : vector<18x16x32xbf16> to vector<16x16x32xbf16>
    %104 = vector.extract_strided_slice %96 {offsets = [1, 0, 0], sizes = [16, 16, 32], strides = [1, 1, 1]} : vector<18x16x32xbf16> to vector<16x16x32xbf16>
    %105 = vector.extract_strided_slice %98 {offsets = [1, 0, 0], sizes = [16, 16, 32], strides = [1, 1, 1]} : vector<18x16x32xbf16> to vector<16x16x32xbf16>
    %106 = vector.extract_strided_slice %100 {offsets = [1, 0, 0], sizes = [16, 16, 32], strides = [1, 1, 1]} : vector<18x16x32xbf16> to vector<16x16x32xbf16>
    %107 = vector.extract_strided_slice %96 {offsets = [2, 0, 0], sizes = [16, 16, 32], strides = [1, 1, 1]} : vector<18x16x32xbf16> to vector<16x16x32xbf16>
    %108 = vector.extract_strided_slice %98 {offsets = [2, 0, 0], sizes = [16, 16, 32], strides = [1, 1, 1]} : vector<18x16x32xbf16> to vector<16x16x32xbf16>
    %109 = vector.extract_strided_slice %100 {offsets = [2, 0, 0], sizes = [16, 16, 32], strides = [1, 1, 1]} : vector<18x16x32xbf16> to vector<16x16x32xbf16>
    %110 = tpu.concatenate %101, %102, %103, %104, %105, %106, %107, %108, %109 in 2 : vector<16x16x32xbf16>, vector<16x16x32xbf16>, vector<16x16x32xbf16>, vector<16x16x32xbf16>, vector<16x16x32xbf16>, vector<16x16x32xbf16>, vector<16x16x32xbf16>, vector<16x16x32xbf16>, vector<16x16x32xbf16> -> vector<16x16x288xbf16>
    %111 = vector.shape_cast %110 : vector<16x16x288xbf16> to vector<256x288xbf16>
    %c1_72 = arith.constant 1 : index
    %c0_73 = arith.constant 0 : index
    %c0_74 = arith.constant 0 : index
    %112 = vector.load %arg2[%c1_72, %c0_73, %c0_74] : memref<2x288x32xbf16, #tpu.memory_space<vmem>>, vector<1x288x32xbf16>
    %113 = vector.shape_cast %112 : vector<1x288x32xbf16> to vector<288x32xbf16>
    %cst_75 = arith.constant dense<0.000000e+00> : vector<256x32xf32>
    %114 = tpu.matmul %111, %113, %cst_75 {dimension_numbers = #tpu.dot_dimension_numbers<[1], [0], [0], [1], [0, 0, 1, 1], [], []>} : vector<256x288xbf16>, vector<288x32xbf16>, vector<256x32xf32> -> vector<256x32xf32>
    %c1_76 = arith.constant 1 : index
    %c0_77 = arith.constant 0 : index
    %c0_78 = arith.constant 0 : index
    %115 = vector.load %arg3[%c1_76, %c0_77, %c0_78] : memref<2x1x32xf32, #tpu.memory_space<vmem>>, vector<1x1x32xf32>
    %116 = vector.shape_cast %115 : vector<1x1x32xf32> to vector<1x32xf32>
    %117 = vector.broadcast %116 : vector<1x32xf32> to vector<256x32xf32>
    %118 = arith.addf %114, %117 : vector<256x32xf32>
    %c1_79 = arith.constant 1 : index
    %c0_80 = arith.constant 0 : index
    %c0_81 = arith.constant 0 : index
    %119 = vector.load %arg4[%c1_79, %c0_80, %c0_81] : memref<2x1x32xf32, #tpu.memory_space<vmem>>, vector<1x1x32xf32>
    %120 = vector.shape_cast %119 : vector<1x1x32xf32> to vector<1x32xf32>
    %c1_82 = arith.constant 1 : index
    %c0_83 = arith.constant 0 : index
    %c0_84 = arith.constant 0 : index
    %121 = vector.load %arg5[%c1_82, %c0_83, %c0_84] : memref<2x1x32xf32, #tpu.memory_space<vmem>>, vector<1x1x32xf32>
    %122 = vector.shape_cast %121 : vector<1x1x32xf32> to vector<1x32xf32>
    %cst_85 = arith.constant dense<0.000000e+00> : vector<32xf32>
    %123 = vector.multi_reduction <add>, %118, %cst_85 [0] : vector<256x32xf32> to vector<32xf32>
    %124 = vector.shape_cast %123 : vector<32xf32> to vector<1x32xf32>
    %cst_86 = arith.constant 2.560000e+02 : f32
    %125 = vector.broadcast %cst_86 : f32 to vector<1x32xf32>
    %126 = arith.divf %124, %125 : vector<1x32xf32>
    %127 = vector.broadcast %126 : vector<1x32xf32> to vector<256x32xf32>
    %128 = arith.subf %118, %127 : vector<256x32xf32>
    %129 = arith.mulf %128, %128 : vector<256x32xf32>
    %cst_87 = arith.constant dense<0.000000e+00> : vector<32xf32>
    %130 = vector.multi_reduction <add>, %129, %cst_87 [0] : vector<256x32xf32> to vector<32xf32>
    %131 = vector.shape_cast %130 : vector<32xf32> to vector<1x32xf32>
    %cst_88 = arith.constant 2.560000e+02 : f32
    %132 = vector.broadcast %cst_88 : f32 to vector<1x32xf32>
    %133 = arith.divf %131, %132 : vector<1x32xf32>
    %cst_89 = arith.constant 9.99999974E-6 : f32
    %134 = vector.broadcast %cst_89 : f32 to vector<1x32xf32>
    %135 = arith.addf %133, %134 : vector<1x32xf32>
    %136 = math.rsqrt %135 : vector<1x32xf32>
    %137 = vector.broadcast %136 : vector<1x32xf32> to vector<256x32xf32>
    %138 = arith.mulf %128, %137 : vector<256x32xf32>
    %139 = vector.broadcast %120 : vector<1x32xf32> to vector<256x32xf32>
    %140 = arith.mulf %138, %139 : vector<256x32xf32>
    %141 = vector.broadcast %122 : vector<1x32xf32> to vector<256x32xf32>
    %142 = arith.addf %140, %141 : vector<256x32xf32>
    %cst_90 = arith.constant 0.000000e+00 : f32
    %143 = vector.broadcast %cst_90 : f32 to vector<256x32xf32>
    %144 = arith.maximumf %142, %143 : vector<256x32xf32>
    %145 = vector.shape_cast %144 : vector<256x32xf32> to vector<16x16x32xf32>
    %c1_91 = arith.constant 1 : index
    %c8_92 = arith.constant 8 : index
    %c0_93 = arith.constant 0 : index
    %146 = vector.load %arg15[%c1_91, %c8_92, %c0_93] : memref<18x32x32xf32, #tpu.memory_space<vmem>>, vector<16x16x32xf32>
    tpu.vector_store %arg15[%c1_91, %c8_92, %c0_93], %145 {strides = array<i32>} : memref<18x32x32xf32, #tpu.memory_space<vmem>>, vector<16x16x32xf32>,
    %c0_94 = arith.constant 0 : index
    %c7_95 = arith.constant 7 : index
    %c0_96 = arith.constant 0 : index
    %147 = vector.load %arg15[%c0_94, %c7_95, %c0_96] : memref<18x32x32xf32, #tpu.memory_space<vmem>>, vector<18x16x32xf32>
    %148 = arith.truncf %147 : vector<18x16x32xf32> to vector<18x16x32xbf16>
    %c0_97 = arith.constant 0 : index
    %c8_98 = arith.constant 8 : index
    %c0_99 = arith.constant 0 : index
    %149 = vector.load %arg15[%c0_97, %c8_98, %c0_99] : memref<18x32x32xf32, #tpu.memory_space<vmem>>, vector<18x16x32xf32>
    %150 = arith.truncf %149 : vector<18x16x32xf32> to vector<18x16x32xbf16>
    %c0_100 = arith.constant 0 : index
    %c9_101 = arith.constant 9 : index
    %c0_102 = arith.constant 0 : index
    %151 = vector.load %arg15[%c0_100, %c9_101, %c0_102] : memref<18x32x32xf32, #tpu.memory_space<vmem>>, vector<18x16x32xf32>
    %152 = arith.truncf %151 : vector<18x16x32xf32> to vector<18x16x32xbf16>
    %153 = vector.extract_strided_slice %148 {offsets = [0, 0, 0], sizes = [16, 16, 32], strides = [1, 1, 1]} : vector<18x16x32xbf16> to vector<16x16x32xbf16>
    %154 = vector.extract_strided_slice %150 {offsets = [0, 0, 0], sizes = [16, 16, 32], strides = [1, 1, 1]} : vector<18x16x32xbf16> to vector<16x16x32xbf16>
    %155 = vector.extract_strided_slice %152 {offsets = [0, 0, 0], sizes = [16, 16, 32], strides = [1, 1, 1]} : vector<18x16x32xbf16> to vector<16x16x32xbf16>
    %156 = vector.extract_strided_slice %148 {offsets = [1, 0, 0], sizes = [16, 16, 32], strides = [1, 1, 1]} : vector<18x16x32xbf16> to vector<16x16x32xbf16>
    %157 = vector.extract_strided_slice %150 {offsets = [1, 0, 0], sizes = [16, 16, 32], strides = [1, 1, 1]} : vector<18x16x32xbf16> to vector<16x16x32xbf16>
    %158 = vector.extract_strided_slice %152 {offsets = [1, 0, 0], sizes = [16, 16, 32], strides = [1, 1, 1]} : vector<18x16x32xbf16> to vector<16x16x32xbf16>
    %159 = vector.extract_strided_slice %148 {offsets = [2, 0, 0], sizes = [16, 16, 32], strides = [1, 1, 1]} : vector<18x16x32xbf16> to vector<16x16x32xbf16>
    %160 = vector.extract_strided_slice %150 {offsets = [2, 0, 0], sizes = [16, 16, 32], strides = [1, 1, 1]} : vector<18x16x32xbf16> to vector<16x16x32xbf16>
    %161 = vector.extract_strided_slice %152 {offsets = [2, 0, 0], sizes = [16, 16, 32], strides = [1, 1, 1]} : vector<18x16x32xbf16> to vector<16x16x32xbf16>
    %162 = tpu.concatenate %153, %154, %155, %156, %157, %158, %159, %160, %161 in 2 : vector<16x16x32xbf16>, vector<16x16x32xbf16>, vector<16x16x32xbf16>, vector<16x16x32xbf16>, vector<16x16x32xbf16>, vector<16x16x32xbf16>, vector<16x16x32xbf16>, vector<16x16x32xbf16>, vector<16x16x32xbf16> -> vector<16x16x288xbf16>
    %163 = vector.shape_cast %162 : vector<16x16x288xbf16> to vector<256x288xbf16>
    %c0_103 = arith.constant 0 : index
    %c0_104 = arith.constant 0 : index
    %164 = vector.load %arg10[%c0_103, %c0_104] : memref<288x64xbf16, #tpu.memory_space<vmem>>, vector<288x64xbf16>
    %cst_105 = arith.constant dense<0.000000e+00> : vector<256x64xf32>
    %165 = tpu.matmul %163, %164, %cst_105 {dimension_numbers = #tpu.dot_dimension_numbers<[1], [0], [0], [1], [0, 0, 1, 1], [], []>} : vector<256x288xbf16>, vector<288x64xbf16>, vector<256x64xf32> -> vector<256x64xf32>
    %c0_106 = arith.constant 0 : index
    %c0_107 = arith.constant 0 : index
    %166 = vector.load %arg11[%c0_106, %c0_107] : memref<1x64xf32, #tpu.memory_space<vmem>>, vector<1x64xf32>
    %167 = vector.broadcast %166 : vector<1x64xf32> to vector<256x64xf32>
    %168 = arith.addf %165, %167 : vector<256x64xf32>
    %c32_i32 = arith.constant 32 : i32
    %169 = vector.broadcast %c32_i32 : i32 to vector<1x64xi32>
    %170 = arith.cmpi sge, %92, %169 : vector<1x64xi32>
    %c36_i32 = arith.constant 36 : i32
    %171 = vector.broadcast %c36_i32 : i32 to vector<1x64xi32>
    %172 = arith.cmpi slt, %92, %171 : vector<1x64xi32>
    %173 = arith.andi %170, %172 : vector<1x64xi1>
    %174 = arith.negf %168 : vector<256x64xf32>
    %175 = math.exp %174 : vector<256x64xf32>
    %cst_108 = arith.constant 1.000000e+00 : f32
    %176 = vector.broadcast %cst_108 : f32 to vector<256x64xf32>
    %177 = arith.addf %176, %175 : vector<256x64xf32>
    %178 = arith.divf %176, %177 : vector<256x64xf32>
    %179 = vector.shape_cast %173 : vector<1x64xi1> to vector<1x64xi1>
    %180 = vector.broadcast %179 : vector<1x64xi1> to vector<256x64xi1>
    %181 = arith.select %180, %178, %168 : vector<256x64xi1>, vector<256x64xf32>
    %182 = vector.shape_cast %91 : vector<256x32xf32> to vector<16x16x32xf32>
    %c1_109 = arith.constant 1 : index
    %c8_110 = arith.constant 8 : index
    %c0_111 = arith.constant 0 : index
    %183 = vector.load %arg15[%c1_109, %c8_110, %c0_111] : memref<18x32x32xf32, #tpu.memory_space<vmem>>, vector<16x16x32xf32>
    tpu.vector_store %arg15[%c1_109, %c8_110, %c0_111], %182 {strides = array<i32>} : memref<18x32x32xf32, #tpu.memory_space<vmem>>, vector<16x16x32xf32>,
    %c0_112 = arith.constant 0 : index
    %c7_113 = arith.constant 7 : index
    %c0_114 = arith.constant 0 : index
    %184 = vector.load %arg15[%c0_112, %c7_113, %c0_114] : memref<18x32x32xf32, #tpu.memory_space<vmem>>, vector<18x16x32xf32>
    %185 = arith.truncf %184 : vector<18x16x32xf32> to vector<18x16x32xbf16>
    %c0_115 = arith.constant 0 : index
    %c8_116 = arith.constant 8 : index
    %c0_117 = arith.constant 0 : index
    %186 = vector.load %arg15[%c0_115, %c8_116, %c0_117] : memref<18x32x32xf32, #tpu.memory_space<vmem>>, vector<18x16x32xf32>
    %187 = arith.truncf %186 : vector<18x16x32xf32> to vector<18x16x32xbf16>
    %c0_118 = arith.constant 0 : index
    %c9_119 = arith.constant 9 : index
    %c0_120 = arith.constant 0 : index
    %188 = vector.load %arg15[%c0_118, %c9_119, %c0_120] : memref<18x32x32xf32, #tpu.memory_space<vmem>>, vector<18x16x32xf32>
    %189 = arith.truncf %188 : vector<18x16x32xf32> to vector<18x16x32xbf16>
    %190 = vector.extract_strided_slice %185 {offsets = [0, 0, 0], sizes = [16, 16, 32], strides = [1, 1, 1]} : vector<18x16x32xbf16> to vector<16x16x32xbf16>
    %191 = vector.extract_strided_slice %187 {offsets = [0, 0, 0], sizes = [16, 16, 32], strides = [1, 1, 1]} : vector<18x16x32xbf16> to vector<16x16x32xbf16>
    %192 = vector.extract_strided_slice %189 {offsets = [0, 0, 0], sizes = [16, 16, 32], strides = [1, 1, 1]} : vector<18x16x32xbf16> to vector<16x16x32xbf16>
    %193 = vector.extract_strided_slice %185 {offsets = [1, 0, 0], sizes = [16, 16, 32], strides = [1, 1, 1]} : vector<18x16x32xbf16> to vector<16x16x32xbf16>
    %194 = vector.extract_strided_slice %187 {offsets = [1, 0, 0], sizes = [16, 16, 32], strides = [1, 1, 1]} : vector<18x16x32xbf16> to vector<16x16x32xbf16>
    %195 = vector.extract_strided_slice %189 {offsets = [1, 0, 0], sizes = [16, 16, 32], strides = [1, 1, 1]} : vector<18x16x32xbf16> to vector<16x16x32xbf16>
    %196 = vector.extract_strided_slice %185 {offsets = [2, 0, 0], sizes = [16, 16, 32], strides = [1, 1, 1]} : vector<18x16x32xbf16> to vector<16x16x32xbf16>
    %197 = vector.extract_strided_slice %187 {offsets = [2, 0, 0], sizes = [16, 16, 32], strides = [1, 1, 1]} : vector<18x16x32xbf16> to vector<16x16x32xbf16>
    %198 = vector.extract_strided_slice %189 {offsets = [2, 0, 0], sizes = [16, 16, 32], strides = [1, 1, 1]} : vector<18x16x32xbf16> to vector<16x16x32xbf16>
    %199 = tpu.concatenate %190, %191, %192, %193, %194, %195, %196, %197, %198 in 2 : vector<16x16x32xbf16>, vector<16x16x32xbf16>, vector<16x16x32xbf16>, vector<16x16x32xbf16>, vector<16x16x32xbf16>, vector<16x16x32xbf16>, vector<16x16x32xbf16>, vector<16x16x32xbf16>, vector<16x16x32xbf16> -> vector<16x16x288xbf16>
    %200 = vector.shape_cast %199 : vector<16x16x288xbf16> to vector<256x288xbf16>
    %c1_121 = arith.constant 1 : index
    %c0_122 = arith.constant 0 : index
    %c0_123 = arith.constant 0 : index
    %201 = vector.load %arg6[%c1_121, %c0_122, %c0_123] : memref<2x288x32xbf16, #tpu.memory_space<vmem>>, vector<1x288x32xbf16>
    %202 = vector.shape_cast %201 : vector<1x288x32xbf16> to vector<288x32xbf16>
    %cst_124 = arith.constant dense<0.000000e+00> : vector<256x32xf32>
    %203 = tpu.matmul %200, %202, %cst_124 {dimension_numbers = #tpu.dot_dimension_numbers<[1], [0], [0], [1], [0, 0, 1, 1], [], []>} : vector<256x288xbf16>, vector<288x32xbf16>, vector<256x32xf32> -> vector<256x32xf32>
    %c1_125 = arith.constant 1 : index
    %c0_126 = arith.constant 0 : index
    %c0_127 = arith.constant 0 : index
    %204 = vector.load %arg7[%c1_125, %c0_126, %c0_127] : memref<2x1x32xf32, #tpu.memory_space<vmem>>, vector<1x1x32xf32>
    %205 = vector.shape_cast %204 : vector<1x1x32xf32> to vector<1x32xf32>
    %206 = vector.broadcast %205 : vector<1x32xf32> to vector<256x32xf32>
    %207 = arith.addf %203, %206 : vector<256x32xf32>
    %c1_128 = arith.constant 1 : index
    %c0_129 = arith.constant 0 : index
    %c0_130 = arith.constant 0 : index
    %208 = vector.load %arg8[%c1_128, %c0_129, %c0_130] : memref<2x1x32xf32, #tpu.memory_space<vmem>>, vector<1x1x32xf32>
    %209 = vector.shape_cast %208 : vector<1x1x32xf32> to vector<1x32xf32>
    %c1_131 = arith.constant 1 : index
    %c0_132 = arith.constant 0 : index
    %c0_133 = arith.constant 0 : index
    %210 = vector.load %arg9[%c1_131, %c0_132, %c0_133] : memref<2x1x32xf32, #tpu.memory_space<vmem>>, vector<1x1x32xf32>
    %211 = vector.shape_cast %210 : vector<1x1x32xf32> to vector<1x32xf32>
    %cst_134 = arith.constant dense<0.000000e+00> : vector<32xf32>
    %212 = vector.multi_reduction <add>, %207, %cst_134 [0] : vector<256x32xf32> to vector<32xf32>
    %213 = vector.shape_cast %212 : vector<32xf32> to vector<1x32xf32>
    %cst_135 = arith.constant 2.560000e+02 : f32
    %214 = vector.broadcast %cst_135 : f32 to vector<1x32xf32>
    %215 = arith.divf %213, %214 : vector<1x32xf32>
    %216 = vector.broadcast %215 : vector<1x32xf32> to vector<256x32xf32>
    %217 = arith.subf %207, %216 : vector<256x32xf32>
    %218 = arith.mulf %217, %217 : vector<256x32xf32>
    %cst_136 = arith.constant dense<0.000000e+00> : vector<32xf32>
    %219 = vector.multi_reduction <add>, %218, %cst_136 [0] : vector<256x32xf32> to vector<32xf32>
    %220 = vector.shape_cast %219 : vector<32xf32> to vector<1x32xf32>
    %cst_137 = arith.constant 2.560000e+02 : f32
    %221 = vector.broadcast %cst_137 : f32 to vector<1x32xf32>
    %222 = arith.divf %220, %221 : vector<1x32xf32>
    %cst_138 = arith.constant 9.99999974E-6 : f32
    %223 = vector.broadcast %cst_138 : f32 to vector<1x32xf32>
    %224 = arith.addf %222, %223 : vector<1x32xf32>
    %225 = math.rsqrt %224 : vector<1x32xf32>
    %226 = vector.broadcast %225 : vector<1x32xf32> to vector<256x32xf32>
    %227 = arith.mulf %217, %226 : vector<256x32xf32>
    %228 = vector.broadcast %209 : vector<1x32xf32> to vector<256x32xf32>
    %229 = arith.mulf %227, %228 : vector<256x32xf32>
    %230 = vector.broadcast %211 : vector<1x32xf32> to vector<256x32xf32>
    %231 = arith.addf %229, %230 : vector<256x32xf32>
    %cst_139 = arith.constant 0.000000e+00 : f32
    %232 = vector.broadcast %cst_139 : f32 to vector<256x32xf32>
    %233 = arith.maximumf %231, %232 : vector<256x32xf32>
    %234 = vector.shape_cast %233 : vector<256x32xf32> to vector<16x16x32xf32>
    %c1_140 = arith.constant 1 : index
    %c8_141 = arith.constant 8 : index
    %c0_142 = arith.constant 0 : index
    %235 = vector.load %arg15[%c1_140, %c8_141, %c0_142] : memref<18x32x32xf32, #tpu.memory_space<vmem>>, vector<16x16x32xf32>
    tpu.vector_store %arg15[%c1_140, %c8_141, %c0_142], %234 {strides = array<i32>} : memref<18x32x32xf32, #tpu.memory_space<vmem>>, vector<16x16x32xf32>,
    %c0_143 = arith.constant 0 : index
    %c7_144 = arith.constant 7 : index
    %c0_145 = arith.constant 0 : index
    %236 = vector.load %arg15[%c0_143, %c7_144, %c0_145] : memref<18x32x32xf32, #tpu.memory_space<vmem>>, vector<18x16x32xf32>
    %237 = arith.truncf %236 : vector<18x16x32xf32> to vector<18x16x32xbf16>
    %c0_146 = arith.constant 0 : index
    %c8_147 = arith.constant 8 : index
    %c0_148 = arith.constant 0 : index
    %238 = vector.load %arg15[%c0_146, %c8_147, %c0_148] : memref<18x32x32xf32, #tpu.memory_space<vmem>>, vector<18x16x32xf32>
    %239 = arith.truncf %238 : vector<18x16x32xf32> to vector<18x16x32xbf16>
    %c0_149 = arith.constant 0 : index
    %c9_150 = arith.constant 9 : index
    %c0_151 = arith.constant 0 : index
    %240 = vector.load %arg15[%c0_149, %c9_150, %c0_151] : memref<18x32x32xf32, #tpu.memory_space<vmem>>, vector<18x16x32xf32>
    %241 = arith.truncf %240 : vector<18x16x32xf32> to vector<18x16x32xbf16>
    %242 = vector.extract_strided_slice %237 {offsets = [0, 0, 0], sizes = [16, 16, 32], strides = [1, 1, 1]} : vector<18x16x32xbf16> to vector<16x16x32xbf16>
    %243 = vector.extract_strided_slice %239 {offsets = [0, 0, 0], sizes = [16, 16, 32], strides = [1, 1, 1]} : vector<18x16x32xbf16> to vector<16x16x32xbf16>
    %244 = vector.extract_strided_slice %241 {offsets = [0, 0, 0], sizes = [16, 16, 32], strides = [1, 1, 1]} : vector<18x16x32xbf16> to vector<16x16x32xbf16>
    %245 = vector.extract_strided_slice %237 {offsets = [1, 0, 0], sizes = [16, 16, 32], strides = [1, 1, 1]} : vector<18x16x32xbf16> to vector<16x16x32xbf16>
    %246 = vector.extract_strided_slice %239 {offsets = [1, 0, 0], sizes = [16, 16, 32], strides = [1, 1, 1]} : vector<18x16x32xbf16> to vector<16x16x32xbf16>
    %247 = vector.extract_strided_slice %241 {offsets = [1, 0, 0], sizes = [16, 16, 32], strides = [1, 1, 1]} : vector<18x16x32xbf16> to vector<16x16x32xbf16>
    %248 = vector.extract_strided_slice %237 {offsets = [2, 0, 0], sizes = [16, 16, 32], strides = [1, 1, 1]} : vector<18x16x32xbf16> to vector<16x16x32xbf16>
    %249 = vector.extract_strided_slice %239 {offsets = [2, 0, 0], sizes = [16, 16, 32], strides = [1, 1, 1]} : vector<18x16x32xbf16> to vector<16x16x32xbf16>
    %250 = vector.extract_strided_slice %241 {offsets = [2, 0, 0], sizes = [16, 16, 32], strides = [1, 1, 1]} : vector<18x16x32xbf16> to vector<16x16x32xbf16>
    %251 = tpu.concatenate %242, %243, %244, %245, %246, %247, %248, %249, %250 in 2 : vector<16x16x32xbf16>, vector<16x16x32xbf16>, vector<16x16x32xbf16>, vector<16x16x32xbf16>, vector<16x16x32xbf16>, vector<16x16x32xbf16>, vector<16x16x32xbf16>, vector<16x16x32xbf16>, vector<16x16x32xbf16> -> vector<16x16x288xbf16>
    %252 = vector.shape_cast %251 : vector<16x16x288xbf16> to vector<256x288xbf16>
    %c0_152 = arith.constant 0 : index
    %c0_153 = arith.constant 0 : index
    %253 = vector.load %arg12[%c0_152, %c0_153] : memref<288x64xbf16, #tpu.memory_space<vmem>>, vector<288x64xbf16>
    %cst_154 = arith.constant dense<0.000000e+00> : vector<256x64xf32>
    %254 = tpu.matmul %252, %253, %cst_154 {dimension_numbers = #tpu.dot_dimension_numbers<[1], [0], [0], [1], [0, 0, 1, 1], [], []>} : vector<256x288xbf16>, vector<288x64xbf16>, vector<256x64xf32> -> vector<256x64xf32>
    %c0_155 = arith.constant 0 : index
    %c0_156 = arith.constant 0 : index
    %255 = vector.load %arg13[%c0_155, %c0_156] : memref<1x64xf32, #tpu.memory_space<vmem>>, vector<1x64xf32>
    %256 = vector.broadcast %255 : vector<1x64xf32> to vector<256x64xf32>
    %257 = arith.addf %254, %256 : vector<256x64xf32>
    %c1_i32 = arith.constant 1 : i32
    %258 = vector.broadcast %c1_i32 : i32 to vector<1x64xi32>
    %259 = arith.cmpi sge, %92, %258 : vector<1x64xi32>
    %c17_i32 = arith.constant 17 : i32
    %260 = vector.broadcast %c17_i32 : i32 to vector<1x64xi32>
    %261 = arith.cmpi slt, %92, %260 : vector<1x64xi32>
    %262 = arith.andi %259, %261 : vector<1x64xi1>
    %cst_157 = arith.constant 0.000000e+00 : f32
    %263 = vector.broadcast %cst_157 : f32 to vector<256x64xf32>
    %264 = arith.maximumf %257, %263 : vector<256x64xf32>
    %265 = vector.shape_cast %262 : vector<1x64xi1> to vector<1x64xi1>
    %266 = vector.broadcast %265 : vector<1x64xi1> to vector<256x64xi1>
    %267 = arith.select %266, %264, %257 : vector<256x64xi1>, vector<256x64xf32>
    %268 = tpu.concatenate %181, %267 in 1 : vector<256x64xf32>, vector<256x64xf32> -> vector<256x128xf32>
    %c0_158 = arith.constant 0 : index
    %c0_159 = arith.constant 0 : index
    %c0_160 = arith.constant 0 : index
    %269 = vector.load %arg14[%c0_158, %c0_159, %c0_160] : memref<1x256x128xf32, #tpu.memory_space<vmem>>, vector<1x256x128xf32>
    %270 = vector.shape_cast %269 : vector<1x256x128xf32> to vector<256x128xf32>
    %271 = vector.shape_cast %268 : vector<256x128xf32> to vector<1x256x128xf32>
    tpu.vector_store %arg14[%c0_158, %c0_159, %c0_160], %271 {strides = array<i32>} : memref<1x256x128xf32, #tpu.memory_space<vmem>>, vector<1x256x128xf32>,
    return
  }
  func.func @transform_0(%arg0: i32) -> (i32, i32, i32, i32) {
    %c0_i32 = arith.constant 0 : i32
    %c0_i32_0 = arith.constant 0 : i32
    %c0_i32_1 = arith.constant 0 : i32
    %c0_i32_2 = arith.constant 0 : i32
    return %arg0, %c0_i32, %c0_i32_0, %c0_i32_1 : i32, i32, i32, i32
  }
  func.func @transform_1(%arg0: i32) -> (i32, i32, i32) {
    %c0_i32 = arith.constant 0 : i32
    %c0_i32_0 = arith.constant 0 : i32
    %c0_i32_1 = arith.constant 0 : i32
    %c0_i32_2 = arith.constant 0 : i32
    return %c0_i32, %c0_i32_0, %c0_i32_1 : i32, i32, i32
  }
  func.func @transform_2(%arg0: i32) -> (i32, i32, i32) {
    %c0_i32 = arith.constant 0 : i32
    %c0_i32_0 = arith.constant 0 : i32
    %c0_i32_1 = arith.constant 0 : i32
    %c0_i32_2 = arith.constant 0 : i32
    return %c0_i32, %c0_i32_0, %c0_i32_1 : i32, i32, i32
  }
  func.func @transform_3(%arg0: i32) -> (i32, i32, i32) {
    %c0_i32 = arith.constant 0 : i32
    %c0_i32_0 = arith.constant 0 : i32
    %c0_i32_1 = arith.constant 0 : i32
    %c0_i32_2 = arith.constant 0 : i32
    return %c0_i32, %c0_i32_0, %c0_i32_1 : i32, i32, i32
  }
  func.func @transform_4(%arg0: i32) -> (i32, i32, i32) {
    %c0_i32 = arith.constant 0 : i32
    %c0_i32_0 = arith.constant 0 : i32
    %c0_i32_1 = arith.constant 0 : i32
    %c0_i32_2 = arith.constant 0 : i32
    return %c0_i32, %c0_i32_0, %c0_i32_1 : i32, i32, i32
  }
  func.func @transform_5(%arg0: i32) -> (i32, i32, i32) {
    %c0_i32 = arith.constant 0 : i32
    %c0_i32_0 = arith.constant 0 : i32
    %c0_i32_1 = arith.constant 0 : i32
    %c0_i32_2 = arith.constant 0 : i32
    return %c0_i32, %c0_i32_0, %c0_i32_1 : i32, i32, i32
  }
  func.func @transform_6(%arg0: i32) -> (i32, i32, i32) {
    %c0_i32 = arith.constant 0 : i32
    %c0_i32_0 = arith.constant 0 : i32
    %c0_i32_1 = arith.constant 0 : i32
    %c0_i32_2 = arith.constant 0 : i32
    return %c0_i32, %c0_i32_0, %c0_i32_1 : i32, i32, i32
  }
  func.func @transform_7(%arg0: i32) -> (i32, i32, i32) {
    %c0_i32 = arith.constant 0 : i32
    %c0_i32_0 = arith.constant 0 : i32
    %c0_i32_1 = arith.constant 0 : i32
    %c0_i32_2 = arith.constant 0 : i32
    return %c0_i32, %c0_i32_0, %c0_i32_1 : i32, i32, i32
  }
  func.func @transform_8(%arg0: i32) -> (i32, i32, i32) {
    %c0_i32 = arith.constant 0 : i32
    %c0_i32_0 = arith.constant 0 : i32
    %c0_i32_1 = arith.constant 0 : i32
    %c0_i32_2 = arith.constant 0 : i32
    return %c0_i32, %c0_i32_0, %c0_i32_1 : i32, i32, i32
  }
  func.func @transform_9(%arg0: i32) -> (i32, i32) {
    %c0_i32 = arith.constant 0 : i32
    %c0_i32_0 = arith.constant 0 : i32
    %c0_i32_1 = arith.constant 0 : i32
    return %c0_i32, %c0_i32_0 : i32, i32
  }
  func.func @transform_10(%arg0: i32) -> (i32, i32) {
    %c0_i32 = arith.constant 0 : i32
    %c0_i32_0 = arith.constant 0 : i32
    %c0_i32_1 = arith.constant 0 : i32
    return %c0_i32, %c0_i32_0 : i32, i32
  }
  func.func @transform_11(%arg0: i32) -> (i32, i32) {
    %c0_i32 = arith.constant 0 : i32
    %c0_i32_0 = arith.constant 0 : i32
    %c0_i32_1 = arith.constant 0 : i32
    return %c0_i32, %c0_i32_0 : i32, i32
  }
  func.func @transform_12(%arg0: i32) -> (i32, i32) {
    %c0_i32 = arith.constant 0 : i32
    %c0_i32_0 = arith.constant 0 : i32
    %c0_i32_1 = arith.constant 0 : i32
    return %c0_i32, %c0_i32_0 : i32, i32
  }
  func.func @transform_13(%arg0: i32) -> (i32, i32, i32) {
    %c0_i32 = arith.constant 0 : i32
    %c0_i32_0 = arith.constant 0 : i32
    %c0_i32_1 = arith.constant 0 : i32
    return %arg0, %c0_i32, %c0_i32_0 : i32, i32, i32
  }
}

</mosaic_0001>

<llo_original>
// kernel: tpu_custom_call.1
$region0: #{tpu_custom_call.1}
  #allocation0 [shape = 'u32[]', space=smem, size = 0x4, offset = 0x4, fixed_abs, tag = 'smem constant byte address 0x4 - core index']
  #allocation1 [shape = 'u32[72,128]{1,0:T(1,128)}', space=vmem, size = 0x9000, scoped, tag = 'internal scratch']
  #allocation2 [shape = 'f32[18,32,32]{2,1,0:T(8,128)}', space=vmem, size = 0x48000, scoped, tag = 'scratch operand']
  %s0 = inlined_call_operand.vmem [shape: f32[2,16,16,32], index: 0, kind: input, shape index: {}]
  %s1 = inlined_call_operand.vmem [shape: bf16[2,288,32], index: 1, kind: input, shape index: {}]
  %s2 = inlined_call_operand.vmem [shape: f32[2,1,32], index: 2, kind: input, shape index: {}]
  %s3 = inlined_call_operand.vmem [shape: f32[2,1,32], index: 3, kind: input, shape index: {}]
  %s4 = inlined_call_operand.vmem [shape: f32[2,1,32], index: 4, kind: input, shape index: {}]
  %s5 = inlined_call_operand.vmem [shape: bf16[2,288,32], index: 5, kind: input, shape index: {}]
  %s6 = inlined_call_operand.vmem [shape: f32[2,1,32], index: 6, kind: input, shape index: {}]
  %s7 = inlined_call_operand.vmem [shape: f32[2,1,32], index: 7, kind: input, shape index: {}]
  %s8 = inlined_call_operand.vmem [shape: f32[2,1,32], index: 8, kind: input, shape index: {}]
  %s9 = inlined_call_operand.vmem [shape: bf16[288,64], index: 9, kind: input, shape index: {}]
  %s10 = inlined_call_operand.vmem [shape: f32[1,64], index: 10, kind: input, shape index: {}]
  %s11 = inlined_call_operand.vmem [shape: bf16[288,64], index: 11, kind: input, shape index: {}]
  %s12 = inlined_call_operand.vmem [shape: f32[1,64], index: 12, kind: input, shape index: {}]
  %s13 = inlined_call_operand.hbm [shape: f32[2,256,128], index: 13, kind: output, shape index: {}]
  %s14 = sld [smem:[#allocation0]]
  $region85: #{tpu_custom_call.1} parent=0
    _
  %s16 = ssub.s32 1, %s14
  %s17 = scalar_select 0, %s16, %s14
  $region1: #{tpu_custom_call.1} parent=0
    #allocation3 [shape = 'u8[262144]{0}', space=vmem, size = 0x40000, scoped, tag = 'output window, operand 0']
    #allocation4 [shape = 's32[2]{0}', space=sflag, size = 0x8, scoped, tag = 'scoped memory for tpu_custom_call.1']
    %18 = vsyncpa [#allocation4], 0
    %s19 = scalar_lea.sflag [#allocation4], 1
    %20 = vsyncpa %s19, 0
    loop: start=0, step=1, limit=4
    $region2: #{tpu_custom_call.1} parent=1 // loop_pre_header
      _
    $region3: #{tpu_custom_call.1} parent=1 // loop_header
      %s22 = sphi 0, %s26
      %p23 = scmp.ge.s32.totalorder %s22, 4
      %s32 = sphi 0, %s34
      %s35 = sphi 0, %s32
      %s36 = sphi 0, %s35
      %s52 = sphi 0, %s36
      %s56 = sphi 0, %s56
      %s58 = sphi 0, %s56
      %s59 = sphi 0, %s58
      %s73 = sphi 0, %s59
      %s77 = sphi 0, %s77
      %s79 = sphi 0, %s77
      %s80 = sphi 0, %s79
      %s94 = sphi 0, %s80
      %s98 = sphi 0, %s98
      %s100 = sphi 0, %s98
      %s101 = sphi 0, %s100
      %s115 = sphi 0, %s101
      %s119 = sphi 0, %s119
      %s121 = sphi 0, %s119
      %s122 = sphi 0, %s121
      %s136 = sphi 0, %s122
      %s140 = sphi 0, %s140
      %s142 = sphi 0, %s140
      %s143 = sphi 0, %s142
      %s157 = sphi 0, %s143
      %s161 = sphi 0, %s161
      %s163 = sphi 0, %s161
      %s164 = sphi 0, %s163
      %s178 = sphi 0, %s164
      %s182 = sphi 0, %s182
      %s184 = sphi 0, %s182
      %s185 = sphi 0, %s184
      %s199 = sphi 0, %s185
      %s203 = sphi 0, %s203
      %s205 = sphi 0, %s203
      %s206 = sphi 0, %s205
      %s220 = sphi 0, %s206
      %s224 = sphi 0, %s224
      %s226 = sphi 0, %s224
      %s227 = sphi 0, %s226
      %s241 = sphi 0, %s227
      %s245 = sphi 0, %s245
      %s247 = sphi 0, %s245
      %s248 = sphi 0, %s247
      %s262 = sphi 0, %s248
      %s266 = sphi 0, %s266
      %s268 = sphi 0, %s266
      %s269 = sphi 0, %s268
      %s283 = sphi 0, %s269
      %s287 = sphi 0, %s287
      %s289 = sphi 0, %s287
      %s290 = sphi 0, %s289
      %s304 = sphi 0, %s290
      %s310 = sphi 0, %s312
      %s313 = sphi 0, %s310
      %s314 = sphi 0, %s313
      %s330 = sphi 0, %s314
    $region4: #{tpu_custom_call.1} parent=1 // loop_header_branch
      %25 = sbr.rel (%p23) target = $region8
    $region5: #{tpu_custom_call.1} parent=1 // loop_body
      %s27 = ssub.s32 %s22, 1
      %s28 = ssub.s32 %s22, 2
      %s29 = sadd.s32 %s22, 1
      %s30 = ssub.s32 %s22, %s29
      %p31 = scmp.eq.s32.totalorder %s30, 0
      %s33 = sadd.s32 %s32, 1
      %s34 = scalar_select %p31, %s32, %s33
      %p37 = pneg %p31
      %p38 = scmp.eq.s32.totalorder %s22, 1
      %p39 = por %p37, %p38
      %p40 = scmp.ne.s32.totalorder %s32, %s35
      %p41 = scmp.eq.s32.totalorder %s22, 0
      %p42 = por %p40, %p41
      %p43 = scmp.ne.s32.totalorder %s32, %s35
      %p44 = scmp.eq.s32.totalorder %s27, 1
      %p45 = por %p43, %p44
      %p46 = scmp.ne.s32.totalorder %s35, %s36
      %p47 = scmp.eq.s32.totalorder %s27, 0
      %p48 = por %p46, %p47
      %p49 = scmp.ne.s32.totalorder %s35, %s36
      %p50 = scmp.eq.s32.totalorder %s28, 1
      %p51 = por %p49, %p50
      %p53 = scmp.ne.s32.totalorder %s36, %s52
      %p54 = scmp.eq.s32.totalorder %s28, 0
      %p55 = por %p53, %p54
      %s57 = sadd.s32 %s56, 1
      %p60 = scmp.eq.s32.totalorder %s22, 1
      %p61 = scmp.ne.s32.totalorder %s56, %s58
      %p62 = scmp.eq.s32.totalorder %s22, 0
      %p63 = por %p61, %p62
      %p64 = scmp.ne.s32.totalorder %s56, %s58
      %p65 = scmp.eq.s32.totalorder %s27, 1
      %p66 = por %p64, %p65
      %p67 = scmp.ne.s32.totalorder %s58, %s59
      %p68 = scmp.eq.s32.totalorder %s27, 0
      %p69 = por %p67, %p68
      %p70 = scmp.ne.s32.totalorder %s58, %s59
      %p71 = scmp.eq.s32.totalorder %s28, 1
      %p72 = por %p70, %p71
      %p74 = scmp.ne.s32.totalorder %s59, %s73
      %p75 = scmp.eq.s32.totalorder %s28, 0
      %p76 = por %p74, %p75
      %s78 = sadd.s32 %s77, 1
      %p81 = scmp.eq.s32.totalorder %s22, 1
      %p82 = scmp.ne.s32.totalorder %s77, %s79
      %p83 = scmp.eq.s32.totalorder %s22, 0
      %p84 = por %p82, %p83
      %p85 = scmp.ne.s32.totalorder %s77, %s79
      %p86 = scmp.eq.s32.totalorder %s27, 1
      %p87 = por %p85, %p86
      %p88 = scmp.ne.s32.totalorder %s79, %s80
      %p89 = scmp.eq.s32.totalorder %s27, 0
      %p90 = por %p88, %p89
      %p91 = scmp.ne.s32.totalorder %s79, %s80
      %p92 = scmp.eq.s32.totalorder %s28, 1
      %p93 = por %p91, %p92
      %p95 = scmp.ne.s32.totalorder %s80, %s94
      %p96 = scmp.eq.s32.totalorder %s28, 0
      %p97 = por %p95, %p96
      %s99 = sadd.s32 %s98, 1
      %p102 = scmp.eq.s32.totalorder %s22, 1
      %p103 = scmp.ne.s32.totalorder %s98, %s100
      %p104 = scmp.eq.s32.totalorder %s22, 0
      %p105 = por %p103, %p104
      %p106 = scmp.ne.s32.totalorder %s98, %s100
      %p107 = scmp.eq.s32.totalorder %s27, 1
      %p108 = por %p106, %p107
      %p109 = scmp.ne.s32.totalorder %s100, %s101
      %p110 = scmp.eq.s32.totalorder %s27, 0
      %p111 = por %p109, %p110
      %p112 = scmp.ne.s32.totalorder %s100, %s101
      %p113 = scmp.eq.s32.totalorder %s28, 1
      %p114 = por %p112, %p113
      %p116 = scmp.ne.s32.totalorder %s101, %s115
      %p117 = scmp.eq.s32.totalorder %s28, 0
      %p118 = por %p116, %p117
      %s120 = sadd.s32 %s119, 1
      %p123 = scmp.eq.s32.totalorder %s22, 1
      %p124 = scmp.ne.s32.totalorder %s119, %s121
      %p125 = scmp.eq.s32.totalorder %s22, 0
      %p126 = por %p124, %p125
      %p127 = scmp.ne.s32.totalorder %s119, %s121
      %p128 = scmp.eq.s32.totalorder %s27, 1
      %p129 = por %p127, %p128
      %p130 = scmp.ne.s32.totalorder %s121, %s122
      %p131 = scmp.eq.s32.totalorder %s27, 0
      %p132 = por %p130, %p131
      %p133 = scmp.ne.s32.totalorder %s121, %s122
      %p134 = scmp.eq.s32.totalorder %s28, 1
      %p135 = por %p133, %p134
      %p137 = scmp.ne.s32.totalorder %s122, %s136
      %p138 = scmp.eq.s32.totalorder %s28, 0
      %p139 = por %p137, %p138
      %s141 = sadd.s32 %s140, 1
      %p144 = scmp.eq.s32.totalorder %s22, 1
      %p145 = scmp.ne.s32.totalorder %s140, %s142
      %p146 = scmp.eq.s32.totalorder %s22, 0
      %p147 = por %p145, %p146
      %p148 = scmp.ne.s32.totalorder %s140, %s142
      %p149 = scmp.eq.s32.totalorder %s27, 1
      %p150 = por %p148, %p149
      %p151 = scmp.ne.s32.totalorder %s142, %s143
      %p152 = scmp.eq.s32.totalorder %s27, 0
      %p153 = por %p151, %p152
      %p154 = scmp.ne.s32.totalorder %s142, %s143
      %p155 = scmp.eq.s32.totalorder %s28, 1
      %p156 = por %p154, %p155
      %p158 = scmp.ne.s32.totalorder %s143, %s157
      %p159 = scmp.eq.s32.totalorder %s28, 0
      %p160 = por %p158, %p159
      %s162 = sadd.s32 %s161, 1
      %p165 = scmp.eq.s32.totalorder %s22, 1
      %p166 = scmp.ne.s32.totalorder %s161, %s163
      %p167 = scmp.eq.s32.totalorder %s22, 0
      %p168 = por %p166, %p167
      %p169 = scmp.ne.s32.totalorder %s161, %s163
      %p170 = scmp.eq.s32.totalorder %s27, 1
      %p171 = por %p169, %p170
      %p172 = scmp.ne.s32.totalorder %s163, %s164
      %p173 = scmp.eq.s32.totalorder %s27, 0
      %p174 = por %p172, %p173
      %p175 = scmp.ne.s32.totalorder %s163, %s164
      %p176 = scmp.eq.s32.totalorder %s28, 1
      %p177 = por %p175, %p176
      %p179 = scmp.ne.s32.totalorder %s164, %s178
      %p180 = scmp.eq.s32.totalorder %s28, 0
      %p181 = por %p179, %p180
      %s183 = sadd.s32 %s182, 1
      %p186 = scmp.eq.s32.totalorder %s22, 1
      %p187 = scmp.ne.s32.totalorder %s182, %s184
      %p188 = scmp.eq.s32.totalorder %s22, 0
      %p189 = por %p187, %p188
      %p190 = scmp.ne.s32.totalorder %s182, %s184
      %p191 = scmp.eq.s32.totalorder %s27, 1
      %p192 = por %p190, %p191
      %p193 = scmp.ne.s32.totalorder %s184, %s185
      %p194 = scmp.eq.s32.totalorder %s27, 0
      %p195 = por %p193, %p194
      %p196 = scmp.ne.s32.totalorder %s184, %s185
      %p197 = scmp.eq.s32.totalorder %s28, 1
      %p198 = por %p196, %p197
      %p200 = scmp.ne.s32.totalorder %s185, %s199
      %p201 = scmp.eq.s32.totalorder %s28, 0
      %p202 = por %p200, %p201
      %s204 = sadd.s32 %s203, 1
      %p207 = scmp.eq.s32.totalorder %s22, 1
      %p208 = scmp.ne.s32.totalorder %s203, %s205
      %p209 = scmp.eq.s32.totalorder %s22, 0
      %p210 = por %p208, %p209
      %p211 = scmp.ne.s32.totalorder %s203, %s205
      %p212 = scmp.eq.s32.totalorder %s27, 1
      %p213 = por %p211, %p212
      %p214 = scmp.ne.s32.totalorder %s205, %s206
      %p215 = scmp.eq.s32.totalorder %s27, 0
      %p216 = por %p214, %p215
      %p217 = scmp.ne.s32.totalorder %s205, %s206
      %p218 = scmp.eq.s32.totalorder %s28, 1
      %p219 = por %p217, %p218
      %p221 = scmp.ne.s32.totalorder %s206, %s220
      %p222 = scmp.eq.s32.totalorder %s28, 0
      %p223 = por %p221, %p222
      %s225 = sadd.s32 %s224, 1
      %p228 = scmp.eq.s32.totalorder %s22, 1
      %p229 = scmp.ne.s32.totalorder %s224, %s226
      %p230 = scmp.eq.s32.totalorder %s22, 0
      %p231 = por %p229, %p230
      %p232 = scmp.ne.s32.totalorder %s224, %s226
      %p233 = scmp.eq.s32.totalorder %s27, 1
      %p234 = por %p232, %p233
      %p235 = scmp.ne.s32.totalorder %s226, %s227
      %p236 = scmp.eq.s32.totalorder %s27, 0
      %p237 = por %p235, %p236
      %p238 = scmp.ne.s32.totalorder %s226, %s227
      %p239 = scmp.eq.s32.totalorder %s28, 1
      %p240 = por %p238, %p239
      %p242 = scmp.ne.s32.totalorder %s227, %s241
      %p243 = scmp.eq.s32.totalorder %s28, 0
      %p244 = por %p242, %p243
      %s246 = sadd.s32 %s245, 1
      %p249 = scmp.eq.s32.totalorder %s22, 1
      %p250 = scmp.ne.s32.totalorder %s245, %s247
      %p251 = scmp.eq.s32.totalorder %s22, 0
      %p252 = por %p250, %p251
      %p253 = scmp.ne.s32.totalorder %s245, %s247
      %p254 = scmp.eq.s32.totalorder %s27, 1
      %p255 = por %p253, %p254
      %p256 = scmp.ne.s32.totalorder %s247, %s248
      %p257 = scmp.eq.s32.totalorder %s27, 0
      %p258 = por %p256, %p257
      %p259 = scmp.ne.s32.totalorder %s247, %s248
      %p260 = scmp.eq.s32.totalorder %s28, 1
      %p261 = por %p259, %p260
      %p263 = scmp.ne.s32.totalorder %s248, %s262
      %p264 = scmp.eq.s32.totalorder %s28, 0
      %p265 = por %p263, %p264
      %s267 = sadd.s32 %s266, 1
      %p270 = scmp.eq.s32.totalorder %s22, 1
      %p271 = scmp.ne.s32.totalorder %s266, %s268
      %p272 = scmp.eq.s32.totalorder %s22, 0
      %p273 = por %p271, %p272
      %p274 = scmp.ne.s32.totalorder %s266, %s268
      %p275 = scmp.eq.s32.totalorder %s27, 1
      %p276 = por %p274, %p275
      %p277 = scmp.ne.s32.totalorder %s268, %s269
      %p278 = scmp.eq.s32.totalorder %s27, 0
      %p279 = por %p277, %p278
      %p280 = scmp.ne.s32.totalorder %s268, %s269
      %p281 = scmp.eq.s32.totalorder %s28, 1
      %p282 = por %p280, %p281
      %p284 = scmp.ne.s32.totalorder %s269, %s283
      %p285 = scmp.eq.s32.totalorder %s28, 0
      %p286 = por %p284, %p285
      %s288 = sadd.s32 %s287, 1
      %p291 = scmp.eq.s32.totalorder %s22, 1
      %p292 = scmp.ne.s32.totalorder %s287, %s289
      %p293 = scmp.eq.s32.totalorder %s22, 0
      %p294 = por %p292, %p293
      %p295 = scmp.ne.s32.totalorder %s287, %s289
      %p296 = scmp.eq.s32.totalorder %s27, 1
      %p297 = por %p295, %p296
      %p298 = scmp.ne.s32.totalorder %s289, %s290
      %p299 = scmp.eq.s32.totalorder %s27, 0
      %p300 = por %p298, %p299
      %p301 = scmp.ne.s32.totalorder %s289, %s290
      %p302 = scmp.eq.s32.totalorder %s28, 1
      %p303 = por %p301, %p302
      %p305 = scmp.ne.s32.totalorder %s290, %s304
      %p306 = scmp.eq.s32.totalorder %s28, 0
      %p307 = por %p305, %p306
      %s308 = ssub.s32 %s22, %s29
      %p309 = scmp.eq.s32.totalorder %s308, 0
      %s311 = sadd.s32 %s310, 1
      %s312 = scalar_select %p309, %s310, %s311
      %p315 = pneg %p309
      %p316 = scmp.eq.s32.totalorder %s22, 1
      %p317 = por %p315, %p316
      %p318 = scmp.ne.s32.totalorder %s310, %s313
      %p319 = scmp.eq.s32.totalorder %s22, 0
      %p320 = por %p318, %p319
      %p321 = scmp.ne.s32.totalorder %s310, %s313
      %p322 = scmp.eq.s32.totalorder %s27, 1
      %p323 = por %p321, %p322
      %p324 = scmp.ne.s32.totalorder %s313, %s314
      %p325 = scmp.eq.s32.totalorder %s27, 0
      %p326 = por %p324, %p325
      %p327 = scmp.ne.s32.totalorder %s313, %s314
      %p328 = scmp.eq.s32.totalorder %s28, 1
      %p329 = por %p327, %p328
      %p331 = scmp.ne.s32.totalorder %s314, %s330
      %p332 = scmp.eq.s32.totalorder %s28, 0
      %p333 = por %p331, %p332
      %p334 = scmp.le.s32.totalorder 1, %s22
      %p335 = scmp.lt.s32.totalorder %s22, 3
      %p336 = pnand %p334, %p335
      %p337 = pneg %p336
      // Predicated region
      $region9: #{tpu_custom_call.1} parent=5 // pred_check
        _
      $region10: #{tpu_custom_call.1} parent=5 // pred_check_branch
        %339 = sbr.rel (%p336) target = $region12
      $region11: #{tpu_custom_call.1} parent=5 // pred_region
        %s340 = ssub.s32 %s22, 1
        // Predicated region
        $region13: #{tpu_custom_call.1} parent=11 // pred_check
          %p341 = pneg %p69
        $region14: #{tpu_custom_call.1} parent=11 // pred_check_branch
          %343 = sbr.rel (%p341) target = $region16
        $region15: #{tpu_custom_call.1} parent=11 // pred_region
          _
        $region16: #{tpu_custom_call.1} parent=11 // pred_fallthru
          _
        // Predicated region
        $region17: #{tpu_custom_call.1} parent=11 // pred_check
          %p344 = pneg %p90
        $region18: #{tpu_custom_call.1} parent=11 // pred_check_branch
          %346 = sbr.rel (%p344) target = $region20
        $region19: #{tpu_custom_call.1} parent=11 // pred_region
          _
        $region20: #{tpu_custom_call.1} parent=11 // pred_fallthru
          _
        // Predicated region
        $region21: #{tpu_custom_call.1} parent=11 // pred_check
          %p347 = pneg %p111
        $region22: #{tpu_custom_call.1} parent=11 // pred_check_branch
          %349 = sbr.rel (%p347) target = $region24
        $region23: #{tpu_custom_call.1} parent=11 // pred_region
          _
        $region24: #{tpu_custom_call.1} parent=11 // pred_fallthru
          _
        // Predicated region
        $region25: #{tpu_custom_call.1} parent=11 // pred_check
          %p350 = pneg %p132
        $region26: #{tpu_custom_call.1} parent=11 // pred_check_branch
          %352 = sbr.rel (%p350) target = $region28
        $region27: #{tpu_custom_call.1} parent=11 // pred_region
          _
        $region28: #{tpu_custom_call.1} parent=11 // pred_fallthru
          _
        // Predicated region
        $region29: #{tpu_custom_call.1} parent=11 // pred_check
          %p353 = pneg %p153
        $region30: #{tpu_custom_call.1} parent=11 // pred_check_branch
          %355 = sbr.rel (%p353) target = $region32
        $region31: #{tpu_custom_call.1} parent=11 // pred_region
          _
        $region32: #{tpu_custom_call.1} parent=11 // pred_fallthru
          _
        // Predicated region
        $region33: #{tpu_custom_call.1} parent=11 // pred_check
          %p356 = pneg %p174
        $region34: #{tpu_custom_call.1} parent=11 // pred_check_branch
          %358 = sbr.rel (%p356) target = $region36
        $region35: #{tpu_custom_call.1} parent=11 // pred_region
          _
        $region36: #{tpu_custom_call.1} parent=11 // pred_fallthru
          _
        // Predicated region
        $region37: #{tpu_custom_call.1} parent=11 // pred_check
          %p359 = pneg %p195
        $region38: #{tpu_custom_call.1} parent=11 // pred_check_branch
          %361 = sbr.rel (%p359) target = $region40
        $region39: #{tpu_custom_call.1} parent=11 // pred_region
          _
        $region40: #{tpu_custom_call.1} parent=11 // pred_fallthru
          _
        // Predicated region
        $region41: #{tpu_custom_call.1} parent=11 // pred_check
          %p362 = pneg %p216
        $region42: #{tpu_custom_call.1} parent=11 // pred_check_branch
          %364 = sbr.rel (%p362) target = $region44
        $region43: #{tpu_custom_call.1} parent=11 // pred_region
          _
        $region44: #{tpu_custom_call.1} parent=11 // pred_fallthru
          _
        // Predicated region
        $region45: #{tpu_custom_call.1} parent=11 // pred_check
          %p365 = pneg %p237
        $region46: #{tpu_custom_call.1} parent=11 // pred_check_branch
          %367 = sbr.rel (%p365) target = $region48
        $region47: #{tpu_custom_call.1} parent=11 // pred_region
          _
        $region48: #{tpu_custom_call.1} parent=11 // pred_fallthru
          _
        // Predicated region
        $region49: #{tpu_custom_call.1} parent=11 // pred_check
          %p368 = pneg %p258
        $region50: #{tpu_custom_call.1} parent=11 // pred_check_branch
          %370 = sbr.rel (%p368) target = $region52
        $region51: #{tpu_custom_call.1} parent=11 // pred_region
          _
        $region52: #{tpu_custom_call.1} parent=11 // pred_fallthru
          _
        // Predicated region
        $region53: #{tpu_custom_call.1} parent=11 // pred_check
          %p371 = pneg %p279
        $region54: #{tpu_custom_call.1} parent=11 // pred_check_branch
          %373 = sbr.rel (%p371) target = $region56
        $region55: #{tpu_custom_call.1} parent=11 // pred_region
          _
        $region56: #{tpu_custom_call.1} parent=11 // pred_fallthru
          _
        // Predicated region
        $region57: #{tpu_custom_call.1} parent=11 // pred_check
          %p374 = pneg %p300
        $region58: #{tpu_custom_call.1} parent=11 // pred_check_branch
          %376 = sbr.rel (%p374) target = $region60
        $region59: #{tpu_custom_call.1} parent=11 // pred_region
          _
        $region60: #{tpu_custom_call.1} parent=11 // pred_fallthru
          _
      $region12: #{tpu_custom_call.1} parent=5 // pred_fallthru
        _
      %p377 = scmp.lt.s32.totalorder %s22, 2
      // Predicated region
      $region61: #{tpu_custom_call.1} parent=5 // pred_check
        %p378 = pneg %p377
      $region62: #{tpu_custom_call.1} parent=5 // pred_check_branch
        %380 = sbr.rel (%p378) target = $region64
      $region63: #{tpu_custom_call.1} parent=5 // pred_region
        // Predicated region
        $region65: #{tpu_custom_call.1} parent=63 // pred_check
          %p381 = pneg %p42
        $region66: #{tpu_custom_call.1} parent=63 // pred_check_branch
          %383 = sbr.rel (%p381) target = $region68
        $region67: #{tpu_custom_call.1} parent=63 // pred_region
          %p384 = scmp.lt.s32.totalorder %s22, 1
          %s385 = scalar_select %p384, %s22, 1
          %s386 = smul.addr %s385, 32
          %s387 = smul.addr %s386, 8
          %s388 = scalar_lea.vmem %s0, %s387
        $region68: #{tpu_custom_call.1} parent=63 // pred_fallthru
          _
      $region64: #{tpu_custom_call.1} parent=5 // pred_fallthru
        _
      %p389 = scmp.le.s32.totalorder 1, %s22
      %p390 = scmp.lt.s32.totalorder %s22, 3
      %p391 = pnand %p389, %p390
      %p392 = pneg %p391
      // Predicated region
      $region69: #{tpu_custom_call.1} parent=5 // pred_check
        _
      $region70: #{tpu_custom_call.1} parent=5 // pred_check_branch
        %394 = sbr.rel (%p391) target = $region72
      $region71: #{tpu_custom_call.1} parent=5 // pred_region
        %s395 = ssub.s32 %s22, 1
        %p396 = scmp.lt.s32.totalorder %s27, 1
        %s397 = scalar_select %p396, %s27, 1
        %s398 = smul.addr %s397, 32
        %s399 = smul.addr %s398, 8
        %s400 = scalar_lea.vmem %s0, %s399
        %p401 = pneg %p48
        %p402 = pneg %p45
        %p403 = pneg %p69
        %p404 = pneg %p66
        %p405 = pneg %p90
        %p406 = pneg %p87
        %p407 = pneg %p111
        %p408 = pneg %p108
        %p409 = pneg %p132
        %p410 = pneg %p129
        %p411 = pneg %p153
        %p412 = pneg %p150
        %p413 = pneg %p174
        %p414 = pneg %p171
        %p415 = pneg %p195
        %p416 = pneg %p192
        %p417 = pneg %p216
        %p418 = pneg %p213
        %p419 = pneg %p237
        %p420 = pneg %p234
        %p421 = pneg %p258
        %p422 = pneg %p255
        %p423 = pneg %p279
        %p424 = pneg %p276
        %p425 = pneg %p300
        %p426 = pneg %p297
        %p427 = pneg %p326
        %p428 = pneg %p323
        %s429 = sand.u32 %s313, 1
        %s430 = scalar_lea.sflag [#allocation4], %s429
        %s431 = sand.u32 %s313, 1
        %s432 = smul.addr %s431, 256
        %s433 = scalar_lea.vmem [#allocation3], %s432
        %p434 = scmp.lt.s32.totalorder %s27, 1
        %s435 = scalar_select %p434, %s27, 1
        %s436 = smul.addr %s435, 32
        %s437 = smul.addr %s436, 8
        %s438 = scalar_lea.vmem %s0, %s437
        %vm440 = vcmask 261120
        %441 = vst.msk [vmem:[#allocation2] sm:$0xff] %vm440, 0.0
        %442 = vst.msk [vmem:[#allocation2 + $0x8] sm:$0xff] %vm440, 0.0
        %443 = vst.msk [vmem:[#allocation2 + $0x10] sm:$0xff] %vm440, 0.0
        %444 = vst.msk [vmem:[#allocation2 + $0x18] sm:$0xff] %vm440, 0.0
        %s445 = scalar_lea.vmem [#allocation2], 544
        %446 = vst.msk [vmem:[%s445] sm:$0xff] %vm440, 0.0
        %447 = vst.msk [vmem:[%s445 + $0x8] sm:$0xff] %vm440, 0.0
        %448 = vst.msk [vmem:[%s445 + $0x10] sm:$0xff] %vm440, 0.0
        %449 = vst.msk [vmem:[%s445 + $0x18] sm:$0xff] %vm440, 0.0
        %s450 = scalar_lea.vmem [#allocation2], 32
        %451 = vst.msk [vmem:[%s450] sm:$0xff] %vm440, 0.0
        %452 = vst.msk [vmem:[%s450 + $0x20] sm:$0xff] %vm440, 0.0
        %453 = vst.msk [vmem:[%s450 + $0x40] sm:$0xff] %vm440, 0.0
        %454 = vst.msk [vmem:[%s450 + $0x60] sm:$0xff] %vm440, 0.0
        %455 = vst.msk [vmem:[%s450 + $0x80] sm:$0xff] %vm440, 0.0
        %456 = vst.msk [vmem:[%s450 + $0xa0] sm:$0xff] %vm440, 0.0
        %457 = vst.msk [vmem:[%s450 + $0xc0] sm:$0xff] %vm440, 0.0
        %458 = vst.msk [vmem:[%s450 + $0xe0] sm:$0xff] %vm440, 0.0
        %459 = vst.msk [vmem:[%s450 + $0x100] sm:$0xff] %vm440, 0.0
        %460 = vst.msk [vmem:[%s450 + $0x120] sm:$0xff] %vm440, 0.0
        %461 = vst.msk [vmem:[%s450 + $0x140] sm:$0xff] %vm440, 0.0
        %462 = vst.msk [vmem:[%s450 + $0x160] sm:$0xff] %vm440, 0.0
        %463 = vst.msk [vmem:[%s450 + $0x180] sm:$0xff] %vm440, 0.0
        %464 = vst.msk [vmem:[%s450 + $0x1a0] sm:$0xff] %vm440, 0.0
        %465 = vst.msk [vmem:[%s450 + $0x1c0] sm:$0xff] %vm440, 0.0
        %466 = vst.msk [vmem:[%s450 + $0x1e0] sm:$0xff] %vm440, 0.0
        %467 = vst.msk [vmem:[%s450 + $0x18] sm:$0xff] %vm440, 0.0
        %468 = vst.msk [vmem:[%s450 + $0x38] sm:$0xff] %vm440, 0.0
        %469 = vst.msk [vmem:[%s450 + $0x58] sm:$0xff] %vm440, 0.0
        %470 = vst.msk [vmem:[%s450 + $0x78] sm:$0xff] %vm440, 0.0
        %471 = vst.msk [vmem:[%s450 + $0x98] sm:$0xff] %vm440, 0.0
        %472 = vst.msk [vmem:[%s450 + $0xb8] sm:$0xff] %vm440, 0.0
        %473 = vst.msk [vmem:[%s450 + $0xd8] sm:$0xff] %vm440, 0.0
        %474 = vst.msk [vmem:[%s450 + $0xf8] sm:$0xff] %vm440, 0.0
        %475 = vst.msk [vmem:[%s450 + $0x118] sm:$0xff] %vm440, 0.0
        %476 = vst.msk [vmem:[%s450 + $0x138] sm:$0xff] %vm440, 0.0
        %477 = vst.msk [vmem:[%s450 + $0x158] sm:$0xff] %vm440, 0.0
        %478 = vst.msk [vmem:[%s450 + $0x178] sm:$0xff] %vm440, 0.0
        %479 = vst.msk [vmem:[%s450 + $0x198] sm:$0xff] %vm440, 0.0
        %480 = vst.msk [vmem:[%s450 + $0x1b8] sm:$0xff] %vm440, 0.0
        %481 = vst.msk [vmem:[%s450 + $0x1d8] sm:$0xff] %vm440, 0.0
        %482 = vst.msk [vmem:[%s450 + $0x1f8] sm:$0xff] %vm440, 0.0
        %v483 = vld [vmem:[%s438] sm:$0xff]
        %v484 = vld [vmem:[%s438 + $0x8] sm:$0xff]
        %v485 = vld [vmem:[%s438 + $0x10] sm:$0xff]
        %v486 = vld [vmem:[%s438 + $0x18] sm:$0xff]
        %v487 = vld [vmem:[%s438 + $0x20] sm:$0xff]
        %v488 = vld [vmem:[%s438 + $0x28] sm:$0xff]
        %v489 = vld [vmem:[%s438 + $0x30] sm:$0xff]
        %v490 = vld [vmem:[%s438 + $0x38] sm:$0xff]
        %v491 = vld [vmem:[%s438 + $0x40] sm:$0xff]
        %v492 = vld [vmem:[%s438 + $0x48] sm:$0xff]
        %v493 = vld [vmem:[%s438 + $0x50] sm:$0xff]
        %v494 = vld [vmem:[%s438 + $0x58] sm:$0xff]
        %v495 = vld [vmem:[%s438 + $0x60] sm:$0xff]
        %v496 = vld [vmem:[%s438 + $0x68] sm:$0xff]
        %v497 = vld [vmem:[%s438 + $0x70] sm:$0xff]
        %v498 = vld [vmem:[%s438 + $0x78] sm:$0xff]
        %v499 = vld [vmem:[%s438 + $0x80] sm:$0xff]
        %v500 = vld [vmem:[%s438 + $0x88] sm:$0xff]
        %v501 = vld [vmem:[%s438 + $0x90] sm:$0xff]
        %v502 = vld [vmem:[%s438 + $0x98] sm:$0xff]
        %v503 = vld [vmem:[%s438 + $0xa0] sm:$0xff]
        %v504 = vld [vmem:[%s438 + $0xa8] sm:$0xff]
        %v505 = vld [vmem:[%s438 + $0xb0] sm:$0xff]
        %v506 = vld [vmem:[%s438 + $0xb8] sm:$0xff]
        %v507 = vld [vmem:[%s438 + $0xc0] sm:$0xff]
        %v508 = vld [vmem:[%s438 + $0xc8] sm:$0xff]
        %v509 = vld [vmem:[%s438 + $0xd0] sm:$0xff]
        %v510 = vld [vmem:[%s438 + $0xd8] sm:$0xff]
        %v511 = vld [vmem:[%s438 + $0xe0] sm:$0xff]
        %v512 = vld [vmem:[%s438 + $0xe8] sm:$0xff]
        %v513 = vld [vmem:[%s438 + $0xf0] sm:$0xff]
        %v514 = vld [vmem:[%s438 + $0xf8] sm:$0xff]
        %515 = vst.msk [vmem:[%s450 + $0x8] sm:$0xff] %vm440, %v483
        %516 = vst.msk [vmem:[%s450 + $0x10] sm:$0xff] %vm440, %v484
        %517 = vst.msk [vmem:[%s450 + $0x28] sm:$0xff] %vm440, %v485
        %518 = vst.msk [vmem:[%s450 + $0x30] sm:$0xff] %vm440, %v486
        %519 = vst.msk [vmem:[%s450 + $0x48] sm:$0xff] %vm440, %v487
        %520 = vst.msk [vmem:[%s450 + $0x50] sm:$0xff] %vm440, %v488
        %521 = vst.msk [vmem:[%s450 + $0x68] sm:$0xff] %vm440, %v489
        %522 = vst.msk [vmem:[%s450 + $0x70] sm:$0xff] %vm440, %v490
        %523 = vst.msk [vmem:[%s450 + $0x88] sm:$0xff] %vm440, %v491
        %524 = vst.msk [vmem:[%s450 + $0x90] sm:$0xff] %vm440, %v492
        %525 = vst.msk [vmem:[%s450 + $0xa8] sm:$0xff] %vm440, %v493
        %526 = vst.msk [vmem:[%s450 + $0xb0] sm:$0xff] %vm440, %v494
        %527 = vst.msk [vmem:[%s450 + $0xc8] sm:$0xff] %vm440, %v495
        %528 = vst.msk [vmem:[%s450 + $0xd0] sm:$0xff] %vm440, %v496
        %529 = vst.msk [vmem:[%s450 + $0xe8] sm:$0xff] %vm440, %v497
        %530 = vst.msk [vmem:[%s450 + $0xf0] sm:$0xff] %vm440, %v498
        %531 = vst.msk [vmem:[%s450 + $0x108] sm:$0xff] %vm440, %v499
        %532 = vst.msk [vmem:[%s450 + $0x110] sm:$0xff] %vm440, %v500
        %533 = vst.msk [vmem:[%s450 + $0x128] sm:$0xff] %vm440, %v501
        %534 = vst.msk [vmem:[%s450 + $0x130] sm:$0xff] %vm440, %v502
        %535 = vst.msk [vmem:[%s450 + $0x148] sm:$0xff] %vm440, %v503
        %536 = vst.msk [vmem:[%s450 + $0x150] sm:$0xff] %vm440, %v504
        %537 = vst.msk [vmem:[%s450 + $0x168] sm:$0xff] %vm440, %v505
        %538 = vst.msk [vmem:[%s450 + $0x170] sm:$0xff] %vm440, %v506
        %539 = vst.msk [vmem:[%s450 + $0x188] sm:$0xff] %vm440, %v507
        %540 = vst.msk [vmem:[%s450 + $0x190] sm:$0xff] %vm440, %v508
        %541 = vst.msk [vmem:[%s450 + $0x1a8] sm:$0xff] %vm440, %v509
        %542 = vst.msk [vmem:[%s450 + $0x1b0] sm:$0xff] %vm440, %v510
        %543 = vst.msk [vmem:[%s450 + $0x1c8] sm:$0xff] %vm440, %v511
        %544 = vst.msk [vmem:[%s450 + $0x1d0] sm:$0xff] %vm440, %v512
        %545 = vst.msk [vmem:[%s450 + $0x1e8] sm:$0xff] %vm440, %v513
        %546 = vst.msk [vmem:[%s450 + $0x1f0] sm:$0xff] %vm440, %v514
        %v547 = vld [vmem:[#allocation2 + $0x7] sm:$0xff]
        %v548 = vld [vmem:[#allocation2 + $0xf] sm:$0xff]
        %v549 = vld [vmem:[#allocation2 + $0x27] sm:$0xff]
        %v550 = vld [vmem:[#allocation2 + $0x2f] sm:$0xff]
        %v551 = vld [vmem:[#allocation2 + $0x47] sm:$0xff]
        %v552 = vld [vmem:[#allocation2 + $0x4f] sm:$0xff]
        %v553 = vld [vmem:[#allocation2 + $0x67] sm:$0xff]
        %v554 = vld [vmem:[#allocation2 + $0x6f] sm:$0xff]
        %v555 = vld [vmem:[#allocation2 + $0x87] sm:$0xff]
        %v556 = vld [vmem:[#allocation2 + $0x8f] sm:$0xff]
        %v557 = vld [vmem:[#allocation2 + $0xa7] sm:$0xff]
        %v558 = vld [vmem:[#allocation2 + $0xaf] sm:$0xff]
        %v559 = vld [vmem:[#allocation2 + $0xc7] sm:$0xff]
        %v560 = vld [vmem:[#allocation2 + $0xcf] sm:$0xff]
        %v561 = vld [vmem:[#allocation2 + $0xe7] sm:$0xff]
        %v562 = vld [vmem:[#allocation2 + $0xef] sm:$0xff]
        %v563 = vld [vmem:[#allocation2 + $0x107] sm:$0xff]
        %v564 = vld [vmem:[#allocation2 + $0x10f] sm:$0xff]
        %v565 = vld [vmem:[#allocation2 + $0x127] sm:$0xff]
        %v566 = vld [vmem:[#allocation2 + $0x12f] sm:$0xff]
        %v567 = vld [vmem:[#allocation2 + $0x147] sm:$0xff]
        %v568 = vld [vmem:[#allocation2 + $0x14f] sm:$0xff]
        %v569 = vld [vmem:[#allocation2 + $0x167] sm:$0xff]
        %v570 = vld [vmem:[#allocation2 + $0x16f] sm:$0xff]
        %v571 = vld [vmem:[#allocation2 + $0x187] sm:$0xff]
        %v572 = vld [vmem:[#allocation2 + $0x18f] sm:$0xff]
        %v573 = vld [vmem:[#allocation2 + $0x1a7] sm:$0xff]
        %v574 = vld [vmem:[#allocation2 + $0x1af] sm:$0xff]
        %v575 = vld [vmem:[#allocation2 + $0x1c7] sm:$0xff]
        %v576 = vld [vmem:[#allocation2 + $0x1cf] sm:$0xff]
        %v577 = vld [vmem:[#allocation2 + $0x1e7] sm:$0xff]
        %v578 = vld [vmem:[#allocation2 + $0x1ef] sm:$0xff]
        %v579 = vld [vmem:[#allocation2 + $0x207] sm:$0xff]
        %v580 = vld [vmem:[#allocation2 + $0x20f] sm:$0xff]
        %v581 = vld [vmem:[#allocation2 + $0x227] sm:$0xff]
        %v582 = vld [vmem:[#allocation2 + $0x22f] sm:$0xff]
        %v583 = vpack.c.bf16 %v547, %v547
        %v584 = vpack.c.bf16 %v548, %v548
        %v585 = vpack.c.bf16 %v549, %v549
        %v586 = vpack.c.bf16 %v550, %v550
        %v587 = vpack.c.bf16 %v551, %v551
        %v588 = vpack.c.bf16 %v552, %v552
        %v589 = vpack.c.bf16 %v553, %v553
        %v590 = vpack.c.bf16 %v554, %v554
        %v591 = vpack.c.bf16 %v555, %v555
        %v592 = vpack.c.bf16 %v556, %v556
        %v593 = vpack.c.bf16 %v557, %v557
        %v594 = vpack.c.bf16 %v558, %v558
        %v595 = vpack.c.bf16 %v559, %v559
        %v596 = vpack.c.bf16 %v560, %v560
        %v597 = vpack.c.bf16 %v561, %v561
        %v598 = vpack.c.bf16 %v562, %v562
        %v599 = vpack.c.bf16 %v563, %v563
        %v600 = vpack.c.bf16 %v564, %v564
        %v601 = vpack.c.bf16 %v565, %v565
        %v602 = vpack.c.bf16 %v566, %v566
        %v603 = vpack.c.bf16 %v567, %v567
        %v604 = vpack.c.bf16 %v568, %v568
        %v605 = vpack.c.bf16 %v569, %v569
        %v606 = vpack.c.bf16 %v570, %v570
        %v607 = vpack.c.bf16 %v571, %v571
        %v608 = vpack.c.bf16 %v572, %v572
        %v609 = vpack.c.bf16 %v573, %v573
        %v610 = vpack.c.bf16 %v574, %v574
        %v611 = vpack.c.bf16 %v575, %v575
        %v612 = vpack.c.bf16 %v576, %v576
        %v613 = vpack.c.bf16 %v577, %v577
        %v614 = vpack.c.bf16 %v578, %v578
        %v615 = vpack.c.bf16 %v579, %v579
        %v616 = vpack.c.bf16 %v580, %v580
        %v617 = vpack.c.bf16 %v581, %v581
        %v618 = vpack.c.bf16 %v582, %v582
        %v619 = vld [vmem:[#allocation2 + $0x8] sm:$0xff]
        %v620 = vld [vmem:[#allocation2 + $0x10] sm:$0xff]
        %v621 = vld [vmem:[#allocation2 + $0x28] sm:$0xff]
        %v622 = vld [vmem:[#allocation2 + $0x30] sm:$0xff]
        %v623 = vld [vmem:[#allocation2 + $0x48] sm:$0xff]
        %v624 = vld [vmem:[#allocation2 + $0x50] sm:$0xff]
        %v625 = vld [vmem:[#allocation2 + $0x68] sm:$0xff]
        %v626 = vld [vmem:[#allocation2 + $0x70] sm:$0xff]
        %v627 = vld [vmem:[#allocation2 + $0x88] sm:$0xff]
        %v628 = vld [vmem:[#allocation2 + $0x90] sm:$0xff]
        %v629 = vld [vmem:[#allocation2 + $0xa8] sm:$0xff]
        %v630 = vld [vmem:[#allocation2 + $0xb0] sm:$0xff]
        %v631 = vld [vmem:[#allocation2 + $0xc8] sm:$0xff]
        %v632 = vld [vmem:[#allocation2 + $0xd0] sm:$0xff]
        %v633 = vld [vmem:[#allocation2 + $0xe8] sm:$0xff]
        %v634 = vld [vmem:[#allocation2 + $0xf0] sm:$0xff]
        %v635 = vld [vmem:[#allocation2 + $0x108] sm:$0xff]
        %v636 = vld [vmem:[#allocation2 + $0x110] sm:$0xff]
        %v637 = vld [vmem:[#allocation2 + $0x128] sm:$0xff]
        %v638 = vld [vmem:[#allocation2 + $0x130] sm:$0xff]
        %v639 = vld [vmem:[#allocation2 + $0x148] sm:$0xff]
        %v640 = vld [vmem:[#allocation2 + $0x150] sm:$0xff]
        %v641 = vld [vmem:[#allocation2 + $0x168] sm:$0xff]
        %v642 = vld [vmem:[#allocation2 + $0x170] sm:$0xff]
        %v643 = vld [vmem:[#allocation2 + $0x188] sm:$0xff]
        %v644 = vld [vmem:[#allocation2 + $0x190] sm:$0xff]
        %v645 = vld [vmem:[#allocation2 + $0x1a8] sm:$0xff]
        %v646 = vld [vmem:[#allocation2 + $0x1b0] sm:$0xff]
        %v647 = vld [vmem:[#allocation2 + $0x1c8] sm:$0xff]
        %v648 = vld [vmem:[#allocation2 + $0x1d0] sm:$0xff]
        %v649 = vld [vmem:[#allocation2 + $0x1e8] sm:$0xff]
        %v650 = vld [vmem:[#allocation2 + $0x1f0] sm:$0xff]
        %v651 = vld [vmem:[#allocation2 + $0x208] sm:$0xff]
        %v652 = vld [vmem:[#allocation2 + $0x210] sm:$0xff]
        %v653 = vld [vmem:[#allocation2 + $0x228] sm:$0xff]
        %v654 = vld [vmem:[#allocation2 + $0x230] sm:$0xff]
        %v655 = vpack.c.bf16 %v619, %v619
        %v656 = vpack.c.bf16 %v620, %v620
        %v657 = vpack.c.bf16 %v621, %v621
        %v658 = vpack.c.bf16 %v622, %v622
        %v659 = vpack.c.bf16 %v623, %v623
        %v660 = vpack.c.bf16 %v624, %v624
        %v661 = vpack.c.bf16 %v625, %v625
        %v662 = vpack.c.bf16 %v626, %v626
        %v663 = vpack.c.bf16 %v627, %v627
        %v664 = vpack.c.bf16 %v628, %v628
        %v665 = vpack.c.bf16 %v629, %v629
        %v666 = vpack.c.bf16 %v630, %v630
        %v667 = vpack.c.bf16 %v631, %v631
        %v668 = vpack.c.bf16 %v632, %v632
        %v669 = vpack.c.bf16 %v633, %v633
        %v670 = vpack.c.bf16 %v634, %v634
        %v671 = vpack.c.bf16 %v635, %v635
        %v672 = vpack.c.bf16 %v636, %v636
        %v673 = vpack.c.bf16 %v637, %v637
        %v674 = vpack.c.bf16 %v638, %v638
        %v675 = vpack.c.bf16 %v639, %v639
        %v676 = vpack.c.bf16 %v640, %v640
        %v677 = vpack.c.bf16 %v641, %v641
        %v678 = vpack.c.bf16 %v642, %v642
        %v679 = vpack.c.bf16 %v643, %v643
        %v680 = vpack.c.bf16 %v644, %v644
        %v681 = vpack.c.bf16 %v645, %v645
        %v682 = vpack.c.bf16 %v646, %v646
        %v683 = vpack.c.bf16 %v647, %v647
        %v684 = vpack.c.bf16 %v648, %v648
        %v685 = vpack.c.bf16 %v649, %v649
        %v686 = vpack.c.bf16 %v650, %v650
        %v687 = vpack.c.bf16 %v651, %v651
        %v688 = vpack.c.bf16 %v652, %v652
        %v689 = vpack.c.bf16 %v653, %v653
        %v690 = vpack.c.bf16 %v654, %v654
        %v691 = vld [vmem:[#allocation2 + $0x9] sm:$0xff]
        %v692 = vld [vmem:[#allocation2 + $0x11] sm:$0xff]
        %v693 = vld [vmem:[#allocation2 + $0x29] sm:$0xff]
        %v694 = vld [vmem:[#allocation2 + $0x31] sm:$0xff]
        %v695 = vld [vmem:[#allocation2 + $0x49] sm:$0xff]
        %v696 = vld [vmem:[#allocation2 + $0x51] sm:$0xff]
        %v697 = vld [vmem:[#allocation2 + $0x69] sm:$0xff]
        %v698 = vld [vmem:[#allocation2 + $0x71] sm:$0xff]
        %v699 = vld [vmem:[#allocation2 + $0x89] sm:$0xff]
        %v700 = vld [vmem:[#allocation2 + $0x91] sm:$0xff]
        %v701 = vld [vmem:[#allocation2 + $0xa9] sm:$0xff]
        %v702 = vld [vmem:[#allocation2 + $0xb1] sm:$0xff]
        %v703 = vld [vmem:[#allocation2 + $0xc9] sm:$0xff]
        %v704 = vld [vmem:[#allocation2 + $0xd1] sm:$0xff]
        %v705 = vld [vmem:[#allocation2 + $0xe9] sm:$0xff]
        %v706 = vld [vmem:[#allocation2 + $0xf1] sm:$0xff]
        %v707 = vld [vmem:[#allocation2 + $0x109] sm:$0xff]
        %v708 = vld [vmem:[#allocation2 + $0x111] sm:$0xff]
        %v709 = vld [vmem:[#allocation2 + $0x129] sm:$0xff]
        %v710 = vld [vmem:[#allocation2 + $0x131] sm:$0xff]
        %v711 = vld [vmem:[#allocation2 + $0x149] sm:$0xff]
        %v712 = vld [vmem:[#allocation2 + $0x151] sm:$0xff]
        %v713 = vld [vmem:[#allocation2 + $0x169] sm:$0xff]
        %v714 = vld [vmem:[#allocation2 + $0x171] sm:$0xff]
        %v715 = vld [vmem:[#allocation2 + $0x189] sm:$0xff]
        %v716 = vld [vmem:[#allocation2 + $0x191] sm:$0xff]
        %v717 = vld [vmem:[#allocation2 + $0x1a9] sm:$0xff]
        %v718 = vld [vmem:[#allocation2 + $0x1b1] sm:$0xff]
        %v719 = vld [vmem:[#allocation2 + $0x1c9] sm:$0xff]
        %v720 = vld [vmem:[#allocation2 + $0x1d1] sm:$0xff]
        %v721 = vld [vmem:[#allocation2 + $0x1e9] sm:$0xff]
        %v722 = vld [vmem:[#allocation2 + $0x1f1] sm:$0xff]
        %v723 = vld [vmem:[#allocation2 + $0x209] sm:$0xff]
        %v724 = vld [vmem:[#allocation2 + $0x211] sm:$0xff]
        %v725 = vld [vmem:[#allocation2 + $0x229] sm:$0xff]
        %v726 = vld [vmem:[#allocation2 + $0x231] sm:$0xff]
        %v727 = vpack.c.bf16 %v691, %v691
        %v728 = vpack.c.bf16 %v692, %v692
        %v729 = vpack.c.bf16 %v693, %v693
        %v730 = vpack.c.bf16 %v694, %v694
        %v731 = vpack.c.bf16 %v695, %v695
        %v732 = vpack.c.bf16 %v696, %v696
        %v733 = vpack.c.bf16 %v697, %v697
        %v734 = vpack.c.bf16 %v698, %v698
        %v735 = vpack.c.bf16 %v699, %v699
        %v736 = vpack.c.bf16 %v700, %v700
        %v737 = vpack.c.bf16 %v701, %v701
        %v738 = vpack.c.bf16 %v702, %v702
        %v739 = vpack.c.bf16 %v703, %v703
        %v740 = vpack.c.bf16 %v704, %v704
        %v741 = vpack.c.bf16 %v705, %v705
        %v742 = vpack.c.bf16 %v706, %v706
        %v743 = vpack.c.bf16 %v707, %v707
        %v744 = vpack.c.bf16 %v708, %v708
        %v745 = vpack.c.bf16 %v709, %v709
        %v746 = vpack.c.bf16 %v710, %v710
        %v747 = vpack.c.bf16 %v711, %v711
        %v748 = vpack.c.bf16 %v712, %v712
        %v749 = vpack.c.bf16 %v713, %v713
        %v750 = vpack.c.bf16 %v714, %v714
        %v751 = vpack.c.bf16 %v715, %v715
        %v752 = vpack.c.bf16 %v716, %v716
        %v753 = vpack.c.bf16 %v717, %v717
        %v754 = vpack.c.bf16 %v718, %v718
        %v755 = vpack.c.bf16 %v719, %v719
        %v756 = vpack.c.bf16 %v720, %v720
        %v757 = vpack.c.bf16 %v721, %v721
        %v758 = vpack.c.bf16 %v722, %v722
        %v759 = vpack.c.bf16 %v723, %v723
        %v760 = vpack.c.bf16 %v724, %v724
        %v761 = vpack.c.bf16 %v725, %v725
        %v762 = vpack.c.bf16 %v726, %v726
        %v795 = vunpack.c.l.b16 %v583
        %v796 = vunpack.c.l.b16 %v584
        %v797 = vunpack.c.l.b16 %v585
        %v798 = vunpack.c.l.b16 %v586
        %v799 = vunpack.c.l.b16 %v587
        %v800 = vunpack.c.l.b16 %v588
        %v801 = vunpack.c.l.b16 %v589
        %v802 = vunpack.c.l.b16 %v590
        %v803 = vunpack.c.l.b16 %v591
        %v804 = vunpack.c.l.b16 %v592
        %v805 = vunpack.c.l.b16 %v593
        %v806 = vunpack.c.l.b16 %v594
        %v807 = vunpack.c.l.b16 %v595
        %v808 = vunpack.c.l.b16 %v596
        %v809 = vunpack.c.l.b16 %v597
        %v810 = vunpack.c.l.b16 %v598
        %v811 = vunpack.c.l.b16 %v599
        %v812 = vunpack.c.l.b16 %v600
        %v813 = vunpack.c.l.b16 %v601
        %v814 = vunpack.c.l.b16 %v602
        %v815 = vunpack.c.l.b16 %v603
        %v816 = vunpack.c.l.b16 %v604
        %v817 = vunpack.c.l.b16 %v605
        %v818 = vunpack.c.l.b16 %v606
        %v819 = vunpack.c.l.b16 %v607
        %v820 = vunpack.c.l.b16 %v608
        %v821 = vunpack.c.l.b16 %v609
        %v822 = vunpack.c.l.b16 %v610
        %v823 = vunpack.c.l.b16 %v611
        %v824 = vunpack.c.l.b16 %v612
        %v825 = vunpack.c.l.b16 %v613
        %v826 = vunpack.c.l.b16 %v614
        %v827 = vpack.c.b16 %v796, %v795
        %v828 = vpack.c.b16 %v798, %v797
        %v829 = vpack.c.b16 %v800, %v799
        %v830 = vpack.c.b16 %v802, %v801
        %v831 = vpack.c.b16 %v804, %v803
        %v832 = vpack.c.b16 %v806, %v805
        %v833 = vpack.c.b16 %v808, %v807
        %v834 = vpack.c.b16 %v810, %v809
        %v835 = vpack.c.b16 %v812, %v811
        %v836 = vpack.c.b16 %v814, %v813
        %v837 = vpack.c.b16 %v816, %v815
        %v838 = vpack.c.b16 %v818, %v817
        %v839 = vpack.c.b16 %v820, %v819
        %v840 = vpack.c.b16 %v822, %v821
        %v841 = vpack.c.b16 %v824, %v823
        %v842 = vpack.c.b16 %v826, %v825
        %v875 = vunpack.c.l.b16 %v655
        %v876 = vunpack.c.l.b16 %v656
        %v877 = vunpack.c.l.b16 %v657
        %v878 = vunpack.c.l.b16 %v658
        %v879 = vunpack.c.l.b16 %v659
        %v880 = vunpack.c.l.b16 %v660
        %v881 = vunpack.c.l.b16 %v661
        %v882 = vunpack.c.l.b16 %v662
        %v883 = vunpack.c.l.b16 %v663
        %v884 = vunpack.c.l.b16 %v664
        %v885 = vunpack.c.l.b16 %v665
        %v886 = vunpack.c.l.b16 %v666
        %v887 = vunpack.c.l.b16 %v667
        %v888 = vunpack.c.l.b16 %v668
        %v889 = vunpack.c.l.b16 %v669
        %v890 = vunpack.c.l.b16 %v670
        %v891 = vunpack.c.l.b16 %v671
        %v892 = vunpack.c.l.b16 %v672
        %v893 = vunpack.c.l.b16 %v673
        %v894 = vunpack.c.l.b16 %v674
        %v895 = vunpack.c.l.b16 %v675
        %v896 = vunpack.c.l.b16 %v676
        %v897 = vunpack.c.l.b16 %v677
        %v898 = vunpack.c.l.b16 %v678
        %v899 = vunpack.c.l.b16 %v679
        %v900 = vunpack.c.l.b16 %v680
        %v901 = vunpack.c.l.b16 %v681
        %v902 = vunpack.c.l.b16 %v682
        %v903 = vunpack.c.l.b16 %v683
        %v904 = vunpack.c.l.b16 %v684
        %v905 = vunpack.c.l.b16 %v685
        %v906 = vunpack.c.l.b16 %v686
        %v907 = vpack.c.b16 %v876, %v875
        %v908 = vpack.c.b16 %v878, %v877
        %v909 = vpack.c.b16 %v880, %v879
        %v910 = vpack.c.b16 %v882, %v881
        %v911 = vpack.c.b16 %v884, %v883
        %v912 = vpack.c.b16 %v886, %v885
        %v913 = vpack.c.b16 %v888, %v887
        %v914 = vpack.c.b16 %v890, %v889
        %v915 = vpack.c.b16 %v892, %v891
        %v916 = vpack.c.b16 %v894, %v893
        %v917 = vpack.c.b16 %v896, %v895
        %v918 = vpack.c.b16 %v898, %v897
        %v919 = vpack.c.b16 %v900, %v899
        %v920 = vpack.c.b16 %v902, %v901
        %v921 = vpack.c.b16 %v904, %v903
        %v922 = vpack.c.b16 %v906, %v905
        %923 = vrot.lane.b32.xlu0 %v907, 32
        %v924 = vpop.permute.xlu0 %923
        %925 = vrot.lane.b32.xlu0 %v908, 32
        %v926 = vpop.permute.xlu0 %925
        %927 = vrot.lane.b32.xlu0 %v909, 32
        %v928 = vpop.permute.xlu0 %927
        %929 = vrot.lane.b32.xlu0 %v910, 32
        %v930 = vpop.permute.xlu0 %929
        %931 = vrot.lane.b32.xlu0 %v911, 32
        %v932 = vpop.permute.xlu0 %931
        %933 = vrot.lane.b32.xlu0 %v912, 32
        %v934 = vpop.permute.xlu0 %933
        %935 = vrot.lane.b32.xlu0 %v913, 32
        %v936 = vpop.permute.xlu0 %935
        %937 = vrot.lane.b32.xlu0 %v914, 32
        %v938 = vpop.permute.xlu0 %937
        %939 = vrot.lane.b32.xlu0 %v915, 32
        %v940 = vpop.permute.xlu0 %939
        %941 = vrot.lane.b32.xlu0 %v916, 32
        %v942 = vpop.permute.xlu0 %941
        %943 = vrot.lane.b32.xlu0 %v917, 32
        %v944 = vpop.permute.xlu0 %943
        %945 = vrot.lane.b32.xlu0 %v918, 32
        %v946 = vpop.permute.xlu0 %945
        %947 = vrot.lane.b32.xlu0 %v919, 32
        %v948 = vpop.permute.xlu0 %947
        %949 = vrot.lane.b32.xlu0 %v920, 32
        %v950 = vpop.permute.xlu0 %949
        %951 = vrot.lane.b32.xlu0 %v921, 32
        %v952 = vpop.permute.xlu0 %951
        %953 = vrot.lane.b32.xlu0 %v922, 32
        %v954 = vpop.permute.xlu0 %953
        %v987 = vunpack.c.l.b16 %v727
        %v988 = vunpack.c.l.b16 %v728
        %v989 = vunpack.c.l.b16 %v729
        %v990 = vunpack.c.l.b16 %v730
        %v991 = vunpack.c.l.b16 %v731
        %v992 = vunpack.c.l.b16 %v732
        %v993 = vunpack.c.l.b16 %v733
        %v994 = vunpack.c.l.b16 %v734
        %v995 = vunpack.c.l.b16 %v735
        %v996 = vunpack.c.l.b16 %v736
        %v997 = vunpack.c.l.b16 %v737
        %v998 = vunpack.c.l.b16 %v738
        %v999 = vunpack.c.l.b16 %v739
        %v1000 = vunpack.c.l.b16 %v740
        %v1001 = vunpack.c.l.b16 %v741
        %v1002 = vunpack.c.l.b16 %v742
        %v1003 = vunpack.c.l.b16 %v743
        %v1004 = vunpack.c.l.b16 %v744
        %v1005 = vunpack.c.l.b16 %v745
        %v1006 = vunpack.c.l.b16 %v746
        %v1007 = vunpack.c.l.b16 %v747
        %v1008 = vunpack.c.l.b16 %v748
        %v1009 = vunpack.c.l.b16 %v749
        %v1010 = vunpack.c.l.b16 %v750
        %v1011 = vunpack.c.l.b16 %v751
        %v1012 = vunpack.c.l.b16 %v752
        %v1013 = vunpack.c.l.b16 %v753
        %v1014 = vunpack.c.l.b16 %v754
        %v1015 = vunpack.c.l.b16 %v755
        %v1016 = vunpack.c.l.b16 %v756
        %v1017 = vunpack.c.l.b16 %v757
        %v1018 = vunpack.c.l.b16 %v758
        %v1019 = vpack.c.b16 %v988, %v987
        %v1020 = vpack.c.b16 %v990, %v989
        %v1021 = vpack.c.b16 %v992, %v991
        %v1022 = vpack.c.b16 %v994, %v993
        %v1023 = vpack.c.b16 %v996, %v995
        %v1024 = vpack.c.b16 %v998, %v997
        %v1025 = vpack.c.b16 %v1000, %v999
        %v1026 = vpack.c.b16 %v1002, %v1001
        %v1027 = vpack.c.b16 %v1004, %v1003
        %v1028 = vpack.c.b16 %v1006, %v1005
        %v1029 = vpack.c.b16 %v1008, %v1007
        %v1030 = vpack.c.b16 %v1010, %v1009
        %v1031 = vpack.c.b16 %v1012, %v1011
        %v1032 = vpack.c.b16 %v1014, %v1013
        %v1033 = vpack.c.b16 %v1016, %v1015
        %v1034 = vpack.c.b16 %v1018, %v1017
        %1035 = vrot.lane.b32.xlu0 %v1019, 64
        %v1036 = vpop.permute.xlu0 %1035
        %1037 = vrot.lane.b32.xlu0 %v1020, 64
        %v1038 = vpop.permute.xlu0 %1037
        %1039 = vrot.lane.b32.xlu0 %v1021, 64
        %v1040 = vpop.permute.xlu0 %1039
        %1041 = vrot.lane.b32.xlu0 %v1022, 64
        %v1042 = vpop.permute.xlu0 %1041
        %1043 = vrot.lane.b32.xlu0 %v1023, 64
        %v1044 = vpop.permute.xlu0 %1043
        %1045 = vrot.lane.b32.xlu0 %v1024, 64
        %v1046 = vpop.permute.xlu0 %1045
        %1047 = vrot.lane.b32.xlu0 %v1025, 64
        %v1048 = vpop.permute.xlu0 %1047
        %1049 = vrot.lane.b32.xlu0 %v1026, 64
        %v1050 = vpop.permute.xlu0 %1049
        %1051 = vrot.lane.b32.xlu0 %v1027, 64
        %v1052 = vpop.permute.xlu0 %1051
        %1053 = vrot.lane.b32.xlu0 %v1028, 64
        %v1054 = vpop.permute.xlu0 %1053
        %1055 = vrot.lane.b32.xlu0 %v1029, 64
        %v1056 = vpop.permute.xlu0 %1055
        %1057 = vrot.lane.b32.xlu0 %v1030, 64
        %v1058 = vpop.permute.xlu0 %1057
        %1059 = vrot.lane.b32.xlu0 %v1031, 64
        %v1060 = vpop.permute.xlu0 %1059
        %1061 = vrot.lane.b32.xlu0 %v1032, 64
        %v1062 = vpop.permute.xlu0 %1061
        %1063 = vrot.lane.b32.xlu0 %v1033, 64
        %v1064 = vpop.permute.xlu0 %1063
        %1065 = vrot.lane.b32.xlu0 %v1034, 64
        %v1066 = vpop.permute.xlu0 %1065
        %v1069 = vunpack.c.l.b16 %v615
        %v1070 = vunpack.c.l.b16 %v616
        %v1071 = vpack.c.b16 %v1070, %v1069
        %1072 = vrot.lane.b32.xlu0 %v828, 96
        %v1073 = vpop.permute.xlu0 %1072
        %1074 = vrot.lane.b32.xlu0 %v829, 96
        %v1075 = vpop.permute.xlu0 %1074
        %1076 = vrot.lane.b32.xlu0 %v830, 96
        %v1077 = vpop.permute.xlu0 %1076
        %1078 = vrot.lane.b32.xlu0 %v831, 96
        %v1079 = vpop.permute.xlu0 %1078
        %1080 = vrot.lane.b32.xlu0 %v832, 96
        %v1081 = vpop.permute.xlu0 %1080
        %1082 = vrot.lane.b32.xlu0 %v833, 96
        %v1083 = vpop.permute.xlu0 %1082
        %1084 = vrot.lane.b32.xlu0 %v834, 96
        %v1085 = vpop.permute.xlu0 %1084
        %1086 = vrot.lane.b32.xlu0 %v835, 96
        %v1087 = vpop.permute.xlu0 %1086
        %1088 = vrot.lane.b32.xlu0 %v836, 96
        %v1089 = vpop.permute.xlu0 %1088
        %1090 = vrot.lane.b32.xlu0 %v837, 96
        %v1091 = vpop.permute.xlu0 %1090
        %1092 = vrot.lane.b32.xlu0 %v838, 96
        %v1093 = vpop.permute.xlu0 %1092
        %1094 = vrot.lane.b32.xlu0 %v839, 96
        %v1095 = vpop.permute.xlu0 %1094
        %1096 = vrot.lane.b32.xlu0 %v840, 96
        %v1097 = vpop.permute.xlu0 %1096
        %1098 = vrot.lane.b32.xlu0 %v841, 96
        %v1099 = vpop.permute.xlu0 %1098
        %1100 = vrot.lane.b32.xlu0 %v842, 96
        %v1101 = vpop.permute.xlu0 %1100
        %1102 = vrot.lane.b32.xlu0 %v1071, 96
        %v1103 = vpop.permute.xlu0 %1102
        %v1106 = vunpack.c.l.b16 %v687
        %v1107 = vunpack.c.l.b16 %v688
        %v1108 = vpack.c.b16 %v1107, %v1106
        %v1111 = vunpack.c.l.b16 %v759
        %v1112 = vunpack.c.l.b16 %v760
        %v1113 = vpack.c.b16 %v1112, %v1111
        %1114 = vrot.lane.b32.xlu0 %v1020, 32
        %v1115 = vpop.permute.xlu0 %1114
        %1116 = vrot.lane.b32.xlu0 %v1021, 32
        %v1117 = vpop.permute.xlu0 %1116
        %1118 = vrot.lane.b32.xlu0 %v1022, 32
        %v1119 = vpop.permute.xlu0 %1118
        %1120 = vrot.lane.b32.xlu0 %v1023, 32
        %v1121 = vpop.permute.xlu0 %1120
        %1122 = vrot.lane.b32.xlu0 %v1024, 32
        %v1123 = vpop.permute.xlu0 %1122
        %1124 = vrot.lane.b32.xlu0 %v1025, 32
        %v1125 = vpop.permute.xlu0 %1124
        %1126 = vrot.lane.b32.xlu0 %v1026, 32
        %v1127 = vpop.permute.xlu0 %1126
        %1128 = vrot.lane.b32.xlu0 %v1027, 32
        %v1129 = vpop.permute.xlu0 %1128
        %1130 = vrot.lane.b32.xlu0 %v1028, 32
        %v1131 = vpop.permute.xlu0 %1130
        %1132 = vrot.lane.b32.xlu0 %v1029, 32
        %v1133 = vpop.permute.xlu0 %1132
        %1134 = vrot.lane.b32.xlu0 %v1030, 32
        %v1135 = vpop.permute.xlu0 %1134
        %1136 = vrot.lane.b32.xlu0 %v1031, 32
        %v1137 = vpop.permute.xlu0 %1136
        %1138 = vrot.lane.b32.xlu0 %v1032, 32
        %v1139 = vpop.permute.xlu0 %1138
        %1140 = vrot.lane.b32.xlu0 %v1033, 32
        %v1141 = vpop.permute.xlu0 %1140
        %1142 = vrot.lane.b32.xlu0 %v1034, 32
        %v1143 = vpop.permute.xlu0 %1142
        %1144 = vrot.lane.b32.xlu0 %v1113, 32
        %v1145 = vpop.permute.xlu0 %1144
        %v1148 = vunpack.c.l.b16 %v617
        %v1149 = vunpack.c.l.b16 %v618
        %v1150 = vpack.c.b16 %v1149, %v1148
        %1151 = vrot.lane.b32.xlu0 %v829, 64
        %v1152 = vpop.permute.xlu0 %1151
        %1153 = vrot.lane.b32.xlu0 %v830, 64
        %v1154 = vpop.permute.xlu0 %1153
        %1155 = vrot.lane.b32.xlu0 %v831, 64
        %v1156 = vpop.permute.xlu0 %1155
        %1157 = vrot.lane.b32.xlu0 %v832, 64
        %v1158 = vpop.permute.xlu0 %1157
        %1159 = vrot.lane.b32.xlu0 %v833, 64
        %v1160 = vpop.permute.xlu0 %1159
        %1161 = vrot.lane.b32.xlu0 %v834, 64
        %v1162 = vpop.permute.xlu0 %1161
        %1163 = vrot.lane.b32.xlu0 %v835, 64
        %v1164 = vpop.permute.xlu0 %1163
        %1165 = vrot.lane.b32.xlu0 %v836, 64
        %v1166 = vpop.permute.xlu0 %1165
        %1167 = vrot.lane.b32.xlu0 %v837, 64
        %v1168 = vpop.permute.xlu0 %1167
        %1169 = vrot.lane.b32.xlu0 %v838, 64
        %v1170 = vpop.permute.xlu0 %1169
        %1171 = vrot.lane.b32.xlu0 %v839, 64
        %v1172 = vpop.permute.xlu0 %1171
        %1173 = vrot.lane.b32.xlu0 %v840, 64
        %v1174 = vpop.permute.xlu0 %1173
        %1175 = vrot.lane.b32.xlu0 %v841, 64
        %v1176 = vpop.permute.xlu0 %1175
        %1177 = vrot.lane.b32.xlu0 %v842, 64
        %v1178 = vpop.permute.xlu0 %1177
        %1179 = vrot.lane.b32.xlu0 %v1071, 64
        %v1180 = vpop.permute.xlu0 %1179
        %1181 = vrot.lane.b32.xlu0 %v1150, 64
        %v1182 = vpop.permute.xlu0 %1181
        %v1185 = vunpack.c.l.b16 %v689
        %v1186 = vunpack.c.l.b16 %v690
        %v1187 = vpack.c.b16 %v1186, %v1185
        %1188 = vrot.lane.b32.xlu0 %v909, 96
        %v1189 = vpop.permute.xlu0 %1188
        %1190 = vrot.lane.b32.xlu0 %v910, 96
        %v1191 = vpop.permute.xlu0 %1190
        %1192 = vrot.lane.b32.xlu0 %v911, 96
        %v1193 = vpop.permute.xlu0 %1192
        %1194 = vrot.lane.b32.xlu0 %v912, 96
        %v1195 = vpop.permute.xlu0 %1194
        %1196 = vrot.lane.b32.xlu0 %v913, 96
        %v1197 = vpop.permute.xlu0 %1196
        %1198 = vrot.lane.b32.xlu0 %v914, 96
        %v1199 = vpop.permute.xlu0 %1198
        %1200 = vrot.lane.b32.xlu0 %v915, 96
        %v1201 = vpop.permute.xlu0 %1200
        %1202 = vrot.lane.b32.xlu0 %v916, 96
        %v1203 = vpop.permute.xlu0 %1202
        %1204 = vrot.lane.b32.xlu0 %v917, 96
        %v1205 = vpop.permute.xlu0 %1204
        %1206 = vrot.lane.b32.xlu0 %v918, 96
        %v1207 = vpop.permute.xlu0 %1206
        %1208 = vrot.lane.b32.xlu0 %v919, 96
        %v1209 = vpop.permute.xlu0 %1208
        %1210 = vrot.lane.b32.xlu0 %v920, 96
        %v1211 = vpop.permute.xlu0 %1210
        %1212 = vrot.lane.b32.xlu0 %v921, 96
        %v1213 = vpop.permute.xlu0 %1212
        %1214 = vrot.lane.b32.xlu0 %v922, 96
        %v1215 = vpop.permute.xlu0 %1214
        %1216 = vrot.lane.b32.xlu0 %v1108, 96
        %v1217 = vpop.permute.xlu0 %1216
        %1218 = vrot.lane.b32.xlu0 %v1187, 96
        %v1219 = vpop.permute.xlu0 %1218
        %v1222 = vunpack.c.l.b16 %v761
        %v1223 = vunpack.c.l.b16 %v762
        %v1224 = vpack.c.b16 %v1223, %v1222
        %v1227 = vsel %vm440, %v827, %v924
        %v1230 = vsel %vm440, %v828, %v926
        %v1233 = vsel %vm440, %v829, %v928
        %v1236 = vsel %vm440, %v830, %v930
        %v1239 = vsel %vm440, %v831, %v932
        %v1242 = vsel %vm440, %v832, %v934
        %v1245 = vsel %vm440, %v833, %v936
        %v1248 = vsel %vm440, %v834, %v938
        %v1251 = vsel %vm440, %v835, %v940
        %v1254 = vsel %vm440, %v836, %v942
        %v1257 = vsel %vm440, %v837, %v944
        %v1260 = vsel %vm440, %v838, %v946
        %v1263 = vsel %vm440, %v839, %v948
        %v1266 = vsel %vm440, %v840, %v950
        %v1269 = vsel %vm440, %v841, %v952
        %v1272 = vsel %vm440, %v842, %v954
        %vm1273 = vcmask 523264
        %v1275 = vsel %vm1273, %v1227, %v1036
        %v1277 = vsel %vm1273, %v1230, %v1038
        %v1279 = vsel %vm1273, %v1233, %v1040
        %v1281 = vsel %vm1273, %v1236, %v1042
        %v1283 = vsel %vm1273, %v1239, %v1044
        %v1285 = vsel %vm1273, %v1242, %v1046
        %v1287 = vsel %vm1273, %v1245, %v1048
        %v1289 = vsel %vm1273, %v1248, %v1050
        %v1291 = vsel %vm1273, %v1251, %v1052
        %v1293 = vsel %vm1273, %v1254, %v1054
        %v1295 = vsel %vm1273, %v1257, %v1056
        %v1297 = vsel %vm1273, %v1260, %v1058
        %v1299 = vsel %vm1273, %v1263, %v1060
        %v1301 = vsel %vm1273, %v1266, %v1062
        %v1303 = vsel %vm1273, %v1269, %v1064
        %v1305 = vsel %vm1273, %v1272, %v1066
        %vm1306 = vcmask 785408
        %v1308 = vsel %vm1306, %v1275, %v1073
        %v1311 = vsel %vm1306, %v1277, %v1075
        %v1314 = vsel %vm1306, %v1279, %v1077
        %v1317 = vsel %vm1306, %v1281, %v1079
        %v1320 = vsel %vm1306, %v1283, %v1081
        %v1323 = vsel %vm1306, %v1285, %v1083
        %v1326 = vsel %vm1306, %v1287, %v1085
        %v1329 = vsel %vm1306, %v1289, %v1087
        %v1332 = vsel %vm1306, %v1291, %v1089
        %v1335 = vsel %vm1306, %v1293, %v1091
        %v1338 = vsel %vm1306, %v1295, %v1093
        %v1341 = vsel %vm1306, %v1297, %v1095
        %v1344 = vsel %vm1306, %v1299, %v1097
        %v1347 = vsel %vm1306, %v1301, %v1099
        %v1350 = vsel %vm1306, %v1303, %v1101
        %v1353 = vsel %vm1306, %v1305, %v1103
        %v1357 = vsel %vm440, %v908, %v1115
        %v1360 = vsel %vm440, %v909, %v1117
        %v1363 = vsel %vm440, %v910, %v1119
        %v1366 = vsel %vm440, %v911, %v1121
        %v1369 = vsel %vm440, %v912, %v1123
        %v1372 = vsel %vm440, %v913, %v1125
        %v1375 = vsel %vm440, %v914, %v1127
        %v1378 = vsel %vm440, %v915, %v1129
        %v1381 = vsel %vm440, %v916, %v1131
        %v1384 = vsel %vm440, %v917, %v1133
        %v1387 = vsel %vm440, %v918, %v1135
        %v1390 = vsel %vm440, %v919, %v1137
        %v1393 = vsel %vm440, %v920, %v1139
        %v1396 = vsel %vm440, %v921, %v1141
        %v1399 = vsel %vm440, %v922, %v1143
        %v1402 = vsel %vm440, %v1108, %v1145
        %v1404 = vsel %vm1273, %v1357, %v1152
        %v1406 = vsel %vm1273, %v1360, %v1154
        %v1408 = vsel %vm1273, %v1363, %v1156
        %v1410 = vsel %vm1273, %v1366, %v1158
        %v1412 = vsel %vm1273, %v1369, %v1160
        %v1414 = vsel %vm1273, %v1372, %v1162
        %v1416 = vsel %vm1273, %v1375, %v1164
        %v1418 = vsel %vm1273, %v1378, %v1166
        %v1420 = vsel %vm1273, %v1381, %v1168
        %v1422 = vsel %vm1273, %v1384, %v1170
        %v1424 = vsel %vm1273, %v1387, %v1172
        %v1426 = vsel %vm1273, %v1390, %v1174
        %v1428 = vsel %vm1273, %v1393, %v1176
        %v1430 = vsel %vm1273, %v1396, %v1178
        %v1432 = vsel %vm1273, %v1399, %v1180
        %v1434 = vsel %vm1273, %v1402, %v1182
        %v1436 = vsel %vm1306, %v1404, %v1189
        %v1439 = vsel %vm1306, %v1406, %v1191
        %v1442 = vsel %vm1306, %v1408, %v1193
        %v1445 = vsel %vm1306, %v1410, %v1195
        %v1448 = vsel %vm1306, %v1412, %v1197
        %v1451 = vsel %vm1306, %v1414, %v1199
        %v1454 = vsel %vm1306, %v1416, %v1201
        %v1457 = vsel %vm1306, %v1418, %v1203
        %v1460 = vsel %vm1306, %v1420, %v1205
        %v1463 = vsel %vm1306, %v1422, %v1207
        %v1466 = vsel %vm1306, %v1424, %v1209
        %v1469 = vsel %vm1306, %v1426, %v1211
        %v1472 = vsel %vm1306, %v1428, %v1213
        %v1475 = vsel %vm1306, %v1430, %v1215
        %v1478 = vsel %vm1306, %v1432, %v1217
        %v1481 = vsel %vm1306, %v1434, %v1219
        %v1483 = vld [vmem:[%s1] sm:$0xf]
        %v1484 = vld [vmem:[%s1 + $0x4] sm:$0xf]
        %v1485 = vld [vmem:[%s1 + $0x8] sm:$0xf]
        %v1486 = vld [vmem:[%s1 + $0xc] sm:$0xf]
        %v1487 = vld [vmem:[%s1 + $0x10] sm:$0xf]
        %v1488 = vld [vmem:[%s1 + $0x14] sm:$0xf]
        %v1489 = vld [vmem:[%s1 + $0x18] sm:$0xf]
        %v1490 = vld [vmem:[%s1 + $0x1c] sm:$0xf]
        %v1491 = vld [vmem:[%s1 + $0x20] sm:$0xf]
        %v1492 = vld [vmem:[%s1 + $0x24] sm:$0xf]
        %v1493 = vld [vmem:[%s1 + $0x28] sm:$0xf]
        %v1494 = vld [vmem:[%s1 + $0x2c] sm:$0xf]
        %v1495 = vld [vmem:[%s1 + $0x30] sm:$0xf]
        %v1496 = vld [vmem:[%s1 + $0x34] sm:$0xf]
        %v1497 = vld [vmem:[%s1 + $0x38] sm:$0xf]
        %v1498 = vld [vmem:[%s1 + $0x3c] sm:$0xf]
        %v1499 = vld [vmem:[%s1 + $0x40] sm:$0xf]
        %v1500 = vld [vmem:[%s1 + $0x44] sm:$0xf]
        %v1501 = vld [vmem:[%s1 + $0x48] sm:$0xf]
        %v1502 = vld [vmem:[%s1 + $0x4c] sm:$0xf]
        %v1503 = vld [vmem:[%s1 + $0x50] sm:$0xf]
        %v1504 = vld [vmem:[%s1 + $0x54] sm:$0xf]
        %v1505 = vld [vmem:[%s1 + $0x58] sm:$0xf]
        %v1506 = vld [vmem:[%s1 + $0x5c] sm:$0xf]
        %v1507 = vld [vmem:[%s1 + $0x60] sm:$0xf]
        %v1508 = vld [vmem:[%s1 + $0x64] sm:$0xf]
        %v1509 = vld [vmem:[%s1 + $0x68] sm:$0xf]
        %v1510 = vld [vmem:[%s1 + $0x6c] sm:$0xf]
        %v1511 = vld [vmem:[%s1 + $0x70] sm:$0xf]
        %v1512 = vld [vmem:[%s1 + $0x74] sm:$0xf]
        %v1513 = vld [vmem:[%s1 + $0x78] sm:$0xf]
        %v1514 = vld [vmem:[%s1 + $0x7c] sm:$0xf]
        %v1515 = vld [vmem:[%s1 + $0x80] sm:$0xf]
        %v1516 = vld [vmem:[%s1 + $0x84] sm:$0xf]
        %v1517 = vld [vmem:[%s1 + $0x88] sm:$0xf]
        %v1518 = vld [vmem:[%s1 + $0x8c] sm:$0xf]
        %v1519 = vld [vmem:[%s2] sm:$0x1]
        %v1521 = vperm.slane %v1519, 0
        %v1559 = vunpack.c.l.b16 %v1483
        %v1560 = vunpack.c.l.b16 %v1484
        %v1561 = vunpack.c.l.b16 %v1485
        %v1562 = vunpack.c.l.b16 %v1486
        %v1563 = vunpack.c.l.b16 %v1487
        %v1564 = vunpack.c.l.b16 %v1488
        %v1565 = vunpack.c.l.b16 %v1489
        %v1566 = vunpack.c.l.b16 %v1490
        %v1567 = vunpack.c.l.b16 %v1491
        %v1568 = vunpack.c.l.b16 %v1492
        %v1569 = vunpack.c.l.b16 %v1493
        %v1570 = vunpack.c.l.b16 %v1494
        %v1571 = vunpack.c.l.b16 %v1495
        %v1572 = vunpack.c.l.b16 %v1496
        %v1573 = vunpack.c.l.b16 %v1497
        %v1574 = vunpack.c.l.b16 %v1498
        %v1575 = vunpack.c.l.b16 %v1499
        %v1576 = vunpack.c.l.b16 %v1500
        %v1577 = vunpack.c.l.b16 %v1501
        %v1578 = vunpack.c.l.b16 %v1502
        %v1579 = vunpack.c.l.b16 %v1503
        %v1580 = vunpack.c.l.b16 %v1504
        %v1581 = vunpack.c.l.b16 %v1505
        %v1582 = vunpack.c.l.b16 %v1506
        %v1583 = vunpack.c.l.b16 %v1507
        %v1584 = vunpack.c.l.b16 %v1508
        %v1585 = vunpack.c.l.b16 %v1509
        %v1586 = vunpack.c.l.b16 %v1510
        %v1587 = vunpack.c.l.b16 %v1511
        %v1588 = vunpack.c.l.b16 %v1512
        %v1589 = vunpack.c.l.b16 %v1513
        %v1590 = vunpack.c.l.b16 %v1514
        %v1591 = vunpack.c.l.b16 %v1515
        %v1592 = vunpack.c.l.b16 %v1516
        %v1593 = vunpack.c.l.b16 %v1517
        %v1594 = vunpack.c.l.b16 %v1518
        %v1595 = vpack.c.b16 %v1560, %v1559
        %v1596 = vpack.c.b16 %v1562, %v1561
        %v1597 = vpack.c.b16 %v1564, %v1563
        %v1598 = vpack.c.b16 %v1566, %v1565
        %v1599 = vpack.c.b16 %v1568, %v1567
        %v1600 = vpack.c.b16 %v1570, %v1569
        %v1601 = vpack.c.b16 %v1572, %v1571
        %v1602 = vpack.c.b16 %v1574, %v1573
        %v1603 = vpack.c.b16 %v1576, %v1575
        %v1604 = vpack.c.b16 %v1578, %v1577
        %v1605 = vpack.c.b16 %v1580, %v1579
        %v1606 = vpack.c.b16 %v1582, %v1581
        %v1607 = vpack.c.b16 %v1584, %v1583
        %v1608 = vpack.c.b16 %v1586, %v1585
        %v1609 = vpack.c.b16 %v1588, %v1587
        %v1610 = vpack.c.b16 %v1590, %v1589
        %v1611 = vpack.c.b16 %v1592, %v1591
        %v1612 = vpack.c.b16 %v1594, %v1593
        %v1632 = vsel %vm440, %v1021, 0
        %v1635 = vsel %vm440, %v1022, 0
        %v1638 = vsel %vm440, %v1023, 0
        %v1641 = vsel %vm440, %v1024, 0
        %v1644 = vsel %vm440, %v1025, 0
        %v1647 = vsel %vm440, %v1026, 0
        %v1650 = vsel %vm440, %v1027, 0
        %v1653 = vsel %vm440, %v1028, 0
        %v1656 = vsel %vm440, %v1029, 0
        %v1659 = vsel %vm440, %v1030, 0
        %v1662 = vsel %vm440, %v1031, 0
        %v1665 = vsel %vm440, %v1032, 0
        %v1668 = vsel %vm440, %v1033, 0
        %v1671 = vsel %vm440, %v1034, 0
        %v1674 = vsel %vm440, %v1113, 0
        %v1677 = vsel %vm440, %v1224, 0
        %1679 = vmatpush.bf16.msra.mxu0 %v1602
        %1680 = vmatpush.bf16.msra.mxu0 %v1601
        %1681 = vmatpush.bf16.msra.mxu0 %v1600
        %1682 = vmatpush.bf16.msra.mxu0 %v1599
        %1683 = vmatpush.bf16.msra.mxu0 %v1598
        %1684 = vmatpush.bf16.msra.mxu0 %v1597
        %1685 = vmatpush.bf16.msra.mxu0 %v1596
        %1686 = vmatpush.bf16.msra.mxu0 %v1595
        %1687 = vmatmul.bf16.gmra.mxu0 %v1308
        %v1688 = vpop.f32.mrf.mxu0
        %v1689 = vadd.f32 %v1521, %v1688
        %v1690 = vpop.f32.mrf.mxu0
        %v1691 = vadd.f32 %v1521, %v1690
        %1692 = vmatmul.bf16.gmra.mxu0 %v1311
        %v1693 = vpop.f32.mrf.mxu0
        %v1694 = vadd.f32 %v1521, %v1693
        %v1695 = vpop.f32.mrf.mxu0
        %v1696 = vadd.f32 %v1521, %v1695
        %1697 = vmatmul.bf16.gmra.mxu0 %v1314
        %v1698 = vpop.f32.mrf.mxu0
        %v1699 = vadd.f32 %v1521, %v1698
        %v1700 = vpop.f32.mrf.mxu0
        %v1701 = vadd.f32 %v1521, %v1700
        %1702 = vmatmul.bf16.gmra.mxu0 %v1317
        %v1703 = vpop.f32.mrf.mxu0
        %v1704 = vadd.f32 %v1521, %v1703
        %v1705 = vpop.f32.mrf.mxu0
        %v1706 = vadd.f32 %v1521, %v1705
        %1707 = vmatmul.bf16.gmra.mxu0 %v1320
        %v1708 = vpop.f32.mrf.mxu0
        %v1709 = vadd.f32 %v1521, %v1708
        %v1710 = vpop.f32.mrf.mxu0
        %v1711 = vadd.f32 %v1521, %v1710
        %1712 = vmatmul.bf16.gmra.mxu0 %v1323
        %v1713 = vpop.f32.mrf.mxu0
        %v1714 = vadd.f32 %v1521, %v1713
        %v1715 = vpop.f32.mrf.mxu0
        %v1716 = vadd.f32 %v1521, %v1715
        %1717 = vmatmul.bf16.gmra.mxu0 %v1326
        %v1718 = vpop.f32.mrf.mxu0
        %v1719 = vadd.f32 %v1521, %v1718
        %v1720 = vpop.f32.mrf.mxu0
        %v1721 = vadd.f32 %v1521, %v1720
        %1722 = vmatmul.bf16.gmra.mxu0 %v1329
        %v1723 = vpop.f32.mrf.mxu0
        %v1724 = vadd.f32 %v1521, %v1723
        %v1725 = vpop.f32.mrf.mxu0
        %v1726 = vadd.f32 %v1521, %v1725
        %1727 = vmatmul.bf16.gmra.mxu0 %v1332
        %v1728 = vpop.f32.mrf.mxu0
        %v1729 = vadd.f32 %v1521, %v1728
        %v1730 = vpop.f32.mrf.mxu0
        %v1731 = vadd.f32 %v1521, %v1730
        %1732 = vmatmul.bf16.gmra.mxu0 %v1335
        %v1733 = vpop.f32.mrf.mxu0
        %v1734 = vadd.f32 %v1521, %v1733
        %v1735 = vpop.f32.mrf.mxu0
        %v1736 = vadd.f32 %v1521, %v1735
        %1737 = vmatmul.bf16.gmra.mxu0 %v1338
        %v1738 = vpop.f32.mrf.mxu0
        %v1739 = vadd.f32 %v1521, %v1738
        %v1740 = vpop.f32.mrf.mxu0
        %v1741 = vadd.f32 %v1521, %v1740
        %1742 = vmatmul.bf16.gmra.mxu0 %v1341
        %v1743 = vpop.f32.mrf.mxu0
        %v1744 = vadd.f32 %v1521, %v1743
        %v1745 = vpop.f32.mrf.mxu0
        %v1746 = vadd.f32 %v1521, %v1745
        %1747 = vmatmul.bf16.gmra.mxu0 %v1344
        %v1748 = vpop.f32.mrf.mxu0
        %v1749 = vadd.f32 %v1521, %v1748
        %v1750 = vpop.f32.mrf.mxu0
        %v1751 = vadd.f32 %v1521, %v1750
        %1752 = vmatmul.bf16.gmra.mxu0 %v1347
        %v1753 = vpop.f32.mrf.mxu0
        %v1754 = vadd.f32 %v1521, %v1753
        %v1755 = vpop.f32.mrf.mxu0
        %v1756 = vadd.f32 %v1521, %v1755
        %1757 = vmatmul.bf16.gmra.mxu0 %v1350
        %v1758 = vpop.f32.mrf.mxu0
        %v1759 = vadd.f32 %v1521, %v1758
        %v1760 = vpop.f32.mrf.mxu0
        %v1761 = vadd.f32 %v1521, %v1760
        %1762 = vmatmul.bf16.gmra.mxu0 %v1353
        %v1763 = vpop.f32.mrf.mxu0
        %v1764 = vadd.f32 %v1521, %v1763
        %v1765 = vpop.f32.mrf.mxu0
        %v1766 = vadd.f32 %v1521, %v1765
        %1767 = vdwg.mxu0
        %1768 = vmatpush.bf16.msra.mxu0 %v1610
        %1769 = vmatpush.bf16.msra.mxu0 %v1609
        %1770 = vmatpush.bf16.msra.mxu0 %v1608
        %1771 = vmatpush.bf16.msra.mxu0 %v1607
        %1772 = vmatpush.bf16.msra.mxu0 %v1606
        %1773 = vmatpush.bf16.msra.mxu0 %v1605
        %1774 = vmatpush.bf16.msra.mxu0 %v1604
        %1775 = vmatpush.bf16.msra.mxu0 %v1603
        %1776 = vmatmul.bf16.gmra.mxu0 %v1436
        %v1777 = vpop.f32.mrf.mxu0
        %v1778 = vadd.f32 %v1689, %v1777
        %v1779 = vpop.f32.mrf.mxu0
        %v1780 = vadd.f32 %v1691, %v1779
        %1781 = vmatmul.bf16.gmra.mxu0 %v1439
        %v1782 = vpop.f32.mrf.mxu0
        %v1783 = vadd.f32 %v1694, %v1782
        %v1784 = vpop.f32.mrf.mxu0
        %v1785 = vadd.f32 %v1696, %v1784
        %1786 = vmatmul.bf16.gmra.mxu0 %v1442
        %v1787 = vpop.f32.mrf.mxu0
        %v1788 = vadd.f32 %v1699, %v1787
        %v1789 = vpop.f32.mrf.mxu0
        %v1790 = vadd.f32 %v1701, %v1789
        %1791 = vmatmul.bf16.gmra.mxu0 %v1445
        %v1792 = vpop.f32.mrf.mxu0
        %v1793 = vadd.f32 %v1704, %v1792
        %v1794 = vpop.f32.mrf.mxu0
        %v1795 = vadd.f32 %v1706, %v1794
        %1796 = vmatmul.bf16.gmra.mxu0 %v1448
        %v1797 = vpop.f32.mrf.mxu0
        %v1798 = vadd.f32 %v1709, %v1797
        %v1799 = vpop.f32.mrf.mxu0
        %v1800 = vadd.f32 %v1711, %v1799
        %1801 = vmatmul.bf16.gmra.mxu0 %v1451
        %v1802 = vpop.f32.mrf.mxu0
        %v1803 = vadd.f32 %v1714, %v1802
        %v1804 = vpop.f32.mrf.mxu0
        %v1805 = vadd.f32 %v1716, %v1804
        %1806 = vmatmul.bf16.gmra.mxu0 %v1454
        %v1807 = vpop.f32.mrf.mxu0
        %v1808 = vadd.f32 %v1719, %v1807
        %v1809 = vpop.f32.mrf.mxu0
        %v1810 = vadd.f32 %v1721, %v1809
        %1811 = vmatmul.bf16.gmra.mxu0 %v1457
        %v1812 = vpop.f32.mrf.mxu0
        %v1813 = vadd.f32 %v1724, %v1812
        %v1814 = vpop.f32.mrf.mxu0
        %v1815 = vadd.f32 %v1726, %v1814
        %1816 = vmatmul.bf16.gmra.mxu0 %v1460
        %v1817 = vpop.f32.mrf.mxu0
        %v1818 = vadd.f32 %v1729, %v1817
        %v1819 = vpop.f32.mrf.mxu0
        %v1820 = vadd.f32 %v1731, %v1819
        %1821 = vmatmul.bf16.gmra.mxu0 %v1463
        %v1822 = vpop.f32.mrf.mxu0
        %v1823 = vadd.f32 %v1734, %v1822
        %v1824 = vpop.f32.mrf.mxu0
        %v1825 = vadd.f32 %v1736, %v1824
        %1826 = vmatmul.bf16.gmra.mxu0 %v1466
        %v1827 = vpop.f32.mrf.mxu0
        %v1828 = vadd.f32 %v1739, %v1827
        %v1829 = vpop.f32.mrf.mxu0
        %v1830 = vadd.f32 %v1741, %v1829
        %1831 = vmatmul.bf16.gmra.mxu0 %v1469
        %v1832 = vpop.f32.mrf.mxu0
        %v1833 = vadd.f32 %v1744, %v1832
        %v1834 = vpop.f32.mrf.mxu0
        %v1835 = vadd.f32 %v1746, %v1834
        %1836 = vmatmul.bf16.gmra.mxu0 %v1472
        %v1837 = vpop.f32.mrf.mxu0
        %v1838 = vadd.f32 %v1749, %v1837
        %v1839 = vpop.f32.mrf.mxu0
        %v1840 = vadd.f32 %v1751, %v1839
        %1841 = vmatmul.bf16.gmra.mxu0 %v1475
        %v1842 = vpop.f32.mrf.mxu0
        %v1843 = vadd.f32 %v1754, %v1842
        %v1844 = vpop.f32.mrf.mxu0
        %v1845 = vadd.f32 %v1756, %v1844
        %1846 = vmatmul.bf16.gmra.mxu0 %v1478
        %v1847 = vpop.f32.mrf.mxu0
        %v1848 = vadd.f32 %v1759, %v1847
        %v1849 = vpop.f32.mrf.mxu0
        %v1850 = vadd.f32 %v1761, %v1849
        %1851 = vmatmul.bf16.gmra.mxu0 %v1481
        %v1852 = vpop.f32.mrf.mxu0
        %v1853 = vadd.f32 %v1764, %v1852
        %v1854 = vpop.f32.mrf.mxu0
        %v1855 = vadd.f32 %v1766, %v1854
        %1856 = vdwg.mxu0
        %1857 = vmatpush.bf16.msra.mxu0 0
        %1858 = vmatpush.bf16.msra.mxu0 0
        %1859 = vmatpush.bf16.msra.mxu0 0
        %1860 = vmatpush.bf16.msra.mxu0 0
        %1861 = vmatpush.bf16.msra.mxu0 0
        %1862 = vmatpush.bf16.msra.mxu0 0
        %1863 = vmatpush.bf16.msra.mxu0 %v1612
        %1864 = vmatpush.bf16.msra.mxu0 %v1611
        %1865 = vmatmul.bf16.gmra.mxu0 %v1632
        %v1866 = vpop.f32.mrf.mxu0
        %v1867 = vadd.f32 %v1778, %v1866
        %v1868 = vpop.f32.mrf.mxu0
        %v1869 = vadd.f32 %v1780, %v1868
        %1870 = vmatmul.bf16.gmra.mxu0 %v1635
        %v1871 = vpop.f32.mrf.mxu0
        %v1872 = vadd.f32 %v1783, %v1871
        %v1873 = vpop.f32.mrf.mxu0
        %v1874 = vadd.f32 %v1785, %v1873
        %1875 = vmatmul.bf16.gmra.mxu0 %v1638
        %v1876 = vpop.f32.mrf.mxu0
        %v1877 = vadd.f32 %v1788, %v1876
        %v1878 = vpop.f32.mrf.mxu0
        %v1879 = vadd.f32 %v1790, %v1878
        %1880 = vmatmul.bf16.gmra.mxu0 %v1641
        %v1881 = vpop.f32.mrf.mxu0
        %v1882 = vadd.f32 %v1793, %v1881
        %v1883 = vpop.f32.mrf.mxu0
        %v1884 = vadd.f32 %v1795, %v1883
        %1885 = vmatmul.bf16.gmra.mxu0 %v1644
        %v1886 = vpop.f32.mrf.mxu0
        %v1887 = vadd.f32 %v1798, %v1886
        %v1888 = vpop.f32.mrf.mxu0
        %v1889 = vadd.f32 %v1800, %v1888
        %1890 = vmatmul.bf16.gmra.mxu0 %v1647
        %v1891 = vpop.f32.mrf.mxu0
        %v1892 = vadd.f32 %v1803, %v1891
        %v1893 = vpop.f32.mrf.mxu0
        %v1894 = vadd.f32 %v1805, %v1893
        %1895 = vmatmul.bf16.gmra.mxu0 %v1650
        %v1896 = vpop.f32.mrf.mxu0
        %v1897 = vadd.f32 %v1808, %v1896
        %v1898 = vpop.f32.mrf.mxu0
        %v1899 = vadd.f32 %v1810, %v1898
        %1900 = vmatmul.bf16.gmra.mxu0 %v1653
        %v1901 = vpop.f32.mrf.mxu0
        %v1902 = vadd.f32 %v1813, %v1901
        %v1903 = vpop.f32.mrf.mxu0
        %v1904 = vadd.f32 %v1815, %v1903
        %1905 = vmatmul.bf16.gmra.mxu0 %v1656
        %v1906 = vpop.f32.mrf.mxu0
        %v1907 = vadd.f32 %v1818, %v1906
        %v1908 = vpop.f32.mrf.mxu0
        %v1909 = vadd.f32 %v1820, %v1908
        %1910 = vmatmul.bf16.gmra.mxu0 %v1659
        %v1911 = vpop.f32.mrf.mxu0
        %v1912 = vadd.f32 %v1823, %v1911
        %v1913 = vpop.f32.mrf.mxu0
        %v1914 = vadd.f32 %v1825, %v1913
        %1915 = vmatmul.bf16.gmra.mxu0 %v1662
        %v1916 = vpop.f32.mrf.mxu0
        %v1917 = vadd.f32 %v1828, %v1916
        %v1918 = vpop.f32.mrf.mxu0
        %v1919 = vadd.f32 %v1830, %v1918
        %1920 = vmatmul.bf16.gmra.mxu0 %v1665
        %v1921 = vpop.f32.mrf.mxu0
        %v1922 = vadd.f32 %v1833, %v1921
        %v1923 = vpop.f32.mrf.mxu0
        %v1924 = vadd.f32 %v1835, %v1923
        %1925 = vmatmul.bf16.gmra.mxu0 %v1668
        %v1926 = vpop.f32.mrf.mxu0
        %v1927 = vadd.f32 %v1838, %v1926
        %v1928 = vpop.f32.mrf.mxu0
        %v1929 = vadd.f32 %v1840, %v1928
        %1930 = vmatmul.bf16.gmra.mxu0 %v1671
        %v1931 = vpop.f32.mrf.mxu0
        %v1932 = vadd.f32 %v1843, %v1931
        %v1933 = vpop.f32.mrf.mxu0
        %v1934 = vadd.f32 %v1845, %v1933
        %1935 = vmatmul.bf16.gmra.mxu0 %v1674
        %v1936 = vpop.f32.mrf.mxu0
        %v1937 = vadd.f32 %v1848, %v1936
        %v1938 = vpop.f32.mrf.mxu0
        %v1939 = vadd.f32 %v1850, %v1938
        %1940 = vmatmul.bf16.gmra.mxu0 %v1677
        %v1941 = vpop.f32.mrf.mxu0
        %v1942 = vadd.f32 %v1853, %v1941
        %v1943 = vpop.f32.mrf.mxu0
        %v1944 = vadd.f32 %v1855, %v1943
        %1945 = vdwg.mxu0
        %v1946 = vld [vmem:[%s5] sm:$0xf]
        %v1947 = vld [vmem:[%s5 + $0x4] sm:$0xf]
        %v1948 = vld [vmem:[%s5 + $0x8] sm:$0xf]
        %v1949 = vld [vmem:[%s5 + $0xc] sm:$0xf]
        %v1950 = vld [vmem:[%s5 + $0x10] sm:$0xf]
        %v1951 = vld [vmem:[%s5 + $0x14] sm:$0xf]
        %v1952 = vld [vmem:[%s5 + $0x18] sm:$0xf]
        %v1953 = vld [vmem:[%s5 + $0x1c] sm:$0xf]
        %v1954 = vld [vmem:[%s5 + $0x20] sm:$0xf]
        %v1955 = vld [vmem:[%s5 + $0x24] sm:$0xf]
        %v1956 = vld [vmem:[%s5 + $0x28] sm:$0xf]
        %v1957 = vld [vmem:[%s5 + $0x2c] sm:$0xf]
        %v1958 = vld [vmem:[%s5 + $0x30] sm:$0xf]
        %v1959 = vld [vmem:[%s5 + $0x34] sm:$0xf]
        %v1960 = vld [vmem:[%s5 + $0x38] sm:$0xf]
        %v1961 = vld [vmem:[%s5 + $0x3c] sm:$0xf]
        %v1962 = vld [vmem:[%s5 + $0x40] sm:$0xf]
        %v1963 = vld [vmem:[%s5 + $0x44] sm:$0xf]
        %v1964 = vld [vmem:[%s5 + $0x48] sm:$0xf]
        %v1965 = vld [vmem:[%s5 + $0x4c] sm:$0xf]
        %v1966 = vld [vmem:[%s5 + $0x50] sm:$0xf]
        %v1967 = vld [vmem:[%s5 + $0x54] sm:$0xf]
        %v1968 = vld [vmem:[%s5 + $0x58] sm:$0xf]
        %v1969 = vld [vmem:[%s5 + $0x5c] sm:$0xf]
        %v1970 = vld [vmem:[%s5 + $0x60] sm:$0xf]
        %v1971 = vld [vmem:[%s5 + $0x64] sm:$0xf]
        %v1972 = vld [vmem:[%s5 + $0x68] sm:$0xf]
        %v1973 = vld [vmem:[%s5 + $0x6c] sm:$0xf]
        %v1974 = vld [vmem:[%s5 + $0x70] sm:$0xf]
        %v1975 = vld [vmem:[%s5 + $0x74] sm:$0xf]
        %v1976 = vld [vmem:[%s5 + $0x78] sm:$0xf]
        %v1977 = vld [vmem:[%s5 + $0x7c] sm:$0xf]
        %v1978 = vld [vmem:[%s5 + $0x80] sm:$0xf]
        %v1979 = vld [vmem:[%s5 + $0x84] sm:$0xf]
        %v1980 = vld [vmem:[%s5 + $0x88] sm:$0xf]
        %v1981 = vld [vmem:[%s5 + $0x8c] sm:$0xf]
        %v1982 = vld [vmem:[%s6] sm:$0x1]
        %v1984 = vperm.slane %v1982, 0
        %v2022 = vunpack.c.l.b16 %v1946
        %v2023 = vunpack.c.l.b16 %v1947
        %v2024 = vunpack.c.l.b16 %v1948
        %v2025 = vunpack.c.l.b16 %v1949
        %v2026 = vunpack.c.l.b16 %v1950
        %v2027 = vunpack.c.l.b16 %v1951
        %v2028 = vunpack.c.l.b16 %v1952
        %v2029 = vunpack.c.l.b16 %v1953
        %v2030 = vunpack.c.l.b16 %v1954
        %v2031 = vunpack.c.l.b16 %v1955
        %v2032 = vunpack.c.l.b16 %v1956
        %v2033 = vunpack.c.l.b16 %v1957
        %v2034 = vunpack.c.l.b16 %v1958
        %v2035 = vunpack.c.l.b16 %v1959
        %v2036 = vunpack.c.l.b16 %v1960
        %v2037 = vunpack.c.l.b16 %v1961
        %v2038 = vunpack.c.l.b16 %v1962
        %v2039 = vunpack.c.l.b16 %v1963
        %v2040 = vunpack.c.l.b16 %v1964
        %v2041 = vunpack.c.l.b16 %v1965
        %v2042 = vunpack.c.l.b16 %v1966
        %v2043 = vunpack.c.l.b16 %v1967
        %v2044 = vunpack.c.l.b16 %v1968
        %v2045 = vunpack.c.l.b16 %v1969
        %v2046 = vunpack.c.l.b16 %v1970
        %v2047 = vunpack.c.l.b16 %v1971
        %v2048 = vunpack.c.l.b16 %v1972
        %v2049 = vunpack.c.l.b16 %v1973
        %v2050 = vunpack.c.l.b16 %v1974
        %v2051 = vunpack.c.l.b16 %v1975
        %v2052 = vunpack.c.l.b16 %v1976
        %v2053 = vunpack.c.l.b16 %v1977
        %v2054 = vunpack.c.l.b16 %v1978
        %v2055 = vunpack.c.l.b16 %v1979
        %v2056 = vunpack.c.l.b16 %v1980
        %v2057 = vunpack.c.l.b16 %v1981
        %v2058 = vpack.c.b16 %v2023, %v2022
        %v2059 = vpack.c.b16 %v2025, %v2024
        %v2060 = vpack.c.b16 %v2027, %v2026
        %v2061 = vpack.c.b16 %v2029, %v2028
        %v2062 = vpack.c.b16 %v2031, %v2030
        %v2063 = vpack.c.b16 %v2033, %v2032
        %v2064 = vpack.c.b16 %v2035, %v2034
        %v2065 = vpack.c.b16 %v2037, %v2036
        %v2066 = vpack.c.b16 %v2039, %v2038
        %v2067 = vpack.c.b16 %v2041, %v2040
        %v2068 = vpack.c.b16 %v2043, %v2042
        %v2069 = vpack.c.b16 %v2045, %v2044
        %v2070 = vpack.c.b16 %v2047, %v2046
        %v2071 = vpack.c.b16 %v2049, %v2048
        %v2072 = vpack.c.b16 %v2051, %v2050
        %v2073 = vpack.c.b16 %v2053, %v2052
        %v2074 = vpack.c.b16 %v2055, %v2054
        %v2075 = vpack.c.b16 %v2057, %v2056
        %2094 = vmatpush.bf16.msra.mxu0 %v2065
        %2095 = vmatpush.bf16.msra.mxu0 %v2064
        %2096 = vmatpush.bf16.msra.mxu0 %v2063
        %2097 = vmatpush.bf16.msra.mxu0 %v2062
        %2098 = vmatpush.bf16.msra.mxu0 %v2061
        %2099 = vmatpush.bf16.msra.mxu0 %v2060
        %2100 = vmatpush.bf16.msra.mxu0 %v2059
        %2101 = vmatpush.bf16.msra.mxu0 %v2058
        %2102 = vmatmul.bf16.gmra.mxu0 %v1308
        %v2103 = vpop.f32.mrf.mxu0
        %v2104 = vadd.f32 %v1984, %v2103
        %v2105 = vpop.f32.mrf.mxu0
        %v2106 = vadd.f32 %v1984, %v2105
        %2107 = vmatmul.bf16.gmra.mxu0 %v1311
        %v2108 = vpop.f32.mrf.mxu0
        %v2109 = vadd.f32 %v1984, %v2108
        %v2110 = vpop.f32.mrf.mxu0
        %v2111 = vadd.f32 %v1984, %v2110
        %2112 = vmatmul.bf16.gmra.mxu0 %v1314
        %v2113 = vpop.f32.mrf.mxu0
        %v2114 = vadd.f32 %v1984, %v2113
        %v2115 = vpop.f32.mrf.mxu0
        %v2116 = vadd.f32 %v1984, %v2115
        %2117 = vmatmul.bf16.gmra.mxu0 %v1317
        %v2118 = vpop.f32.mrf.mxu0
        %v2119 = vadd.f32 %v1984, %v2118
        %v2120 = vpop.f32.mrf.mxu0
        %v2121 = vadd.f32 %v1984, %v2120
        %2122 = vmatmul.bf16.gmra.mxu0 %v1320
        %v2123 = vpop.f32.mrf.mxu0
        %v2124 = vadd.f32 %v1984, %v2123
        %v2125 = vpop.f32.mrf.mxu0
        %v2126 = vadd.f32 %v1984, %v2125
        %2127 = vmatmul.bf16.gmra.mxu0 %v1323
        %v2128 = vpop.f32.mrf.mxu0
        %v2129 = vadd.f32 %v1984, %v2128
        %v2130 = vpop.f32.mrf.mxu0
        %v2131 = vadd.f32 %v1984, %v2130
        %2132 = vmatmul.bf16.gmra.mxu0 %v1326
        %v2133 = vpop.f32.mrf.mxu0
        %v2134 = vadd.f32 %v1984, %v2133
        %v2135 = vpop.f32.mrf.mxu0
        %v2136 = vadd.f32 %v1984, %v2135
        %2137 = vmatmul.bf16.gmra.mxu0 %v1329
        %v2138 = vpop.f32.mrf.mxu0
        %v2139 = vadd.f32 %v1984, %v2138
        %v2140 = vpop.f32.mrf.mxu0
        %v2141 = vadd.f32 %v1984, %v2140
        %2142 = vmatmul.bf16.gmra.mxu0 %v1332
        %v2143 = vpop.f32.mrf.mxu0
        %v2144 = vadd.f32 %v1984, %v2143
        %v2145 = vpop.f32.mrf.mxu0
        %v2146 = vadd.f32 %v1984, %v2145
        %2147 = vmatmul.bf16.gmra.mxu0 %v1335
        %v2148 = vpop.f32.mrf.mxu0
        %v2149 = vadd.f32 %v1984, %v2148
        %v2150 = vpop.f32.mrf.mxu0
        %v2151 = vadd.f32 %v1984, %v2150
        %2152 = vmatmul.bf16.gmra.mxu0 %v1338
        %v2153 = vpop.f32.mrf.mxu0
        %v2154 = vadd.f32 %v1984, %v2153
        %v2155 = vpop.f32.mrf.mxu0
        %v2156 = vadd.f32 %v1984, %v2155
        %2157 = vmatmul.bf16.gmra.mxu0 %v1341
        %v2158 = vpop.f32.mrf.mxu0
        %v2159 = vadd.f32 %v1984, %v2158
        %v2160 = vpop.f32.mrf.mxu0
        %v2161 = vadd.f32 %v1984, %v2160
        %2162 = vmatmul.bf16.gmra.mxu0 %v1344
        %v2163 = vpop.f32.mrf.mxu0
        %v2164 = vadd.f32 %v1984, %v2163
        %v2165 = vpop.f32.mrf.mxu0
        %v2166 = vadd.f32 %v1984, %v2165
        %2167 = vmatmul.bf16.gmra.mxu0 %v1347
        %v2168 = vpop.f32.mrf.mxu0
        %v2169 = vadd.f32 %v1984, %v2168
        %v2170 = vpop.f32.mrf.mxu0
        %v2171 = vadd.f32 %v1984, %v2170
        %2172 = vmatmul.bf16.gmra.mxu0 %v1350
        %v2173 = vpop.f32.mrf.mxu0
        %v2174 = vadd.f32 %v1984, %v2173
        %v2175 = vpop.f32.mrf.mxu0
        %v2176 = vadd.f32 %v1984, %v2175
        %2177 = vmatmul.bf16.gmra.mxu0 %v1353
        %v2178 = vpop.f32.mrf.mxu0
        %v2179 = vadd.f32 %v1984, %v2178
        %v2180 = vpop.f32.mrf.mxu0
        %v2181 = vadd.f32 %v1984, %v2180
        %2182 = vdwg.mxu0
        %2183 = vmatpush.bf16.msra.mxu0 %v2073
        %2184 = vmatpush.bf16.msra.mxu0 %v2072
        %2185 = vmatpush.bf16.msra.mxu0 %v2071
        %2186 = vmatpush.bf16.msra.mxu0 %v2070
        %2187 = vmatpush.bf16.msra.mxu0 %v2069
        %2188 = vmatpush.bf16.msra.mxu0 %v2068
        %2189 = vmatpush.bf16.msra.mxu0 %v2067
        %2190 = vmatpush.bf16.msra.mxu0 %v2066
        %2191 = vmatmul.bf16.gmra.mxu0 %v1436
        %v2192 = vpop.f32.mrf.mxu0
        %v2193 = vadd.f32 %v2104, %v2192
        %v2194 = vpop.f32.mrf.mxu0
        %v2195 = vadd.f32 %v2106, %v2194
        %2196 = vmatmul.bf16.gmra.mxu0 %v1439
        %v2197 = vpop.f32.mrf.mxu0
        %v2198 = vadd.f32 %v2109, %v2197
        %v2199 = vpop.f32.mrf.mxu0
        %v2200 = vadd.f32 %v2111, %v2199
        %2201 = vmatmul.bf16.gmra.mxu0 %v1442
        %v2202 = vpop.f32.mrf.mxu0
        %v2203 = vadd.f32 %v2114, %v2202
        %v2204 = vpop.f32.mrf.mxu0
        %v2205 = vadd.f32 %v2116, %v2204
        %2206 = vmatmul.bf16.gmra.mxu0 %v1445
        %v2207 = vpop.f32.mrf.mxu0
        %v2208 = vadd.f32 %v2119, %v2207
        %v2209 = vpop.f32.mrf.mxu0
        %v2210 = vadd.f32 %v2121, %v2209
        %2211 = vmatmul.bf16.gmra.mxu0 %v1448
        %v2212 = vpop.f32.mrf.mxu0
        %v2213 = vadd.f32 %v2124, %v2212
        %v2214 = vpop.f32.mrf.mxu0
        %v2215 = vadd.f32 %v2126, %v2214
        %2216 = vmatmul.bf16.gmra.mxu0 %v1451
        %v2217 = vpop.f32.mrf.mxu0
        %v2218 = vadd.f32 %v2129, %v2217
        %v2219 = vpop.f32.mrf.mxu0
        %v2220 = vadd.f32 %v2131, %v2219
        %2221 = vmatmul.bf16.gmra.mxu0 %v1454
        %v2222 = vpop.f32.mrf.mxu0
        %v2223 = vadd.f32 %v2134, %v2222
        %v2224 = vpop.f32.mrf.mxu0
        %v2225 = vadd.f32 %v2136, %v2224
        %2226 = vmatmul.bf16.gmra.mxu0 %v1457
        %v2227 = vpop.f32.mrf.mxu0
        %v2228 = vadd.f32 %v2139, %v2227
        %v2229 = vpop.f32.mrf.mxu0
        %v2230 = vadd.f32 %v2141, %v2229
        %2231 = vmatmul.bf16.gmra.mxu0 %v1460
        %v2232 = vpop.f32.mrf.mxu0
        %v2233 = vadd.f32 %v2144, %v2232
        %v2234 = vpop.f32.mrf.mxu0
        %v2235 = vadd.f32 %v2146, %v2234
        %2236 = vmatmul.bf16.gmra.mxu0 %v1463
        %v2237 = vpop.f32.mrf.mxu0
        %v2238 = vadd.f32 %v2149, %v2237
        %v2239 = vpop.f32.mrf.mxu0
        %v2240 = vadd.f32 %v2151, %v2239
        %2241 = vmatmul.bf16.gmra.mxu0 %v1466
        %v2242 = vpop.f32.mrf.mxu0
        %v2243 = vadd.f32 %v2154, %v2242
        %v2244 = vpop.f32.mrf.mxu0
        %v2245 = vadd.f32 %v2156, %v2244
        %2246 = vmatmul.bf16.gmra.mxu0 %v1469
        %v2247 = vpop.f32.mrf.mxu0
        %v2248 = vadd.f32 %v2159, %v2247
        %v2249 = vpop.f32.mrf.mxu0
        %v2250 = vadd.f32 %v2161, %v2249
        %2251 = vmatmul.bf16.gmra.mxu0 %v1472
        %v2252 = vpop.f32.mrf.mxu0
        %v2253 = vadd.f32 %v2164, %v2252
        %v2254 = vpop.f32.mrf.mxu0
        %v2255 = vadd.f32 %v2166, %v2254
        %2256 = vmatmul.bf16.gmra.mxu0 %v1475
        %v2257 = vpop.f32.mrf.mxu0
        %v2258 = vadd.f32 %v2169, %v2257
        %v2259 = vpop.f32.mrf.mxu0
        %v2260 = vadd.f32 %v2171, %v2259
        %2261 = vmatmul.bf16.gmra.mxu0 %v1478
        %v2262 = vpop.f32.mrf.mxu0
        %v2263 = vadd.f32 %v2174, %v2262
        %v2264 = vpop.f32.mrf.mxu0
        %v2265 = vadd.f32 %v2176, %v2264
        %2266 = vmatmul.bf16.gmra.mxu0 %v1481
        %v2267 = vpop.f32.mrf.mxu0
        %v2268 = vadd.f32 %v2179, %v2267
        %v2269 = vpop.f32.mrf.mxu0
        %v2270 = vadd.f32 %v2181, %v2269
        %2271 = vdwg.mxu0
        %2272 = vmatpush.bf16.msra.mxu0 0
        %2273 = vmatpush.bf16.msra.mxu0 0
        %2274 = vmatpush.bf16.msra.mxu0 0
        %2275 = vmatpush.bf16.msra.mxu0 0
        %2276 = vmatpush.bf16.msra.mxu0 0
        %2277 = vmatpush.bf16.msra.mxu0 0
        %2278 = vmatpush.bf16.msra.mxu0 %v2075
        %2279 = vmatpush.bf16.msra.mxu0 %v2074
        %2280 = vmatmul.bf16.gmra.mxu0 %v1632
        %v2281 = vpop.f32.mrf.mxu0
        %v2282 = vadd.f32 %v2193, %v2281
        %v2283 = vpop.f32.mrf.mxu0
        %v2284 = vadd.f32 %v2195, %v2283
        %2285 = vmatmul.bf16.gmra.mxu0 %v1635
        %v2286 = vpop.f32.mrf.mxu0
        %v2287 = vadd.f32 %v2198, %v2286
        %v2288 = vpop.f32.mrf.mxu0
        %v2289 = vadd.f32 %v2200, %v2288
        %2290 = vmatmul.bf16.gmra.mxu0 %v1638
        %v2291 = vpop.f32.mrf.mxu0
        %v2292 = vadd.f32 %v2203, %v2291
        %v2293 = vpop.f32.mrf.mxu0
        %v2294 = vadd.f32 %v2205, %v2293
        %2295 = vmatmul.bf16.gmra.mxu0 %v1641
        %v2296 = vpop.f32.mrf.mxu0
        %v2297 = vadd.f32 %v2208, %v2296
        %v2298 = vpop.f32.mrf.mxu0
        %v2299 = vadd.f32 %v2210, %v2298
        %2300 = vmatmul.bf16.gmra.mxu0 %v1644
        %v2301 = vpop.f32.mrf.mxu0
        %v2302 = vadd.f32 %v2213, %v2301
        %v2303 = vpop.f32.mrf.mxu0
        %v2304 = vadd.f32 %v2215, %v2303
        %2305 = vmatmul.bf16.gmra.mxu0 %v1647
        %v2306 = vpop.f32.mrf.mxu0
        %v2307 = vadd.f32 %v2218, %v2306
        %v2308 = vpop.f32.mrf.mxu0
        %v2309 = vadd.f32 %v2220, %v2308
        %2310 = vmatmul.bf16.gmra.mxu0 %v1650
        %v2311 = vpop.f32.mrf.mxu0
        %v2312 = vadd.f32 %v2223, %v2311
        %v2313 = vpop.f32.mrf.mxu0
        %v2314 = vadd.f32 %v2225, %v2313
        %2315 = vmatmul.bf16.gmra.mxu0 %v1653
        %v2316 = vpop.f32.mrf.mxu0
        %v2317 = vadd.f32 %v2228, %v2316
        %v2318 = vpop.f32.mrf.mxu0
        %v2319 = vadd.f32 %v2230, %v2318
        %2320 = vmatmul.bf16.gmra.mxu0 %v1656
        %v2321 = vpop.f32.mrf.mxu0
        %v2322 = vadd.f32 %v2233, %v2321
        %v2323 = vpop.f32.mrf.mxu0
        %v2324 = vadd.f32 %v2235, %v2323
        %2325 = vmatmul.bf16.gmra.mxu0 %v1659
        %v2326 = vpop.f32.mrf.mxu0
        %v2327 = vadd.f32 %v2238, %v2326
        %v2328 = vpop.f32.mrf.mxu0
        %v2329 = vadd.f32 %v2240, %v2328
        %2330 = vmatmul.bf16.gmra.mxu0 %v1662
        %v2331 = vpop.f32.mrf.mxu0
        %v2332 = vadd.f32 %v2243, %v2331
        %v2333 = vpop.f32.mrf.mxu0
        %v2334 = vadd.f32 %v2245, %v2333
        %2335 = vmatmul.bf16.gmra.mxu0 %v1665
        %v2336 = vpop.f32.mrf.mxu0
        %v2337 = vadd.f32 %v2248, %v2336
        %v2338 = vpop.f32.mrf.mxu0
        %v2339 = vadd.f32 %v2250, %v2338
        %2340 = vmatmul.bf16.gmra.mxu0 %v1668
        %v2341 = vpop.f32.mrf.mxu0
        %v2342 = vadd.f32 %v2253, %v2341
        %v2343 = vpop.f32.mrf.mxu0
        %v2344 = vadd.f32 %v2255, %v2343
        %2345 = vmatmul.bf16.gmra.mxu0 %v1671
        %v2346 = vpop.f32.mrf.mxu0
        %v2347 = vadd.f32 %v2258, %v2346
        %v2348 = vpop.f32.mrf.mxu0
        %v2349 = vadd.f32 %v2260, %v2348
        %2350 = vmatmul.bf16.gmra.mxu0 %v1674
        %v2351 = vpop.f32.mrf.mxu0
        %v2352 = vadd.f32 %v2263, %v2351
        %v2353 = vpop.f32.mrf.mxu0
        %v2354 = vadd.f32 %v2265, %v2353
        %2355 = vmatmul.bf16.gmra.mxu0 %v1677
        %v2356 = vpop.f32.mrf.mxu0
        %v2357 = vadd.f32 %v2268, %v2356
        %v2358 = vpop.f32.mrf.mxu0
        %v2359 = vadd.f32 %v2270, %v2358
        %2360 = vdwg.mxu0
        %v2361 = vld [vmem:[%s3] sm:$0x1]
        %v2362 = vld [vmem:[%s4] sm:$0x1]
        %v2363 = vsel %vm440, %v1867, 0.0
        %v2364 = vsel %vm440, %v1869, 0.0
        %v2365 = vadd.f32 %v2363, %v2364
        %v2366 = vsel %vm440, %v1872, 0.0
        %v2367 = vadd.f32 %v2365, %v2366
        %v2368 = vsel %vm440, %v1874, 0.0
        %v2369 = vadd.f32 %v2367, %v2368
        %v2370 = vsel %vm440, %v1877, 0.0
        %v2371 = vadd.f32 %v2369, %v2370
        %v2372 = vsel %vm440, %v1879, 0.0
        %v2373 = vadd.f32 %v2371, %v2372
        %v2374 = vsel %vm440, %v1882, 0.0
        %v2375 = vadd.f32 %v2373, %v2374
        %v2376 = vsel %vm440, %v1884, 0.0
        %v2377 = vadd.f32 %v2375, %v2376
        %v2378 = vsel %vm440, %v1887, 0.0
        %v2379 = vadd.f32 %v2377, %v2378
        %v2380 = vsel %vm440, %v1889, 0.0
        %v2381 = vadd.f32 %v2379, %v2380
        %v2382 = vsel %vm440, %v1892, 0.0
        %v2383 = vadd.f32 %v2381, %v2382
        %v2384 = vsel %vm440, %v1894, 0.0
        %v2385 = vadd.f32 %v2383, %v2384
        %v2386 = vsel %vm440, %v1897, 0.0
        %v2387 = vadd.f32 %v2385, %v2386
        %v2388 = vsel %vm440, %v1899, 0.0
        %v2389 = vadd.f32 %v2387, %v2388
        %v2390 = vsel %vm440, %v1902, 0.0
        %v2391 = vadd.f32 %v2389, %v2390
        %v2392 = vsel %vm440, %v1904, 0.0
        %v2393 = vadd.f32 %v2391, %v2392
        %v2394 = vsel %vm440, %v1907, 0.0
        %v2395 = vadd.f32 %v2393, %v2394
        %v2396 = vsel %vm440, %v1909, 0.0
        %v2397 = vadd.f32 %v2395, %v2396
        %v2398 = vsel %vm440, %v1912, 0.0
        %v2399 = vadd.f32 %v2397, %v2398
        %v2400 = vsel %vm440, %v1914, 0.0
        %v2401 = vadd.f32 %v2399, %v2400
        %v2402 = vsel %vm440, %v1917, 0.0
        %v2403 = vadd.f32 %v2401, %v2402
        %v2404 = vsel %vm440, %v1919, 0.0
        %v2405 = vadd.f32 %v2403, %v2404
        %v2406 = vsel %vm440, %v1922, 0.0
        %v2407 = vadd.f32 %v2405, %v2406
        %v2408 = vsel %vm440, %v1924, 0.0
        %v2409 = vadd.f32 %v2407, %v2408
        %v2410 = vsel %vm440, %v1927, 0.0
        %v2411 = vadd.f32 %v2409, %v2410
        %v2412 = vsel %vm440, %v1929, 0.0
        %v2413 = vadd.f32 %v2411, %v2412
        %v2414 = vsel %vm440, %v1932, 0.0
        %v2415 = vadd.f32 %v2413, %v2414
        %v2416 = vsel %vm440, %v1934, 0.0
        %v2417 = vadd.f32 %v2415, %v2416
        %v2418 = vsel %vm440, %v1937, 0.0
        %v2419 = vadd.f32 %v2417, %v2418
        %v2420 = vsel %vm440, %v1939, 0.0
        %v2421 = vadd.f32 %v2419, %v2420
        %v2422 = vsel %vm440, %v1942, 0.0
        %v2423 = vadd.f32 %v2421, %v2422
        %v2424 = vsel %vm440, %v1944, 0.0
        %v2425 = vadd.f32 %v2423, %v2424
        %v2426 = vrot.slane %v2425, 4
        %v2427 = vadd.f32 %v2425, %v2426
        %v2428 = vrot.slane %v2427, 2
        %v2429 = vadd.f32 %v2427, %v2428
        %v2430 = vrot.slane %v2429, 1
        %v2431 = vadd.f32 %v2429, %v2430
        %v2432 = vrcp.pop 256.0
        %v2433 = vmul.f32 256.0, %v2432
        %v2434 = vsub.f32 1.0, %v2433
        %v2435 = vmul.f32 %v2432, %v2434
        %v2436 = vadd.f32 %v2432, %v2435
        %vm2437 = vweird.f32 %v2432
        %v2438 = vsel %vm2437, %v2432, %v2436
        %v2439 = vmul.f32 %v2431, %v2438
        %v2440 = vsub.f32 %v1867, %v2439
        %v2441 = vsub.f32 %v1869, %v2439
        %v2442 = vsub.f32 %v1872, %v2439
        %v2443 = vsub.f32 %v1874, %v2439
        %v2444 = vsub.f32 %v1877, %v2439
        %v2445 = vsub.f32 %v1879, %v2439
        %v2446 = vsub.f32 %v1882, %v2439
        %v2447 = vsub.f32 %v1884, %v2439
        %v2448 = vsub.f32 %v1887, %v2439
        %v2449 = vsub.f32 %v1889, %v2439
        %v2450 = vsub.f32 %v1892, %v2439
        %v2451 = vsub.f32 %v1894, %v2439
        %v2452 = vsub.f32 %v1897, %v2439
        %v2453 = vsub.f32 %v1899, %v2439
        %v2454 = vsub.f32 %v1902, %v2439
        %v2455 = vsub.f32 %v1904, %v2439
        %v2456 = vsub.f32 %v1907, %v2439
        %v2457 = vsub.f32 %v1909, %v2439
        %v2458 = vsub.f32 %v1912, %v2439
        %v2459 = vsub.f32 %v1914, %v2439
        %v2460 = vsub.f32 %v1917, %v2439
        %v2461 = vsub.f32 %v1919, %v2439
        %v2462 = vsub.f32 %v1922, %v2439
        %v2463 = vsub.f32 %v1924, %v2439
        %v2464 = vsub.f32 %v1927, %v2439
        %v2465 = vsub.f32 %v1929, %v2439
        %v2466 = vsub.f32 %v1932, %v2439
        %v2467 = vsub.f32 %v1934, %v2439
        %v2468 = vsub.f32 %v1937, %v2439
        %v2469 = vsub.f32 %v1939, %v2439
        %v2470 = vsub.f32 %v1942, %v2439
        %v2471 = vsub.f32 %v1944, %v2439
        %v2472 = vmul.f32 %v2440, %v2440
        %v2473 = vmul.f32 %v2441, %v2441
        %v2474 = vmul.f32 %v2442, %v2442
        %v2475 = vmul.f32 %v2443, %v2443
        %v2476 = vmul.f32 %v2444, %v2444
        %v2477 = vmul.f32 %v2445, %v2445
        %v2478 = vmul.f32 %v2446, %v2446
        %v2479 = vmul.f32 %v2447, %v2447
        %v2480 = vmul.f32 %v2448, %v2448
        %v2481 = vmul.f32 %v2449, %v2449
        %v2482 = vmul.f32 %v2450, %v2450
        %v2483 = vmul.f32 %v2451, %v2451
        %v2484 = vmul.f32 %v2452, %v2452
        %v2485 = vmul.f32 %v2453, %v2453
        %v2486 = vmul.f32 %v2454, %v2454
        %v2487 = vmul.f32 %v2455, %v2455
        %v2488 = vmul.f32 %v2456, %v2456
        %v2489 = vmul.f32 %v2457, %v2457
        %v2490 = vmul.f32 %v2458, %v2458
        %v2491 = vmul.f32 %v2459, %v2459
        %v2492 = vmul.f32 %v2460, %v2460
        %v2493 = vmul.f32 %v2461, %v2461
        %v2494 = vmul.f32 %v2462, %v2462
        %v2495 = vmul.f32 %v2463, %v2463
        %v2496 = vmul.f32 %v2464, %v2464
        %v2497 = vmul.f32 %v2465, %v2465
        %v2498 = vmul.f32 %v2466, %v2466
        %v2499 = vmul.f32 %v2467, %v2467
        %v2500 = vmul.f32 %v2468, %v2468
        %v2501 = vmul.f32 %v2469, %v2469
        %v2502 = vmul.f32 %v2470, %v2470
        %v2503 = vmul.f32 %v2471, %v2471
        %v2504 = vsel %vm440, %v2472, 0.0
        %v2505 = vsel %vm440, %v2473, 0.0
        %v2506 = vadd.f32 %v2504, %v2505
        %v2507 = vsel %vm440, %v2474, 0.0
        %v2508 = vadd.f32 %v2506, %v2507
        %v2509 = vsel %vm440, %v2475, 0.0
        %v2510 = vadd.f32 %v2508, %v2509
        %v2511 = vsel %vm440, %v2476, 0.0
        %v2512 = vadd.f32 %v2510, %v2511
        %v2513 = vsel %vm440, %v2477, 0.0
        %v2514 = vadd.f32 %v2512, %v2513
        %v2515 = vsel %vm440, %v2478, 0.0
        %v2516 = vadd.f32 %v2514, %v2515
        %v2517 = vsel %vm440, %v2479, 0.0
        %v2518 = vadd.f32 %v2516, %v2517
        %v2519 = vsel %vm440, %v2480, 0.0
        %v2520 = vadd.f32 %v2518, %v2519
        %v2521 = vsel %vm440, %v2481, 0.0
        %v2522 = vadd.f32 %v2520, %v2521
        %v2523 = vsel %vm440, %v2482, 0.0
        %v2524 = vadd.f32 %v2522, %v2523
        %v2525 = vsel %vm440, %v2483, 0.0
        %v2526 = vadd.f32 %v2524, %v2525
        %v2527 = vsel %vm440, %v2484, 0.0
        %v2528 = vadd.f32 %v2526, %v2527
        %v2529 = vsel %vm440, %v2485, 0.0
        %v2530 = vadd.f32 %v2528, %v2529
        %v2531 = vsel %vm440, %v2486, 0.0
        %v2532 = vadd.f32 %v2530, %v2531
        %v2533 = vsel %vm440, %v2487, 0.0
        %v2534 = vadd.f32 %v2532, %v2533
        %v2535 = vsel %vm440, %v2488, 0.0
        %v2536 = vadd.f32 %v2534, %v2535
        %v2537 = vsel %vm440, %v2489, 0.0
        %v2538 = vadd.f32 %v2536, %v2537
        %v2539 = vsel %vm440, %v2490, 0.0
        %v2540 = vadd.f32 %v2538, %v2539
        %v2541 = vsel %vm440, %v2491, 0.0
        %v2542 = vadd.f32 %v2540, %v2541
        %v2543 = vsel %vm440, %v2492, 0.0
        %v2544 = vadd.f32 %v2542, %v2543
        %v2545 = vsel %vm440, %v2493, 0.0
        %v2546 = vadd.f32 %v2544, %v2545
        %v2547 = vsel %vm440, %v2494, 0.0
        %v2548 = vadd.f32 %v2546, %v2547
        %v2549 = vsel %vm440, %v2495, 0.0
        %v2550 = vadd.f32 %v2548, %v2549
        %v2551 = vsel %vm440, %v2496, 0.0
        %v2552 = vadd.f32 %v2550, %v2551
        %v2553 = vsel %vm440, %v2497, 0.0
        %v2554 = vadd.f32 %v2552, %v2553
        %v2555 = vsel %vm440, %v2498, 0.0
        %v2556 = vadd.f32 %v2554, %v2555
        %v2557 = vsel %vm440, %v2499, 0.0
        %v2558 = vadd.f32 %v2556, %v2557
        %v2559 = vsel %vm440, %v2500, 0.0
        %v2560 = vadd.f32 %v2558, %v2559
        %v2561 = vsel %vm440, %v2501, 0.0
        %v2562 = vadd.f32 %v2560, %v2561
        %v2563 = vsel %vm440, %v2502, 0.0
        %v2564 = vadd.f32 %v2562, %v2563
        %v2565 = vsel %vm440, %v2503, 0.0
        %v2566 = vadd.f32 %v2564, %v2565
        %v2567 = vrot.slane %v2566, 4
        %v2568 = vadd.f32 %v2566, %v2567
        %v2569 = vrot.slane %v2568, 2
        %v2570 = vadd.f32 %v2568, %v2569
        %v2571 = vrot.slane %v2570, 1
        %v2572 = vadd.f32 %v2570, %v2571
        %v2573 = vmul.f32 %v2572, %v2438
        %v2574 = vadd.f32 %v2573, 1e-05
        %v2575 = vrsqrt.pop %v2574
        %v2576 = vmul.f32 %v2575, %v2574
        %v2577 = vmul.f32 %v2576, %v2575
        %v2578 = vmul.f32 0.5, %v2577
        %v2579 = vsub.f32 1.5, %v2578
        %v2580 = vmul.f32 %v2575, %v2579
        %vm2581 = vweird.f32 %v2574
        %vm2582 = vweird.f32 %v2575
        %vm2583 = vmor %vm2581, %vm2582
        %v2584 = vsel %vm2583, %v2575, %v2580
        %v2585 = vmul.f32 %v2440, %v2584
        %v2586 = vmul.f32 %v2441, %v2584
        %v2587 = vmul.f32 %v2442, %v2584
        %v2588 = vmul.f32 %v2443, %v2584
        %v2589 = vmul.f32 %v2444, %v2584
        %v2590 = vmul.f32 %v2445, %v2584
        %v2591 = vmul.f32 %v2446, %v2584
        %v2592 = vmul.f32 %v2447, %v2584
        %v2593 = vmul.f32 %v2448, %v2584
        %v2594 = vmul.f32 %v2449, %v2584
        %v2595 = vmul.f32 %v2450, %v2584
        %v2596 = vmul.f32 %v2451, %v2584
        %v2597 = vmul.f32 %v2452, %v2584
        %v2598 = vmul.f32 %v2453, %v2584
        %v2599 = vmul.f32 %v2454, %v2584
        %v2600 = vmul.f32 %v2455, %v2584
        %v2601 = vmul.f32 %v2456, %v2584
        %v2602 = vmul.f32 %v2457, %v2584
        %v2603 = vmul.f32 %v2458, %v2584
        %v2604 = vmul.f32 %v2459, %v2584
        %v2605 = vmul.f32 %v2460, %v2584
        %v2606 = vmul.f32 %v2461, %v2584
        %v2607 = vmul.f32 %v2462, %v2584
        %v2608 = vmul.f32 %v2463, %v2584
        %v2609 = vmul.f32 %v2464, %v2584
        %v2610 = vmul.f32 %v2465, %v2584
        %v2611 = vmul.f32 %v2466, %v2584
        %v2612 = vmul.f32 %v2467, %v2584
        %v2613 = vmul.f32 %v2468, %v2584
        %v2614 = vmul.f32 %v2469, %v2584
        %v2615 = vmul.f32 %v2470, %v2584
        %v2616 = vmul.f32 %v2471, %v2584
        %v2618 = vperm.slane %v2361, 0
        %v2620 = vmul.f32 %v2585, %v2618
        %v2621 = vmul.f32 %v2586, %v2618
        %v2622 = vmul.f32 %v2587, %v2618
        %v2623 = vmul.f32 %v2588, %v2618
        %v2624 = vmul.f32 %v2589, %v2618
        %v2625 = vmul.f32 %v2590, %v2618
        %v2626 = vmul.f32 %v2591, %v2618
        %v2627 = vmul.f32 %v2592, %v2618
        %v2628 = vmul.f32 %v2593, %v2618
        %v2629 = vmul.f32 %v2594, %v2618
        %v2630 = vmul.f32 %v2595, %v2618
        %v2631 = vmul.f32 %v2596, %v2618
        %v2632 = vmul.f32 %v2597, %v2618
        %v2633 = vmul.f32 %v2598, %v2618
        %v2634 = vmul.f32 %v2599, %v2618
        %v2635 = vmul.f32 %v2600, %v2618
        %v2636 = vmul.f32 %v2601, %v2618
        %v2637 = vmul.f32 %v2602, %v2618
        %v2638 = vmul.f32 %v2603, %v2618
        %v2639 = vmul.f32 %v2604, %v2618
        %v2640 = vmul.f32 %v2605, %v2618
        %v2641 = vmul.f32 %v2606, %v2618
        %v2642 = vmul.f32 %v2607, %v2618
        %v2643 = vmul.f32 %v2608, %v2618
        %v2644 = vmul.f32 %v2609, %v2618
        %v2645 = vmul.f32 %v2610, %v2618
        %v2646 = vmul.f32 %v2611, %v2618
        %v2647 = vmul.f32 %v2612, %v2618
        %v2648 = vmul.f32 %v2613, %v2618
        %v2649 = vmul.f32 %v2614, %v2618
        %v2650 = vmul.f32 %v2615, %v2618
        %v2651 = vmul.f32 %v2616, %v2618
        %v2653 = vperm.slane %v2362, 0
        %v2655 = vadd.f32 %v2620, %v2653
        %v2656 = vadd.f32 %v2621, %v2653
        %v2657 = vadd.f32 %v2622, %v2653
        %v2658 = vadd.f32 %v2623, %v2653
        %v2659 = vadd.f32 %v2624, %v2653
        %v2660 = vadd.f32 %v2625, %v2653
        %v2661 = vadd.f32 %v2626, %v2653
        %v2662 = vadd.f32 %v2627, %v2653
        %v2663 = vadd.f32 %v2628, %v2653
        %v2664 = vadd.f32 %v2629, %v2653
        %v2665 = vadd.f32 %v2630, %v2653
        %v2666 = vadd.f32 %v2631, %v2653
        %v2667 = vadd.f32 %v2632, %v2653
        %v2668 = vadd.f32 %v2633, %v2653
        %v2669 = vadd.f32 %v2634, %v2653
        %v2670 = vadd.f32 %v2635, %v2653
        %v2671 = vadd.f32 %v2636, %v2653
        %v2672 = vadd.f32 %v2637, %v2653
        %v2673 = vadd.f32 %v2638, %v2653
        %v2674 = vadd.f32 %v2639, %v2653
        %v2675 = vadd.f32 %v2640, %v2653
        %v2676 = vadd.f32 %v2641, %v2653
        %v2677 = vadd.f32 %v2642, %v2653
        %v2678 = vadd.f32 %v2643, %v2653
        %v2679 = vadd.f32 %v2644, %v2653
        %v2680 = vadd.f32 %v2645, %v2653
        %v2681 = vadd.f32 %v2646, %v2653
        %v2682 = vadd.f32 %v2647, %v2653
        %v2683 = vadd.f32 %v2648, %v2653
        %v2684 = vadd.f32 %v2649, %v2653
        %v2685 = vadd.f32 %v2650, %v2653
        %v2686 = vadd.f32 %v2651, %v2653
        %v2687 = vmax.f32 %v2655, 0.0
        %v2688 = vmax.f32 %v2656, 0.0
        %v2689 = vmax.f32 %v2657, 0.0
        %v2690 = vmax.f32 %v2658, 0.0
        %v2691 = vmax.f32 %v2659, 0.0
        %v2692 = vmax.f32 %v2660, 0.0
        %v2693 = vmax.f32 %v2661, 0.0
        %v2694 = vmax.f32 %v2662, 0.0
        %v2695 = vmax.f32 %v2663, 0.0
        %v2696 = vmax.f32 %v2664, 0.0
        %v2697 = vmax.f32 %v2665, 0.0
        %v2698 = vmax.f32 %v2666, 0.0
        %v2699 = vmax.f32 %v2667, 0.0
        %v2700 = vmax.f32 %v2668, 0.0
        %v2701 = vmax.f32 %v2669, 0.0
        %v2702 = vmax.f32 %v2670, 0.0
        %v2703 = vmax.f32 %v2671, 0.0
        %v2704 = vmax.f32 %v2672, 0.0
        %v2705 = vmax.f32 %v2673, 0.0
        %v2706 = vmax.f32 %v2674, 0.0
        %v2707 = vmax.f32 %v2675, 0.0
        %v2708 = vmax.f32 %v2676, 0.0
        %v2709 = vmax.f32 %v2677, 0.0
        %v2710 = vmax.f32 %v2678, 0.0
        %v2711 = vmax.f32 %v2679, 0.0
        %v2712 = vmax.f32 %v2680, 0.0
        %v2713 = vmax.f32 %v2681, 0.0
        %v2714 = vmax.f32 %v2682, 0.0
        %v2715 = vmax.f32 %v2683, 0.0
        %v2716 = vmax.f32 %v2684, 0.0
        %v2717 = vmax.f32 %v2685, 0.0
        %v2718 = vmax.f32 %v2686, 0.0
        %v2719 = vld [vmem:[%s7] sm:$0x1]
        %v2720 = vld [vmem:[%s8] sm:$0x1]
        %v2721 = vsel %vm440, %v2282, 0.0
        %v2722 = vsel %vm440, %v2284, 0.0
        %v2723 = vadd.f32 %v2721, %v2722
        %v2724 = vsel %vm440, %v2287, 0.0
        %v2725 = vadd.f32 %v2723, %v2724
        %v2726 = vsel %vm440, %v2289, 0.0
        %v2727 = vadd.f32 %v2725, %v2726
        %v2728 = vsel %vm440, %v2292, 0.0
        %v2729 = vadd.f32 %v2727, %v2728
        %v2730 = vsel %vm440, %v2294, 0.0
        %v2731 = vadd.f32 %v2729, %v2730
        %v2732 = vsel %vm440, %v2297, 0.0
        %v2733 = vadd.f32 %v2731, %v2732
        %v2734 = vsel %vm440, %v2299, 0.0
        %v2735 = vadd.f32 %v2733, %v2734
        %v2736 = vsel %vm440, %v2302, 0.0
        %v2737 = vadd.f32 %v2735, %v2736
        %v2738 = vsel %vm440, %v2304, 0.0
        %v2739 = vadd.f32 %v2737, %v2738
        %v2740 = vsel %vm440, %v2307, 0.0
        %v2741 = vadd.f32 %v2739, %v2740
        %v2742 = vsel %vm440, %v2309, 0.0
        %v2743 = vadd.f32 %v2741, %v2742
        %v2744 = vsel %vm440, %v2312, 0.0
        %v2745 = vadd.f32 %v2743, %v2744
        %v2746 = vsel %vm440, %v2314, 0.0
        %v2747 = vadd.f32 %v2745, %v2746
        %v2748 = vsel %vm440, %v2317, 0.0
        %v2749 = vadd.f32 %v2747, %v2748
        %v2750 = vsel %vm440, %v2319, 0.0
        %v2751 = vadd.f32 %v2749, %v2750
        %v2752 = vsel %vm440, %v2322, 0.0
        %v2753 = vadd.f32 %v2751, %v2752
        %v2754 = vsel %vm440, %v2324, 0.0
        %v2755 = vadd.f32 %v2753, %v2754
        %v2756 = vsel %vm440, %v2327, 0.0
        %v2757 = vadd.f32 %v2755, %v2756
        %v2758 = vsel %vm440, %v2329, 0.0
        %v2759 = vadd.f32 %v2757, %v2758
        %v2760 = vsel %vm440, %v2332, 0.0
        %v2761 = vadd.f32 %v2759, %v2760
        %v2762 = vsel %vm440, %v2334, 0.0
        %v2763 = vadd.f32 %v2761, %v2762
        %v2764 = vsel %vm440, %v2337, 0.0
        %v2765 = vadd.f32 %v2763, %v2764
        %v2766 = vsel %vm440, %v2339, 0.0
        %v2767 = vadd.f32 %v2765, %v2766
        %v2768 = vsel %vm440, %v2342, 0.0
        %v2769 = vadd.f32 %v2767, %v2768
        %v2770 = vsel %vm440, %v2344, 0.0
        %v2771 = vadd.f32 %v2769, %v2770
        %v2772 = vsel %vm440, %v2347, 0.0
        %v2773 = vadd.f32 %v2771, %v2772
        %v2774 = vsel %vm440, %v2349, 0.0
        %v2775 = vadd.f32 %v2773, %v2774
        %v2776 = vsel %vm440, %v2352, 0.0
        %v2777 = vadd.f32 %v2775, %v2776
        %v2778 = vsel %vm440, %v2354, 0.0
        %v2779 = vadd.f32 %v2777, %v2778
        %v2780 = vsel %vm440, %v2357, 0.0
        %v2781 = vadd.f32 %v2779, %v2780
        %v2782 = vsel %vm440, %v2359, 0.0
        %v2783 = vadd.f32 %v2781, %v2782
        %v2784 = vrot.slane %v2783, 4
        %v2785 = vadd.f32 %v2783, %v2784
        %v2786 = vrot.slane %v2785, 2
        %v2787 = vadd.f32 %v2785, %v2786
        %v2788 = vrot.slane %v2787, 1
        %v2789 = vadd.f32 %v2787, %v2788
        %v2790 = vmul.f32 %v2789, %v2438
        %v2791 = vsub.f32 %v2282, %v2790
        %v2792 = vsub.f32 %v2284, %v2790
        %v2793 = vsub.f32 %v2287, %v2790
        %v2794 = vsub.f32 %v2289, %v2790
        %v2795 = vsub.f32 %v2292, %v2790
        %v2796 = vsub.f32 %v2294, %v2790
        %v2797 = vsub.f32 %v2297, %v2790
        %v2798 = vsub.f32 %v2299, %v2790
        %v2799 = vsub.f32 %v2302, %v2790
        %v2800 = vsub.f32 %v2304, %v2790
        %v2801 = vsub.f32 %v2307, %v2790
        %v2802 = vsub.f32 %v2309, %v2790
        %v2803 = vsub.f32 %v2312, %v2790
        %v2804 = vsub.f32 %v2314, %v2790
        %v2805 = vsub.f32 %v2317, %v2790
        %v2806 = vsub.f32 %v2319, %v2790
        %v2807 = vsub.f32 %v2322, %v2790
        %v2808 = vsub.f32 %v2324, %v2790
        %v2809 = vsub.f32 %v2327, %v2790
        %v2810 = vsub.f32 %v2329, %v2790
        %v2811 = vsub.f32 %v2332, %v2790
        %v2812 = vsub.f32 %v2334, %v2790
        %v2813 = vsub.f32 %v2337, %v2790
        %v2814 = vsub.f32 %v2339, %v2790
        %v2815 = vsub.f32 %v2342, %v2790
        %v2816 = vsub.f32 %v2344, %v2790
        %v2817 = vsub.f32 %v2347, %v2790
        %v2818 = vsub.f32 %v2349, %v2790
        %v2819 = vsub.f32 %v2352, %v2790
        %v2820 = vsub.f32 %v2354, %v2790
        %v2821 = vsub.f32 %v2357, %v2790
        %v2822 = vsub.f32 %v2359, %v2790
        %v2823 = vmul.f32 %v2791, %v2791
        %v2824 = vmul.f32 %v2792, %v2792
        %v2825 = vmul.f32 %v2793, %v2793
        %v2826 = vmul.f32 %v2794, %v2794
        %v2827 = vmul.f32 %v2795, %v2795
        %v2828 = vmul.f32 %v2796, %v2796
        %v2829 = vmul.f32 %v2797, %v2797
        %v2830 = vmul.f32 %v2798, %v2798
        %v2831 = vmul.f32 %v2799, %v2799
        %v2832 = vmul.f32 %v2800, %v2800
        %v2833 = vmul.f32 %v2801, %v2801
        %v2834 = vmul.f32 %v2802, %v2802
        %v2835 = vmul.f32 %v2803, %v2803
        %v2836 = vmul.f32 %v2804, %v2804
        %v2837 = vmul.f32 %v2805, %v2805
        %v2838 = vmul.f32 %v2806, %v2806
        %v2839 = vmul.f32 %v2807, %v2807
        %v2840 = vmul.f32 %v2808, %v2808
        %v2841 = vmul.f32 %v2809, %v2809
        %v2842 = vmul.f32 %v2810, %v2810
        %v2843 = vmul.f32 %v2811, %v2811
        %v2844 = vmul.f32 %v2812, %v2812
        %v2845 = vmul.f32 %v2813, %v2813
        %v2846 = vmul.f32 %v2814, %v2814
        %v2847 = vmul.f32 %v2815, %v2815
        %v2848 = vmul.f32 %v2816, %v2816
        %v2849 = vmul.f32 %v2817, %v2817
        %v2850 = vmul.f32 %v2818, %v2818
        %v2851 = vmul.f32 %v2819, %v2819
        %v2852 = vmul.f32 %v2820, %v2820
        %v2853 = vmul.f32 %v2821, %v2821
        %v2854 = vmul.f32 %v2822, %v2822
        %v2855 = vsel %vm440, %v2823, 0.0
        %v2856 = vsel %vm440, %v2824, 0.0
        %v2857 = vadd.f32 %v2855, %v2856
        %v2858 = vsel %vm440, %v2825, 0.0
        %v2859 = vadd.f32 %v2857, %v2858
        %v2860 = vsel %vm440, %v2826, 0.0
        %v2861 = vadd.f32 %v2859, %v2860
        %v2862 = vsel %vm440, %v2827, 0.0
        %v2863 = vadd.f32 %v2861, %v2862
        %v2864 = vsel %vm440, %v2828, 0.0
        %v2865 = vadd.f32 %v2863, %v2864
        %v2866 = vsel %vm440, %v2829, 0.0
        %v2867 = vadd.f32 %v2865, %v2866
        %v2868 = vsel %vm440, %v2830, 0.0
        %v2869 = vadd.f32 %v2867, %v2868
        %v2870 = vsel %vm440, %v2831, 0.0
        %v2871 = vadd.f32 %v2869, %v2870
        %v2872 = vsel %vm440, %v2832, 0.0
        %v2873 = vadd.f32 %v2871, %v2872
        %v2874 = vsel %vm440, %v2833, 0.0
        %v2875 = vadd.f32 %v2873, %v2874
        %v2876 = vsel %vm440, %v2834, 0.0
        %v2877 = vadd.f32 %v2875, %v2876
        %v2878 = vsel %vm440, %v2835, 0.0
        %v2879 = vadd.f32 %v2877, %v2878
        %v2880 = vsel %vm440, %v2836, 0.0
        %v2881 = vadd.f32 %v2879, %v2880
        %v2882 = vsel %vm440, %v2837, 0.0
        %v2883 = vadd.f32 %v2881, %v2882
        %v2884 = vsel %vm440, %v2838, 0.0
        %v2885 = vadd.f32 %v2883, %v2884
        %v2886 = vsel %vm440, %v2839, 0.0
        %v2887 = vadd.f32 %v2885, %v2886
        %v2888 = vsel %vm440, %v2840, 0.0
        %v2889 = vadd.f32 %v2887, %v2888
        %v2890 = vsel %vm440, %v2841, 0.0
        %v2891 = vadd.f32 %v2889, %v2890
        %v2892 = vsel %vm440, %v2842, 0.0
        %v2893 = vadd.f32 %v2891, %v2892
        %v2894 = vsel %vm440, %v2843, 0.0
        %v2895 = vadd.f32 %v2893, %v2894
        %v2896 = vsel %vm440, %v2844, 0.0
        %v2897 = vadd.f32 %v2895, %v2896
        %v2898 = vsel %vm440, %v2845, 0.0
        %v2899 = vadd.f32 %v2897, %v2898
        %v2900 = vsel %vm440, %v2846, 0.0
        %v2901 = vadd.f32 %v2899, %v2900
        %v2902 = vsel %vm440, %v2847, 0.0
        %v2903 = vadd.f32 %v2901, %v2902
        %v2904 = vsel %vm440, %v2848, 0.0
        %v2905 = vadd.f32 %v2903, %v2904
        %v2906 = vsel %vm440, %v2849, 0.0
        %v2907 = vadd.f32 %v2905, %v2906
        %v2908 = vsel %vm440, %v2850, 0.0
        %v2909 = vadd.f32 %v2907, %v2908
        %v2910 = vsel %vm440, %v2851, 0.0
        %v2911 = vadd.f32 %v2909, %v2910
        %v2912 = vsel %vm440, %v2852, 0.0
        %v2913 = vadd.f32 %v2911, %v2912
        %v2914 = vsel %vm440, %v2853, 0.0
        %v2915 = vadd.f32 %v2913, %v2914
        %v2916 = vsel %vm440, %v2854, 0.0
        %v2917 = vadd.f32 %v2915, %v2916
        %v2918 = vrot.slane %v2917, 4
        %v2919 = vadd.f32 %v2917, %v2918
        %v2920 = vrot.slane %v2919, 2
        %v2921 = vadd.f32 %v2919, %v2920
        %v2922 = vrot.slane %v2921, 1
        %v2923 = vadd.f32 %v2921, %v2922
        %v2924 = vmul.f32 %v2923, %v2438
        %v2925 = vadd.f32 %v2924, 1e-05
        %v2926 = vrsqrt.pop %v2925
        %v2927 = vmul.f32 %v2926, %v2925
        %v2928 = vmul.f32 %v2927, %v2926
        %v2929 = vmul.f32 0.5, %v2928
        %v2930 = vsub.f32 1.5, %v2929
        %v2931 = vmul.f32 %v2926, %v2930
        %vm2932 = vweird.f32 %v2925
        %vm2933 = vweird.f32 %v2926
        %vm2934 = vmor %vm2932, %vm2933
        %v2935 = vsel %vm2934, %v2926, %v2931
        %v2936 = vmul.f32 %v2791, %v2935
        %v2937 = vmul.f32 %v2792, %v2935
        %v2938 = vmul.f32 %v2793, %v2935
        %v2939 = vmul.f32 %v2794, %v2935
        %v2940 = vmul.f32 %v2795, %v2935
        %v2941 = vmul.f32 %v2796, %v2935
        %v2942 = vmul.f32 %v2797, %v2935
        %v2943 = vmul.f32 %v2798, %v2935
        %v2944 = vmul.f32 %v2799, %v2935
        %v2945 = vmul.f32 %v2800, %v2935
        %v2946 = vmul.f32 %v2801, %v2935
        %v2947 = vmul.f32 %v2802, %v2935
        %v2948 = vmul.f32 %v2803, %v2935
        %v2949 = vmul.f32 %v2804, %v2935
        %v2950 = vmul.f32 %v2805, %v2935
        %v2951 = vmul.f32 %v2806, %v2935
        %v2952 = vmul.f32 %v2807, %v2935
        %v2953 = vmul.f32 %v2808, %v2935
        %v2954 = vmul.f32 %v2809, %v2935
        %v2955 = vmul.f32 %v2810, %v2935
        %v2956 = vmul.f32 %v2811, %v2935
        %v2957 = vmul.f32 %v2812, %v2935
        %v2958 = vmul.f32 %v2813, %v2935
        %v2959 = vmul.f32 %v2814, %v2935
        %v2960 = vmul.f32 %v2815, %v2935
        %v2961 = vmul.f32 %v2816, %v2935
        %v2962 = vmul.f32 %v2817, %v2935
        %v2963 = vmul.f32 %v2818, %v2935
        %v2964 = vmul.f32 %v2819, %v2935
        %v2965 = vmul.f32 %v2820, %v2935
        %v2966 = vmul.f32 %v2821, %v2935
        %v2967 = vmul.f32 %v2822, %v2935
        %v2969 = vperm.slane %v2719, 0
        %v2971 = vmul.f32 %v2936, %v2969
        %v2972 = vmul.f32 %v2937, %v2969
        %v2973 = vmul.f32 %v2938, %v2969
        %v2974 = vmul.f32 %v2939, %v2969
        %v2975 = vmul.f32 %v2940, %v2969
        %v2976 = vmul.f32 %v2941, %v2969
        %v2977 = vmul.f32 %v2942, %v2969
        %v2978 = vmul.f32 %v2943, %v2969
        %v2979 = vmul.f32 %v2944, %v2969
        %v2980 = vmul.f32 %v2945, %v2969
        %v2981 = vmul.f32 %v2946, %v2969
        %v2982 = vmul.f32 %v2947, %v2969
        %v2983 = vmul.f32 %v2948, %v2969
        %v2984 = vmul.f32 %v2949, %v2969
        %v2985 = vmul.f32 %v2950, %v2969
        %v2986 = vmul.f32 %v2951, %v2969
        %v2987 = vmul.f32 %v2952, %v2969
        %v2988 = vmul.f32 %v2953, %v2969
        %v2989 = vmul.f32 %v2954, %v2969
        %v2990 = vmul.f32 %v2955, %v2969
        %v2991 = vmul.f32 %v2956, %v2969
        %v2992 = vmul.f32 %v2957, %v2969
        %v2993 = vmul.f32 %v2958, %v2969
        %v2994 = vmul.f32 %v2959, %v2969
        %v2995 = vmul.f32 %v2960, %v2969
        %v2996 = vmul.f32 %v2961, %v2969
        %v2997 = vmul.f32 %v2962, %v2969
        %v2998 = vmul.f32 %v2963, %v2969
        %v2999 = vmul.f32 %v2964, %v2969
        %v3000 = vmul.f32 %v2965, %v2969
        %v3001 = vmul.f32 %v2966, %v2969
        %v3002 = vmul.f32 %v2967, %v2969
        %v3004 = vperm.slane %v2720, 0
        %v3006 = vadd.f32 %v2971, %v3004
        %v3007 = vadd.f32 %v2972, %v3004
        %v3008 = vadd.f32 %v2973, %v3004
        %v3009 = vadd.f32 %v2974, %v3004
        %v3010 = vadd.f32 %v2975, %v3004
        %v3011 = vadd.f32 %v2976, %v3004
        %v3012 = vadd.f32 %v2977, %v3004
        %v3013 = vadd.f32 %v2978, %v3004
        %v3014 = vadd.f32 %v2979, %v3004
        %v3015 = vadd.f32 %v2980, %v3004
        %v3016 = vadd.f32 %v2981, %v3004
        %v3017 = vadd.f32 %v2982, %v3004
        %v3018 = vadd.f32 %v2983, %v3004
        %v3019 = vadd.f32 %v2984, %v3004
        %v3020 = vadd.f32 %v2985, %v3004
        %v3021 = vadd.f32 %v2986, %v3004
        %v3022 = vadd.f32 %v2987, %v3004
        %v3023 = vadd.f32 %v2988, %v3004
        %v3024 = vadd.f32 %v2989, %v3004
        %v3025 = vadd.f32 %v2990, %v3004
        %v3026 = vadd.f32 %v2991, %v3004
        %v3027 = vadd.f32 %v2992, %v3004
        %v3028 = vadd.f32 %v2993, %v3004
        %v3029 = vadd.f32 %v2994, %v3004
        %v3030 = vadd.f32 %v2995, %v3004
        %v3031 = vadd.f32 %v2996, %v3004
        %v3032 = vadd.f32 %v2997, %v3004
        %v3033 = vadd.f32 %v2998, %v3004
        %v3034 = vadd.f32 %v2999, %v3004
        %v3035 = vadd.f32 %v3000, %v3004
        %v3036 = vadd.f32 %v3001, %v3004
        %v3037 = vadd.f32 %v3002, %v3004
        %v3038 = vmax.f32 %v3006, 0.0
        %v3039 = vmax.f32 %v3007, 0.0
        %v3040 = vmax.f32 %v3008, 0.0
        %v3041 = vmax.f32 %v3009, 0.0
        %v3042 = vmax.f32 %v3010, 0.0
        %v3043 = vmax.f32 %v3011, 0.0
        %v3044 = vmax.f32 %v3012, 0.0
        %v3045 = vmax.f32 %v3013, 0.0
        %v3046 = vmax.f32 %v3014, 0.0
        %v3047 = vmax.f32 %v3015, 0.0
        %v3048 = vmax.f32 %v3016, 0.0
        %v3049 = vmax.f32 %v3017, 0.0
        %v3050 = vmax.f32 %v3018, 0.0
        %v3051 = vmax.f32 %v3019, 0.0
        %v3052 = vmax.f32 %v3020, 0.0
        %v3053 = vmax.f32 %v3021, 0.0
        %v3054 = vmax.f32 %v3022, 0.0
        %v3055 = vmax.f32 %v3023, 0.0
        %v3056 = vmax.f32 %v3024, 0.0
        %v3057 = vmax.f32 %v3025, 0.0
        %v3058 = vmax.f32 %v3026, 0.0
        %v3059 = vmax.f32 %v3027, 0.0
        %v3060 = vmax.f32 %v3028, 0.0
        %v3061 = vmax.f32 %v3029, 0.0
        %v3062 = vmax.f32 %v3030, 0.0
        %v3063 = vmax.f32 %v3031, 0.0
        %v3064 = vmax.f32 %v3032, 0.0
        %v3065 = vmax.f32 %v3033, 0.0
        %v3066 = vmax.f32 %v3034, 0.0
        %v3067 = vmax.f32 %v3035, 0.0
        %v3068 = vmax.f32 %v3036, 0.0
        %v3069 = vmax.f32 %v3037, 0.0
        %v3070 = vlaneseq
        %v3071 = vand.u32 %v3070, 127
        %3072 = vst.msk [vmem:[%s450 + $0x8] sm:$0xff] %vm440, %v2687
        %3073 = vst.msk [vmem:[%s450 + $0x10] sm:$0xff] %vm440, %v2688
        %3074 = vst.msk [vmem:[%s450 + $0x28] sm:$0xff] %vm440, %v2689
        %3075 = vst.msk [vmem:[%s450 + $0x30] sm:$0xff] %vm440, %v2690
        %3076 = vst.msk [vmem:[%s450 + $0x48] sm:$0xff] %vm440, %v2691
        %3077 = vst.msk [vmem:[%s450 + $0x50] sm:$0xff] %vm440, %v2692
        %3078 = vst.msk [vmem:[%s450 + $0x68] sm:$0xff] %vm440, %v2693
        %3079 = vst.msk [vmem:[%s450 + $0x70] sm:$0xff] %vm440, %v2694
        %3080 = vst.msk [vmem:[%s450 + $0x88] sm:$0xff] %vm440, %v2695
        %3081 = vst.msk [vmem:[%s450 + $0x90] sm:$0xff] %vm440, %v2696
        %3082 = vst.msk [vmem:[%s450 + $0xa8] sm:$0xff] %vm440, %v2697
        %3083 = vst.msk [vmem:[%s450 + $0xb0] sm:$0xff] %vm440, %v2698
        %3084 = vst.msk [vmem:[%s450 + $0xc8] sm:$0xff] %vm440, %v2699
        %3085 = vst.msk [vmem:[%s450 + $0xd0] sm:$0xff] %vm440, %v2700
        %3086 = vst.msk [vmem:[%s450 + $0xe8] sm:$0xff] %vm440, %v2701
        %3087 = vst.msk [vmem:[%s450 + $0xf0] sm:$0xff] %vm440, %v2702
        %3088 = vst.msk [vmem:[%s450 + $0x108] sm:$0xff] %vm440, %v2703
        %3089 = vst.msk [vmem:[%s450 + $0x110] sm:$0xff] %vm440, %v2704
        %3090 = vst.msk [vmem:[%s450 + $0x128] sm:$0xff] %vm440, %v2705
        %3091 = vst.msk [vmem:[%s450 + $0x130] sm:$0xff] %vm440, %v2706
        %3092 = vst.msk [vmem:[%s450 + $0x148] sm:$0xff] %vm440, %v2707
        %3093 = vst.msk [vmem:[%s450 + $0x150] sm:$0xff] %vm440, %v2708
        %3094 = vst.msk [vmem:[%s450 + $0x168] sm:$0xff] %vm440, %v2709
        %3095 = vst.msk [vmem:[%s450 + $0x170] sm:$0xff] %vm440, %v2710
        %3096 = vst.msk [vmem:[%s450 + $0x188] sm:$0xff] %vm440, %v2711
        %3097 = vst.msk [vmem:[%s450 + $0x190] sm:$0xff] %vm440, %v2712
        %3098 = vst.msk [vmem:[%s450 + $0x1a8] sm:$0xff] %vm440, %v2713
        %3099 = vst.msk [vmem:[%s450 + $0x1b0] sm:$0xff] %vm440, %v2714
        %3100 = vst.msk [vmem:[%s450 + $0x1c8] sm:$0xff] %vm440, %v2715
        %3101 = vst.msk [vmem:[%s450 + $0x1d0] sm:$0xff] %vm440, %v2716
        %3102 = vst.msk [vmem:[%s450 + $0x1e8] sm:$0xff] %vm440, %v2717
        %3103 = vst.msk [vmem:[%s450 + $0x1f0] sm:$0xff] %vm440, %v2718
        %v3104 = vld [vmem:[#allocation2 + $0x7] sm:$0xff]
        %v3105 = vld [vmem:[#allocation2 + $0xf] sm:$0xff]
        %v3106 = vld [vmem:[#allocation2 + $0x27] sm:$0xff]
        %v3107 = vld [vmem:[#allocation2 + $0x2f] sm:$0xff]
        %v3108 = vld [vmem:[#allocation2 + $0x47] sm:$0xff]
        %v3109 = vld [vmem:[#allocation2 + $0x4f] sm:$0xff]
        %v3110 = vld [vmem:[#allocation2 + $0x67] sm:$0xff]
        %v3111 = vld [vmem:[#allocation2 + $0x6f] sm:$0xff]
        %v3112 = vld [vmem:[#allocation2 + $0x87] sm:$0xff]
        %v3113 = vld [vmem:[#allocation2 + $0x8f] sm:$0xff]
        %v3114 = vld [vmem:[#allocation2 + $0xa7] sm:$0xff]
        %v3115 = vld [vmem:[#allocation2 + $0xaf] sm:$0xff]
        %v3116 = vld [vmem:[#allocation2 + $0xc7] sm:$0xff]
        %v3117 = vld [vmem:[#allocation2 + $0xcf] sm:$0xff]
        %v3118 = vld [vmem:[#allocation2 + $0xe7] sm:$0xff]
        %v3119 = vld [vmem:[#allocation2 + $0xef] sm:$0xff]
        %v3120 = vld [vmem:[#allocation2 + $0x107] sm:$0xff]
        %v3121 = vld [vmem:[#allocation2 + $0x10f] sm:$0xff]
        %v3122 = vld [vmem:[#allocation2 + $0x127] sm:$0xff]
        %v3123 = vld [vmem:[#allocation2 + $0x12f] sm:$0xff]
        %v3124 = vld [vmem:[#allocation2 + $0x147] sm:$0xff]
        %v3125 = vld [vmem:[#allocation2 + $0x14f] sm:$0xff]
        %v3126 = vld [vmem:[#allocation2 + $0x167] sm:$0xff]
        %v3127 = vld [vmem:[#allocation2 + $0x16f] sm:$0xff]
        %v3128 = vld [vmem:[#allocation2 + $0x187] sm:$0xff]
        %v3129 = vld [vmem:[#allocation2 + $0x18f] sm:$0xff]
        %v3130 = vld [vmem:[#allocation2 + $0x1a7] sm:$0xff]
        %v3131 = vld [vmem:[#allocation2 + $0x1af] sm:$0xff]
        %v3132 = vld [vmem:[#allocation2 + $0x1c7] sm:$0xff]
        %v3133 = vld [vmem:[#allocation2 + $0x1cf] sm:$0xff]
        %v3134 = vld [vmem:[#allocation2 + $0x1e7] sm:$0xff]
        %v3135 = vld [vmem:[#allocation2 + $0x1ef] sm:$0xff]
        %v3136 = vld [vmem:[#allocation2 + $0x207] sm:$0xff]
        %v3137 = vld [vmem:[#allocation2 + $0x20f] sm:$0xff]
        %v3138 = vld [vmem:[#allocation2 + $0x227] sm:$0xff]
        %v3139 = vld [vmem:[#allocation2 + $0x22f] sm:$0xff]
        %v3140 = vpack.c.bf16 %v3104, %v3104
        %v3141 = vpack.c.bf16 %v3105, %v3105
        %v3142 = vpack.c.bf16 %v3106, %v3106
        %v3143 = vpack.c.bf16 %v3107, %v3107
        %v3144 = vpack.c.bf16 %v3108, %v3108
        %v3145 = vpack.c.bf16 %v3109, %v3109
        %v3146 = vpack.c.bf16 %v3110, %v3110
        %v3147 = vpack.c.bf16 %v3111, %v3111
        %v3148 = vpack.c.bf16 %v3112, %v3112
        %v3149 = vpack.c.bf16 %v3113, %v3113
        %v3150 = vpack.c.bf16 %v3114, %v3114
        %v3151 = vpack.c.bf16 %v3115, %v3115
        %v3152 = vpack.c.bf16 %v3116, %v3116
        %v3153 = vpack.c.bf16 %v3117, %v3117
        %v3154 = vpack.c.bf16 %v3118, %v3118
        %v3155 = vpack.c.bf16 %v3119, %v3119
        %v3156 = vpack.c.bf16 %v3120, %v3120
        %v3157 = vpack.c.bf16 %v3121, %v3121
        %v3158 = vpack.c.bf16 %v3122, %v3122
        %v3159 = vpack.c.bf16 %v3123, %v3123
        %v3160 = vpack.c.bf16 %v3124, %v3124
        %v3161 = vpack.c.bf16 %v3125, %v3125
        %v3162 = vpack.c.bf16 %v3126, %v3126
        %v3163 = vpack.c.bf16 %v3127, %v3127
        %v3164 = vpack.c.bf16 %v3128, %v3128
        %v3165 = vpack.c.bf16 %v3129, %v3129
        %v3166 = vpack.c.bf16 %v3130, %v3130
        %v3167 = vpack.c.bf16 %v3131, %v3131
        %v3168 = vpack.c.bf16 %v3132, %v3132
        %v3169 = vpack.c.bf16 %v3133, %v3133
        %v3170 = vpack.c.bf16 %v3134, %v3134
        %v3171 = vpack.c.bf16 %v3135, %v3135
        %v3172 = vpack.c.bf16 %v3136, %v3136
        %v3173 = vpack.c.bf16 %v3137, %v3137
        %v3174 = vpack.c.bf16 %v3138, %v3138
        %v3175 = vpack.c.bf16 %v3139, %v3139
        %v3176 = vld [vmem:[#allocation2 + $0x8] sm:$0xff]
        %v3177 = vld [vmem:[#allocation2 + $0x10] sm:$0xff]
        %v3178 = vld [vmem:[#allocation2 + $0x28] sm:$0xff]
        %v3179 = vld [vmem:[#allocation2 + $0x30] sm:$0xff]
        %v3180 = vld [vmem:[#allocation2 + $0x48] sm:$0xff]
        %v3181 = vld [vmem:[#allocation2 + $0x50] sm:$0xff]
        %v3182 = vld [vmem:[#allocation2 + $0x68] sm:$0xff]
        %v3183 = vld [vmem:[#allocation2 + $0x70] sm:$0xff]
        %v3184 = vld [vmem:[#allocation2 + $0x88] sm:$0xff]
        %v3185 = vld [vmem:[#allocation2 + $0x90] sm:$0xff]
        %v3186 = vld [vmem:[#allocation2 + $0xa8] sm:$0xff]
        %v3187 = vld [vmem:[#allocation2 + $0xb0] sm:$0xff]
        %v3188 = vld [vmem:[#allocation2 + $0xc8] sm:$0xff]
        %v3189 = vld [vmem:[#allocation2 + $0xd0] sm:$0xff]
        %v3190 = vld [vmem:[#allocation2 + $0xe8] sm:$0xff]
        %v3191 = vld [vmem:[#allocation2 + $0xf0] sm:$0xff]
        %v3192 = vld [vmem:[#allocation2 + $0x108] sm:$0xff]
        %v3193 = vld [vmem:[#allocation2 + $0x110] sm:$0xff]
        %v3194 = vld [vmem:[#allocation2 + $0x128] sm:$0xff]
        %v3195 = vld [vmem:[#allocation2 + $0x130] sm:$0xff]
        %v3196 = vld [vmem:[#allocation2 + $0x148] sm:$0xff]
        %v3197 = vld [vmem:[#allocation2 + $0x150] sm:$0xff]
        %v3198 = vld [vmem:[#allocation2 + $0x168] sm:$0xff]
        %v3199 = vld [vmem:[#allocation2 + $0x170] sm:$0xff]
        %v3200 = vld [vmem:[#allocation2 + $0x188] sm:$0xff]
        %v3201 = vld [vmem:[#allocation2 + $0x190] sm:$0xff]
        %v3202 = vld [vmem:[#allocation2 + $0x1a8] sm:$0xff]
        %v3203 = vld [vmem:[#allocation2 + $0x1b0] sm:$0xff]
        %v3204 = vld [vmem:[#allocation2 + $0x1c8] sm:$0xff]
        %v3205 = vld [vmem:[#allocation2 + $0x1d0] sm:$0xff]
        %v3206 = vld [vmem:[#allocation2 + $0x1e8] sm:$0xff]
        %v3207 = vld [vmem:[#allocation2 + $0x1f0] sm:$0xff]
        %v3208 = vld [vmem:[#allocation2 + $0x208] sm:$0xff]
        %v3209 = vld [vmem:[#allocation2 + $0x210] sm:$0xff]
        %v3210 = vld [vmem:[#allocation2 + $0x228] sm:$0xff]
        %v3211 = vld [vmem:[#allocation2 + $0x230] sm:$0xff]
        %v3212 = vpack.c.bf16 %v3176, %v3176
        %v3213 = vpack.c.bf16 %v3177, %v3177
        %v3214 = vpack.c.bf16 %v3178, %v3178
        %v3215 = vpack.c.bf16 %v3179, %v3179
        %v3216 = vpack.c.bf16 %v3180, %v3180
        %v3217 = vpack.c.bf16 %v3181, %v3181
        %v3218 = vpack.c.bf16 %v3182, %v3182
        %v3219 = vpack.c.bf16 %v3183, %v3183
        %v3220 = vpack.c.bf16 %v3184, %v3184
        %v3221 = vpack.c.bf16 %v3185, %v3185
        %v3222 = vpack.c.bf16 %v3186, %v3186
        %v3223 = vpack.c.bf16 %v3187, %v3187
        %v3224 = vpack.c.bf16 %v3188, %v3188
        %v3225 = vpack.c.bf16 %v3189, %v3189
        %v3226 = vpack.c.bf16 %v3190, %v3190
        %v3227 = vpack.c.bf16 %v3191, %v3191
        %v3228 = vpack.c.bf16 %v3192, %v3192
        %v3229 = vpack.c.bf16 %v3193, %v3193
        %v3230 = vpack.c.bf16 %v3194, %v3194
        %v3231 = vpack.c.bf16 %v3195, %v3195
        %v3232 = vpack.c.bf16 %v3196, %v3196
        %v3233 = vpack.c.bf16 %v3197, %v3197
        %v3234 = vpack.c.bf16 %v3198, %v3198
        %v3235 = vpack.c.bf16 %v3199, %v3199
        %v3236 = vpack.c.bf16 %v3200, %v3200
        %v3237 = vpack.c.bf16 %v3201, %v3201
        %v3238 = vpack.c.bf16 %v3202, %v3202
        %v3239 = vpack.c.bf16 %v3203, %v3203
        %v3240 = vpack.c.bf16 %v3204, %v3204
        %v3241 = vpack.c.bf16 %v3205, %v3205
        %v3242 = vpack.c.bf16 %v3206, %v3206
        %v3243 = vpack.c.bf16 %v3207, %v3207
        %v3244 = vpack.c.bf16 %v3208, %v3208
        %v3245 = vpack.c.bf16 %v3209, %v3209
        %v3246 = vpack.c.bf16 %v3210, %v3210
        %v3247 = vpack.c.bf16 %v3211, %v3211
        %v3248 = vld [vmem:[#allocation2 + $0x9] sm:$0xff]
        %v3249 = vld [vmem:[#allocation2 + $0x11] sm:$0xff]
        %v3250 = vld [vmem:[#allocation2 + $0x29] sm:$0xff]
        %v3251 = vld [vmem:[#allocation2 + $0x31] sm:$0xff]
        %v3252 = vld [vmem:[#allocation2 + $0x49] sm:$0xff]
        %v3253 = vld [vmem:[#allocation2 + $0x51] sm:$0xff]
        %v3254 = vld [vmem:[#allocation2 + $0x69] sm:$0xff]
        %v3255 = vld [vmem:[#allocation2 + $0x71] sm:$0xff]
        %v3256 = vld [vmem:[#allocation2 + $0x89] sm:$0xff]
        %v3257 = vld [vmem:[#allocation2 + $0x91] sm:$0xff]
        %v3258 = vld [vmem:[#allocation2 + $0xa9] sm:$0xff]
        %v3259 = vld [vmem:[#allocation2 + $0xb1] sm:$0xff]
        %v3260 = vld [vmem:[#allocation2 + $0xc9] sm:$0xff]
        %v3261 = vld [vmem:[#allocation2 + $0xd1] sm:$0xff]
        %v3262 = vld [vmem:[#allocation2 + $0xe9] sm:$0xff]
        %v3263 = vld [vmem:[#allocation2 + $0xf1] sm:$0xff]
        %v3264 = vld [vmem:[#allocation2 + $0x109] sm:$0xff]
        %v3265 = vld [vmem:[#allocation2 + $0x111] sm:$0xff]
        %v3266 = vld [vmem:[#allocation2 + $0x129] sm:$0xff]
        %v3267 = vld [vmem:[#allocation2 + $0x131] sm:$0xff]
        %v3268 = vld [vmem:[#allocation2 + $0x149] sm:$0xff]
        %v3269 = vld [vmem:[#allocation2 + $0x151] sm:$0xff]
        %v3270 = vld [vmem:[#allocation2 + $0x169] sm:$0xff]
        %v3271 = vld [vmem:[#allocation2 + $0x171] sm:$0xff]
        %v3272 = vld [vmem:[#allocation2 + $0x189] sm:$0xff]
        %v3273 = vld [vmem:[#allocation2 + $0x191] sm:$0xff]
        %v3274 = vld [vmem:[#allocation2 + $0x1a9] sm:$0xff]
        %v3275 = vld [vmem:[#allocation2 + $0x1b1] sm:$0xff]
        %v3276 = vld [vmem:[#allocation2 + $0x1c9] sm:$0xff]
        %v3277 = vld [vmem:[#allocation2 + $0x1d1] sm:$0xff]
        %v3278 = vld [vmem:[#allocation2 + $0x1e9] sm:$0xff]
        %v3279 = vld [vmem:[#allocation2 + $0x1f1] sm:$0xff]
        %v3280 = vld [vmem:[#allocation2 + $0x209] sm:$0xff]
        %v3281 = vld [vmem:[#allocation2 + $0x211] sm:$0xff]
        %v3282 = vld [vmem:[#allocation2 + $0x229] sm:$0xff]
        %v3283 = vld [vmem:[#allocation2 + $0x231] sm:$0xff]
        %v3284 = vpack.c.bf16 %v3248, %v3248
        %v3285 = vpack.c.bf16 %v3249, %v3249
        %v3286 = vpack.c.bf16 %v3250, %v3250
        %v3287 = vpack.c.bf16 %v3251, %v3251
        %v3288 = vpack.c.bf16 %v3252, %v3252
        %v3289 = vpack.c.bf16 %v3253, %v3253
        %v3290 = vpack.c.bf16 %v3254, %v3254
        %v3291 = vpack.c.bf16 %v3255, %v3255
        %v3292 = vpack.c.bf16 %v3256, %v3256
        %v3293 = vpack.c.bf16 %v3257, %v3257
        %v3294 = vpack.c.bf16 %v3258, %v3258
        %v3295 = vpack.c.bf16 %v3259, %v3259
        %v3296 = vpack.c.bf16 %v3260, %v3260
        %v3297 = vpack.c.bf16 %v3261, %v3261
        %v3298 = vpack.c.bf16 %v3262, %v3262
        %v3299 = vpack.c.bf16 %v3263, %v3263
        %v3300 = vpack.c.bf16 %v3264, %v3264
        %v3301 = vpack.c.bf16 %v3265, %v3265
        %v3302 = vpack.c.bf16 %v3266, %v3266
        %v3303 = vpack.c.bf16 %v3267, %v3267
        %v3304 = vpack.c.bf16 %v3268, %v3268
        %v3305 = vpack.c.bf16 %v3269, %v3269
        %v3306 = vpack.c.bf16 %v3270, %v3270
        %v3307 = vpack.c.bf16 %v3271, %v3271
        %v3308 = vpack.c.bf16 %v3272, %v3272
        %v3309 = vpack.c.bf16 %v3273, %v3273
        %v3310 = vpack.c.bf16 %v3274, %v3274
        %v3311 = vpack.c.bf16 %v3275, %v3275
        %v3312 = vpack.c.bf16 %v3276, %v3276
        %v3313 = vpack.c.bf16 %v3277, %v3277
        %v3314 = vpack.c.bf16 %v3278, %v3278
        %v3315 = vpack.c.bf16 %v3279, %v3279
        %v3316 = vpack.c.bf16 %v3280, %v3280
        %v3317 = vpack.c.bf16 %v3281, %v3281
        %v3318 = vpack.c.bf16 %v3282, %v3282
        %v3319 = vpack.c.bf16 %v3283, %v3283
        %v3352 = vunpack.c.l.b16 %v3140
        %v3353 = vunpack.c.l.b16 %v3141
        %v3354 = vunpack.c.l.b16 %v3142
        %v3355 = vunpack.c.l.b16 %v3143
        %v3356 = vunpack.c.l.b16 %v3144
        %v3357 = vunpack.c.l.b16 %v3145
        %v3358 = vunpack.c.l.b16 %v3146
        %v3359 = vunpack.c.l.b16 %v3147
        %v3360 = vunpack.c.l.b16 %v3148
        %v3361 = vunpack.c.l.b16 %v3149
        %v3362 = vunpack.c.l.b16 %v3150
        %v3363 = vunpack.c.l.b16 %v3151
        %v3364 = vunpack.c.l.b16 %v3152
        %v3365 = vunpack.c.l.b16 %v3153
        %v3366 = vunpack.c.l.b16 %v3154
        %v3367 = vunpack.c.l.b16 %v3155
        %v3368 = vunpack.c.l.b16 %v3156
        %v3369 = vunpack.c.l.b16 %v3157
        %v3370 = vunpack.c.l.b16 %v3158
        %v3371 = vunpack.c.l.b16 %v3159
        %v3372 = vunpack.c.l.b16 %v3160
        %v3373 = vunpack.c.l.b16 %v3161
        %v3374 = vunpack.c.l.b16 %v3162
        %v3375 = vunpack.c.l.b16 %v3163
        %v3376 = vunpack.c.l.b16 %v3164
        %v3377 = vunpack.c.l.b16 %v3165
        %v3378 = vunpack.c.l.b16 %v3166
        %v3379 = vunpack.c.l.b16 %v3167
        %v3380 = vunpack.c.l.b16 %v3168
        %v3381 = vunpack.c.l.b16 %v3169
        %v3382 = vunpack.c.l.b16 %v3170
        %v3383 = vunpack.c.l.b16 %v3171
        %v3384 = vpack.c.b16 %v3353, %v3352
        %v3385 = vpack.c.b16 %v3355, %v3354
        %v3386 = vpack.c.b16 %v3357, %v3356
        %v3387 = vpack.c.b16 %v3359, %v3358
        %v3388 = vpack.c.b16 %v3361, %v3360
        %v3389 = vpack.c.b16 %v3363, %v3362
        %v3390 = vpack.c.b16 %v3365, %v3364
        %v3391 = vpack.c.b16 %v3367, %v3366
        %v3392 = vpack.c.b16 %v3369, %v3368
        %v3393 = vpack.c.b16 %v3371, %v3370
        %v3394 = vpack.c.b16 %v3373, %v3372
        %v3395 = vpack.c.b16 %v3375, %v3374
        %v3396 = vpack.c.b16 %v3377, %v3376
        %v3397 = vpack.c.b16 %v3379, %v3378
        %v3398 = vpack.c.b16 %v3381, %v3380
        %v3399 = vpack.c.b16 %v3383, %v3382
        %v3432 = vunpack.c.l.b16 %v3212
        %v3433 = vunpack.c.l.b16 %v3213
        %v3434 = vunpack.c.l.b16 %v3214
        %v3435 = vunpack.c.l.b16 %v3215
        %v3436 = vunpack.c.l.b16 %v3216
        %v3437 = vunpack.c.l.b16 %v3217
        %v3438 = vunpack.c.l.b16 %v3218
        %v3439 = vunpack.c.l.b16 %v3219
        %v3440 = vunpack.c.l.b16 %v3220
        %v3441 = vunpack.c.l.b16 %v3221
        %v3442 = vunpack.c.l.b16 %v3222
        %v3443 = vunpack.c.l.b16 %v3223
        %v3444 = vunpack.c.l.b16 %v3224
        %v3445 = vunpack.c.l.b16 %v3225
        %v3446 = vunpack.c.l.b16 %v3226
        %v3447 = vunpack.c.l.b16 %v3227
        %v3448 = vunpack.c.l.b16 %v3228
        %v3449 = vunpack.c.l.b16 %v3229
        %v3450 = vunpack.c.l.b16 %v3230
        %v3451 = vunpack.c.l.b16 %v3231
        %v3452 = vunpack.c.l.b16 %v3232
        %v3453 = vunpack.c.l.b16 %v3233
        %v3454 = vunpack.c.l.b16 %v3234
        %v3455 = vunpack.c.l.b16 %v3235
        %v3456 = vunpack.c.l.b16 %v3236
        %v3457 = vunpack.c.l.b16 %v3237
        %v3458 = vunpack.c.l.b16 %v3238
        %v3459 = vunpack.c.l.b16 %v3239
        %v3460 = vunpack.c.l.b16 %v3240
        %v3461 = vunpack.c.l.b16 %v3241
        %v3462 = vunpack.c.l.b16 %v3242
        %v3463 = vunpack.c.l.b16 %v3243
        %v3464 = vpack.c.b16 %v3433, %v3432
        %v3465 = vpack.c.b16 %v3435, %v3434
        %v3466 = vpack.c.b16 %v3437, %v3436
        %v3467 = vpack.c.b16 %v3439, %v3438
        %v3468 = vpack.c.b16 %v3441, %v3440
        %v3469 = vpack.c.b16 %v3443, %v3442
        %v3470 = vpack.c.b16 %v3445, %v3444
        %v3471 = vpack.c.b16 %v3447, %v3446
        %v3472 = vpack.c.b16 %v3449, %v3448
        %v3473 = vpack.c.b16 %v3451, %v3450
        %v3474 = vpack.c.b16 %v3453, %v3452
        %v3475 = vpack.c.b16 %v3455, %v3454
        %v3476 = vpack.c.b16 %v3457, %v3456
        %v3477 = vpack.c.b16 %v3459, %v3458
        %v3478 = vpack.c.b16 %v3461, %v3460
        %v3479 = vpack.c.b16 %v3463, %v3462
        %3480 = vrot.lane.b32.xlu0 %v3464, 32
        %v3481 = vpop.permute.xlu0 %3480
        %3482 = vrot.lane.b32.xlu0 %v3465, 32
        %v3483 = vpop.permute.xlu0 %3482
        %3484 = vrot.lane.b32.xlu0 %v3466, 32
        %v3485 = vpop.permute.xlu0 %3484
        %3486 = vrot.lane.b32.xlu0 %v3467, 32
        %v3487 = vpop.permute.xlu0 %3486
        %3488 = vrot.lane.b32.xlu0 %v3468, 32
        %v3489 = vpop.permute.xlu0 %3488
        %3490 = vrot.lane.b32.xlu0 %v3469, 32
        %v3491 = vpop.permute.xlu0 %3490
        %3492 = vrot.lane.b32.xlu0 %v3470, 32
        %v3493 = vpop.permute.xlu0 %3492
        %3494 = vrot.lane.b32.xlu0 %v3471, 32
        %v3495 = vpop.permute.xlu0 %3494
        %3496 = vrot.lane.b32.xlu0 %v3472, 32
        %v3497 = vpop.permute.xlu0 %3496
        %3498 = vrot.lane.b32.xlu0 %v3473, 32
        %v3499 = vpop.permute.xlu0 %3498
        %3500 = vrot.lane.b32.xlu0 %v3474, 32
        %v3501 = vpop.permute.xlu0 %3500
        %3502 = vrot.lane.b32.xlu0 %v3475, 32
        %v3503 = vpop.permute.xlu0 %3502
        %3504 = vrot.lane.b32.xlu0 %v3476, 32
        %v3505 = vpop.permute.xlu0 %3504
        %3506 = vrot.lane.b32.xlu0 %v3477, 32
        %v3507 = vpop.permute.xlu0 %3506
        %3508 = vrot.lane.b32.xlu0 %v3478, 32
        %v3509 = vpop.permute.xlu0 %3508
        %3510 = vrot.lane.b32.xlu0 %v3479, 32
        %v3511 = vpop.permute.xlu0 %3510
        %v3544 = vunpack.c.l.b16 %v3284
        %v3545 = vunpack.c.l.b16 %v3285
        %v3546 = vunpack.c.l.b16 %v3286
        %v3547 = vunpack.c.l.b16 %v3287
        %v3548 = vunpack.c.l.b16 %v3288
        %v3549 = vunpack.c.l.b16 %v3289
        %v3550 = vunpack.c.l.b16 %v3290
        %v3551 = vunpack.c.l.b16 %v3291
        %v3552 = vunpack.c.l.b16 %v3292
        %v3553 = vunpack.c.l.b16 %v3293
        %v3554 = vunpack.c.l.b16 %v3294
        %v3555 = vunpack.c.l.b16 %v3295
        %v3556 = vunpack.c.l.b16 %v3296
        %v3557 = vunpack.c.l.b16 %v3297
        %v3558 = vunpack.c.l.b16 %v3298
        %v3559 = vunpack.c.l.b16 %v3299
        %v3560 = vunpack.c.l.b16 %v3300
        %v3561 = vunpack.c.l.b16 %v3301
        %v3562 = vunpack.c.l.b16 %v3302
        %v3563 = vunpack.c.l.b16 %v3303
        %v3564 = vunpack.c.l.b16 %v3304
        %v3565 = vunpack.c.l.b16 %v3305
        %v3566 = vunpack.c.l.b16 %v3306
        %v3567 = vunpack.c.l.b16 %v3307
        %v3568 = vunpack.c.l.b16 %v3308
        %v3569 = vunpack.c.l.b16 %v3309
        %v3570 = vunpack.c.l.b16 %v3310
        %v3571 = vunpack.c.l.b16 %v3311
        %v3572 = vunpack.c.l.b16 %v3312
        %v3573 = vunpack.c.l.b16 %v3313
        %v3574 = vunpack.c.l.b16 %v3314
        %v3575 = vunpack.c.l.b16 %v3315
        %v3576 = vpack.c.b16 %v3545, %v3544
        %v3577 = vpack.c.b16 %v3547, %v3546
        %v3578 = vpack.c.b16 %v3549, %v3548
        %v3579 = vpack.c.b16 %v3551, %v3550
        %v3580 = vpack.c.b16 %v3553, %v3552
        %v3581 = vpack.c.b16 %v3555, %v3554
        %v3582 = vpack.c.b16 %v3557, %v3556
        %v3583 = vpack.c.b16 %v3559, %v3558
        %v3584 = vpack.c.b16 %v3561, %v3560
        %v3585 = vpack.c.b16 %v3563, %v3562
        %v3586 = vpack.c.b16 %v3565, %v3564
        %v3587 = vpack.c.b16 %v3567, %v3566
        %v3588 = vpack.c.b16 %v3569, %v3568
        %v3589 = vpack.c.b16 %v3571, %v3570
        %v3590 = vpack.c.b16 %v3573, %v3572
        %v3591 = vpack.c.b16 %v3575, %v3574
        %3592 = vrot.lane.b32.xlu0 %v3576, 64
        %v3593 = vpop.permute.xlu0 %3592
        %3594 = vrot.lane.b32.xlu0 %v3577, 64
        %v3595 = vpop.permute.xlu0 %3594
        %3596 = vrot.lane.b32.xlu0 %v3578, 64
        %v3597 = vpop.permute.xlu0 %3596
        %3598 = vrot.lane.b32.xlu0 %v3579, 64
        %v3599 = vpop.permute.xlu0 %3598
        %3600 = vrot.lane.b32.xlu0 %v3580, 64
        %v3601 = vpop.permute.xlu0 %3600
        %3602 = vrot.lane.b32.xlu0 %v3581, 64
        %v3603 = vpop.permute.xlu0 %3602
        %3604 = vrot.lane.b32.xlu0 %v3582, 64
        %v3605 = vpop.permute.xlu0 %3604
        %3606 = vrot.lane.b32.xlu0 %v3583, 64
        %v3607 = vpop.permute.xlu0 %3606
        %3608 = vrot.lane.b32.xlu0 %v3584, 64
        %v3609 = vpop.permute.xlu0 %3608
        %3610 = vrot.lane.b32.xlu0 %v3585, 64
        %v3611 = vpop.permute.xlu0 %3610
        %3612 = vrot.lane.b32.xlu0 %v3586, 64
        %v3613 = vpop.permute.xlu0 %3612
        %3614 = vrot.lane.b32.xlu0 %v3587, 64
        %v3615 = vpop.permute.xlu0 %3614
        %3616 = vrot.lane.b32.xlu0 %v3588, 64
        %v3617 = vpop.permute.xlu0 %3616
        %3618 = vrot.lane.b32.xlu0 %v3589, 64
        %v3619 = vpop.permute.xlu0 %3618
        %3620 = vrot.lane.b32.xlu0 %v3590, 64
        %v3621 = vpop.permute.xlu0 %3620
        %3622 = vrot.lane.b32.xlu0 %v3591, 64
        %v3623 = vpop.permute.xlu0 %3622
        %v3626 = vunpack.c.l.b16 %v3172
        %v3627 = vunpack.c.l.b16 %v3173
        %v3628 = vpack.c.b16 %v3627, %v3626
        %3629 = vrot.lane.b32.xlu0 %v3385, 96
        %v3630 = vpop.permute.xlu0 %3629
        %3631 = vrot.lane.b32.xlu0 %v3386, 96
        %v3632 = vpop.permute.xlu0 %3631
        %3633 = vrot.lane.b32.xlu0 %v3387, 96
        %v3634 = vpop.permute.xlu0 %3633
        %3635 = vrot.lane.b32.xlu0 %v3388, 96
        %v3636 = vpop.permute.xlu0 %3635
        %3637 = vrot.lane.b32.xlu0 %v3389, 96
        %v3638 = vpop.permute.xlu0 %3637
        %3639 = vrot.lane.b32.xlu0 %v3390, 96
        %v3640 = vpop.permute.xlu0 %3639
        %3641 = vrot.lane.b32.xlu0 %v3391, 96
        %v3642 = vpop.permute.xlu0 %3641
        %3643 = vrot.lane.b32.xlu0 %v3392, 96
        %v3644 = vpop.permute.xlu0 %3643
        %3645 = vrot.lane.b32.xlu0 %v3393, 96
        %v3646 = vpop.permute.xlu0 %3645
        %3647 = vrot.lane.b32.xlu0 %v3394, 96
        %v3648 = vpop.permute.xlu0 %3647
        %3649 = vrot.lane.b32.xlu0 %v3395, 96
        %v3650 = vpop.permute.xlu0 %3649
        %3651 = vrot.lane.b32.xlu0 %v3396, 96
        %v3652 = vpop.permute.xlu0 %3651
        %3653 = vrot.lane.b32.xlu0 %v3397, 96
        %v3654 = vpop.permute.xlu0 %3653
        %3655 = vrot.lane.b32.xlu0 %v3398, 96
        %v3656 = vpop.permute.xlu0 %3655
        %3657 = vrot.lane.b32.xlu0 %v3399, 96
        %v3658 = vpop.permute.xlu0 %3657
        %3659 = vrot.lane.b32.xlu0 %v3628, 96
        %v3660 = vpop.permute.xlu0 %3659
        %v3663 = vunpack.c.l.b16 %v3244
        %v3664 = vunpack.c.l.b16 %v3245
        %v3665 = vpack.c.b16 %v3664, %v3663
        %v3668 = vunpack.c.l.b16 %v3316
        %v3669 = vunpack.c.l.b16 %v3317
        %v3670 = vpack.c.b16 %v3669, %v3668
        %3671 = vrot.lane.b32.xlu0 %v3577, 32
        %v3672 = vpop.permute.xlu0 %3671
        %3673 = vrot.lane.b32.xlu0 %v3578, 32
        %v3674 = vpop.permute.xlu0 %3673
        %3675 = vrot.lane.b32.xlu0 %v3579, 32
        %v3676 = vpop.permute.xlu0 %3675
        %3677 = vrot.lane.b32.xlu0 %v3580, 32
        %v3678 = vpop.permute.xlu0 %3677
        %3679 = vrot.lane.b32.xlu0 %v3581, 32
        %v3680 = vpop.permute.xlu0 %3679
        %3681 = vrot.lane.b32.xlu0 %v3582, 32
        %v3682 = vpop.permute.xlu0 %3681
        %3683 = vrot.lane.b32.xlu0 %v3583, 32
        %v3684 = vpop.permute.xlu0 %3683
        %3685 = vrot.lane.b32.xlu0 %v3584, 32
        %v3686 = vpop.permute.xlu0 %3685
        %3687 = vrot.lane.b32.xlu0 %v3585, 32
        %v3688 = vpop.permute.xlu0 %3687
        %3689 = vrot.lane.b32.xlu0 %v3586, 32
        %v3690 = vpop.permute.xlu0 %3689
        %3691 = vrot.lane.b32.xlu0 %v3587, 32
        %v3692 = vpop.permute.xlu0 %3691
        %3693 = vrot.lane.b32.xlu0 %v3588, 32
        %v3694 = vpop.permute.xlu0 %3693
        %3695 = vrot.lane.b32.xlu0 %v3589, 32
        %v3696 = vpop.permute.xlu0 %3695
        %3697 = vrot.lane.b32.xlu0 %v3590, 32
        %v3698 = vpop.permute.xlu0 %3697
        %3699 = vrot.lane.b32.xlu0 %v3591, 32
        %v3700 = vpop.permute.xlu0 %3699
        %3701 = vrot.lane.b32.xlu0 %v3670, 32
        %v3702 = vpop.permute.xlu0 %3701
        %v3705 = vunpack.c.l.b16 %v3174
        %v3706 = vunpack.c.l.b16 %v3175
        %v3707 = vpack.c.b16 %v3706, %v3705
        %3708 = vrot.lane.b32.xlu0 %v3386, 64
        %v3709 = vpop.permute.xlu0 %3708
        %3710 = vrot.lane.b32.xlu0 %v3387, 64
        %v3711 = vpop.permute.xlu0 %3710
        %3712 = vrot.lane.b32.xlu0 %v3388, 64
        %v3713 = vpop.permute.xlu0 %3712
        %3714 = vrot.lane.b32.xlu0 %v3389, 64
        %v3715 = vpop.permute.xlu0 %3714
        %3716 = vrot.lane.b32.xlu0 %v3390, 64
        %v3717 = vpop.permute.xlu0 %3716
        %3718 = vrot.lane.b32.xlu0 %v3391, 64
        %v3719 = vpop.permute.xlu0 %3718
        %3720 = vrot.lane.b32.xlu0 %v3392, 64
        %v3721 = vpop.permute.xlu0 %3720
        %3722 = vrot.lane.b32.xlu0 %v3393, 64
        %v3723 = vpop.permute.xlu0 %3722
        %3724 = vrot.lane.b32.xlu0 %v3394, 64
        %v3725 = vpop.permute.xlu0 %3724
        %3726 = vrot.lane.b32.xlu0 %v3395, 64
        %v3727 = vpop.permute.xlu0 %3726
        %3728 = vrot.lane.b32.xlu0 %v3396, 64
        %v3729 = vpop.permute.xlu0 %3728
        %3730 = vrot.lane.b32.xlu0 %v3397, 64
        %v3731 = vpop.permute.xlu0 %3730
        %3732 = vrot.lane.b32.xlu0 %v3398, 64
        %v3733 = vpop.permute.xlu0 %3732
        %3734 = vrot.lane.b32.xlu0 %v3399, 64
        %v3735 = vpop.permute.xlu0 %3734
        %3736 = vrot.lane.b32.xlu0 %v3628, 64
        %v3737 = vpop.permute.xlu0 %3736
        %3738 = vrot.lane.b32.xlu0 %v3707, 64
        %v3739 = vpop.permute.xlu0 %3738
        %v3742 = vunpack.c.l.b16 %v3246
        %v3743 = vunpack.c.l.b16 %v3247
        %v3744 = vpack.c.b16 %v3743, %v3742
        %3745 = vrot.lane.b32.xlu0 %v3466, 96
        %v3746 = vpop.permute.xlu0 %3745
        %3747 = vrot.lane.b32.xlu0 %v3467, 96
        %v3748 = vpop.permute.xlu0 %3747
        %3749 = vrot.lane.b32.xlu0 %v3468, 96
        %v3750 = vpop.permute.xlu0 %3749
        %3751 = vrot.lane.b32.xlu0 %v3469, 96
        %v3752 = vpop.permute.xlu0 %3751
        %3753 = vrot.lane.b32.xlu0 %v3470, 96
        %v3754 = vpop.permute.xlu0 %3753
        %3755 = vrot.lane.b32.xlu0 %v3471, 96
        %v3756 = vpop.permute.xlu0 %3755
        %3757 = vrot.lane.b32.xlu0 %v3472, 96
        %v3758 = vpop.permute.xlu0 %3757
        %3759 = vrot.lane.b32.xlu0 %v3473, 96
        %v3760 = vpop.permute.xlu0 %3759
        %3761 = vrot.lane.b32.xlu0 %v3474, 96
        %v3762 = vpop.permute.xlu0 %3761
        %3763 = vrot.lane.b32.xlu0 %v3475, 96
        %v3764 = vpop.permute.xlu0 %3763
        %3765 = vrot.lane.b32.xlu0 %v3476, 96
        %v3766 = vpop.permute.xlu0 %3765
        %3767 = vrot.lane.b32.xlu0 %v3477, 96
        %v3768 = vpop.permute.xlu0 %3767
        %3769 = vrot.lane.b32.xlu0 %v3478, 96
        %v3770 = vpop.permute.xlu0 %3769
        %3771 = vrot.lane.b32.xlu0 %v3479, 96
        %v3772 = vpop.permute.xlu0 %3771
        %3773 = vrot.lane.b32.xlu0 %v3665, 96
        %v3774 = vpop.permute.xlu0 %3773
        %3775 = vrot.lane.b32.xlu0 %v3744, 96
        %v3776 = vpop.permute.xlu0 %3775
        %v3779 = vunpack.c.l.b16 %v3318
        %v3780 = vunpack.c.l.b16 %v3319
        %v3781 = vpack.c.b16 %v3780, %v3779
        %v3784 = vsel %vm440, %v3384, %v3481
        %v3787 = vsel %vm440, %v3385, %v3483
        %v3790 = vsel %vm440, %v3386, %v3485
        %v3793 = vsel %vm440, %v3387, %v3487
        %v3796 = vsel %vm440, %v3388, %v3489
        %v3799 = vsel %vm440, %v3389, %v3491
        %v3802 = vsel %vm440, %v3390, %v3493
        %v3805 = vsel %vm440, %v3391, %v3495
        %v3808 = vsel %vm440, %v3392, %v3497
        %v3811 = vsel %vm440, %v3393, %v3499
        %v3814 = vsel %vm440, %v3394, %v3501
        %v3817 = vsel %vm440, %v3395, %v3503
        %v3820 = vsel %vm440, %v3396, %v3505
        %v3823 = vsel %vm440, %v3397, %v3507
        %v3826 = vsel %vm440, %v3398, %v3509
        %v3829 = vsel %vm440, %v3399, %v3511
        %v3831 = vsel %vm1273, %v3784, %v3593
        %v3833 = vsel %vm1273, %v3787, %v3595
        %v3835 = vsel %vm1273, %v3790, %v3597
        %v3837 = vsel %vm1273, %v3793, %v3599
        %v3839 = vsel %vm1273, %v3796, %v3601
        %v3841 = vsel %vm1273, %v3799, %v3603
        %v3843 = vsel %vm1273, %v3802, %v3605
        %v3845 = vsel %vm1273, %v3805, %v3607
        %v3847 = vsel %vm1273, %v3808, %v3609
        %v3849 = vsel %vm1273, %v3811, %v3611
        %v3851 = vsel %vm1273, %v3814, %v3613
        %v3853 = vsel %vm1273, %v3817, %v3615
        %v3855 = vsel %vm1273, %v3820, %v3617
        %v3857 = vsel %vm1273, %v3823, %v3619
        %v3859 = vsel %vm1273, %v3826, %v3621
        %v3861 = vsel %vm1273, %v3829, %v3623
        %v3863 = vsel %vm1306, %v3831, %v3630
        %v3866 = vsel %vm1306, %v3833, %v3632
        %v3869 = vsel %vm1306, %v3835, %v3634
        %v3872 = vsel %vm1306, %v3837, %v3636
        %v3875 = vsel %vm1306, %v3839, %v3638
        %v3878 = vsel %vm1306, %v3841, %v3640
        %v3881 = vsel %vm1306, %v3843, %v3642
        %v3884 = vsel %vm1306, %v3845, %v3644
        %v3887 = vsel %vm1306, %v3847, %v3646
        %v3890 = vsel %vm1306, %v3849, %v3648
        %v3893 = vsel %vm1306, %v3851, %v3650
        %v3896 = vsel %vm1306, %v3853, %v3652
        %v3899 = vsel %vm1306, %v3855, %v3654
        %v3902 = vsel %vm1306, %v3857, %v3656
        %v3905 = vsel %vm1306, %v3859, %v3658
        %v3908 = vsel %vm1306, %v3861, %v3660
        %v3912 = vsel %vm440, %v3465, %v3672
        %v3915 = vsel %vm440, %v3466, %v3674
        %v3918 = vsel %vm440, %v3467, %v3676
        %v3921 = vsel %vm440, %v3468, %v3678
        %v3924 = vsel %vm440, %v3469, %v3680
        %v3927 = vsel %vm440, %v3470, %v3682
        %v3930 = vsel %vm440, %v3471, %v3684
        %v3933 = vsel %vm440, %v3472, %v3686
        %v3936 = vsel %vm440, %v3473, %v3688
        %v3939 = vsel %vm440, %v3474, %v3690
        %v3942 = vsel %vm440, %v3475, %v3692
        %v3945 = vsel %vm440, %v3476, %v3694
        %v3948 = vsel %vm440, %v3477, %v3696
        %v3951 = vsel %vm440, %v3478, %v3698
        %v3954 = vsel %vm440, %v3479, %v3700
        %v3957 = vsel %vm440, %v3665, %v3702
        %v3959 = vsel %vm1273, %v3912, %v3709
        %v3961 = vsel %vm1273, %v3915, %v3711
        %v3963 = vsel %vm1273, %v3918, %v3713
        %v3965 = vsel %vm1273, %v3921, %v3715
        %v3967 = vsel %vm1273, %v3924, %v3717
        %v3969 = vsel %vm1273, %v3927, %v3719
        %v3971 = vsel %vm1273, %v3930, %v3721
        %v3973 = vsel %vm1273, %v3933, %v3723
        %v3975 = vsel %vm1273, %v3936, %v3725
        %v3977 = vsel %vm1273, %v3939, %v3727
        %v3979 = vsel %vm1273, %v3942, %v3729
        %v3981 = vsel %vm1273, %v3945, %v3731
        %v3983 = vsel %vm1273, %v3948, %v3733
        %v3985 = vsel %vm1273, %v3951, %v3735
        %v3987 = vsel %vm1273, %v3954, %v3737
        %v3989 = vsel %vm1273, %v3957, %v3739
        %v3991 = vsel %vm1306, %v3959, %v3746
        %v3994 = vsel %vm1306, %v3961, %v3748
        %v3997 = vsel %vm1306, %v3963, %v3750
        %v4000 = vsel %vm1306, %v3965, %v3752
        %v4003 = vsel %vm1306, %v3967, %v3754
        %v4006 = vsel %vm1306, %v3969, %v3756
        %v4009 = vsel %vm1306, %v3971, %v3758
        %v4012 = vsel %vm1306, %v3973, %v3760
        %v4015 = vsel %vm1306, %v3975, %v3762
        %v4018 = vsel %vm1306, %v3977, %v3764
        %v4021 = vsel %vm1306, %v3979, %v3766
        %v4024 = vsel %vm1306, %v3981, %v3768
        %v4027 = vsel %vm1306, %v3983, %v3770
        %v4030 = vsel %vm1306, %v3985, %v3772
        %v4033 = vsel %vm1306, %v3987, %v3774
        %v4036 = vsel %vm1306, %v3989, %v3776
        %s4038 = scalar_lea.vmem %s1, 144
        %v4039 = vld [vmem:[%s4038] sm:$0xf]
        %v4040 = vld [vmem:[%s4038 + $0x4] sm:$0xf]
        %v4041 = vld [vmem:[%s4038 + $0x8] sm:$0xf]
        %v4042 = vld [vmem:[%s4038 + $0xc] sm:$0xf]
        %v4043 = vld [vmem:[%s4038 + $0x10] sm:$0xf]
        %v4044 = vld [vmem:[%s4038 + $0x14] sm:$0xf]
        %v4045 = vld [vmem:[%s4038 + $0x18] sm:$0xf]
        %v4046 = vld [vmem:[%s4038 + $0x1c] sm:$0xf]
        %v4047 = vld [vmem:[%s4038 + $0x20] sm:$0xf]
        %v4048 = vld [vmem:[%s4038 + $0x24] sm:$0xf]
        %v4049 = vld [vmem:[%s4038 + $0x28] sm:$0xf]
        %v4050 = vld [vmem:[%s4038 + $0x2c] sm:$0xf]
        %v4051 = vld [vmem:[%s4038 + $0x30] sm:$0xf]
        %v4052 = vld [vmem:[%s4038 + $0x34] sm:$0xf]
        %v4053 = vld [vmem:[%s4038 + $0x38] sm:$0xf]
        %v4054 = vld [vmem:[%s4038 + $0x3c] sm:$0xf]
        %v4055 = vld [vmem:[%s4038 + $0x40] sm:$0xf]
        %v4056 = vld [vmem:[%s4038 + $0x44] sm:$0xf]
        %v4057 = vld [vmem:[%s4038 + $0x48] sm:$0xf]
        %v4058 = vld [vmem:[%s4038 + $0x4c] sm:$0xf]
        %v4059 = vld [vmem:[%s4038 + $0x50] sm:$0xf]
        %v4060 = vld [vmem:[%s4038 + $0x54] sm:$0xf]
        %v4061 = vld [vmem:[%s4038 + $0x58] sm:$0xf]
        %v4062 = vld [vmem:[%s4038 + $0x5c] sm:$0xf]
        %v4063 = vld [vmem:[%s4038 + $0x60] sm:$0xf]
        %v4064 = vld [vmem:[%s4038 + $0x64] sm:$0xf]
        %v4065 = vld [vmem:[%s4038 + $0x68] sm:$0xf]
        %v4066 = vld [vmem:[%s4038 + $0x6c] sm:$0xf]
        %v4067 = vld [vmem:[%s4038 + $0x70] sm:$0xf]
        %v4068 = vld [vmem:[%s4038 + $0x74] sm:$0xf]
        %v4069 = vld [vmem:[%s4038 + $0x78] sm:$0xf]
        %v4070 = vld [vmem:[%s4038 + $0x7c] sm:$0xf]
        %v4071 = vld [vmem:[%s4038 + $0x80] sm:$0xf]
        %v4072 = vld [vmem:[%s4038 + $0x84] sm:$0xf]
        %v4073 = vld [vmem:[%s4038 + $0x88] sm:$0xf]
        %v4074 = vld [vmem:[%s4038 + $0x8c] sm:$0xf]
        %s4075 = scalar_lea.vmem %s2, 1
        %v4076 = vld [vmem:[%s4075] sm:$0x1]
        %v4078 = vperm.slane %v4076, 0
        %v4116 = vunpack.c.l.b16 %v4039
        %v4117 = vunpack.c.l.b16 %v4040
        %v4118 = vunpack.c.l.b16 %v4041
        %v4119 = vunpack.c.l.b16 %v4042
        %v4120 = vunpack.c.l.b16 %v4043
        %v4121 = vunpack.c.l.b16 %v4044
        %v4122 = vunpack.c.l.b16 %v4045
        %v4123 = vunpack.c.l.b16 %v4046
        %v4124 = vunpack.c.l.b16 %v4047
        %v4125 = vunpack.c.l.b16 %v4048
        %v4126 = vunpack.c.l.b16 %v4049
        %v4127 = vunpack.c.l.b16 %v4050
        %v4128 = vunpack.c.l.b16 %v4051
        %v4129 = vunpack.c.l.b16 %v4052
        %v4130 = vunpack.c.l.b16 %v4053
        %v4131 = vunpack.c.l.b16 %v4054
        %v4132 = vunpack.c.l.b16 %v4055
        %v4133 = vunpack.c.l.b16 %v4056
        %v4134 = vunpack.c.l.b16 %v4057
        %v4135 = vunpack.c.l.b16 %v4058
        %v4136 = vunpack.c.l.b16 %v4059
        %v4137 = vunpack.c.l.b16 %v4060
        %v4138 = vunpack.c.l.b16 %v4061
        %v4139 = vunpack.c.l.b16 %v4062
        %v4140 = vunpack.c.l.b16 %v4063
        %v4141 = vunpack.c.l.b16 %v4064
        %v4142 = vunpack.c.l.b16 %v4065
        %v4143 = vunpack.c.l.b16 %v4066
        %v4144 = vunpack.c.l.b16 %v4067
        %v4145 = vunpack.c.l.b16 %v4068
        %v4146 = vunpack.c.l.b16 %v4069
        %v4147 = vunpack.c.l.b16 %v4070
        %v4148 = vunpack.c.l.b16 %v4071
        %v4149 = vunpack.c.l.b16 %v4072
        %v4150 = vunpack.c.l.b16 %v4073
        %v4151 = vunpack.c.l.b16 %v4074
        %v4152 = vpack.c.b16 %v4117, %v4116
        %v4153 = vpack.c.b16 %v4119, %v4118
        %v4154 = vpack.c.b16 %v4121, %v4120
        %v4155 = vpack.c.b16 %v4123, %v4122
        %v4156 = vpack.c.b16 %v4125, %v4124
        %v4157 = vpack.c.b16 %v4127, %v4126
        %v4158 = vpack.c.b16 %v4129, %v4128
        %v4159 = vpack.c.b16 %v4131, %v4130
        %v4160 = vpack.c.b16 %v4133, %v4132
        %v4161 = vpack.c.b16 %v4135, %v4134
        %v4162 = vpack.c.b16 %v4137, %v4136
        %v4163 = vpack.c.b16 %v4139, %v4138
        %v4164 = vpack.c.b16 %v4141, %v4140
        %v4165 = vpack.c.b16 %v4143, %v4142
        %v4166 = vpack.c.b16 %v4145, %v4144
        %v4167 = vpack.c.b16 %v4147, %v4146
        %v4168 = vpack.c.b16 %v4149, %v4148
        %v4169 = vpack.c.b16 %v4151, %v4150
        %v4189 = vsel %vm440, %v3578, 0
        %v4192 = vsel %vm440, %v3579, 0
        %v4195 = vsel %vm440, %v3580, 0
        %v4198 = vsel %vm440, %v3581, 0
        %v4201 = vsel %vm440, %v3582, 0
        %v4204 = vsel %vm440, %v3583, 0
        %v4207 = vsel %vm440, %v3584, 0
        %v4210 = vsel %vm440, %v3585, 0
        %v4213 = vsel %vm440, %v3586, 0
        %v4216 = vsel %vm440, %v3587, 0
        %v4219 = vsel %vm440, %v3588, 0
        %v4222 = vsel %vm440, %v3589, 0
        %v4225 = vsel %vm440, %v3590, 0
        %v4228 = vsel %vm440, %v3591, 0
        %v4231 = vsel %vm440, %v3670, 0
        %v4234 = vsel %vm440, %v3781, 0
        %4236 = vmatpush.bf16.msra.mxu0 %v4159
        %4237 = vmatpush.bf16.msra.mxu0 %v4158
        %4238 = vmatpush.bf16.msra.mxu0 %v4157
        %4239 = vmatpush.bf16.msra.mxu0 %v4156
        %4240 = vmatpush.bf16.msra.mxu0 %v4155
        %4241 = vmatpush.bf16.msra.mxu0 %v4154
        %4242 = vmatpush.bf16.msra.mxu0 %v4153
        %4243 = vmatpush.bf16.msra.mxu0 %v4152
        %4244 = vmatmul.bf16.gmra.mxu0 %v3863
        %v4245 = vpop.f32.mrf.mxu0
        %v4246 = vadd.f32 %v4078, %v4245
        %v4247 = vpop.f32.mrf.mxu0
        %v4248 = vadd.f32 %v4078, %v4247
        %4249 = vmatmul.bf16.gmra.mxu0 %v3866
        %v4250 = vpop.f32.mrf.mxu0
        %v4251 = vadd.f32 %v4078, %v4250
        %v4252 = vpop.f32.mrf.mxu0
        %v4253 = vadd.f32 %v4078, %v4252
        %4254 = vmatmul.bf16.gmra.mxu0 %v3869
        %v4255 = vpop.f32.mrf.mxu0
        %v4256 = vadd.f32 %v4078, %v4255
        %v4257 = vpop.f32.mrf.mxu0
        %v4258 = vadd.f32 %v4078, %v4257
        %4259 = vmatmul.bf16.gmra.mxu0 %v3872
        %v4260 = vpop.f32.mrf.mxu0
        %v4261 = vadd.f32 %v4078, %v4260
        %v4262 = vpop.f32.mrf.mxu0
        %v4263 = vadd.f32 %v4078, %v4262
        %4264 = vmatmul.bf16.gmra.mxu0 %v3875
        %v4265 = vpop.f32.mrf.mxu0
        %v4266 = vadd.f32 %v4078, %v4265
        %v4267 = vpop.f32.mrf.mxu0
        %v4268 = vadd.f32 %v4078, %v4267
        %4269 = vmatmul.bf16.gmra.mxu0 %v3878
        %v4270 = vpop.f32.mrf.mxu0
        %v4271 = vadd.f32 %v4078, %v4270
        %v4272 = vpop.f32.mrf.mxu0
        %v4273 = vadd.f32 %v4078, %v4272
        %4274 = vmatmul.bf16.gmra.mxu0 %v3881
        %v4275 = vpop.f32.mrf.mxu0
        %v4276 = vadd.f32 %v4078, %v4275
        %v4277 = vpop.f32.mrf.mxu0
        %v4278 = vadd.f32 %v4078, %v4277
        %4279 = vmatmul.bf16.gmra.mxu0 %v3884
        %v4280 = vpop.f32.mrf.mxu0
        %v4281 = vadd.f32 %v4078, %v4280
        %v4282 = vpop.f32.mrf.mxu0
        %v4283 = vadd.f32 %v4078, %v4282
        %4284 = vmatmul.bf16.gmra.mxu0 %v3887
        %v4285 = vpop.f32.mrf.mxu0
        %v4286 = vadd.f32 %v4078, %v4285
        %v4287 = vpop.f32.mrf.mxu0
        %v4288 = vadd.f32 %v4078, %v4287
        %4289 = vmatmul.bf16.gmra.mxu0 %v3890
        %v4290 = vpop.f32.mrf.mxu0
        %v4291 = vadd.f32 %v4078, %v4290
        %v4292 = vpop.f32.mrf.mxu0
        %v4293 = vadd.f32 %v4078, %v4292
        %4294 = vmatmul.bf16.gmra.mxu0 %v3893
        %v4295 = vpop.f32.mrf.mxu0
        %v4296 = vadd.f32 %v4078, %v4295
        %v4297 = vpop.f32.mrf.mxu0
        %v4298 = vadd.f32 %v4078, %v4297
        %4299 = vmatmul.bf16.gmra.mxu0 %v3896
        %v4300 = vpop.f32.mrf.mxu0
        %v4301 = vadd.f32 %v4078, %v4300
        %v4302 = vpop.f32.mrf.mxu0
        %v4303 = vadd.f32 %v4078, %v4302
        %4304 = vmatmul.bf16.gmra.mxu0 %v3899
        %v4305 = vpop.f32.mrf.mxu0
        %v4306 = vadd.f32 %v4078, %v4305
        %v4307 = vpop.f32.mrf.mxu0
        %v4308 = vadd.f32 %v4078, %v4307
        %4309 = vmatmul.bf16.gmra.mxu0 %v3902
        %v4310 = vpop.f32.mrf.mxu0
        %v4311 = vadd.f32 %v4078, %v4310
        %v4312 = vpop.f32.mrf.mxu0
        %v4313 = vadd.f32 %v4078, %v4312
        %4314 = vmatmul.bf16.gmra.mxu0 %v3905
        %v4315 = vpop.f32.mrf.mxu0
        %v4316 = vadd.f32 %v4078, %v4315
        %v4317 = vpop.f32.mrf.mxu0
        %v4318 = vadd.f32 %v4078, %v4317
        %4319 = vmatmul.bf16.gmra.mxu0 %v3908
        %v4320 = vpop.f32.mrf.mxu0
        %v4321 = vadd.f32 %v4078, %v4320
        %v4322 = vpop.f32.mrf.mxu0
        %v4323 = vadd.f32 %v4078, %v4322
        %4324 = vdwg.mxu0
        %4325 = vmatpush.bf16.msra.mxu0 %v4167
        %4326 = vmatpush.bf16.msra.mxu0 %v4166
        %4327 = vmatpush.bf16.msra.mxu0 %v4165
        %4328 = vmatpush.bf16.msra.mxu0 %v4164
        %4329 = vmatpush.bf16.msra.mxu0 %v4163
        %4330 = vmatpush.bf16.msra.mxu0 %v4162
        %4331 = vmatpush.bf16.msra.mxu0 %v4161
        %4332 = vmatpush.bf16.msra.mxu0 %v4160
        %4333 = vmatmul.bf16.gmra.mxu0 %v3991
        %v4334 = vpop.f32.mrf.mxu0
        %v4335 = vadd.f32 %v4246, %v4334
        %v4336 = vpop.f32.mrf.mxu0
        %v4337 = vadd.f32 %v4248, %v4336
        %4338 = vmatmul.bf16.gmra.mxu0 %v3994
        %v4339 = vpop.f32.mrf.mxu0
        %v4340 = vadd.f32 %v4251, %v4339
        %v4341 = vpop.f32.mrf.mxu0
        %v4342 = vadd.f32 %v4253, %v4341
        %4343 = vmatmul.bf16.gmra.mxu0 %v3997
        %v4344 = vpop.f32.mrf.mxu0
        %v4345 = vadd.f32 %v4256, %v4344
        %v4346 = vpop.f32.mrf.mxu0
        %v4347 = vadd.f32 %v4258, %v4346
        %4348 = vmatmul.bf16.gmra.mxu0 %v4000
        %v4349 = vpop.f32.mrf.mxu0
        %v4350 = vadd.f32 %v4261, %v4349
        %v4351 = vpop.f32.mrf.mxu0
        %v4352 = vadd.f32 %v4263, %v4351
        %4353 = vmatmul.bf16.gmra.mxu0 %v4003
        %v4354 = vpop.f32.mrf.mxu0
        %v4355 = vadd.f32 %v4266, %v4354
        %v4356 = vpop.f32.mrf.mxu0
        %v4357 = vadd.f32 %v4268, %v4356
        %4358 = vmatmul.bf16.gmra.mxu0 %v4006
        %v4359 = vpop.f32.mrf.mxu0
        %v4360 = vadd.f32 %v4271, %v4359
        %v4361 = vpop.f32.mrf.mxu0
        %v4362 = vadd.f32 %v4273, %v4361
        %4363 = vmatmul.bf16.gmra.mxu0 %v4009
        %v4364 = vpop.f32.mrf.mxu0
        %v4365 = vadd.f32 %v4276, %v4364
        %v4366 = vpop.f32.mrf.mxu0
        %v4367 = vadd.f32 %v4278, %v4366
        %4368 = vmatmul.bf16.gmra.mxu0 %v4012
        %v4369 = vpop.f32.mrf.mxu0
        %v4370 = vadd.f32 %v4281, %v4369
        %v4371 = vpop.f32.mrf.mxu0
        %v4372 = vadd.f32 %v4283, %v4371
        %4373 = vmatmul.bf16.gmra.mxu0 %v4015
        %v4374 = vpop.f32.mrf.mxu0
        %v4375 = vadd.f32 %v4286, %v4374
        %v4376 = vpop.f32.mrf.mxu0
        %v4377 = vadd.f32 %v4288, %v4376
        %4378 = vmatmul.bf16.gmra.mxu0 %v4018
        %v4379 = vpop.f32.mrf.mxu0
        %v4380 = vadd.f32 %v4291, %v4379
        %v4381 = vpop.f32.mrf.mxu0
        %v4382 = vadd.f32 %v4293, %v4381
        %4383 = vmatmul.bf16.gmra.mxu0 %v4021
        %v4384 = vpop.f32.mrf.mxu0
        %v4385 = vadd.f32 %v4296, %v4384
        %v4386 = vpop.f32.mrf.mxu0
        %v4387 = vadd.f32 %v4298, %v4386
        %4388 = vmatmul.bf16.gmra.mxu0 %v4024
        %v4389 = vpop.f32.mrf.mxu0
        %v4390 = vadd.f32 %v4301, %v4389
        %v4391 = vpop.f32.mrf.mxu0
        %v4392 = vadd.f32 %v4303, %v4391
        %4393 = vmatmul.bf16.gmra.mxu0 %v4027
        %v4394 = vpop.f32.mrf.mxu0
        %v4395 = vadd.f32 %v4306, %v4394
        %v4396 = vpop.f32.mrf.mxu0
        %v4397 = vadd.f32 %v4308, %v4396
        %4398 = vmatmul.bf16.gmra.mxu0 %v4030
        %v4399 = vpop.f32.mrf.mxu0
        %v4400 = vadd.f32 %v4311, %v4399
        %v4401 = vpop.f32.mrf.mxu0
        %v4402 = vadd.f32 %v4313, %v4401
        %4403 = vmatmul.bf16.gmra.mxu0 %v4033
        %v4404 = vpop.f32.mrf.mxu0
        %v4405 = vadd.f32 %v4316, %v4404
        %v4406 = vpop.f32.mrf.mxu0
        %v4407 = vadd.f32 %v4318, %v4406
        %4408 = vmatmul.bf16.gmra.mxu0 %v4036
        %v4409 = vpop.f32.mrf.mxu0
        %v4410 = vadd.f32 %v4321, %v4409
        %v4411 = vpop.f32.mrf.mxu0
        %v4412 = vadd.f32 %v4323, %v4411
        %4413 = vdwg.mxu0
        %4414 = vmatpush.bf16.msra.mxu0 0
        %4415 = vmatpush.bf16.msra.mxu0 0
        %4416 = vmatpush.bf16.msra.mxu0 0
        %4417 = vmatpush.bf16.msra.mxu0 0
        %4418 = vmatpush.bf16.msra.mxu0 0
        %4419 = vmatpush.bf16.msra.mxu0 0
        %4420 = vmatpush.bf16.msra.mxu0 %v4169
        %4421 = vmatpush.bf16.msra.mxu0 %v4168
        %4422 = vmatmul.bf16.gmra.mxu0 %v4189
        %v4423 = vpop.f32.mrf.mxu0
        %v4424 = vadd.f32 %v4335, %v4423
        %v4425 = vpop.f32.mrf.mxu0
        %v4426 = vadd.f32 %v4337, %v4425
        %4427 = vmatmul.bf16.gmra.mxu0 %v4192
        %v4428 = vpop.f32.mrf.mxu0
        %v4429 = vadd.f32 %v4340, %v4428
        %v4430 = vpop.f32.mrf.mxu0
        %v4431 = vadd.f32 %v4342, %v4430
        %4432 = vmatmul.bf16.gmra.mxu0 %v4195
        %v4433 = vpop.f32.mrf.mxu0
        %v4434 = vadd.f32 %v4345, %v4433
        %v4435 = vpop.f32.mrf.mxu0
        %v4436 = vadd.f32 %v4347, %v4435
        %4437 = vmatmul.bf16.gmra.mxu0 %v4198
        %v4438 = vpop.f32.mrf.mxu0
        %v4439 = vadd.f32 %v4350, %v4438
        %v4440 = vpop.f32.mrf.mxu0
        %v4441 = vadd.f32 %v4352, %v4440
        %4442 = vmatmul.bf16.gmra.mxu0 %v4201
        %v4443 = vpop.f32.mrf.mxu0
        %v4444 = vadd.f32 %v4355, %v4443
        %v4445 = vpop.f32.mrf.mxu0
        %v4446 = vadd.f32 %v4357, %v4445
        %4447 = vmatmul.bf16.gmra.mxu0 %v4204
        %v4448 = vpop.f32.mrf.mxu0
        %v4449 = vadd.f32 %v4360, %v4448
        %v4450 = vpop.f32.mrf.mxu0
        %v4451 = vadd.f32 %v4362, %v4450
        %4452 = vmatmul.bf16.gmra.mxu0 %v4207
        %v4453 = vpop.f32.mrf.mxu0
        %v4454 = vadd.f32 %v4365, %v4453
        %v4455 = vpop.f32.mrf.mxu0
        %v4456 = vadd.f32 %v4367, %v4455
        %4457 = vmatmul.bf16.gmra.mxu0 %v4210
        %v4458 = vpop.f32.mrf.mxu0
        %v4459 = vadd.f32 %v4370, %v4458
        %v4460 = vpop.f32.mrf.mxu0
        %v4461 = vadd.f32 %v4372, %v4460
        %4462 = vmatmul.bf16.gmra.mxu0 %v4213
        %v4463 = vpop.f32.mrf.mxu0
        %v4464 = vadd.f32 %v4375, %v4463
        %v4465 = vpop.f32.mrf.mxu0
        %v4466 = vadd.f32 %v4377, %v4465
        %4467 = vmatmul.bf16.gmra.mxu0 %v4216
        %v4468 = vpop.f32.mrf.mxu0
        %v4469 = vadd.f32 %v4380, %v4468
        %v4470 = vpop.f32.mrf.mxu0
        %v4471 = vadd.f32 %v4382, %v4470
        %4472 = vmatmul.bf16.gmra.mxu0 %v4219
        %v4473 = vpop.f32.mrf.mxu0
        %v4474 = vadd.f32 %v4385, %v4473
        %v4475 = vpop.f32.mrf.mxu0
        %v4476 = vadd.f32 %v4387, %v4475
        %4477 = vmatmul.bf16.gmra.mxu0 %v4222
        %v4478 = vpop.f32.mrf.mxu0
        %v4479 = vadd.f32 %v4390, %v4478
        %v4480 = vpop.f32.mrf.mxu0
        %v4481 = vadd.f32 %v4392, %v4480
        %4482 = vmatmul.bf16.gmra.mxu0 %v4225
        %v4483 = vpop.f32.mrf.mxu0
        %v4484 = vadd.f32 %v4395, %v4483
        %v4485 = vpop.f32.mrf.mxu0
        %v4486 = vadd.f32 %v4397, %v4485
        %4487 = vmatmul.bf16.gmra.mxu0 %v4228
        %v4488 = vpop.f32.mrf.mxu0
        %v4489 = vadd.f32 %v4400, %v4488
        %v4490 = vpop.f32.mrf.mxu0
        %v4491 = vadd.f32 %v4402, %v4490
        %4492 = vmatmul.bf16.gmra.mxu0 %v4231
        %v4493 = vpop.f32.mrf.mxu0
        %v4494 = vadd.f32 %v4405, %v4493
        %v4495 = vpop.f32.mrf.mxu0
        %v4496 = vadd.f32 %v4407, %v4495
        %4497 = vmatmul.bf16.gmra.mxu0 %v4234
        %v4498 = vpop.f32.mrf.mxu0
        %v4499 = vadd.f32 %v4410, %v4498
        %v4500 = vpop.f32.mrf.mxu0
        %v4501 = vadd.f32 %v4412, %v4500
        %4502 = vdwg.mxu0
        %s4503 = scalar_lea.vmem %s3, 1
        %v4504 = vld [vmem:[%s4503] sm:$0x1]
        %s4505 = scalar_lea.vmem %s4, 1
        %v4506 = vld [vmem:[%s4505] sm:$0x1]
        %v4507 = vsel %vm440, %v4424, 0.0
        %v4508 = vsel %vm440, %v4426, 0.0
        %v4509 = vadd.f32 %v4507, %v4508
        %v4510 = vsel %vm440, %v4429, 0.0
        %v4511 = vadd.f32 %v4509, %v4510
        %v4512 = vsel %vm440, %v4431, 0.0
        %v4513 = vadd.f32 %v4511, %v4512
        %v4514 = vsel %vm440, %v4434, 0.0
        %v4515 = vadd.f32 %v4513, %v4514
        %v4516 = vsel %vm440, %v4436, 0.0
        %v4517 = vadd.f32 %v4515, %v4516
        %v4518 = vsel %vm440, %v4439, 0.0
        %v4519 = vadd.f32 %v4517, %v4518
        %v4520 = vsel %vm440, %v4441, 0.0
        %v4521 = vadd.f32 %v4519, %v4520
        %v4522 = vsel %vm440, %v4444, 0.0
        %v4523 = vadd.f32 %v4521, %v4522
        %v4524 = vsel %vm440, %v4446, 0.0
        %v4525 = vadd.f32 %v4523, %v4524
        %v4526 = vsel %vm440, %v4449, 0.0
        %v4527 = vadd.f32 %v4525, %v4526
        %v4528 = vsel %vm440, %v4451, 0.0
        %v4529 = vadd.f32 %v4527, %v4528
        %v4530 = vsel %vm440, %v4454, 0.0
        %v4531 = vadd.f32 %v4529, %v4530
        %v4532 = vsel %vm440, %v4456, 0.0
        %v4533 = vadd.f32 %v4531, %v4532
        %v4534 = vsel %vm440, %v4459, 0.0
        %v4535 = vadd.f32 %v4533, %v4534
        %v4536 = vsel %vm440, %v4461, 0.0
        %v4537 = vadd.f32 %v4535, %v4536
        %v4538 = vsel %vm440, %v4464, 0.0
        %v4539 = vadd.f32 %v4537, %v4538
        %v4540 = vsel %vm440, %v4466, 0.0
        %v4541 = vadd.f32 %v4539, %v4540
        %v4542 = vsel %vm440, %v4469, 0.0
        %v4543 = vadd.f32 %v4541, %v4542
        %v4544 = vsel %vm440, %v4471, 0.0
        %v4545 = vadd.f32 %v4543, %v4544
        %v4546 = vsel %vm440, %v4474, 0.0
        %v4547 = vadd.f32 %v4545, %v4546
        %v4548 = vsel %vm440, %v4476, 0.0
        %v4549 = vadd.f32 %v4547, %v4548
        %v4550 = vsel %vm440, %v4479, 0.0
        %v4551 = vadd.f32 %v4549, %v4550
        %v4552 = vsel %vm440, %v4481, 0.0
        %v4553 = vadd.f32 %v4551, %v4552
        %v4554 = vsel %vm440, %v4484, 0.0
        %v4555 = vadd.f32 %v4553, %v4554
        %v4556 = vsel %vm440, %v4486, 0.0
        %v4557 = vadd.f32 %v4555, %v4556
        %v4558 = vsel %vm440, %v4489, 0.0
        %v4559 = vadd.f32 %v4557, %v4558
        %v4560 = vsel %vm440, %v4491, 0.0
        %v4561 = vadd.f32 %v4559, %v4560
        %v4562 = vsel %vm440, %v4494, 0.0
        %v4563 = vadd.f32 %v4561, %v4562
        %v4564 = vsel %vm440, %v4496, 0.0
        %v4565 = vadd.f32 %v4563, %v4564
        %v4566 = vsel %vm440, %v4499, 0.0
        %v4567 = vadd.f32 %v4565, %v4566
        %v4568 = vsel %vm440, %v4501, 0.0
        %v4569 = vadd.f32 %v4567, %v4568
        %v4570 = vrot.slane %v4569, 4
        %v4571 = vadd.f32 %v4569, %v4570
        %v4572 = vrot.slane %v4571, 2
        %v4573 = vadd.f32 %v4571, %v4572
        %v4574 = vrot.slane %v4573, 1
        %v4575 = vadd.f32 %v4573, %v4574
        %v4576 = vmul.f32 %v4575, %v2438
        %v4577 = vsub.f32 %v4424, %v4576
        %v4578 = vsub.f32 %v4426, %v4576
        %v4579 = vsub.f32 %v4429, %v4576
        %v4580 = vsub.f32 %v4431, %v4576
        %v4581 = vsub.f32 %v4434, %v4576
        %v4582 = vsub.f32 %v4436, %v4576
        %v4583 = vsub.f32 %v4439, %v4576
        %v4584 = vsub.f32 %v4441, %v4576
        %v4585 = vsub.f32 %v4444, %v4576
        %v4586 = vsub.f32 %v4446, %v4576
        %v4587 = vsub.f32 %v4449, %v4576
        %v4588 = vsub.f32 %v4451, %v4576
        %v4589 = vsub.f32 %v4454, %v4576
        %v4590 = vsub.f32 %v4456, %v4576
        %v4591 = vsub.f32 %v4459, %v4576
        %v4592 = vsub.f32 %v4461, %v4576
        %v4593 = vsub.f32 %v4464, %v4576
        %v4594 = vsub.f32 %v4466, %v4576
        %v4595 = vsub.f32 %v4469, %v4576
        %v4596 = vsub.f32 %v4471, %v4576
        %v4597 = vsub.f32 %v4474, %v4576
        %v4598 = vsub.f32 %v4476, %v4576
        %v4599 = vsub.f32 %v4479, %v4576
        %v4600 = vsub.f32 %v4481, %v4576
        %v4601 = vsub.f32 %v4484, %v4576
        %v4602 = vsub.f32 %v4486, %v4576
        %v4603 = vsub.f32 %v4489, %v4576
        %v4604 = vsub.f32 %v4491, %v4576
        %v4605 = vsub.f32 %v4494, %v4576
        %v4606 = vsub.f32 %v4496, %v4576
        %v4607 = vsub.f32 %v4499, %v4576
        %v4608 = vsub.f32 %v4501, %v4576
        %v4609 = vmul.f32 %v4577, %v4577
        %v4610 = vmul.f32 %v4578, %v4578
        %v4611 = vmul.f32 %v4579, %v4579
        %v4612 = vmul.f32 %v4580, %v4580
        %v4613 = vmul.f32 %v4581, %v4581
        %v4614 = vmul.f32 %v4582, %v4582
        %v4615 = vmul.f32 %v4583, %v4583
        %v4616 = vmul.f32 %v4584, %v4584
        %v4617 = vmul.f32 %v4585, %v4585
        %v4618 = vmul.f32 %v4586, %v4586
        %v4619 = vmul.f32 %v4587, %v4587
        %v4620 = vmul.f32 %v4588, %v4588
        %v4621 = vmul.f32 %v4589, %v4589
        %v4622 = vmul.f32 %v4590, %v4590
        %v4623 = vmul.f32 %v4591, %v4591
        %v4624 = vmul.f32 %v4592, %v4592
        %v4625 = vmul.f32 %v4593, %v4593
        %v4626 = vmul.f32 %v4594, %v4594
        %v4627 = vmul.f32 %v4595, %v4595
        %v4628 = vmul.f32 %v4596, %v4596
        %v4629 = vmul.f32 %v4597, %v4597
        %v4630 = vmul.f32 %v4598, %v4598
        %v4631 = vmul.f32 %v4599, %v4599
        %v4632 = vmul.f32 %v4600, %v4600
        %v4633 = vmul.f32 %v4601, %v4601
        %v4634 = vmul.f32 %v4602, %v4602
        %v4635 = vmul.f32 %v4603, %v4603
        %v4636 = vmul.f32 %v4604, %v4604
        %v4637 = vmul.f32 %v4605, %v4605
        %v4638 = vmul.f32 %v4606, %v4606
        %v4639 = vmul.f32 %v4607, %v4607
        %v4640 = vmul.f32 %v4608, %v4608
        %v4641 = vsel %vm440, %v4609, 0.0
        %v4642 = vsel %vm440, %v4610, 0.0
        %v4643 = vadd.f32 %v4641, %v4642
        %v4644 = vsel %vm440, %v4611, 0.0
        %v4645 = vadd.f32 %v4643, %v4644
        %v4646 = vsel %vm440, %v4612, 0.0
        %v4647 = vadd.f32 %v4645, %v4646
        %v4648 = vsel %vm440, %v4613, 0.0
        %v4649 = vadd.f32 %v4647, %v4648
        %v4650 = vsel %vm440, %v4614, 0.0
        %v4651 = vadd.f32 %v4649, %v4650
        %v4652 = vsel %vm440, %v4615, 0.0
        %v4653 = vadd.f32 %v4651, %v4652
        %v4654 = vsel %vm440, %v4616, 0.0
        %v4655 = vadd.f32 %v4653, %v4654
        %v4656 = vsel %vm440, %v4617, 0.0
        %v4657 = vadd.f32 %v4655, %v4656
        %v4658 = vsel %vm440, %v4618, 0.0
        %v4659 = vadd.f32 %v4657, %v4658
        %v4660 = vsel %vm440, %v4619, 0.0
        %v4661 = vadd.f32 %v4659, %v4660
        %v4662 = vsel %vm440, %v4620, 0.0
        %v4663 = vadd.f32 %v4661, %v4662
        %v4664 = vsel %vm440, %v4621, 0.0
        %v4665 = vadd.f32 %v4663, %v4664
        %v4666 = vsel %vm440, %v4622, 0.0
        %v4667 = vadd.f32 %v4665, %v4666
        %v4668 = vsel %vm440, %v4623, 0.0
        %v4669 = vadd.f32 %v4667, %v4668
        %v4670 = vsel %vm440, %v4624, 0.0
        %v4671 = vadd.f32 %v4669, %v4670
        %v4672 = vsel %vm440, %v4625, 0.0
        %v4673 = vadd.f32 %v4671, %v4672
        %v4674 = vsel %vm440, %v4626, 0.0
        %v4675 = vadd.f32 %v4673, %v4674
        %v4676 = vsel %vm440, %v4627, 0.0
        %v4677 = vadd.f32 %v4675, %v4676
        %v4678 = vsel %vm440, %v4628, 0.0
        %v4679 = vadd.f32 %v4677, %v4678
        %v4680 = vsel %vm440, %v4629, 0.0
        %v4681 = vadd.f32 %v4679, %v4680
        %v4682 = vsel %vm440, %v4630, 0.0
        %v4683 = vadd.f32 %v4681, %v4682
        %v4684 = vsel %vm440, %v4631, 0.0
        %v4685 = vadd.f32 %v4683, %v4684
        %v4686 = vsel %vm440, %v4632, 0.0
        %v4687 = vadd.f32 %v4685, %v4686
        %v4688 = vsel %vm440, %v4633, 0.0
        %v4689 = vadd.f32 %v4687, %v4688
        %v4690 = vsel %vm440, %v4634, 0.0
        %v4691 = vadd.f32 %v4689, %v4690
        %v4692 = vsel %vm440, %v4635, 0.0
        %v4693 = vadd.f32 %v4691, %v4692
        %v4694 = vsel %vm440, %v4636, 0.0
        %v4695 = vadd.f32 %v4693, %v4694
        %v4696 = vsel %vm440, %v4637, 0.0
        %v4697 = vadd.f32 %v4695, %v4696
        %v4698 = vsel %vm440, %v4638, 0.0
        %v4699 = vadd.f32 %v4697, %v4698
        %v4700 = vsel %vm440, %v4639, 0.0
        %v4701 = vadd.f32 %v4699, %v4700
        %v4702 = vsel %vm440, %v4640, 0.0
        %v4703 = vadd.f32 %v4701, %v4702
        %v4704 = vrot.slane %v4703, 4
        %v4705 = vadd.f32 %v4703, %v4704
        %v4706 = vrot.slane %v4705, 2
        %v4707 = vadd.f32 %v4705, %v4706
        %v4708 = vrot.slane %v4707, 1
        %v4709 = vadd.f32 %v4707, %v4708
        %v4710 = vmul.f32 %v4709, %v2438
        %v4711 = vadd.f32 %v4710, 1e-05
        %v4712 = vrsqrt.pop %v4711
        %v4713 = vmul.f32 %v4712, %v4711
        %v4714 = vmul.f32 %v4713, %v4712
        %v4715 = vmul.f32 0.5, %v4714
        %v4716 = vsub.f32 1.5, %v4715
        %v4717 = vmul.f32 %v4712, %v4716
        %vm4718 = vweird.f32 %v4711
        %vm4719 = vweird.f32 %v4712
        %vm4720 = vmor %vm4718, %vm4719
        %v4721 = vsel %vm4720, %v4712, %v4717
        %v4722 = vmul.f32 %v4577, %v4721
        %v4723 = vmul.f32 %v4578, %v4721
        %v4724 = vmul.f32 %v4579, %v4721
        %v4725 = vmul.f32 %v4580, %v4721
        %v4726 = vmul.f32 %v4581, %v4721
        %v4727 = vmul.f32 %v4582, %v4721
        %v4728 = vmul.f32 %v4583, %v4721
        %v4729 = vmul.f32 %v4584, %v4721
        %v4730 = vmul.f32 %v4585, %v4721
        %v4731 = vmul.f32 %v4586, %v4721
        %v4732 = vmul.f32 %v4587, %v4721
        %v4733 = vmul.f32 %v4588, %v4721
        %v4734 = vmul.f32 %v4589, %v4721
        %v4735 = vmul.f32 %v4590, %v4721
        %v4736 = vmul.f32 %v4591, %v4721
        %v4737 = vmul.f32 %v4592, %v4721
        %v4738 = vmul.f32 %v4593, %v4721
        %v4739 = vmul.f32 %v4594, %v4721
        %v4740 = vmul.f32 %v4595, %v4721
        %v4741 = vmul.f32 %v4596, %v4721
        %v4742 = vmul.f32 %v4597, %v4721
        %v4743 = vmul.f32 %v4598, %v4721
        %v4744 = vmul.f32 %v4599, %v4721
        %v4745 = vmul.f32 %v4600, %v4721
        %v4746 = vmul.f32 %v4601, %v4721
        %v4747 = vmul.f32 %v4602, %v4721
        %v4748 = vmul.f32 %v4603, %v4721
        %v4749 = vmul.f32 %v4604, %v4721
        %v4750 = vmul.f32 %v4605, %v4721
        %v4751 = vmul.f32 %v4606, %v4721
        %v4752 = vmul.f32 %v4607, %v4721
        %v4753 = vmul.f32 %v4608, %v4721
        %v4755 = vperm.slane %v4504, 0
        %v4757 = vmul.f32 %v4722, %v4755
        %v4758 = vmul.f32 %v4723, %v4755
        %v4759 = vmul.f32 %v4724, %v4755
        %v4760 = vmul.f32 %v4725, %v4755
        %v4761 = vmul.f32 %v4726, %v4755
        %v4762 = vmul.f32 %v4727, %v4755
        %v4763 = vmul.f32 %v4728, %v4755
        %v4764 = vmul.f32 %v4729, %v4755
        %v4765 = vmul.f32 %v4730, %v4755
        %v4766 = vmul.f32 %v4731, %v4755
        %v4767 = vmul.f32 %v4732, %v4755
        %v4768 = vmul.f32 %v4733, %v4755
        %v4769 = vmul.f32 %v4734, %v4755
        %v4770 = vmul.f32 %v4735, %v4755
        %v4771 = vmul.f32 %v4736, %v4755
        %v4772 = vmul.f32 %v4737, %v4755
        %v4773 = vmul.f32 %v4738, %v4755
        %v4774 = vmul.f32 %v4739, %v4755
        %v4775 = vmul.f32 %v4740, %v4755
        %v4776 = vmul.f32 %v4741, %v4755
        %v4777 = vmul.f32 %v4742, %v4755
        %v4778 = vmul.f32 %v4743, %v4755
        %v4779 = vmul.f32 %v4744, %v4755
        %v4780 = vmul.f32 %v4745, %v4755
        %v4781 = vmul.f32 %v4746, %v4755
        %v4782 = vmul.f32 %v4747, %v4755
        %v4783 = vmul.f32 %v4748, %v4755
        %v4784 = vmul.f32 %v4749, %v4755
        %v4785 = vmul.f32 %v4750, %v4755
        %v4786 = vmul.f32 %v4751, %v4755
        %v4787 = vmul.f32 %v4752, %v4755
        %v4788 = vmul.f32 %v4753, %v4755
        %v4790 = vperm.slane %v4506, 0
        %v4792 = vadd.f32 %v4757, %v4790
        %v4793 = vadd.f32 %v4758, %v4790
        %v4794 = vadd.f32 %v4759, %v4790
        %v4795 = vadd.f32 %v4760, %v4790
        %v4796 = vadd.f32 %v4761, %v4790
        %v4797 = vadd.f32 %v4762, %v4790
        %v4798 = vadd.f32 %v4763, %v4790
        %v4799 = vadd.f32 %v4764, %v4790
        %v4800 = vadd.f32 %v4765, %v4790
        %v4801 = vadd.f32 %v4766, %v4790
        %v4802 = vadd.f32 %v4767, %v4790
        %v4803 = vadd.f32 %v4768, %v4790
        %v4804 = vadd.f32 %v4769, %v4790
        %v4805 = vadd.f32 %v4770, %v4790
        %v4806 = vadd.f32 %v4771, %v4790
        %v4807 = vadd.f32 %v4772, %v4790
        %v4808 = vadd.f32 %v4773, %v4790
        %v4809 = vadd.f32 %v4774, %v4790
        %v4810 = vadd.f32 %v4775, %v4790
        %v4811 = vadd.f32 %v4776, %v4790
        %v4812 = vadd.f32 %v4777, %v4790
        %v4813 = vadd.f32 %v4778, %v4790
        %v4814 = vadd.f32 %v4779, %v4790
        %v4815 = vadd.f32 %v4780, %v4790
        %v4816 = vadd.f32 %v4781, %v4790
        %v4817 = vadd.f32 %v4782, %v4790
        %v4818 = vadd.f32 %v4783, %v4790
        %v4819 = vadd.f32 %v4784, %v4790
        %v4820 = vadd.f32 %v4785, %v4790
        %v4821 = vadd.f32 %v4786, %v4790
        %v4822 = vadd.f32 %v4787, %v4790
        %v4823 = vadd.f32 %v4788, %v4790
        %v4824 = vmax.f32 %v4792, 0.0
        %v4825 = vmax.f32 %v4793, 0.0
        %v4826 = vmax.f32 %v4794, 0.0
        %v4827 = vmax.f32 %v4795, 0.0
        %v4828 = vmax.f32 %v4796, 0.0
        %v4829 = vmax.f32 %v4797, 0.0
        %v4830 = vmax.f32 %v4798, 0.0
        %v4831 = vmax.f32 %v4799, 0.0
        %v4832 = vmax.f32 %v4800, 0.0
        %v4833 = vmax.f32 %v4801, 0.0
        %v4834 = vmax.f32 %v4802, 0.0
        %v4835 = vmax.f32 %v4803, 0.0
        %v4836 = vmax.f32 %v4804, 0.0
        %v4837 = vmax.f32 %v4805, 0.0
        %v4838 = vmax.f32 %v4806, 0.0
        %v4839 = vmax.f32 %v4807, 0.0
        %v4840 = vmax.f32 %v4808, 0.0
        %v4841 = vmax.f32 %v4809, 0.0
        %v4842 = vmax.f32 %v4810, 0.0
        %v4843 = vmax.f32 %v4811, 0.0
        %v4844 = vmax.f32 %v4812, 0.0
        %v4845 = vmax.f32 %v4813, 0.0
        %v4846 = vmax.f32 %v4814, 0.0
        %v4847 = vmax.f32 %v4815, 0.0
        %v4848 = vmax.f32 %v4816, 0.0
        %v4849 = vmax.f32 %v4817, 0.0
        %v4850 = vmax.f32 %v4818, 0.0
        %v4851 = vmax.f32 %v4819, 0.0
        %v4852 = vmax.f32 %v4820, 0.0
        %v4853 = vmax.f32 %v4821, 0.0
        %v4854 = vmax.f32 %v4822, 0.0
        %v4855 = vmax.f32 %v4823, 0.0
        %4856 = vst.msk [vmem:[%s450 + $0x8] sm:$0xff] %vm440, %v4824
        %4857 = vst.msk [vmem:[%s450 + $0x10] sm:$0xff] %vm440, %v4825
        %4858 = vst.msk [vmem:[%s450 + $0x28] sm:$0xff] %vm440, %v4826
        %4859 = vst.msk [vmem:[%s450 + $0x30] sm:$0xff] %vm440, %v4827
        %4860 = vst.msk [vmem:[%s450 + $0x48] sm:$0xff] %vm440, %v4828
        %4861 = vst.msk [vmem:[%s450 + $0x50] sm:$0xff] %vm440, %v4829
        %4862 = vst.msk [vmem:[%s450 + $0x68] sm:$0xff] %vm440, %v4830
        %4863 = vst.msk [vmem:[%s450 + $0x70] sm:$0xff] %vm440, %v4831
        %4864 = vst.msk [vmem:[%s450 + $0x88] sm:$0xff] %vm440, %v4832
        %4865 = vst.msk [vmem:[%s450 + $0x90] sm:$0xff] %vm440, %v4833
        %4866 = vst.msk [vmem:[%s450 + $0xa8] sm:$0xff] %vm440, %v4834
        %4867 = vst.msk [vmem:[%s450 + $0xb0] sm:$0xff] %vm440, %v4835
        %4868 = vst.msk [vmem:[%s450 + $0xc8] sm:$0xff] %vm440, %v4836
        %4869 = vst.msk [vmem:[%s450 + $0xd0] sm:$0xff] %vm440, %v4837
        %4870 = vst.msk [vmem:[%s450 + $0xe8] sm:$0xff] %vm440, %v4838
        %4871 = vst.msk [vmem:[%s450 + $0xf0] sm:$0xff] %vm440, %v4839
        %4872 = vst.msk [vmem:[%s450 + $0x108] sm:$0xff] %vm440, %v4840
        %4873 = vst.msk [vmem:[%s450 + $0x110] sm:$0xff] %vm440, %v4841
        %4874 = vst.msk [vmem:[%s450 + $0x128] sm:$0xff] %vm440, %v4842
        %4875 = vst.msk [vmem:[%s450 + $0x130] sm:$0xff] %vm440, %v4843
        %4876 = vst.msk [vmem:[%s450 + $0x148] sm:$0xff] %vm440, %v4844
        %4877 = vst.msk [vmem:[%s450 + $0x150] sm:$0xff] %vm440, %v4845
        %4878 = vst.msk [vmem:[%s450 + $0x168] sm:$0xff] %vm440, %v4846
        %4879 = vst.msk [vmem:[%s450 + $0x170] sm:$0xff] %vm440, %v4847
        %4880 = vst.msk [vmem:[%s450 + $0x188] sm:$0xff] %vm440, %v4848
        %4881 = vst.msk [vmem:[%s450 + $0x190] sm:$0xff] %vm440, %v4849
        %4882 = vst.msk [vmem:[%s450 + $0x1a8] sm:$0xff] %vm440, %v4850
        %4883 = vst.msk [vmem:[%s450 + $0x1b0] sm:$0xff] %vm440, %v4851
        %4884 = vst.msk [vmem:[%s450 + $0x1c8] sm:$0xff] %vm440, %v4852
        %4885 = vst.msk [vmem:[%s450 + $0x1d0] sm:$0xff] %vm440, %v4853
        %4886 = vst.msk [vmem:[%s450 + $0x1e8] sm:$0xff] %vm440, %v4854
        %4887 = vst.msk [vmem:[%s450 + $0x1f0] sm:$0xff] %vm440, %v4855
        %v4888 = vld [vmem:[#allocation2 + $0x7] sm:$0xff]
        %v4889 = vld [vmem:[#allocation2 + $0xf] sm:$0xff]
        %v4890 = vld [vmem:[#allocation2 + $0x27] sm:$0xff]
        %v4891 = vld [vmem:[#allocation2 + $0x2f] sm:$0xff]
        %v4892 = vld [vmem:[#allocation2 + $0x47] sm:$0xff]
        %v4893 = vld [vmem:[#allocation2 + $0x4f] sm:$0xff]
        %v4894 = vld [vmem:[#allocation2 + $0x67] sm:$0xff]
        %v4895 = vld [vmem:[#allocation2 + $0x6f] sm:$0xff]
        %v4896 = vld [vmem:[#allocation2 + $0x87] sm:$0xff]
        %v4897 = vld [vmem:[#allocation2 + $0x8f] sm:$0xff]
        %v4898 = vld [vmem:[#allocation2 + $0xa7] sm:$0xff]
        %v4899 = vld [vmem:[#allocation2 + $0xaf] sm:$0xff]
        %v4900 = vld [vmem:[#allocation2 + $0xc7] sm:$0xff]
        %v4901 = vld [vmem:[#allocation2 + $0xcf] sm:$0xff]
        %v4902 = vld [vmem:[#allocation2 + $0xe7] sm:$0xff]
        %v4903 = vld [vmem:[#allocation2 + $0xef] sm:$0xff]
        %v4904 = vld [vmem:[#allocation2 + $0x107] sm:$0xff]
        %v4905 = vld [vmem:[#allocation2 + $0x10f] sm:$0xff]
        %v4906 = vld [vmem:[#allocation2 + $0x127] sm:$0xff]
        %v4907 = vld [vmem:[#allocation2 + $0x12f] sm:$0xff]
        %v4908 = vld [vmem:[#allocation2 + $0x147] sm:$0xff]
        %v4909 = vld [vmem:[#allocation2 + $0x14f] sm:$0xff]
        %v4910 = vld [vmem:[#allocation2 + $0x167] sm:$0xff]
        %v4911 = vld [vmem:[#allocation2 + $0x16f] sm:$0xff]
        %v4912 = vld [vmem:[#allocation2 + $0x187] sm:$0xff]
        %v4913 = vld [vmem:[#allocation2 + $0x18f] sm:$0xff]
        %v4914 = vld [vmem:[#allocation2 + $0x1a7] sm:$0xff]
        %v4915 = vld [vmem:[#allocation2 + $0x1af] sm:$0xff]
        %v4916 = vld [vmem:[#allocation2 + $0x1c7] sm:$0xff]
        %v4917 = vld [vmem:[#allocation2 + $0x1cf] sm:$0xff]
        %v4918 = vld [vmem:[#allocation2 + $0x1e7] sm:$0xff]
        %v4919 = vld [vmem:[#allocation2 + $0x1ef] sm:$0xff]
        %v4920 = vld [vmem:[#allocation2 + $0x207] sm:$0xff]
        %v4921 = vld [vmem:[#allocation2 + $0x20f] sm:$0xff]
        %v4922 = vld [vmem:[#allocation2 + $0x227] sm:$0xff]
        %v4923 = vld [vmem:[#allocation2 + $0x22f] sm:$0xff]
        %v4924 = vpack.c.bf16 %v4888, %v4888
        %v4925 = vpack.c.bf16 %v4889, %v4889
        %v4926 = vpack.c.bf16 %v4890, %v4890
        %v4927 = vpack.c.bf16 %v4891, %v4891
        %v4928 = vpack.c.bf16 %v4892, %v4892
        %v4929 = vpack.c.bf16 %v4893, %v4893
        %v4930 = vpack.c.bf16 %v4894, %v4894
        %v4931 = vpack.c.bf16 %v4895, %v4895
        %v4932 = vpack.c.bf16 %v4896, %v4896
        %v4933 = vpack.c.bf16 %v4897, %v4897
        %v4934 = vpack.c.bf16 %v4898, %v4898
        %v4935 = vpack.c.bf16 %v4899, %v4899
        %v4936 = vpack.c.bf16 %v4900, %v4900
        %v4937 = vpack.c.bf16 %v4901, %v4901
        %v4938 = vpack.c.bf16 %v4902, %v4902
        %v4939 = vpack.c.bf16 %v4903, %v4903
        %v4940 = vpack.c.bf16 %v4904, %v4904
        %v4941 = vpack.c.bf16 %v4905, %v4905
        %v4942 = vpack.c.bf16 %v4906, %v4906
        %v4943 = vpack.c.bf16 %v4907, %v4907
        %v4944 = vpack.c.bf16 %v4908, %v4908
        %v4945 = vpack.c.bf16 %v4909, %v4909
        %v4946 = vpack.c.bf16 %v4910, %v4910
        %v4947 = vpack.c.bf16 %v4911, %v4911
        %v4948 = vpack.c.bf16 %v4912, %v4912
        %v4949 = vpack.c.bf16 %v4913, %v4913
        %v4950 = vpack.c.bf16 %v4914, %v4914
        %v4951 = vpack.c.bf16 %v4915, %v4915
        %v4952 = vpack.c.bf16 %v4916, %v4916
        %v4953 = vpack.c.bf16 %v4917, %v4917
        %v4954 = vpack.c.bf16 %v4918, %v4918
        %v4955 = vpack.c.bf16 %v4919, %v4919
        %v4956 = vpack.c.bf16 %v4920, %v4920
        %v4957 = vpack.c.bf16 %v4921, %v4921
        %v4958 = vpack.c.bf16 %v4922, %v4922
        %v4959 = vpack.c.bf16 %v4923, %v4923
        %v4960 = vld [vmem:[#allocation2 + $0x8] sm:$0xff]
        %v4961 = vld [vmem:[#allocation2 + $0x10] sm:$0xff]
        %v4962 = vld [vmem:[#allocation2 + $0x28] sm:$0xff]
        %v4963 = vld [vmem:[#allocation2 + $0x30] sm:$0xff]
        %v4964 = vld [vmem:[#allocation2 + $0x48] sm:$0xff]
        %v4965 = vld [vmem:[#allocation2 + $0x50] sm:$0xff]
        %v4966 = vld [vmem:[#allocation2 + $0x68] sm:$0xff]
        %v4967 = vld [vmem:[#allocation2 + $0x70] sm:$0xff]
        %v4968 = vld [vmem:[#allocation2 + $0x88] sm:$0xff]
        %v4969 = vld [vmem:[#allocation2 + $0x90] sm:$0xff]
        %v4970 = vld [vmem:[#allocation2 + $0xa8] sm:$0xff]
        %v4971 = vld [vmem:[#allocation2 + $0xb0] sm:$0xff]
        %v4972 = vld [vmem:[#allocation2 + $0xc8] sm:$0xff]
        %v4973 = vld [vmem:[#allocation2 + $0xd0] sm:$0xff]
        %v4974 = vld [vmem:[#allocation2 + $0xe8] sm:$0xff]
        %v4975 = vld [vmem:[#allocation2 + $0xf0] sm:$0xff]
        %v4976 = vld [vmem:[#allocation2 + $0x108] sm:$0xff]
        %v4977 = vld [vmem:[#allocation2 + $0x110] sm:$0xff]
        %v4978 = vld [vmem:[#allocation2 + $0x128] sm:$0xff]
        %v4979 = vld [vmem:[#allocation2 + $0x130] sm:$0xff]
        %v4980 = vld [vmem:[#allocation2 + $0x148] sm:$0xff]
        %v4981 = vld [vmem:[#allocation2 + $0x150] sm:$0xff]
        %v4982 = vld [vmem:[#allocation2 + $0x168] sm:$0xff]
        %v4983 = vld [vmem:[#allocation2 + $0x170] sm:$0xff]
        %v4984 = vld [vmem:[#allocation2 + $0x188] sm:$0xff]
        %v4985 = vld [vmem:[#allocation2 + $0x190] sm:$0xff]
        %v4986 = vld [vmem:[#allocation2 + $0x1a8] sm:$0xff]
        %v4987 = vld [vmem:[#allocation2 + $0x1b0] sm:$0xff]
        %v4988 = vld [vmem:[#allocation2 + $0x1c8] sm:$0xff]
        %v4989 = vld [vmem:[#allocation2 + $0x1d0] sm:$0xff]
        %v4990 = vld [vmem:[#allocation2 + $0x1e8] sm:$0xff]
        %v4991 = vld [vmem:[#allocation2 + $0x1f0] sm:$0xff]
        %v4992 = vld [vmem:[#allocation2 + $0x208] sm:$0xff]
        %v4993 = vld [vmem:[#allocation2 + $0x210] sm:$0xff]
        %v4994 = vld [vmem:[#allocation2 + $0x228] sm:$0xff]
        %v4995 = vld [vmem:[#allocation2 + $0x230] sm:$0xff]
        %v4996 = vpack.c.bf16 %v4960, %v4960
        %v4997 = vpack.c.bf16 %v4961, %v4961
        %v4998 = vpack.c.bf16 %v4962, %v4962
        %v4999 = vpack.c.bf16 %v4963, %v4963
        %v5000 = vpack.c.bf16 %v4964, %v4964
        %v5001 = vpack.c.bf16 %v4965, %v4965
        %v5002 = vpack.c.bf16 %v4966, %v4966
        %v5003 = vpack.c.bf16 %v4967, %v4967
        %v5004 = vpack.c.bf16 %v4968, %v4968
        %v5005 = vpack.c.bf16 %v4969, %v4969
        %v5006 = vpack.c.bf16 %v4970, %v4970
        %v5007 = vpack.c.bf16 %v4971, %v4971
        %v5008 = vpack.c.bf16 %v4972, %v4972
        %v5009 = vpack.c.bf16 %v4973, %v4973
        %v5010 = vpack.c.bf16 %v4974, %v4974
        %v5011 = vpack.c.bf16 %v4975, %v4975
        %v5012 = vpack.c.bf16 %v4976, %v4976
        %v5013 = vpack.c.bf16 %v4977, %v4977
        %v5014 = vpack.c.bf16 %v4978, %v4978
        %v5015 = vpack.c.bf16 %v4979, %v4979
        %v5016 = vpack.c.bf16 %v4980, %v4980
        %v5017 = vpack.c.bf16 %v4981, %v4981
        %v5018 = vpack.c.bf16 %v4982, %v4982
        %v5019 = vpack.c.bf16 %v4983, %v4983
        %v5020 = vpack.c.bf16 %v4984, %v4984
        %v5021 = vpack.c.bf16 %v4985, %v4985
        %v5022 = vpack.c.bf16 %v4986, %v4986
        %v5023 = vpack.c.bf16 %v4987, %v4987
        %v5024 = vpack.c.bf16 %v4988, %v4988
        %v5025 = vpack.c.bf16 %v4989, %v4989
        %v5026 = vpack.c.bf16 %v4990, %v4990
        %v5027 = vpack.c.bf16 %v4991, %v4991
        %v5028 = vpack.c.bf16 %v4992, %v4992
        %v5029 = vpack.c.bf16 %v4993, %v4993
        %v5030 = vpack.c.bf16 %v4994, %v4994
        %v5031 = vpack.c.bf16 %v4995, %v4995
        %v5032 = vld [vmem:[#allocation2 + $0x9] sm:$0xff]
        %v5033 = vld [vmem:[#allocation2 + $0x11] sm:$0xff]
        %v5034 = vld [vmem:[#allocation2 + $0x29] sm:$0xff]
        %v5035 = vld [vmem:[#allocation2 + $0x31] sm:$0xff]
        %v5036 = vld [vmem:[#allocation2 + $0x49] sm:$0xff]
        %v5037 = vld [vmem:[#allocation2 + $0x51] sm:$0xff]
        %v5038 = vld [vmem:[#allocation2 + $0x69] sm:$0xff]
        %v5039 = vld [vmem:[#allocation2 + $0x71] sm:$0xff]
        %v5040 = vld [vmem:[#allocation2 + $0x89] sm:$0xff]
        %v5041 = vld [vmem:[#allocation2 + $0x91] sm:$0xff]
        %v5042 = vld [vmem:[#allocation2 + $0xa9] sm:$0xff]
        %v5043 = vld [vmem:[#allocation2 + $0xb1] sm:$0xff]
        %v5044 = vld [vmem:[#allocation2 + $0xc9] sm:$0xff]
        %v5045 = vld [vmem:[#allocation2 + $0xd1] sm:$0xff]
        %v5046 = vld [vmem:[#allocation2 + $0xe9] sm:$0xff]
        %v5047 = vld [vmem:[#allocation2 + $0xf1] sm:$0xff]
        %v5048 = vld [vmem:[#allocation2 + $0x109] sm:$0xff]
        %v5049 = vld [vmem:[#allocation2 + $0x111] sm:$0xff]
        %v5050 = vld [vmem:[#allocation2 + $0x129] sm:$0xff]
        %v5051 = vld [vmem:[#allocation2 + $0x131] sm:$0xff]
        %v5052 = vld [vmem:[#allocation2 + $0x149] sm:$0xff]
        %v5053 = vld [vmem:[#allocation2 + $0x151] sm:$0xff]
        %v5054 = vld [vmem:[#allocation2 + $0x169] sm:$0xff]
        %v5055 = vld [vmem:[#allocation2 + $0x171] sm:$0xff]
        %v5056 = vld [vmem:[#allocation2 + $0x189] sm:$0xff]
        %v5057 = vld [vmem:[#allocation2 + $0x191] sm:$0xff]
        %v5058 = vld [vmem:[#allocation2 + $0x1a9] sm:$0xff]
        %v5059 = vld [vmem:[#allocation2 + $0x1b1] sm:$0xff]
        %v5060 = vld [vmem:[#allocation2 + $0x1c9] sm:$0xff]
        %v5061 = vld [vmem:[#allocation2 + $0x1d1] sm:$0xff]
        %v5062 = vld [vmem:[#allocation2 + $0x1e9] sm:$0xff]
        %v5063 = vld [vmem:[#allocation2 + $0x1f1] sm:$0xff]
        %v5064 = vld [vmem:[#allocation2 + $0x209] sm:$0xff]
        %v5065 = vld [vmem:[#allocation2 + $0x211] sm:$0xff]
        %v5066 = vld [vmem:[#allocation2 + $0x229] sm:$0xff]
        %v5067 = vld [vmem:[#allocation2 + $0x231] sm:$0xff]
        %v5068 = vpack.c.bf16 %v5032, %v5032
        %v5069 = vpack.c.bf16 %v5033, %v5033
        %v5070 = vpack.c.bf16 %v5034, %v5034
        %v5071 = vpack.c.bf16 %v5035, %v5035
        %v5072 = vpack.c.bf16 %v5036, %v5036
        %v5073 = vpack.c.bf16 %v5037, %v5037
        %v5074 = vpack.c.bf16 %v5038, %v5038
        %v5075 = vpack.c.bf16 %v5039, %v5039
        %v5076 = vpack.c.bf16 %v5040, %v5040
        %v5077 = vpack.c.bf16 %v5041, %v5041
        %v5078 = vpack.c.bf16 %v5042, %v5042
        %v5079 = vpack.c.bf16 %v5043, %v5043
        %v5080 = vpack.c.bf16 %v5044, %v5044
        %v5081 = vpack.c.bf16 %v5045, %v5045
        %v5082 = vpack.c.bf16 %v5046, %v5046
        %v5083 = vpack.c.bf16 %v5047, %v5047
        %v5084 = vpack.c.bf16 %v5048, %v5048
        %v5085 = vpack.c.bf16 %v5049, %v5049
        %v5086 = vpack.c.bf16 %v5050, %v5050
        %v5087 = vpack.c.bf16 %v5051, %v5051
        %v5088 = vpack.c.bf16 %v5052, %v5052
        %v5089 = vpack.c.bf16 %v5053, %v5053
        %v5090 = vpack.c.bf16 %v5054, %v5054
        %v5091 = vpack.c.bf16 %v5055, %v5055
        %v5092 = vpack.c.bf16 %v5056, %v5056
        %v5093 = vpack.c.bf16 %v5057, %v5057
        %v5094 = vpack.c.bf16 %v5058, %v5058
        %v5095 = vpack.c.bf16 %v5059, %v5059
        %v5096 = vpack.c.bf16 %v5060, %v5060
        %v5097 = vpack.c.bf16 %v5061, %v5061
        %v5098 = vpack.c.bf16 %v5062, %v5062
        %v5099 = vpack.c.bf16 %v5063, %v5063
        %v5100 = vpack.c.bf16 %v5064, %v5064
        %v5101 = vpack.c.bf16 %v5065, %v5065
        %v5102 = vpack.c.bf16 %v5066, %v5066
        %v5103 = vpack.c.bf16 %v5067, %v5067
        %v5136 = vunpack.c.l.b16 %v4924
        %v5137 = vunpack.c.l.b16 %v4925
        %v5138 = vunpack.c.l.b16 %v4926
        %v5139 = vunpack.c.l.b16 %v4927
        %v5140 = vunpack.c.l.b16 %v4928
        %v5141 = vunpack.c.l.b16 %v4929
        %v5142 = vunpack.c.l.b16 %v4930
        %v5143 = vunpack.c.l.b16 %v4931
        %v5144 = vunpack.c.l.b16 %v4932
        %v5145 = vunpack.c.l.b16 %v4933
        %v5146 = vunpack.c.l.b16 %v4934
        %v5147 = vunpack.c.l.b16 %v4935
        %v5148 = vunpack.c.l.b16 %v4936
        %v5149 = vunpack.c.l.b16 %v4937
        %v5150 = vunpack.c.l.b16 %v4938
        %v5151 = vunpack.c.l.b16 %v4939
        %v5152 = vunpack.c.l.b16 %v4940
        %v5153 = vunpack.c.l.b16 %v4941
        %v5154 = vunpack.c.l.b16 %v4942
        %v5155 = vunpack.c.l.b16 %v4943
        %v5156 = vunpack.c.l.b16 %v4944
        %v5157 = vunpack.c.l.b16 %v4945
        %v5158 = vunpack.c.l.b16 %v4946
        %v5159 = vunpack.c.l.b16 %v4947
        %v5160 = vunpack.c.l.b16 %v4948
        %v5161 = vunpack.c.l.b16 %v4949
        %v5162 = vunpack.c.l.b16 %v4950
        %v5163 = vunpack.c.l.b16 %v4951
        %v5164 = vunpack.c.l.b16 %v4952
        %v5165 = vunpack.c.l.b16 %v4953
        %v5166 = vunpack.c.l.b16 %v4954
        %v5167 = vunpack.c.l.b16 %v4955
        %v5168 = vpack.c.b16 %v5137, %v5136
        %v5169 = vpack.c.b16 %v5139, %v5138
        %v5170 = vpack.c.b16 %v5141, %v5140
        %v5171 = vpack.c.b16 %v5143, %v5142
        %v5172 = vpack.c.b16 %v5145, %v5144
        %v5173 = vpack.c.b16 %v5147, %v5146
        %v5174 = vpack.c.b16 %v5149, %v5148
        %v5175 = vpack.c.b16 %v5151, %v5150
        %v5176 = vpack.c.b16 %v5153, %v5152
        %v5177 = vpack.c.b16 %v5155, %v5154
        %v5178 = vpack.c.b16 %v5157, %v5156
        %v5179 = vpack.c.b16 %v5159, %v5158
        %v5180 = vpack.c.b16 %v5161, %v5160
        %v5181 = vpack.c.b16 %v5163, %v5162
        %v5182 = vpack.c.b16 %v5165, %v5164
        %v5183 = vpack.c.b16 %v5167, %v5166
        %v5216 = vunpack.c.l.b16 %v4996
        %v5217 = vunpack.c.l.b16 %v4997
        %v5218 = vunpack.c.l.b16 %v4998
        %v5219 = vunpack.c.l.b16 %v4999
        %v5220 = vunpack.c.l.b16 %v5000
        %v5221 = vunpack.c.l.b16 %v5001
        %v5222 = vunpack.c.l.b16 %v5002
        %v5223 = vunpack.c.l.b16 %v5003
        %v5224 = vunpack.c.l.b16 %v5004
        %v5225 = vunpack.c.l.b16 %v5005
        %v5226 = vunpack.c.l.b16 %v5006
        %v5227 = vunpack.c.l.b16 %v5007
        %v5228 = vunpack.c.l.b16 %v5008
        %v5229 = vunpack.c.l.b16 %v5009
        %v5230 = vunpack.c.l.b16 %v5010
        %v5231 = vunpack.c.l.b16 %v5011
        %v5232 = vunpack.c.l.b16 %v5012
        %v5233 = vunpack.c.l.b16 %v5013
        %v5234 = vunpack.c.l.b16 %v5014
        %v5235 = vunpack.c.l.b16 %v5015
        %v5236 = vunpack.c.l.b16 %v5016
        %v5237 = vunpack.c.l.b16 %v5017
        %v5238 = vunpack.c.l.b16 %v5018
        %v5239 = vunpack.c.l.b16 %v5019
        %v5240 = vunpack.c.l.b16 %v5020
        %v5241 = vunpack.c.l.b16 %v5021
        %v5242 = vunpack.c.l.b16 %v5022
        %v5243 = vunpack.c.l.b16 %v5023
        %v5244 = vunpack.c.l.b16 %v5024
        %v5245 = vunpack.c.l.b16 %v5025
        %v5246 = vunpack.c.l.b16 %v5026
        %v5247 = vunpack.c.l.b16 %v5027
        %v5248 = vpack.c.b16 %v5217, %v5216
        %v5249 = vpack.c.b16 %v5219, %v5218
        %v5250 = vpack.c.b16 %v5221, %v5220
        %v5251 = vpack.c.b16 %v5223, %v5222
        %v5252 = vpack.c.b16 %v5225, %v5224
        %v5253 = vpack.c.b16 %v5227, %v5226
        %v5254 = vpack.c.b16 %v5229, %v5228
        %v5255 = vpack.c.b16 %v5231, %v5230
        %v5256 = vpack.c.b16 %v5233, %v5232
        %v5257 = vpack.c.b16 %v5235, %v5234
        %v5258 = vpack.c.b16 %v5237, %v5236
        %v5259 = vpack.c.b16 %v5239, %v5238
        %v5260 = vpack.c.b16 %v5241, %v5240
        %v5261 = vpack.c.b16 %v5243, %v5242
        %v5262 = vpack.c.b16 %v5245, %v5244
        %v5263 = vpack.c.b16 %v5247, %v5246
        %5264 = vrot.lane.b32.xlu0 %v5248, 32
        %v5265 = vpop.permute.xlu0 %5264
        %5266 = vrot.lane.b32.xlu0 %v5249, 32
        %v5267 = vpop.permute.xlu0 %5266
        %5268 = vrot.lane.b32.xlu0 %v5250, 32
        %v5269 = vpop.permute.xlu0 %5268
        %5270 = vrot.lane.b32.xlu0 %v5251, 32
        %v5271 = vpop.permute.xlu0 %5270
        %5272 = vrot.lane.b32.xlu0 %v5252, 32
        %v5273 = vpop.permute.xlu0 %5272
        %5274 = vrot.lane.b32.xlu0 %v5253, 32
        %v5275 = vpop.permute.xlu0 %5274
        %5276 = vrot.lane.b32.xlu0 %v5254, 32
        %v5277 = vpop.permute.xlu0 %5276
        %5278 = vrot.lane.b32.xlu0 %v5255, 32
        %v5279 = vpop.permute.xlu0 %5278
        %5280 = vrot.lane.b32.xlu0 %v5256, 32
        %v5281 = vpop.permute.xlu0 %5280
        %5282 = vrot.lane.b32.xlu0 %v5257, 32
        %v5283 = vpop.permute.xlu0 %5282
        %5284 = vrot.lane.b32.xlu0 %v5258, 32
        %v5285 = vpop.permute.xlu0 %5284
        %5286 = vrot.lane.b32.xlu0 %v5259, 32
        %v5287 = vpop.permute.xlu0 %5286
        %5288 = vrot.lane.b32.xlu0 %v5260, 32
        %v5289 = vpop.permute.xlu0 %5288
        %5290 = vrot.lane.b32.xlu0 %v5261, 32
        %v5291 = vpop.permute.xlu0 %5290
        %5292 = vrot.lane.b32.xlu0 %v5262, 32
        %v5293 = vpop.permute.xlu0 %5292
        %5294 = vrot.lane.b32.xlu0 %v5263, 32
        %v5295 = vpop.permute.xlu0 %5294
        %v5328 = vunpack.c.l.b16 %v5068
        %v5329 = vunpack.c.l.b16 %v5069
        %v5330 = vunpack.c.l.b16 %v5070
        %v5331 = vunpack.c.l.b16 %v5071
        %v5332 = vunpack.c.l.b16 %v5072
        %v5333 = vunpack.c.l.b16 %v5073
        %v5334 = vunpack.c.l.b16 %v5074
        %v5335 = vunpack.c.l.b16 %v5075
        %v5336 = vunpack.c.l.b16 %v5076
        %v5337 = vunpack.c.l.b16 %v5077
        %v5338 = vunpack.c.l.b16 %v5078
        %v5339 = vunpack.c.l.b16 %v5079
        %v5340 = vunpack.c.l.b16 %v5080
        %v5341 = vunpack.c.l.b16 %v5081
        %v5342 = vunpack.c.l.b16 %v5082
        %v5343 = vunpack.c.l.b16 %v5083
        %v5344 = vunpack.c.l.b16 %v5084
        %v5345 = vunpack.c.l.b16 %v5085
        %v5346 = vunpack.c.l.b16 %v5086
        %v5347 = vunpack.c.l.b16 %v5087
        %v5348 = vunpack.c.l.b16 %v5088
        %v5349 = vunpack.c.l.b16 %v5089
        %v5350 = vunpack.c.l.b16 %v5090
        %v5351 = vunpack.c.l.b16 %v5091
        %v5352 = vunpack.c.l.b16 %v5092
        %v5353 = vunpack.c.l.b16 %v5093
        %v5354 = vunpack.c.l.b16 %v5094
        %v5355 = vunpack.c.l.b16 %v5095
        %v5356 = vunpack.c.l.b16 %v5096
        %v5357 = vunpack.c.l.b16 %v5097
        %v5358 = vunpack.c.l.b16 %v5098
        %v5359 = vunpack.c.l.b16 %v5099
        %v5360 = vpack.c.b16 %v5329, %v5328
        %v5361 = vpack.c.b16 %v5331, %v5330
        %v5362 = vpack.c.b16 %v5333, %v5332
        %v5363 = vpack.c.b16 %v5335, %v5334
        %v5364 = vpack.c.b16 %v5337, %v5336
        %v5365 = vpack.c.b16 %v5339, %v5338
        %v5366 = vpack.c.b16 %v5341, %v5340
        %v5367 = vpack.c.b16 %v5343, %v5342
        %v5368 = vpack.c.b16 %v5345, %v5344
        %v5369 = vpack.c.b16 %v5347, %v5346
        %v5370 = vpack.c.b16 %v5349, %v5348
        %v5371 = vpack.c.b16 %v5351, %v5350
        %v5372 = vpack.c.b16 %v5353, %v5352
        %v5373 = vpack.c.b16 %v5355, %v5354
        %v5374 = vpack.c.b16 %v5357, %v5356
        %v5375 = vpack.c.b16 %v5359, %v5358
        %5376 = vrot.lane.b32.xlu0 %v5360, 64
        %v5377 = vpop.permute.xlu0 %5376
        %5378 = vrot.lane.b32.xlu0 %v5361, 64
        %v5379 = vpop.permute.xlu0 %5378
        %5380 = vrot.lane.b32.xlu0 %v5362, 64
        %v5381 = vpop.permute.xlu0 %5380
        %5382 = vrot.lane.b32.xlu0 %v5363, 64
        %v5383 = vpop.permute.xlu0 %5382
        %5384 = vrot.lane.b32.xlu0 %v5364, 64
        %v5385 = vpop.permute.xlu0 %5384
        %5386 = vrot.lane.b32.xlu0 %v5365, 64
        %v5387 = vpop.permute.xlu0 %5386
        %5388 = vrot.lane.b32.xlu0 %v5366, 64
        %v5389 = vpop.permute.xlu0 %5388
        %5390 = vrot.lane.b32.xlu0 %v5367, 64
        %v5391 = vpop.permute.xlu0 %5390
        %5392 = vrot.lane.b32.xlu0 %v5368, 64
        %v5393 = vpop.permute.xlu0 %5392
        %5394 = vrot.lane.b32.xlu0 %v5369, 64
        %v5395 = vpop.permute.xlu0 %5394
        %5396 = vrot.lane.b32.xlu0 %v5370, 64
        %v5397 = vpop.permute.xlu0 %5396
        %5398 = vrot.lane.b32.xlu0 %v5371, 64
        %v5399 = vpop.permute.xlu0 %5398
        %5400 = vrot.lane.b32.xlu0 %v5372, 64
        %v5401 = vpop.permute.xlu0 %5400
        %5402 = vrot.lane.b32.xlu0 %v5373, 64
        %v5403 = vpop.permute.xlu0 %5402
        %5404 = vrot.lane.b32.xlu0 %v5374, 64
        %v5405 = vpop.permute.xlu0 %5404
        %5406 = vrot.lane.b32.xlu0 %v5375, 64
        %v5407 = vpop.permute.xlu0 %5406
        %v5410 = vunpack.c.l.b16 %v4956
        %v5411 = vunpack.c.l.b16 %v4957
        %v5412 = vpack.c.b16 %v5411, %v5410
        %5413 = vrot.lane.b32.xlu0 %v5169, 96
        %v5414 = vpop.permute.xlu0 %5413
        %5415 = vrot.lane.b32.xlu0 %v5170, 96
        %v5416 = vpop.permute.xlu0 %5415
        %5417 = vrot.lane.b32.xlu0 %v5171, 96
        %v5418 = vpop.permute.xlu0 %5417
        %5419 = vrot.lane.b32.xlu0 %v5172, 96
        %v5420 = vpop.permute.xlu0 %5419
        %5421 = vrot.lane.b32.xlu0 %v5173, 96
        %v5422 = vpop.permute.xlu0 %5421
        %5423 = vrot.lane.b32.xlu0 %v5174, 96
        %v5424 = vpop.permute.xlu0 %5423
        %5425 = vrot.lane.b32.xlu0 %v5175, 96
        %v5426 = vpop.permute.xlu0 %5425
        %5427 = vrot.lane.b32.xlu0 %v5176, 96
        %v5428 = vpop.permute.xlu0 %5427
        %5429 = vrot.lane.b32.xlu0 %v5177, 96
        %v5430 = vpop.permute.xlu0 %5429
        %5431 = vrot.lane.b32.xlu0 %v5178, 96
        %v5432 = vpop.permute.xlu0 %5431
        %5433 = vrot.lane.b32.xlu0 %v5179, 96
        %v5434 = vpop.permute.xlu0 %5433
        %5435 = vrot.lane.b32.xlu0 %v5180, 96
        %v5436 = vpop.permute.xlu0 %5435
        %5437 = vrot.lane.b32.xlu0 %v5181, 96
        %v5438 = vpop.permute.xlu0 %5437
        %5439 = vrot.lane.b32.xlu0 %v5182, 96
        %v5440 = vpop.permute.xlu0 %5439
        %5441 = vrot.lane.b32.xlu0 %v5183, 96
        %v5442 = vpop.permute.xlu0 %5441
        %5443 = vrot.lane.b32.xlu0 %v5412, 96
        %v5444 = vpop.permute.xlu0 %5443
        %v5447 = vunpack.c.l.b16 %v5028
        %v5448 = vunpack.c.l.b16 %v5029
        %v5449 = vpack.c.b16 %v5448, %v5447
        %v5452 = vunpack.c.l.b16 %v5100
        %v5453 = vunpack.c.l.b16 %v5101
        %v5454 = vpack.c.b16 %v5453, %v5452
        %5455 = vrot.lane.b32.xlu0 %v5361, 32
        %v5456 = vpop.permute.xlu0 %5455
        %5457 = vrot.lane.b32.xlu0 %v5362, 32
        %v5458 = vpop.permute.xlu0 %5457
        %5459 = vrot.lane.b32.xlu0 %v5363, 32
        %v5460 = vpop.permute.xlu0 %5459
        %5461 = vrot.lane.b32.xlu0 %v5364, 32
        %v5462 = vpop.permute.xlu0 %5461
        %5463 = vrot.lane.b32.xlu0 %v5365, 32
        %v5464 = vpop.permute.xlu0 %5463
        %5465 = vrot.lane.b32.xlu0 %v5366, 32
        %v5466 = vpop.permute.xlu0 %5465
        %5467 = vrot.lane.b32.xlu0 %v5367, 32
        %v5468 = vpop.permute.xlu0 %5467
        %5469 = vrot.lane.b32.xlu0 %v5368, 32
        %v5470 = vpop.permute.xlu0 %5469
        %5471 = vrot.lane.b32.xlu0 %v5369, 32
        %v5472 = vpop.permute.xlu0 %5471
        %5473 = vrot.lane.b32.xlu0 %v5370, 32
        %v5474 = vpop.permute.xlu0 %5473
        %5475 = vrot.lane.b32.xlu0 %v5371, 32
        %v5476 = vpop.permute.xlu0 %5475
        %5477 = vrot.lane.b32.xlu0 %v5372, 32
        %v5478 = vpop.permute.xlu0 %5477
        %5479 = vrot.lane.b32.xlu0 %v5373, 32
        %v5480 = vpop.permute.xlu0 %5479
        %5481 = vrot.lane.b32.xlu0 %v5374, 32
        %v5482 = vpop.permute.xlu0 %5481
        %5483 = vrot.lane.b32.xlu0 %v5375, 32
        %v5484 = vpop.permute.xlu0 %5483
        %5485 = vrot.lane.b32.xlu0 %v5454, 32
        %v5486 = vpop.permute.xlu0 %5485
        %v5489 = vunpack.c.l.b16 %v4958
        %v5490 = vunpack.c.l.b16 %v4959
        %v5491 = vpack.c.b16 %v5490, %v5489
        %5492 = vrot.lane.b32.xlu0 %v5170, 64
        %v5493 = vpop.permute.xlu0 %5492
        %5494 = vrot.lane.b32.xlu0 %v5171, 64
        %v5495 = vpop.permute.xlu0 %5494
        %5496 = vrot.lane.b32.xlu0 %v5172, 64
        %v5497 = vpop.permute.xlu0 %5496
        %5498 = vrot.lane.b32.xlu0 %v5173, 64
        %v5499 = vpop.permute.xlu0 %5498
        %5500 = vrot.lane.b32.xlu0 %v5174, 64
        %v5501 = vpop.permute.xlu0 %5500
        %5502 = vrot.lane.b32.xlu0 %v5175, 64
        %v5503 = vpop.permute.xlu0 %5502
        %5504 = vrot.lane.b32.xlu0 %v5176, 64
        %v5505 = vpop.permute.xlu0 %5504
        %5506 = vrot.lane.b32.xlu0 %v5177, 64
        %v5507 = vpop.permute.xlu0 %5506
        %5508 = vrot.lane.b32.xlu0 %v5178, 64
        %v5509 = vpop.permute.xlu0 %5508
        %5510 = vrot.lane.b32.xlu0 %v5179, 64
        %v5511 = vpop.permute.xlu0 %5510
        %5512 = vrot.lane.b32.xlu0 %v5180, 64
        %v5513 = vpop.permute.xlu0 %5512
        %5514 = vrot.lane.b32.xlu0 %v5181, 64
        %v5515 = vpop.permute.xlu0 %5514
        %5516 = vrot.lane.b32.xlu0 %v5182, 64
        %v5517 = vpop.permute.xlu0 %5516
        %5518 = vrot.lane.b32.xlu0 %v5183, 64
        %v5519 = vpop.permute.xlu0 %5518
        %5520 = vrot.lane.b32.xlu0 %v5412, 64
        %v5521 = vpop.permute.xlu0 %5520
        %5522 = vrot.lane.b32.xlu0 %v5491, 64
        %v5523 = vpop.permute.xlu0 %5522
        %v5526 = vunpack.c.l.b16 %v5030
        %v5527 = vunpack.c.l.b16 %v5031
        %v5528 = vpack.c.b16 %v5527, %v5526
        %5529 = vrot.lane.b32.xlu0 %v5250, 96
        %v5530 = vpop.permute.xlu0 %5529
        %5531 = vrot.lane.b32.xlu0 %v5251, 96
        %v5532 = vpop.permute.xlu0 %5531
        %5533 = vrot.lane.b32.xlu0 %v5252, 96
        %v5534 = vpop.permute.xlu0 %5533
        %5535 = vrot.lane.b32.xlu0 %v5253, 96
        %v5536 = vpop.permute.xlu0 %5535
        %5537 = vrot.lane.b32.xlu0 %v5254, 96
        %v5538 = vpop.permute.xlu0 %5537
        %5539 = vrot.lane.b32.xlu0 %v5255, 96
        %v5540 = vpop.permute.xlu0 %5539
        %5541 = vrot.lane.b32.xlu0 %v5256, 96
        %v5542 = vpop.permute.xlu0 %5541
        %5543 = vrot.lane.b32.xlu0 %v5257, 96
        %v5544 = vpop.permute.xlu0 %5543
        %5545 = vrot.lane.b32.xlu0 %v5258, 96
        %v5546 = vpop.permute.xlu0 %5545
        %5547 = vrot.lane.b32.xlu0 %v5259, 96
        %v5548 = vpop.permute.xlu0 %5547
        %5549 = vrot.lane.b32.xlu0 %v5260, 96
        %v5550 = vpop.permute.xlu0 %5549
        %5551 = vrot.lane.b32.xlu0 %v5261, 96
        %v5552 = vpop.permute.xlu0 %5551
        %5553 = vrot.lane.b32.xlu0 %v5262, 96
        %v5554 = vpop.permute.xlu0 %5553
        %5555 = vrot.lane.b32.xlu0 %v5263, 96
        %v5556 = vpop.permute.xlu0 %5555
        %5557 = vrot.lane.b32.xlu0 %v5449, 96
        %v5558 = vpop.permute.xlu0 %5557
        %5559 = vrot.lane.b32.xlu0 %v5528, 96
        %v5560 = vpop.permute.xlu0 %5559
        %v5563 = vunpack.c.l.b16 %v5102
        %v5564 = vunpack.c.l.b16 %v5103
        %v5565 = vpack.c.b16 %v5564, %v5563
        %v5568 = vsel %vm440, %v5168, %v5265
        %v5571 = vsel %vm440, %v5169, %v5267
        %v5574 = vsel %vm440, %v5170, %v5269
        %v5577 = vsel %vm440, %v5171, %v5271
        %v5580 = vsel %vm440, %v5172, %v5273
        %v5583 = vsel %vm440, %v5173, %v5275
        %v5586 = vsel %vm440, %v5174, %v5277
        %v5589 = vsel %vm440, %v5175, %v5279
        %v5592 = vsel %vm440, %v5176, %v5281
        %v5595 = vsel %vm440, %v5177, %v5283
        %v5598 = vsel %vm440, %v5178, %v5285
        %v5601 = vsel %vm440, %v5179, %v5287
        %v5604 = vsel %vm440, %v5180, %v5289
        %v5607 = vsel %vm440, %v5181, %v5291
        %v5610 = vsel %vm440, %v5182, %v5293
        %v5613 = vsel %vm440, %v5183, %v5295
        %v5615 = vsel %vm1273, %v5568, %v5377
        %v5617 = vsel %vm1273, %v5571, %v5379
        %v5619 = vsel %vm1273, %v5574, %v5381
        %v5621 = vsel %vm1273, %v5577, %v5383
        %v5623 = vsel %vm1273, %v5580, %v5385
        %v5625 = vsel %vm1273, %v5583, %v5387
        %v5627 = vsel %vm1273, %v5586, %v5389
        %v5629 = vsel %vm1273, %v5589, %v5391
        %v5631 = vsel %vm1273, %v5592, %v5393
        %v5633 = vsel %vm1273, %v5595, %v5395
        %v5635 = vsel %vm1273, %v5598, %v5397
        %v5637 = vsel %vm1273, %v5601, %v5399
        %v5639 = vsel %vm1273, %v5604, %v5401
        %v5641 = vsel %vm1273, %v5607, %v5403
        %v5643 = vsel %vm1273, %v5610, %v5405
        %v5645 = vsel %vm1273, %v5613, %v5407
        %v5647 = vsel %vm1306, %v5615, %v5414
        %v5650 = vsel %vm1306, %v5617, %v5416
        %v5653 = vsel %vm1306, %v5619, %v5418
        %v5656 = vsel %vm1306, %v5621, %v5420
        %v5659 = vsel %vm1306, %v5623, %v5422
        %v5662 = vsel %vm1306, %v5625, %v5424
        %v5665 = vsel %vm1306, %v5627, %v5426
        %v5668 = vsel %vm1306, %v5629, %v5428
        %v5671 = vsel %vm1306, %v5631, %v5430
        %v5674 = vsel %vm1306, %v5633, %v5432
        %v5677 = vsel %vm1306, %v5635, %v5434
        %v5680 = vsel %vm1306, %v5637, %v5436
        %v5683 = vsel %vm1306, %v5639, %v5438
        %v5686 = vsel %vm1306, %v5641, %v5440
        %v5689 = vsel %vm1306, %v5643, %v5442
        %v5692 = vsel %vm1306, %v5645, %v5444
        %v5696 = vsel %vm440, %v5249, %v5456
        %v5699 = vsel %vm440, %v5250, %v5458
        %v5702 = vsel %vm440, %v5251, %v5460
        %v5705 = vsel %vm440, %v5252, %v5462
        %v5708 = vsel %vm440, %v5253, %v5464
        %v5711 = vsel %vm440, %v5254, %v5466
        %v5714 = vsel %vm440, %v5255, %v5468
        %v5717 = vsel %vm440, %v5256, %v5470
        %v5720 = vsel %vm440, %v5257, %v5472
        %v5723 = vsel %vm440, %v5258, %v5474
        %v5726 = vsel %vm440, %v5259, %v5476
        %v5729 = vsel %vm440, %v5260, %v5478
        %v5732 = vsel %vm440, %v5261, %v5480
        %v5735 = vsel %vm440, %v5262, %v5482
        %v5738 = vsel %vm440, %v5263, %v5484
        %v5741 = vsel %vm440, %v5449, %v5486
        %v5743 = vsel %vm1273, %v5696, %v5493
        %v5745 = vsel %vm1273, %v5699, %v5495
        %v5747 = vsel %vm1273, %v5702, %v5497
        %v5749 = vsel %vm1273, %v5705, %v5499
        %v5751 = vsel %vm1273, %v5708, %v5501
        %v5753 = vsel %vm1273, %v5711, %v5503
        %v5755 = vsel %vm1273, %v5714, %v5505
        %v5757 = vsel %vm1273, %v5717, %v5507
        %v5759 = vsel %vm1273, %v5720, %v5509
        %v5761 = vsel %vm1273, %v5723, %v5511
        %v5763 = vsel %vm1273, %v5726, %v5513
        %v5765 = vsel %vm1273, %v5729, %v5515
        %v5767 = vsel %vm1273, %v5732, %v5517
        %v5769 = vsel %vm1273, %v5735, %v5519
        %v5771 = vsel %vm1273, %v5738, %v5521
        %v5773 = vsel %vm1273, %v5741, %v5523
        %v5775 = vsel %vm1306, %v5743, %v5530
        %v5778 = vsel %vm1306, %v5745, %v5532
        %v5781 = vsel %vm1306, %v5747, %v5534
        %v5784 = vsel %vm1306, %v5749, %v5536
        %v5787 = vsel %vm1306, %v5751, %v5538
        %v5790 = vsel %vm1306, %v5753, %v5540
        %v5793 = vsel %vm1306, %v5755, %v5542
        %v5796 = vsel %vm1306, %v5757, %v5544
        %v5799 = vsel %vm1306, %v5759, %v5546
        %v5802 = vsel %vm1306, %v5761, %v5548
        %v5805 = vsel %vm1306, %v5763, %v5550
        %v5808 = vsel %vm1306, %v5765, %v5552
        %v5811 = vsel %vm1306, %v5767, %v5554
        %v5814 = vsel %vm1306, %v5769, %v5556
        %v5817 = vsel %vm1306, %v5771, %v5558
        %v5820 = vsel %vm1306, %v5773, %v5560
        %v5822 = vld [vmem:[%s9] sm:$0xf]
        %v5823 = vld [vmem:[%s9 + $0x4] sm:$0xf]
        %v5824 = vld [vmem:[%s9 + $0x8] sm:$0xf]
        %v5825 = vld [vmem:[%s9 + $0xc] sm:$0xf]
        %v5826 = vld [vmem:[%s9 + $0x10] sm:$0xf]
        %v5827 = vld [vmem:[%s9 + $0x14] sm:$0xf]
        %v5828 = vld [vmem:[%s9 + $0x18] sm:$0xf]
        %v5829 = vld [vmem:[%s9 + $0x1c] sm:$0xf]
        %v5830 = vld [vmem:[%s9 + $0x20] sm:$0xf]
        %v5831 = vld [vmem:[%s9 + $0x24] sm:$0xf]
        %v5832 = vld [vmem:[%s9 + $0x28] sm:$0xf]
        %v5833 = vld [vmem:[%s9 + $0x2c] sm:$0xf]
        %v5834 = vld [vmem:[%s9 + $0x30] sm:$0xf]
        %v5835 = vld [vmem:[%s9 + $0x34] sm:$0xf]
        %v5836 = vld [vmem:[%s9 + $0x38] sm:$0xf]
        %v5837 = vld [vmem:[%s9 + $0x3c] sm:$0xf]
        %v5838 = vld [vmem:[%s9 + $0x40] sm:$0xf]
        %v5839 = vld [vmem:[%s9 + $0x44] sm:$0xf]
        %v5840 = vld [vmem:[%s9 + $0x48] sm:$0xf]
        %v5841 = vld [vmem:[%s9 + $0x4c] sm:$0xf]
        %v5842 = vld [vmem:[%s9 + $0x50] sm:$0xf]
        %v5843 = vld [vmem:[%s9 + $0x54] sm:$0xf]
        %v5844 = vld [vmem:[%s9 + $0x58] sm:$0xf]
        %v5845 = vld [vmem:[%s9 + $0x5c] sm:$0xf]
        %v5846 = vld [vmem:[%s9 + $0x60] sm:$0xf]
        %v5847 = vld [vmem:[%s9 + $0x64] sm:$0xf]
        %v5848 = vld [vmem:[%s9 + $0x68] sm:$0xf]
        %v5849 = vld [vmem:[%s9 + $0x6c] sm:$0xf]
        %v5850 = vld [vmem:[%s9 + $0x70] sm:$0xf]
        %v5851 = vld [vmem:[%s9 + $0x74] sm:$0xf]
        %v5852 = vld [vmem:[%s9 + $0x78] sm:$0xf]
        %v5853 = vld [vmem:[%s9 + $0x7c] sm:$0xf]
        %v5854 = vld [vmem:[%s9 + $0x80] sm:$0xf]
        %v5855 = vld [vmem:[%s9 + $0x84] sm:$0xf]
        %v5856 = vld [vmem:[%s9 + $0x88] sm:$0xf]
        %v5857 = vld [vmem:[%s9 + $0x8c] sm:$0xf]
        %v5858 = vld [vmem:[%s10] sm:$0x1]
        %v5860 = vperm.slane %v5858, 0
        %v5898 = vunpack.c.l.b16 %v5822
        %v5899 = vunpack.c.l.b16 %v5823
        %v5900 = vunpack.c.l.b16 %v5824
        %v5901 = vunpack.c.l.b16 %v5825
        %v5902 = vunpack.c.l.b16 %v5826
        %v5903 = vunpack.c.l.b16 %v5827
        %v5904 = vunpack.c.l.b16 %v5828
        %v5905 = vunpack.c.l.b16 %v5829
        %v5906 = vunpack.c.l.b16 %v5830
        %v5907 = vunpack.c.l.b16 %v5831
        %v5908 = vunpack.c.l.b16 %v5832
        %v5909 = vunpack.c.l.b16 %v5833
        %v5910 = vunpack.c.l.b16 %v5834
        %v5911 = vunpack.c.l.b16 %v5835
        %v5912 = vunpack.c.l.b16 %v5836
        %v5913 = vunpack.c.l.b16 %v5837
        %v5914 = vunpack.c.l.b16 %v5838
        %v5915 = vunpack.c.l.b16 %v5839
        %v5916 = vunpack.c.l.b16 %v5840
        %v5917 = vunpack.c.l.b16 %v5841
        %v5918 = vunpack.c.l.b16 %v5842
        %v5919 = vunpack.c.l.b16 %v5843
        %v5920 = vunpack.c.l.b16 %v5844
        %v5921 = vunpack.c.l.b16 %v5845
        %v5922 = vunpack.c.l.b16 %v5846
        %v5923 = vunpack.c.l.b16 %v5847
        %v5924 = vunpack.c.l.b16 %v5848
        %v5925 = vunpack.c.l.b16 %v5849
        %v5926 = vunpack.c.l.b16 %v5850
        %v5927 = vunpack.c.l.b16 %v5851
        %v5928 = vunpack.c.l.b16 %v5852
        %v5929 = vunpack.c.l.b16 %v5853
        %v5930 = vunpack.c.l.b16 %v5854
        %v5931 = vunpack.c.l.b16 %v5855
        %v5932 = vunpack.c.l.b16 %v5856
        %v5933 = vunpack.c.l.b16 %v5857
        %v5934 = vpack.c.b16 %v5899, %v5898
        %v5935 = vpack.c.b16 %v5901, %v5900
        %v5936 = vpack.c.b16 %v5903, %v5902
        %v5937 = vpack.c.b16 %v5905, %v5904
        %v5938 = vpack.c.b16 %v5907, %v5906
        %v5939 = vpack.c.b16 %v5909, %v5908
        %v5940 = vpack.c.b16 %v5911, %v5910
        %v5941 = vpack.c.b16 %v5913, %v5912
        %v5942 = vpack.c.b16 %v5915, %v5914
        %v5943 = vpack.c.b16 %v5917, %v5916
        %v5944 = vpack.c.b16 %v5919, %v5918
        %v5945 = vpack.c.b16 %v5921, %v5920
        %v5946 = vpack.c.b16 %v5923, %v5922
        %v5947 = vpack.c.b16 %v5925, %v5924
        %v5948 = vpack.c.b16 %v5927, %v5926
        %v5949 = vpack.c.b16 %v5929, %v5928
        %v5950 = vpack.c.b16 %v5931, %v5930
        %v5951 = vpack.c.b16 %v5933, %v5932
        %v5971 = vsel %vm440, %v5362, 0
        %v5974 = vsel %vm440, %v5363, 0
        %v5977 = vsel %vm440, %v5364, 0
        %v5980 = vsel %vm440, %v5365, 0
        %v5983 = vsel %vm440, %v5366, 0
        %v5986 = vsel %vm440, %v5367, 0
        %v5989 = vsel %vm440, %v5368, 0
        %v5992 = vsel %vm440, %v5369, 0
        %v5995 = vsel %vm440, %v5370, 0
        %v5998 = vsel %vm440, %v5371, 0
        %v6001 = vsel %vm440, %v5372, 0
        %v6004 = vsel %vm440, %v5373, 0
        %v6007 = vsel %vm440, %v5374, 0
        %v6010 = vsel %vm440, %v5375, 0
        %v6013 = vsel %vm440, %v5454, 0
        %v6016 = vsel %vm440, %v5565, 0
        %6018 = vmatpush.bf16.msra.mxu0 %v5941
        %6019 = vmatpush.bf16.msra.mxu0 %v5940
        %6020 = vmatpush.bf16.msra.mxu0 %v5939
        %6021 = vmatpush.bf16.msra.mxu0 %v5938
        %6022 = vmatpush.bf16.msra.mxu0 %v5937
        %6023 = vmatpush.bf16.msra.mxu0 %v5936
        %6024 = vmatpush.bf16.msra.mxu0 %v5935
        %6025 = vmatpush.bf16.msra.mxu0 %v5934
        %6026 = vmatmul.bf16.gmra.mxu0 %v5647
        %v6027 = vpop.f32.mrf.mxu0
        %v6028 = vadd.f32 %v5860, %v6027
        %v6029 = vpop.f32.mrf.mxu0
        %v6030 = vadd.f32 %v5860, %v6029
        %6031 = vmatmul.bf16.gmra.mxu0 %v5650
        %v6032 = vpop.f32.mrf.mxu0
        %v6033 = vadd.f32 %v5860, %v6032
        %v6034 = vpop.f32.mrf.mxu0
        %v6035 = vadd.f32 %v5860, %v6034
        %6036 = vmatmul.bf16.gmra.mxu0 %v5653
        %v6037 = vpop.f32.mrf.mxu0
        %v6038 = vadd.f32 %v5860, %v6037
        %v6039 = vpop.f32.mrf.mxu0
        %v6040 = vadd.f32 %v5860, %v6039
        %6041 = vmatmul.bf16.gmra.mxu0 %v5656
        %v6042 = vpop.f32.mrf.mxu0
        %v6043 = vadd.f32 %v5860, %v6042
        %v6044 = vpop.f32.mrf.mxu0
        %v6045 = vadd.f32 %v5860, %v6044
        %6046 = vmatmul.bf16.gmra.mxu0 %v5659
        %v6047 = vpop.f32.mrf.mxu0
        %v6048 = vadd.f32 %v5860, %v6047
        %v6049 = vpop.f32.mrf.mxu0
        %v6050 = vadd.f32 %v5860, %v6049
        %6051 = vmatmul.bf16.gmra.mxu0 %v5662
        %v6052 = vpop.f32.mrf.mxu0
        %v6053 = vadd.f32 %v5860, %v6052
        %v6054 = vpop.f32.mrf.mxu0
        %v6055 = vadd.f32 %v5860, %v6054
        %6056 = vmatmul.bf16.gmra.mxu0 %v5665
        %v6057 = vpop.f32.mrf.mxu0
        %v6058 = vadd.f32 %v5860, %v6057
        %v6059 = vpop.f32.mrf.mxu0
        %v6060 = vadd.f32 %v5860, %v6059
        %6061 = vmatmul.bf16.gmra.mxu0 %v5668
        %v6062 = vpop.f32.mrf.mxu0
        %v6063 = vadd.f32 %v5860, %v6062
        %v6064 = vpop.f32.mrf.mxu0
        %v6065 = vadd.f32 %v5860, %v6064
        %6066 = vmatmul.bf16.gmra.mxu0 %v5671
        %v6067 = vpop.f32.mrf.mxu0
        %v6068 = vadd.f32 %v5860, %v6067
        %v6069 = vpop.f32.mrf.mxu0
        %v6070 = vadd.f32 %v5860, %v6069
        %6071 = vmatmul.bf16.gmra.mxu0 %v5674
        %v6072 = vpop.f32.mrf.mxu0
        %v6073 = vadd.f32 %v5860, %v6072
        %v6074 = vpop.f32.mrf.mxu0
        %v6075 = vadd.f32 %v5860, %v6074
        %6076 = vmatmul.bf16.gmra.mxu0 %v5677
        %v6077 = vpop.f32.mrf.mxu0
        %v6078 = vadd.f32 %v5860, %v6077
        %v6079 = vpop.f32.mrf.mxu0
        %v6080 = vadd.f32 %v5860, %v6079
        %6081 = vmatmul.bf16.gmra.mxu0 %v5680
        %v6082 = vpop.f32.mrf.mxu0
        %v6083 = vadd.f32 %v5860, %v6082
        %v6084 = vpop.f32.mrf.mxu0
        %v6085 = vadd.f32 %v5860, %v6084
        %6086 = vmatmul.bf16.gmra.mxu0 %v5683
        %v6087 = vpop.f32.mrf.mxu0
        %v6088 = vadd.f32 %v5860, %v6087
        %v6089 = vpop.f32.mrf.mxu0
        %v6090 = vadd.f32 %v5860, %v6089
        %6091 = vmatmul.bf16.gmra.mxu0 %v5686
        %v6092 = vpop.f32.mrf.mxu0
        %v6093 = vadd.f32 %v5860, %v6092
        %v6094 = vpop.f32.mrf.mxu0
        %v6095 = vadd.f32 %v5860, %v6094
        %6096 = vmatmul.bf16.gmra.mxu0 %v5689
        %v6097 = vpop.f32.mrf.mxu0
        %v6098 = vadd.f32 %v5860, %v6097
        %v6099 = vpop.f32.mrf.mxu0
        %v6100 = vadd.f32 %v5860, %v6099
        %6101 = vmatmul.bf16.gmra.mxu0 %v5692
        %v6102 = vpop.f32.mrf.mxu0
        %v6103 = vadd.f32 %v5860, %v6102
        %v6104 = vpop.f32.mrf.mxu0
        %v6105 = vadd.f32 %v5860, %v6104
        %6106 = vdwg.mxu0
        %6107 = vmatpush.bf16.msra.mxu0 %v5949
        %6108 = vmatpush.bf16.msra.mxu0 %v5948
        %6109 = vmatpush.bf16.msra.mxu0 %v5947
        %6110 = vmatpush.bf16.msra.mxu0 %v5946
        %6111 = vmatpush.bf16.msra.mxu0 %v5945
        %6112 = vmatpush.bf16.msra.mxu0 %v5944
        %6113 = vmatpush.bf16.msra.mxu0 %v5943
        %6114 = vmatpush.bf16.msra.mxu0 %v5942
        %6115 = vmatmul.bf16.gmra.mxu0 %v5775
        %v6116 = vpop.f32.mrf.mxu0
        %v6117 = vadd.f32 %v6028, %v6116
        %v6118 = vpop.f32.mrf.mxu0
        %v6119 = vadd.f32 %v6030, %v6118
        %6120 = vmatmul.bf16.gmra.mxu0 %v5778
        %v6121 = vpop.f32.mrf.mxu0
        %v6122 = vadd.f32 %v6033, %v6121
        %v6123 = vpop.f32.mrf.mxu0
        %v6124 = vadd.f32 %v6035, %v6123
        %6125 = vmatmul.bf16.gmra.mxu0 %v5781
        %v6126 = vpop.f32.mrf.mxu0
        %v6127 = vadd.f32 %v6038, %v6126
        %v6128 = vpop.f32.mrf.mxu0
        %v6129 = vadd.f32 %v6040, %v6128
        %6130 = vmatmul.bf16.gmra.mxu0 %v5784
        %v6131 = vpop.f32.mrf.mxu0
        %v6132 = vadd.f32 %v6043, %v6131
        %v6133 = vpop.f32.mrf.mxu0
        %v6134 = vadd.f32 %v6045, %v6133
        %6135 = vmatmul.bf16.gmra.mxu0 %v5787
        %v6136 = vpop.f32.mrf.mxu0
        %v6137 = vadd.f32 %v6048, %v6136
        %v6138 = vpop.f32.mrf.mxu0
        %v6139 = vadd.f32 %v6050, %v6138
        %6140 = vmatmul.bf16.gmra.mxu0 %v5790
        %v6141 = vpop.f32.mrf.mxu0
        %v6142 = vadd.f32 %v6053, %v6141
        %v6143 = vpop.f32.mrf.mxu0
        %v6144 = vadd.f32 %v6055, %v6143
        %6145 = vmatmul.bf16.gmra.mxu0 %v5793
        %v6146 = vpop.f32.mrf.mxu0
        %v6147 = vadd.f32 %v6058, %v6146
        %v6148 = vpop.f32.mrf.mxu0
        %v6149 = vadd.f32 %v6060, %v6148
        %6150 = vmatmul.bf16.gmra.mxu0 %v5796
        %v6151 = vpop.f32.mrf.mxu0
        %v6152 = vadd.f32 %v6063, %v6151
        %v6153 = vpop.f32.mrf.mxu0
        %v6154 = vadd.f32 %v6065, %v6153
        %6155 = vmatmul.bf16.gmra.mxu0 %v5799
        %v6156 = vpop.f32.mrf.mxu0
        %v6157 = vadd.f32 %v6068, %v6156
        %v6158 = vpop.f32.mrf.mxu0
        %v6159 = vadd.f32 %v6070, %v6158
        %6160 = vmatmul.bf16.gmra.mxu0 %v5802
        %v6161 = vpop.f32.mrf.mxu0
        %v6162 = vadd.f32 %v6073, %v6161
        %v6163 = vpop.f32.mrf.mxu0
        %v6164 = vadd.f32 %v6075, %v6163
        %6165 = vmatmul.bf16.gmra.mxu0 %v5805
        %v6166 = vpop.f32.mrf.mxu0
        %v6167 = vadd.f32 %v6078, %v6166
        %v6168 = vpop.f32.mrf.mxu0
        %v6169 = vadd.f32 %v6080, %v6168
        %6170 = vmatmul.bf16.gmra.mxu0 %v5808
        %v6171 = vpop.f32.mrf.mxu0
        %v6172 = vadd.f32 %v6083, %v6171
        %v6173 = vpop.f32.mrf.mxu0
        %v6174 = vadd.f32 %v6085, %v6173
        %6175 = vmatmul.bf16.gmra.mxu0 %v5811
        %v6176 = vpop.f32.mrf.mxu0
        %v6177 = vadd.f32 %v6088, %v6176
        %v6178 = vpop.f32.mrf.mxu0
        %v6179 = vadd.f32 %v6090, %v6178
        %6180 = vmatmul.bf16.gmra.mxu0 %v5814
        %v6181 = vpop.f32.mrf.mxu0
        %v6182 = vadd.f32 %v6093, %v6181
        %v6183 = vpop.f32.mrf.mxu0
        %v6184 = vadd.f32 %v6095, %v6183
        %6185 = vmatmul.bf16.gmra.mxu0 %v5817
        %v6186 = vpop.f32.mrf.mxu0
        %v6187 = vadd.f32 %v6098, %v6186
        %v6188 = vpop.f32.mrf.mxu0
        %v6189 = vadd.f32 %v6100, %v6188
        %6190 = vmatmul.bf16.gmra.mxu0 %v5820
        %v6191 = vpop.f32.mrf.mxu0
        %v6192 = vadd.f32 %v6103, %v6191
        %v6193 = vpop.f32.mrf.mxu0
        %v6194 = vadd.f32 %v6105, %v6193
        %6195 = vdwg.mxu0
        %6196 = vmatpush.bf16.msra.mxu0 0
        %6197 = vmatpush.bf16.msra.mxu0 0
        %6198 = vmatpush.bf16.msra.mxu0 0
        %6199 = vmatpush.bf16.msra.mxu0 0
        %6200 = vmatpush.bf16.msra.mxu0 0
        %6201 = vmatpush.bf16.msra.mxu0 0
        %6202 = vmatpush.bf16.msra.mxu0 %v5951
        %6203 = vmatpush.bf16.msra.mxu0 %v5950
        %6204 = vmatmul.bf16.gmra.mxu0 %v5971
        %v6205 = vpop.f32.mrf.mxu0
        %v6206 = vadd.f32 %v6117, %v6205
        %v6207 = vpop.f32.mrf.mxu0
        %v6208 = vadd.f32 %v6119, %v6207
        %6209 = vmatmul.bf16.gmra.mxu0 %v5974
        %v6210 = vpop.f32.mrf.mxu0
        %v6211 = vadd.f32 %v6122, %v6210
        %v6212 = vpop.f32.mrf.mxu0
        %v6213 = vadd.f32 %v6124, %v6212
        %6214 = vmatmul.bf16.gmra.mxu0 %v5977
        %v6215 = vpop.f32.mrf.mxu0
        %v6216 = vadd.f32 %v6127, %v6215
        %v6217 = vpop.f32.mrf.mxu0
        %v6218 = vadd.f32 %v6129, %v6217
        %6219 = vmatmul.bf16.gmra.mxu0 %v5980
        %v6220 = vpop.f32.mrf.mxu0
        %v6221 = vadd.f32 %v6132, %v6220
        %v6222 = vpop.f32.mrf.mxu0
        %v6223 = vadd.f32 %v6134, %v6222
        %6224 = vmatmul.bf16.gmra.mxu0 %v5983
        %v6225 = vpop.f32.mrf.mxu0
        %v6226 = vadd.f32 %v6137, %v6225
        %v6227 = vpop.f32.mrf.mxu0
        %v6228 = vadd.f32 %v6139, %v6227
        %6229 = vmatmul.bf16.gmra.mxu0 %v5986
        %v6230 = vpop.f32.mrf.mxu0
        %v6231 = vadd.f32 %v6142, %v6230
        %v6232 = vpop.f32.mrf.mxu0
        %v6233 = vadd.f32 %v6144, %v6232
        %6234 = vmatmul.bf16.gmra.mxu0 %v5989
        %v6235 = vpop.f32.mrf.mxu0
        %v6236 = vadd.f32 %v6147, %v6235
        %v6237 = vpop.f32.mrf.mxu0
        %v6238 = vadd.f32 %v6149, %v6237
        %6239 = vmatmul.bf16.gmra.mxu0 %v5992
        %v6240 = vpop.f32.mrf.mxu0
        %v6241 = vadd.f32 %v6152, %v6240
        %v6242 = vpop.f32.mrf.mxu0
        %v6243 = vadd.f32 %v6154, %v6242
        %6244 = vmatmul.bf16.gmra.mxu0 %v5995
        %v6245 = vpop.f32.mrf.mxu0
        %v6246 = vadd.f32 %v6157, %v6245
        %v6247 = vpop.f32.mrf.mxu0
        %v6248 = vadd.f32 %v6159, %v6247
        %6249 = vmatmul.bf16.gmra.mxu0 %v5998
        %v6250 = vpop.f32.mrf.mxu0
        %v6251 = vadd.f32 %v6162, %v6250
        %v6252 = vpop.f32.mrf.mxu0
        %v6253 = vadd.f32 %v6164, %v6252
        %6254 = vmatmul.bf16.gmra.mxu0 %v6001
        %v6255 = vpop.f32.mrf.mxu0
        %v6256 = vadd.f32 %v6167, %v6255
        %v6257 = vpop.f32.mrf.mxu0
        %v6258 = vadd.f32 %v6169, %v6257
        %6259 = vmatmul.bf16.gmra.mxu0 %v6004
        %v6260 = vpop.f32.mrf.mxu0
        %v6261 = vadd.f32 %v6172, %v6260
        %v6262 = vpop.f32.mrf.mxu0
        %v6263 = vadd.f32 %v6174, %v6262
        %6264 = vmatmul.bf16.gmra.mxu0 %v6007
        %v6265 = vpop.f32.mrf.mxu0
        %v6266 = vadd.f32 %v6177, %v6265
        %v6267 = vpop.f32.mrf.mxu0
        %v6268 = vadd.f32 %v6179, %v6267
        %6269 = vmatmul.bf16.gmra.mxu0 %v6010
        %v6270 = vpop.f32.mrf.mxu0
        %v6271 = vadd.f32 %v6182, %v6270
        %v6272 = vpop.f32.mrf.mxu0
        %v6273 = vadd.f32 %v6184, %v6272
        %6274 = vmatmul.bf16.gmra.mxu0 %v6013
        %v6275 = vpop.f32.mrf.mxu0
        %v6276 = vadd.f32 %v6187, %v6275
        %v6277 = vpop.f32.mrf.mxu0
        %v6278 = vadd.f32 %v6189, %v6277
        %6279 = vmatmul.bf16.gmra.mxu0 %v6016
        %v6280 = vpop.f32.mrf.mxu0
        %v6281 = vadd.f32 %v6192, %v6280
        %v6282 = vpop.f32.mrf.mxu0
        %v6283 = vadd.f32 %v6194, %v6282
        %6284 = vdwg.mxu0
        %vm6285 = vcmp.ge.s32.totalorder %v3071, 32
        %vm6286 = vcmp.lt.s32.totalorder %v3071, 36
        %vm6287 = vmand %vm6285, %vm6286
        %v6288 = vxor.u32 %v6206, 2147483648
        %v6289 = vxor.u32 %v6208, 2147483648
        %v6290 = vxor.u32 %v6211, 2147483648
        %v6291 = vxor.u32 %v6213, 2147483648
        %v6292 = vxor.u32 %v6216, 2147483648
        %v6293 = vxor.u32 %v6218, 2147483648
        %v6294 = vxor.u32 %v6221, 2147483648
        %v6295 = vxor.u32 %v6223, 2147483648
        %v6296 = vxor.u32 %v6226, 2147483648
        %v6297 = vxor.u32 %v6228, 2147483648
        %v6298 = vxor.u32 %v6231, 2147483648
        %v6299 = vxor.u32 %v6233, 2147483648
        %v6300 = vxor.u32 %v6236, 2147483648
        %v6301 = vxor.u32 %v6238, 2147483648
        %v6302 = vxor.u32 %v6241, 2147483648
        %v6303 = vxor.u32 %v6243, 2147483648
        %v6304 = vxor.u32 %v6246, 2147483648
        %v6305 = vxor.u32 %v6248, 2147483648
        %v6306 = vxor.u32 %v6251, 2147483648
        %v6307 = vxor.u32 %v6253, 2147483648
        %v6308 = vxor.u32 %v6256, 2147483648
        %v6309 = vxor.u32 %v6258, 2147483648
        %v6310 = vxor.u32 %v6261, 2147483648
        %v6311 = vxor.u32 %v6263, 2147483648
        %v6312 = vxor.u32 %v6266, 2147483648
        %v6313 = vxor.u32 %v6268, 2147483648
        %v6314 = vxor.u32 %v6271, 2147483648
        %v6315 = vxor.u32 %v6273, 2147483648
        %v6316 = vxor.u32 %v6276, 2147483648
        %v6317 = vxor.u32 %v6278, 2147483648
        %v6318 = vxor.u32 %v6281, 2147483648
        %v6319 = vxor.u32 %v6283, 2147483648
        %v6320 = vmul.f32 %v6288, 1.442695
        %v6321 = vpow.pop %v6320
        %v6322 = vmul.f32 %v6289, 1.442695
        %v6323 = vpow.pop %v6322
        %v6324 = vmul.f32 %v6290, 1.442695
        %v6325 = vpow.pop %v6324
        %v6326 = vmul.f32 %v6291, 1.442695
        %v6327 = vpow.pop %v6326
        %v6328 = vmul.f32 %v6292, 1.442695
        %v6329 = vpow.pop %v6328
        %v6330 = vmul.f32 %v6293, 1.442695
        %v6331 = vpow.pop %v6330
        %v6332 = vmul.f32 %v6294, 1.442695
        %v6333 = vpow.pop %v6332
        %v6334 = vmul.f32 %v6295, 1.442695
        %v6335 = vpow.pop %v6334
        %v6336 = vmul.f32 %v6296, 1.442695
        %v6337 = vpow.pop %v6336
        %v6338 = vmul.f32 %v6297, 1.442695
        %v6339 = vpow.pop %v6338
        %v6340 = vmul.f32 %v6298, 1.442695
        %v6341 = vpow.pop %v6340
        %v6342 = vmul.f32 %v6299, 1.442695
        %v6343 = vpow.pop %v6342
        %v6344 = vmul.f32 %v6300, 1.442695
        %v6345 = vpow.pop %v6344
        %v6346 = vmul.f32 %v6301, 1.442695
        %v6347 = vpow.pop %v6346
        %v6348 = vmul.f32 %v6302, 1.442695
        %v6349 = vpow.pop %v6348
        %v6350 = vmul.f32 %v6303, 1.442695
        %v6351 = vpow.pop %v6350
        %v6352 = vmul.f32 %v6304, 1.442695
        %v6353 = vpow.pop %v6352
        %v6354 = vmul.f32 %v6305, 1.442695
        %v6355 = vpow.pop %v6354
        %v6356 = vmul.f32 %v6306, 1.442695
        %v6357 = vpow.pop %v6356
        %v6358 = vmul.f32 %v6307, 1.442695
        %v6359 = vpow.pop %v6358
        %v6360 = vmul.f32 %v6308, 1.442695
        %v6361 = vpow.pop %v6360
        %v6362 = vmul.f32 %v6309, 1.442695
        %v6363 = vpow.pop %v6362
        %v6364 = vmul.f32 %v6310, 1.442695
        %v6365 = vpow.pop %v6364
        %v6366 = vmul.f32 %v6311, 1.442695
        %v6367 = vpow.pop %v6366
        %v6368 = vmul.f32 %v6312, 1.442695
        %v6369 = vpow.pop %v6368
        %v6370 = vmul.f32 %v6313, 1.442695
        %v6371 = vpow.pop %v6370
        %v6372 = vmul.f32 %v6314, 1.442695
        %v6373 = vpow.pop %v6372
        %v6374 = vmul.f32 %v6315, 1.442695
        %v6375 = vpow.pop %v6374
        %v6376 = vmul.f32 %v6316, 1.442695
        %v6377 = vpow.pop %v6376
        %v6378 = vmul.f32 %v6317, 1.442695
        %v6379 = vpow.pop %v6378
        %v6380 = vmul.f32 %v6318, 1.442695
        %v6381 = vpow.pop %v6380
        %v6382 = vmul.f32 %v6319, 1.442695
        %v6383 = vpow.pop %v6382
        %v6384 = vadd.f32 %v6321, 1.0
        %v6385 = vadd.f32 %v6323, 1.0
        %v6386 = vadd.f32 %v6325, 1.0
        %v6387 = vadd.f32 %v6327, 1.0
        %v6388 = vadd.f32 %v6329, 1.0
        %v6389 = vadd.f32 %v6331, 1.0
        %v6390 = vadd.f32 %v6333, 1.0
        %v6391 = vadd.f32 %v6335, 1.0
        %v6392 = vadd.f32 %v6337, 1.0
        %v6393 = vadd.f32 %v6339, 1.0
        %v6394 = vadd.f32 %v6341, 1.0
        %v6395 = vadd.f32 %v6343, 1.0
        %v6396 = vadd.f32 %v6345, 1.0
        %v6397 = vadd.f32 %v6347, 1.0
        %v6398 = vadd.f32 %v6349, 1.0
        %v6399 = vadd.f32 %v6351, 1.0
        %v6400 = vadd.f32 %v6353, 1.0
        %v6401 = vadd.f32 %v6355, 1.0
        %v6402 = vadd.f32 %v6357, 1.0
        %v6403 = vadd.f32 %v6359, 1.0
        %v6404 = vadd.f32 %v6361, 1.0
        %v6405 = vadd.f32 %v6363, 1.0
        %v6406 = vadd.f32 %v6365, 1.0
        %v6407 = vadd.f32 %v6367, 1.0
        %v6408 = vadd.f32 %v6369, 1.0
        %v6409 = vadd.f32 %v6371, 1.0
        %v6410 = vadd.f32 %v6373, 1.0
        %v6411 = vadd.f32 %v6375, 1.0
        %v6412 = vadd.f32 %v6377, 1.0
        %v6413 = vadd.f32 %v6379, 1.0
        %v6414 = vadd.f32 %v6381, 1.0
        %v6415 = vadd.f32 %v6383, 1.0
        %v6416 = vrcp.pop %v6384
        %v6417 = vmul.f32 %v6384, %v6416
        %v6418 = vsub.f32 1.0, %v6417
        %v6419 = vmul.f32 %v6416, %v6418
        %v6420 = vadd.f32 %v6416, %v6419
        %vm6421 = vweird.f32 %v6384
        %vm6422 = vweird.f32 %v6416
        %vm6423 = vmor %vm6421, %vm6422
        %v6424 = vsel %vm6423, %v6416, %v6420
        %v6425 = vand.u32 2147483647, %v6384
        %vm6426 = vcmp.eq.f32.partialorder %v6425, 8.507059e+37
        %v6427 = vand.u32 %v6384, 2147483648
        %v6428 = vor.u32 1.1754944e-38, %v6427
        %v6429 = vsel %vm6426, %v6428, %v6424
        %v6430 = vmul.f32 1.0, %v6429
        %v6431 = vrcp.pop %v6385
        %v6432 = vmul.f32 %v6385, %v6431
        %v6433 = vsub.f32 1.0, %v6432
        %v6434 = vmul.f32 %v6431, %v6433
        %v6435 = vadd.f32 %v6431, %v6434
        %vm6436 = vweird.f32 %v6385
        %vm6437 = vweird.f32 %v6431
        %vm6438 = vmor %vm6436, %vm6437
        %v6439 = vsel %vm6438, %v6431, %v6435
        %v6440 = vand.u32 2147483647, %v6385
        %vm6441 = vcmp.eq.f32.partialorder %v6440, 8.507059e+37
        %v6442 = vand.u32 %v6385, 2147483648
        %v6443 = vor.u32 1.1754944e-38, %v6442
        %v6444 = vsel %vm6441, %v6443, %v6439
        %v6445 = vmul.f32 1.0, %v6444
        %v6446 = vrcp.pop %v6386
        %v6447 = vmul.f32 %v6386, %v6446
        %v6448 = vsub.f32 1.0, %v6447
        %v6449 = vmul.f32 %v6446, %v6448
        %v6450 = vadd.f32 %v6446, %v6449
        %vm6451 = vweird.f32 %v6386
        %vm6452 = vweird.f32 %v6446
        %vm6453 = vmor %vm6451, %vm6452
        %v6454 = vsel %vm6453, %v6446, %v6450
        %v6455 = vand.u32 2147483647, %v6386
        %vm6456 = vcmp.eq.f32.partialorder %v6455, 8.507059e+37
        %v6457 = vand.u32 %v6386, 2147483648
        %v6458 = vor.u32 1.1754944e-38, %v6457
        %v6459 = vsel %vm6456, %v6458, %v6454
        %v6460 = vmul.f32 1.0, %v6459
        %v6461 = vrcp.pop %v6387
        %v6462 = vmul.f32 %v6387, %v6461
        %v6463 = vsub.f32 1.0, %v6462
        %v6464 = vmul.f32 %v6461, %v6463
        %v6465 = vadd.f32 %v6461, %v6464
        %vm6466 = vweird.f32 %v6387
        %vm6467 = vweird.f32 %v6461
        %vm6468 = vmor %vm6466, %vm6467
        %v6469 = vsel %vm6468, %v6461, %v6465
        %v6470 = vand.u32 2147483647, %v6387
        %vm6471 = vcmp.eq.f32.partialorder %v6470, 8.507059e+37
        %v6472 = vand.u32 %v6387, 2147483648
        %v6473 = vor.u32 1.1754944e-38, %v6472
        %v6474 = vsel %vm6471, %v6473, %v6469
        %v6475 = vmul.f32 1.0, %v6474
        %v6476 = vrcp.pop %v6388
        %v6477 = vmul.f32 %v6388, %v6476
        %v6478 = vsub.f32 1.0, %v6477
        %v6479 = vmul.f32 %v6476, %v6478
        %v6480 = vadd.f32 %v6476, %v6479
        %vm6481 = vweird.f32 %v6388
        %vm6482 = vweird.f32 %v6476
        %vm6483 = vmor %vm6481, %vm6482
        %v6484 = vsel %vm6483, %v6476, %v6480
        %v6485 = vand.u32 2147483647, %v6388
        %vm6486 = vcmp.eq.f32.partialorder %v6485, 8.507059e+37
        %v6487 = vand.u32 %v6388, 2147483648
        %v6488 = vor.u32 1.1754944e-38, %v6487
        %v6489 = vsel %vm6486, %v6488, %v6484
        %v6490 = vmul.f32 1.0, %v6489
        %v6491 = vrcp.pop %v6389
        %v6492 = vmul.f32 %v6389, %v6491
        %v6493 = vsub.f32 1.0, %v6492
        %v6494 = vmul.f32 %v6491, %v6493
        %v6495 = vadd.f32 %v6491, %v6494
        %vm6496 = vweird.f32 %v6389
        %vm6497 = vweird.f32 %v6491
        %vm6498 = vmor %vm6496, %vm6497
        %v6499 = vsel %vm6498, %v6491, %v6495
        %v6500 = vand.u32 2147483647, %v6389
        %vm6501 = vcmp.eq.f32.partialorder %v6500, 8.507059e+37
        %v6502 = vand.u32 %v6389, 2147483648
        %v6503 = vor.u32 1.1754944e-38, %v6502
        %v6504 = vsel %vm6501, %v6503, %v6499
        %v6505 = vmul.f32 1.0, %v6504
        %v6506 = vrcp.pop %v6390
        %v6507 = vmul.f32 %v6390, %v6506
        %v6508 = vsub.f32 1.0, %v6507
        %v6509 = vmul.f32 %v6506, %v6508
        %v6510 = vadd.f32 %v6506, %v6509
        %vm6511 = vweird.f32 %v6390
        %vm6512 = vweird.f32 %v6506
        %vm6513 = vmor %vm6511, %vm6512
        %v6514 = vsel %vm6513, %v6506, %v6510
        %v6515 = vand.u32 2147483647, %v6390
        %vm6516 = vcmp.eq.f32.partialorder %v6515, 8.507059e+37
        %v6517 = vand.u32 %v6390, 2147483648
        %v6518 = vor.u32 1.1754944e-38, %v6517
        %v6519 = vsel %vm6516, %v6518, %v6514
        %v6520 = vmul.f32 1.0, %v6519
        %v6521 = vrcp.pop %v6391
        %v6522 = vmul.f32 %v6391, %v6521
        %v6523 = vsub.f32 1.0, %v6522
        %v6524 = vmul.f32 %v6521, %v6523
        %v6525 = vadd.f32 %v6521, %v6524
        %vm6526 = vweird.f32 %v6391
        %vm6527 = vweird.f32 %v6521
        %vm6528 = vmor %vm6526, %vm6527
        %v6529 = vsel %vm6528, %v6521, %v6525
        %v6530 = vand.u32 2147483647, %v6391
        %vm6531 = vcmp.eq.f32.partialorder %v6530, 8.507059e+37
        %v6532 = vand.u32 %v6391, 2147483648
        %v6533 = vor.u32 1.1754944e-38, %v6532
        %v6534 = vsel %vm6531, %v6533, %v6529
        %v6535 = vmul.f32 1.0, %v6534
        %v6536 = vrcp.pop %v6392
        %v6537 = vmul.f32 %v6392, %v6536
        %v6538 = vsub.f32 1.0, %v6537
        %v6539 = vmul.f32 %v6536, %v6538
        %v6540 = vadd.f32 %v6536, %v6539
        %vm6541 = vweird.f32 %v6392
        %vm6542 = vweird.f32 %v6536
        %vm6543 = vmor %vm6541, %vm6542
        %v6544 = vsel %vm6543, %v6536, %v6540
        %v6545 = vand.u32 2147483647, %v6392
        %vm6546 = vcmp.eq.f32.partialorder %v6545, 8.507059e+37
        %v6547 = vand.u32 %v6392, 2147483648
        %v6548 = vor.u32 1.1754944e-38, %v6547
        %v6549 = vsel %vm6546, %v6548, %v6544
        %v6550 = vmul.f32 1.0, %v6549
        %v6551 = vrcp.pop %v6393
        %v6552 = vmul.f32 %v6393, %v6551
        %v6553 = vsub.f32 1.0, %v6552
        %v6554 = vmul.f32 %v6551, %v6553
        %v6555 = vadd.f32 %v6551, %v6554
        %vm6556 = vweird.f32 %v6393
        %vm6557 = vweird.f32 %v6551
        %vm6558 = vmor %vm6556, %vm6557
        %v6559 = vsel %vm6558, %v6551, %v6555
        %v6560 = vand.u32 2147483647, %v6393
        %vm6561 = vcmp.eq.f32.partialorder %v6560, 8.507059e+37
        %v6562 = vand.u32 %v6393, 2147483648
        %v6563 = vor.u32 1.1754944e-38, %v6562
        %v6564 = vsel %vm6561, %v6563, %v6559
        %v6565 = vmul.f32 1.0, %v6564
        %v6566 = vrcp.pop %v6394
        %v6567 = vmul.f32 %v6394, %v6566
        %v6568 = vsub.f32 1.0, %v6567
        %v6569 = vmul.f32 %v6566, %v6568
        %v6570 = vadd.f32 %v6566, %v6569
        %vm6571 = vweird.f32 %v6394
        %vm6572 = vweird.f32 %v6566
        %vm6573 = vmor %vm6571, %vm6572
        %v6574 = vsel %vm6573, %v6566, %v6570
        %v6575 = vand.u32 2147483647, %v6394
        %vm6576 = vcmp.eq.f32.partialorder %v6575, 8.507059e+37
        %v6577 = vand.u32 %v6394, 2147483648
        %v6578 = vor.u32 1.1754944e-38, %v6577
        %v6579 = vsel %vm6576, %v6578, %v6574
        %v6580 = vmul.f32 1.0, %v6579
        %v6581 = vrcp.pop %v6395
        %v6582 = vmul.f32 %v6395, %v6581
        %v6583 = vsub.f32 1.0, %v6582
        %v6584 = vmul.f32 %v6581, %v6583
        %v6585 = vadd.f32 %v6581, %v6584
        %vm6586 = vweird.f32 %v6395
        %vm6587 = vweird.f32 %v6581
        %vm6588 = vmor %vm6586, %vm6587
        %v6589 = vsel %vm6588, %v6581, %v6585
        %v6590 = vand.u32 2147483647, %v6395
        %vm6591 = vcmp.eq.f32.partialorder %v6590, 8.507059e+37
        %v6592 = vand.u32 %v6395, 2147483648
        %v6593 = vor.u32 1.1754944e-38, %v6592
        %v6594 = vsel %vm6591, %v6593, %v6589
        %v6595 = vmul.f32 1.0, %v6594
        %v6596 = vrcp.pop %v6396
        %v6597 = vmul.f32 %v6396, %v6596
        %v6598 = vsub.f32 1.0, %v6597
        %v6599 = vmul.f32 %v6596, %v6598
        %v6600 = vadd.f32 %v6596, %v6599
        %vm6601 = vweird.f32 %v6396
        %vm6602 = vweird.f32 %v6596
        %vm6603 = vmor %vm6601, %vm6602
        %v6604 = vsel %vm6603, %v6596, %v6600
        %v6605 = vand.u32 2147483647, %v6396
        %vm6606 = vcmp.eq.f32.partialorder %v6605, 8.507059e+37
        %v6607 = vand.u32 %v6396, 2147483648
        %v6608 = vor.u32 1.1754944e-38, %v6607
        %v6609 = vsel %vm6606, %v6608, %v6604
        %v6610 = vmul.f32 1.0, %v6609
        %v6611 = vrcp.pop %v6397
        %v6612 = vmul.f32 %v6397, %v6611
        %v6613 = vsub.f32 1.0, %v6612
        %v6614 = vmul.f32 %v6611, %v6613
        %v6615 = vadd.f32 %v6611, %v6614
        %vm6616 = vweird.f32 %v6397
        %vm6617 = vweird.f32 %v6611
        %vm6618 = vmor %vm6616, %vm6617
        %v6619 = vsel %vm6618, %v6611, %v6615
        %v6620 = vand.u32 2147483647, %v6397
        %vm6621 = vcmp.eq.f32.partialorder %v6620, 8.507059e+37
        %v6622 = vand.u32 %v6397, 2147483648
        %v6623 = vor.u32 1.1754944e-38, %v6622
        %v6624 = vsel %vm6621, %v6623, %v6619
        %v6625 = vmul.f32 1.0, %v6624
        %v6626 = vrcp.pop %v6398
        %v6627 = vmul.f32 %v6398, %v6626
        %v6628 = vsub.f32 1.0, %v6627
        %v6629 = vmul.f32 %v6626, %v6628
        %v6630 = vadd.f32 %v6626, %v6629
        %vm6631 = vweird.f32 %v6398
        %vm6632 = vweird.f32 %v6626
        %vm6633 = vmor %vm6631, %vm6632
        %v6634 = vsel %vm6633, %v6626, %v6630
        %v6635 = vand.u32 2147483647, %v6398
        %vm6636 = vcmp.eq.f32.partialorder %v6635, 8.507059e+37
        %v6637 = vand.u32 %v6398, 2147483648
        %v6638 = vor.u32 1.1754944e-38, %v6637
        %v6639 = vsel %vm6636, %v6638, %v6634
        %v6640 = vmul.f32 1.0, %v6639
        %v6641 = vrcp.pop %v6399
        %v6642 = vmul.f32 %v6399, %v6641
        %v6643 = vsub.f32 1.0, %v6642
        %v6644 = vmul.f32 %v6641, %v6643
        %v6645 = vadd.f32 %v6641, %v6644
        %vm6646 = vweird.f32 %v6399
        %vm6647 = vweird.f32 %v6641
        %vm6648 = vmor %vm6646, %vm6647
        %v6649 = vsel %vm6648, %v6641, %v6645
        %v6650 = vand.u32 2147483647, %v6399
        %vm6651 = vcmp.eq.f32.partialorder %v6650, 8.507059e+37
        %v6652 = vand.u32 %v6399, 2147483648
        %v6653 = vor.u32 1.1754944e-38, %v6652
        %v6654 = vsel %vm6651, %v6653, %v6649
        %v6655 = vmul.f32 1.0, %v6654
        %v6656 = vrcp.pop %v6400
        %v6657 = vmul.f32 %v6400, %v6656
        %v6658 = vsub.f32 1.0, %v6657
        %v6659 = vmul.f32 %v6656, %v6658
        %v6660 = vadd.f32 %v6656, %v6659
        %vm6661 = vweird.f32 %v6400
        %vm6662 = vweird.f32 %v6656
        %vm6663 = vmor %vm6661, %vm6662
        %v6664 = vsel %vm6663, %v6656, %v6660
        %v6665 = vand.u32 2147483647, %v6400
        %vm6666 = vcmp.eq.f32.partialorder %v6665, 8.507059e+37
        %v6667 = vand.u32 %v6400, 2147483648
        %v6668 = vor.u32 1.1754944e-38, %v6667
        %v6669 = vsel %vm6666, %v6668, %v6664
        %v6670 = vmul.f32 1.0, %v6669
        %v6671 = vrcp.pop %v6401
        %v6672 = vmul.f32 %v6401, %v6671
        %v6673 = vsub.f32 1.0, %v6672
        %v6674 = vmul.f32 %v6671, %v6673
        %v6675 = vadd.f32 %v6671, %v6674
        %vm6676 = vweird.f32 %v6401
        %vm6677 = vweird.f32 %v6671
        %vm6678 = vmor %vm6676, %vm6677
        %v6679 = vsel %vm6678, %v6671, %v6675
        %v6680 = vand.u32 2147483647, %v6401
        %vm6681 = vcmp.eq.f32.partialorder %v6680, 8.507059e+37
        %v6682 = vand.u32 %v6401, 2147483648
        %v6683 = vor.u32 1.1754944e-38, %v6682
        %v6684 = vsel %vm6681, %v6683, %v6679
        %v6685 = vmul.f32 1.0, %v6684
        %v6686 = vrcp.pop %v6402
        %v6687 = vmul.f32 %v6402, %v6686
        %v6688 = vsub.f32 1.0, %v6687
        %v6689 = vmul.f32 %v6686, %v6688
        %v6690 = vadd.f32 %v6686, %v6689
        %vm6691 = vweird.f32 %v6402
        %vm6692 = vweird.f32 %v6686
        %vm6693 = vmor %vm6691, %vm6692
        %v6694 = vsel %vm6693, %v6686, %v6690
        %v6695 = vand.u32 2147483647, %v6402
        %vm6696 = vcmp.eq.f32.partialorder %v6695, 8.507059e+37
        %v6697 = vand.u32 %v6402, 2147483648
        %v6698 = vor.u32 1.1754944e-38, %v6697
        %v6699 = vsel %vm6696, %v6698, %v6694
        %v6700 = vmul.f32 1.0, %v6699
        %v6701 = vrcp.pop %v6403
        %v6702 = vmul.f32 %v6403, %v6701
        %v6703 = vsub.f32 1.0, %v6702
        %v6704 = vmul.f32 %v6701, %v6703
        %v6705 = vadd.f32 %v6701, %v6704
        %vm6706 = vweird.f32 %v6403
        %vm6707 = vweird.f32 %v6701
        %vm6708 = vmor %vm6706, %vm6707
        %v6709 = vsel %vm6708, %v6701, %v6705
        %v6710 = vand.u32 2147483647, %v6403
        %vm6711 = vcmp.eq.f32.partialorder %v6710, 8.507059e+37
        %v6712 = vand.u32 %v6403, 2147483648
        %v6713 = vor.u32 1.1754944e-38, %v6712
        %v6714 = vsel %vm6711, %v6713, %v6709
        %v6715 = vmul.f32 1.0, %v6714
        %v6716 = vrcp.pop %v6404
        %v6717 = vmul.f32 %v6404, %v6716
        %v6718 = vsub.f32 1.0, %v6717
        %v6719 = vmul.f32 %v6716, %v6718
        %v6720 = vadd.f32 %v6716, %v6719
        %vm6721 = vweird.f32 %v6404
        %vm6722 = vweird.f32 %v6716
        %vm6723 = vmor %vm6721, %vm6722
        %v6724 = vsel %vm6723, %v6716, %v6720
        %v6725 = vand.u32 2147483647, %v6404
        %vm6726 = vcmp.eq.f32.partialorder %v6725, 8.507059e+37
        %v6727 = vand.u32 %v6404, 2147483648
        %v6728 = vor.u32 1.1754944e-38, %v6727
        %v6729 = vsel %vm6726, %v6728, %v6724
        %v6730 = vmul.f32 1.0, %v6729
        %v6731 = vrcp.pop %v6405
        %v6732 = vmul.f32 %v6405, %v6731
        %v6733 = vsub.f32 1.0, %v6732
        %v6734 = vmul.f32 %v6731, %v6733
        %v6735 = vadd.f32 %v6731, %v6734
        %vm6736 = vweird.f32 %v6405
        %vm6737 = vweird.f32 %v6731
        %vm6738 = vmor %vm6736, %vm6737
        %v6739 = vsel %vm6738, %v6731, %v6735
        %v6740 = vand.u32 2147483647, %v6405
        %vm6741 = vcmp.eq.f32.partialorder %v6740, 8.507059e+37
        %v6742 = vand.u32 %v6405, 2147483648
        %v6743 = vor.u32 1.1754944e-38, %v6742
        %v6744 = vsel %vm6741, %v6743, %v6739
        %v6745 = vmul.f32 1.0, %v6744
        %v6746 = vrcp.pop %v6406
        %v6747 = vmul.f32 %v6406, %v6746
        %v6748 = vsub.f32 1.0, %v6747
        %v6749 = vmul.f32 %v6746, %v6748
        %v6750 = vadd.f32 %v6746, %v6749
        %vm6751 = vweird.f32 %v6406
        %vm6752 = vweird.f32 %v6746
        %vm6753 = vmor %vm6751, %vm6752
        %v6754 = vsel %vm6753, %v6746, %v6750
        %v6755 = vand.u32 2147483647, %v6406
        %vm6756 = vcmp.eq.f32.partialorder %v6755, 8.507059e+37
        %v6757 = vand.u32 %v6406, 2147483648
        %v6758 = vor.u32 1.1754944e-38, %v6757
        %v6759 = vsel %vm6756, %v6758, %v6754
        %v6760 = vmul.f32 1.0, %v6759
        %v6761 = vrcp.pop %v6407
        %v6762 = vmul.f32 %v6407, %v6761
        %v6763 = vsub.f32 1.0, %v6762
        %v6764 = vmul.f32 %v6761, %v6763
        %v6765 = vadd.f32 %v6761, %v6764
        %vm6766 = vweird.f32 %v6407
        %vm6767 = vweird.f32 %v6761
        %vm6768 = vmor %vm6766, %vm6767
        %v6769 = vsel %vm6768, %v6761, %v6765
        %v6770 = vand.u32 2147483647, %v6407
        %vm6771 = vcmp.eq.f32.partialorder %v6770, 8.507059e+37
        %v6772 = vand.u32 %v6407, 2147483648
        %v6773 = vor.u32 1.1754944e-38, %v6772
        %v6774 = vsel %vm6771, %v6773, %v6769
        %v6775 = vmul.f32 1.0, %v6774
        %v6776 = vrcp.pop %v6408
        %v6777 = vmul.f32 %v6408, %v6776
        %v6778 = vsub.f32 1.0, %v6777
        %v6779 = vmul.f32 %v6776, %v6778
        %v6780 = vadd.f32 %v6776, %v6779
        %vm6781 = vweird.f32 %v6408
        %vm6782 = vweird.f32 %v6776
        %vm6783 = vmor %vm6781, %vm6782
        %v6784 = vsel %vm6783, %v6776, %v6780
        %v6785 = vand.u32 2147483647, %v6408
        %vm6786 = vcmp.eq.f32.partialorder %v6785, 8.507059e+37
        %v6787 = vand.u32 %v6408, 2147483648
        %v6788 = vor.u32 1.1754944e-38, %v6787
        %v6789 = vsel %vm6786, %v6788, %v6784
        %v6790 = vmul.f32 1.0, %v6789
        %v6791 = vrcp.pop %v6409
        %v6792 = vmul.f32 %v6409, %v6791
        %v6793 = vsub.f32 1.0, %v6792
        %v6794 = vmul.f32 %v6791, %v6793
        %v6795 = vadd.f32 %v6791, %v6794
        %vm6796 = vweird.f32 %v6409
        %vm6797 = vweird.f32 %v6791
        %vm6798 = vmor %vm6796, %vm6797
        %v6799 = vsel %vm6798, %v6791, %v6795
        %v6800 = vand.u32 2147483647, %v6409
        %vm6801 = vcmp.eq.f32.partialorder %v6800, 8.507059e+37
        %v6802 = vand.u32 %v6409, 2147483648
        %v6803 = vor.u32 1.1754944e-38, %v6802
        %v6804 = vsel %vm6801, %v6803, %v6799
        %v6805 = vmul.f32 1.0, %v6804
        %v6806 = vrcp.pop %v6410
        %v6807 = vmul.f32 %v6410, %v6806
        %v6808 = vsub.f32 1.0, %v6807
        %v6809 = vmul.f32 %v6806, %v6808
        %v6810 = vadd.f32 %v6806, %v6809
        %vm6811 = vweird.f32 %v6410
        %vm6812 = vweird.f32 %v6806
        %vm6813 = vmor %vm6811, %vm6812
        %v6814 = vsel %vm6813, %v6806, %v6810
        %v6815 = vand.u32 2147483647, %v6410
        %vm6816 = vcmp.eq.f32.partialorder %v6815, 8.507059e+37
        %v6817 = vand.u32 %v6410, 2147483648
        %v6818 = vor.u32 1.1754944e-38, %v6817
        %v6819 = vsel %vm6816, %v6818, %v6814
        %v6820 = vmul.f32 1.0, %v6819
        %v6821 = vrcp.pop %v6411
        %v6822 = vmul.f32 %v6411, %v6821
        %v6823 = vsub.f32 1.0, %v6822
        %v6824 = vmul.f32 %v6821, %v6823
        %v6825 = vadd.f32 %v6821, %v6824
        %vm6826 = vweird.f32 %v6411
        %vm6827 = vweird.f32 %v6821
        %vm6828 = vmor %vm6826, %vm6827
        %v6829 = vsel %vm6828, %v6821, %v6825
        %v6830 = vand.u32 2147483647, %v6411
        %vm6831 = vcmp.eq.f32.partialorder %v6830, 8.507059e+37
        %v6832 = vand.u32 %v6411, 2147483648
        %v6833 = vor.u32 1.1754944e-38, %v6832
        %v6834 = vsel %vm6831, %v6833, %v6829
        %v6835 = vmul.f32 1.0, %v6834
        %v6836 = vrcp.pop %v6412
        %v6837 = vmul.f32 %v6412, %v6836
        %v6838 = vsub.f32 1.0, %v6837
        %v6839 = vmul.f32 %v6836, %v6838
        %v6840 = vadd.f32 %v6836, %v6839
        %vm6841 = vweird.f32 %v6412
        %vm6842 = vweird.f32 %v6836
        %vm6843 = vmor %vm6841, %vm6842
        %v6844 = vsel %vm6843, %v6836, %v6840
        %v6845 = vand.u32 2147483647, %v6412
        %vm6846 = vcmp.eq.f32.partialorder %v6845, 8.507059e+37
        %v6847 = vand.u32 %v6412, 2147483648
        %v6848 = vor.u32 1.1754944e-38, %v6847
        %v6849 = vsel %vm6846, %v6848, %v6844
        %v6850 = vmul.f32 1.0, %v6849
        %v6851 = vrcp.pop %v6413
        %v6852 = vmul.f32 %v6413, %v6851
        %v6853 = vsub.f32 1.0, %v6852
        %v6854 = vmul.f32 %v6851, %v6853
        %v6855 = vadd.f32 %v6851, %v6854
        %vm6856 = vweird.f32 %v6413
        %vm6857 = vweird.f32 %v6851
        %vm6858 = vmor %vm6856, %vm6857
        %v6859 = vsel %vm6858, %v6851, %v6855
        %v6860 = vand.u32 2147483647, %v6413
        %vm6861 = vcmp.eq.f32.partialorder %v6860, 8.507059e+37
        %v6862 = vand.u32 %v6413, 2147483648
        %v6863 = vor.u32 1.1754944e-38, %v6862
        %v6864 = vsel %vm6861, %v6863, %v6859
        %v6865 = vmul.f32 1.0, %v6864
        %v6866 = vrcp.pop %v6414
        %v6867 = vmul.f32 %v6414, %v6866
        %v6868 = vsub.f32 1.0, %v6867
        %v6869 = vmul.f32 %v6866, %v6868
        %v6870 = vadd.f32 %v6866, %v6869
        %vm6871 = vweird.f32 %v6414
        %vm6872 = vweird.f32 %v6866
        %vm6873 = vmor %vm6871, %vm6872
        %v6874 = vsel %vm6873, %v6866, %v6870
        %v6875 = vand.u32 2147483647, %v6414
        %vm6876 = vcmp.eq.f32.partialorder %v6875, 8.507059e+37
        %v6877 = vand.u32 %v6414, 2147483648
        %v6878 = vor.u32 1.1754944e-38, %v6877
        %v6879 = vsel %vm6876, %v6878, %v6874
        %v6880 = vmul.f32 1.0, %v6879
        %v6881 = vrcp.pop %v6415
        %v6882 = vmul.f32 %v6415, %v6881
        %v6883 = vsub.f32 1.0, %v6882
        %v6884 = vmul.f32 %v6881, %v6883
        %v6885 = vadd.f32 %v6881, %v6884
        %vm6886 = vweird.f32 %v6415
        %vm6887 = vweird.f32 %v6881
        %vm6888 = vmor %vm6886, %vm6887
        %v6889 = vsel %vm6888, %v6881, %v6885
        %v6890 = vand.u32 2147483647, %v6415
        %vm6891 = vcmp.eq.f32.partialorder %v6890, 8.507059e+37
        %v6892 = vand.u32 %v6415, 2147483648
        %v6893 = vor.u32 1.1754944e-38, %v6892
        %v6894 = vsel %vm6891, %v6893, %v6889
        %v6895 = vmul.f32 1.0, %v6894
        %v6896 = vsel %vm6287, 1, 0
        %vm6897 = vcmp.eq.s32.totalorder %v6896, 1
        %v6898 = vsel %vm6897, %v6430, %v6206
        %v6899 = vsel %vm6897, %v6445, %v6208
        %v6900 = vsel %vm6897, %v6460, %v6211
        %v6901 = vsel %vm6897, %v6475, %v6213
        %v6902 = vsel %vm6897, %v6490, %v6216
        %v6903 = vsel %vm6897, %v6505, %v6218
        %v6904 = vsel %vm6897, %v6520, %v6221
        %v6905 = vsel %vm6897, %v6535, %v6223
        %v6906 = vsel %vm6897, %v6550, %v6226
        %v6907 = vsel %vm6897, %v6565, %v6228
        %v6908 = vsel %vm6897, %v6580, %v6231
        %v6909 = vsel %vm6897, %v6595, %v6233
        %v6910 = vsel %vm6897, %v6610, %v6236
        %v6911 = vsel %vm6897, %v6625, %v6238
        %v6912 = vsel %vm6897, %v6640, %v6241
        %v6913 = vsel %vm6897, %v6655, %v6243
        %v6914 = vsel %vm6897, %v6670, %v6246
        %v6915 = vsel %vm6897, %v6685, %v6248
        %v6916 = vsel %vm6897, %v6700, %v6251
        %v6917 = vsel %vm6897, %v6715, %v6253
        %v6918 = vsel %vm6897, %v6730, %v6256
        %v6919 = vsel %vm6897, %v6745, %v6258
        %v6920 = vsel %vm6897, %v6760, %v6261
        %v6921 = vsel %vm6897, %v6775, %v6263
        %v6922 = vsel %vm6897, %v6790, %v6266
        %v6923 = vsel %vm6897, %v6805, %v6268
        %v6924 = vsel %vm6897, %v6820, %v6271
        %v6925 = vsel %vm6897, %v6835, %v6273
        %v6926 = vsel %vm6897, %v6850, %v6276
        %v6927 = vsel %vm6897, %v6865, %v6278
        %v6928 = vsel %vm6897, %v6880, %v6281
        %v6929 = vsel %vm6897, %v6895, %v6283
        %6930 = vst.msk [vmem:[%s450 + $0x8] sm:$0xff] %vm440, %v3038
        %6931 = vst.msk [vmem:[%s450 + $0x10] sm:$0xff] %vm440, %v3039
        %6932 = vst.msk [vmem:[%s450 + $0x28] sm:$0xff] %vm440, %v3040
        %6933 = vst.msk [vmem:[%s450 + $0x30] sm:$0xff] %vm440, %v3041
        %6934 = vst.msk [vmem:[%s450 + $0x48] sm:$0xff] %vm440, %v3042
        %6935 = vst.msk [vmem:[%s450 + $0x50] sm:$0xff] %vm440, %v3043
        %6936 = vst.msk [vmem:[%s450 + $0x68] sm:$0xff] %vm440, %v3044
        %6937 = vst.msk [vmem:[%s450 + $0x70] sm:$0xff] %vm440, %v3045
        %6938 = vst.msk [vmem:[%s450 + $0x88] sm:$0xff] %vm440, %v3046
        %6939 = vst.msk [vmem:[%s450 + $0x90] sm:$0xff] %vm440, %v3047
        %6940 = vst.msk [vmem:[%s450 + $0xa8] sm:$0xff] %vm440, %v3048
        %6941 = vst.msk [vmem:[%s450 + $0xb0] sm:$0xff] %vm440, %v3049
        %6942 = vst.msk [vmem:[%s450 + $0xc8] sm:$0xff] %vm440, %v3050
        %6943 = vst.msk [vmem:[%s450 + $0xd0] sm:$0xff] %vm440, %v3051
        %6944 = vst.msk [vmem:[%s450 + $0xe8] sm:$0xff] %vm440, %v3052
        %6945 = vst.msk [vmem:[%s450 + $0xf0] sm:$0xff] %vm440, %v3053
        %6946 = vst.msk [vmem:[%s450 + $0x108] sm:$0xff] %vm440, %v3054
        %6947 = vst.msk [vmem:[%s450 + $0x110] sm:$0xff] %vm440, %v3055
        %6948 = vst.msk [vmem:[%s450 + $0x128] sm:$0xff] %vm440, %v3056
        %6949 = vst.msk [vmem:[%s450 + $0x130] sm:$0xff] %vm440, %v3057
        %6950 = vst.msk [vmem:[%s450 + $0x148] sm:$0xff] %vm440, %v3058
        %6951 = vst.msk [vmem:[%s450 + $0x150] sm:$0xff] %vm440, %v3059
        %6952 = vst.msk [vmem:[%s450 + $0x168] sm:$0xff] %vm440, %v3060
        %6953 = vst.msk [vmem:[%s450 + $0x170] sm:$0xff] %vm440, %v3061
        %6954 = vst.msk [vmem:[%s450 + $0x188] sm:$0xff] %vm440, %v3062
        %6955 = vst.msk [vmem:[%s450 + $0x190] sm:$0xff] %vm440, %v3063
        %6956 = vst.msk [vmem:[%s450 + $0x1a8] sm:$0xff] %vm440, %v3064
        %6957 = vst.msk [vmem:[%s450 + $0x1b0] sm:$0xff] %vm440, %v3065
        %6958 = vst.msk [vmem:[%s450 + $0x1c8] sm:$0xff] %vm440, %v3066
        %6959 = vst.msk [vmem:[%s450 + $0x1d0] sm:$0xff] %vm440, %v3067
        %6960 = vst.msk [vmem:[%s450 + $0x1e8] sm:$0xff] %vm440, %v3068
        %6961 = vst.msk [vmem:[%s450 + $0x1f0] sm:$0xff] %vm440, %v3069
        %v6962 = vld [vmem:[#allocation2 + $0x7] sm:$0xff]
        %v6963 = vld [vmem:[#allocation2 + $0xf] sm:$0xff]
        %v6964 = vld [vmem:[#allocation2 + $0x27] sm:$0xff]
        %v6965 = vld [vmem:[#allocation2 + $0x2f] sm:$0xff]
        %v6966 = vld [vmem:[#allocation2 + $0x47] sm:$0xff]
        %v6967 = vld [vmem:[#allocation2 + $0x4f] sm:$0xff]
        %v6968 = vld [vmem:[#allocation2 + $0x67] sm:$0xff]
        %v6969 = vld [vmem:[#allocation2 + $0x6f] sm:$0xff]
        %v6970 = vld [vmem:[#allocation2 + $0x87] sm:$0xff]
        %v6971 = vld [vmem:[#allocation2 + $0x8f] sm:$0xff]
        %v6972 = vld [vmem:[#allocation2 + $0xa7] sm:$0xff]
        %v6973 = vld [vmem:[#allocation2 + $0xaf] sm:$0xff]
        %v6974 = vld [vmem:[#allocation2 + $0xc7] sm:$0xff]
        %v6975 = vld [vmem:[#allocation2 + $0xcf] sm:$0xff]
        %v6976 = vld [vmem:[#allocation2 + $0xe7] sm:$0xff]
        %v6977 = vld [vmem:[#allocation2 + $0xef] sm:$0xff]
        %v6978 = vld [vmem:[#allocation2 + $0x107] sm:$0xff]
        %v6979 = vld [vmem:[#allocation2 + $0x10f] sm:$0xff]
        %v6980 = vld [vmem:[#allocation2 + $0x127] sm:$0xff]
        %v6981 = vld [vmem:[#allocation2 + $0x12f] sm:$0xff]
        %v6982 = vld [vmem:[#allocation2 + $0x147] sm:$0xff]
        %v6983 = vld [vmem:[#allocation2 + $0x14f] sm:$0xff]
        %v6984 = vld [vmem:[#allocation2 + $0x167] sm:$0xff]
        %v6985 = vld [vmem:[#allocation2 + $0x16f] sm:$0xff]
        %v6986 = vld [vmem:[#allocation2 + $0x187] sm:$0xff]
        %v6987 = vld [vmem:[#allocation2 + $0x18f] sm:$0xff]
        %v6988 = vld [vmem:[#allocation2 + $0x1a7] sm:$0xff]
        %v6989 = vld [vmem:[#allocation2 + $0x1af] sm:$0xff]
        %v6990 = vld [vmem:[#allocation2 + $0x1c7] sm:$0xff]
        %v6991 = vld [vmem:[#allocation2 + $0x1cf] sm:$0xff]
        %v6992 = vld [vmem:[#allocation2 + $0x1e7] sm:$0xff]
        %v6993 = vld [vmem:[#allocation2 + $0x1ef] sm:$0xff]
        %v6994 = vld [vmem:[#allocation2 + $0x207] sm:$0xff]
        %v6995 = vld [vmem:[#allocation2 + $0x20f] sm:$0xff]
        %v6996 = vld [vmem:[#allocation2 + $0x227] sm:$0xff]
        %v6997 = vld [vmem:[#allocation2 + $0x22f] sm:$0xff]
        %v6998 = vpack.c.bf16 %v6962, %v6962
        %v6999 = vpack.c.bf16 %v6963, %v6963
        %v7000 = vpack.c.bf16 %v6964, %v6964
        %v7001 = vpack.c.bf16 %v6965, %v6965
        %v7002 = vpack.c.bf16 %v6966, %v6966
        %v7003 = vpack.c.bf16 %v6967, %v6967
        %v7004 = vpack.c.bf16 %v6968, %v6968
        %v7005 = vpack.c.bf16 %v6969, %v6969
        %v7006 = vpack.c.bf16 %v6970, %v6970
        %v7007 = vpack.c.bf16 %v6971, %v6971
        %v7008 = vpack.c.bf16 %v6972, %v6972
        %v7009 = vpack.c.bf16 %v6973, %v6973
        %v7010 = vpack.c.bf16 %v6974, %v6974
        %v7011 = vpack.c.bf16 %v6975, %v6975
        %v7012 = vpack.c.bf16 %v6976, %v6976
        %v7013 = vpack.c.bf16 %v6977, %v6977
        %v7014 = vpack.c.bf16 %v6978, %v6978
        %v7015 = vpack.c.bf16 %v6979, %v6979
        %v7016 = vpack.c.bf16 %v6980, %v6980
        %v7017 = vpack.c.bf16 %v6981, %v6981
        %v7018 = vpack.c.bf16 %v6982, %v6982
        %v7019 = vpack.c.bf16 %v6983, %v6983
        %v7020 = vpack.c.bf16 %v6984, %v6984
        %v7021 = vpack.c.bf16 %v6985, %v6985
        %v7022 = vpack.c.bf16 %v6986, %v6986
        %v7023 = vpack.c.bf16 %v6987, %v6987
        %v7024 = vpack.c.bf16 %v6988, %v6988
        %v7025 = vpack.c.bf16 %v6989, %v6989
        %v7026 = vpack.c.bf16 %v6990, %v6990
        %v7027 = vpack.c.bf16 %v6991, %v6991
        %v7028 = vpack.c.bf16 %v6992, %v6992
        %v7029 = vpack.c.bf16 %v6993, %v6993
        %v7030 = vpack.c.bf16 %v6994, %v6994
        %v7031 = vpack.c.bf16 %v6995, %v6995
        %v7032 = vpack.c.bf16 %v6996, %v6996
        %v7033 = vpack.c.bf16 %v6997, %v6997
        %v7034 = vld [vmem:[#allocation2 + $0x8] sm:$0xff]
        %v7035 = vld [vmem:[#allocation2 + $0x10] sm:$0xff]
        %v7036 = vld [vmem:[#allocation2 + $0x28] sm:$0xff]
        %v7037 = vld [vmem:[#allocation2 + $0x30] sm:$0xff]
        %v7038 = vld [vmem:[#allocation2 + $0x48] sm:$0xff]
        %v7039 = vld [vmem:[#allocation2 + $0x50] sm:$0xff]
        %v7040 = vld [vmem:[#allocation2 + $0x68] sm:$0xff]
        %v7041 = vld [vmem:[#allocation2 + $0x70] sm:$0xff]
        %v7042 = vld [vmem:[#allocation2 + $0x88] sm:$0xff]
        %v7043 = vld [vmem:[#allocation2 + $0x90] sm:$0xff]
        %v7044 = vld [vmem:[#allocation2 + $0xa8] sm:$0xff]
        %v7045 = vld [vmem:[#allocation2 + $0xb0] sm:$0xff]
        %v7046 = vld [vmem:[#allocation2 + $0xc8] sm:$0xff]
        %v7047 = vld [vmem:[#allocation2 + $0xd0] sm:$0xff]
        %v7048 = vld [vmem:[#allocation2 + $0xe8] sm:$0xff]
        %v7049 = vld [vmem:[#allocation2 + $0xf0] sm:$0xff]
        %v7050 = vld [vmem:[#allocation2 + $0x108] sm:$0xff]
        %v7051 = vld [vmem:[#allocation2 + $0x110] sm:$0xff]
        %v7052 = vld [vmem:[#allocation2 + $0x128] sm:$0xff]
        %v7053 = vld [vmem:[#allocation2 + $0x130] sm:$0xff]
        %v7054 = vld [vmem:[#allocation2 + $0x148] sm:$0xff]
        %v7055 = vld [vmem:[#allocation2 + $0x150] sm:$0xff]
        %v7056 = vld [vmem:[#allocation2 + $0x168] sm:$0xff]
        %v7057 = vld [vmem:[#allocation2 + $0x170] sm:$0xff]
        %v7058 = vld [vmem:[#allocation2 + $0x188] sm:$0xff]
        %v7059 = vld [vmem:[#allocation2 + $0x190] sm:$0xff]
        %v7060 = vld [vmem:[#allocation2 + $0x1a8] sm:$0xff]
        %v7061 = vld [vmem:[#allocation2 + $0x1b0] sm:$0xff]
        %v7062 = vld [vmem:[#allocation2 + $0x1c8] sm:$0xff]
        %v7063 = vld [vmem:[#allocation2 + $0x1d0] sm:$0xff]
        %v7064 = vld [vmem:[#allocation2 + $0x1e8] sm:$0xff]
        %v7065 = vld [vmem:[#allocation2 + $0x1f0] sm:$0xff]
        %v7066 = vld [vmem:[#allocation2 + $0x208] sm:$0xff]
        %v7067 = vld [vmem:[#allocation2 + $0x210] sm:$0xff]
        %v7068 = vld [vmem:[#allocation2 + $0x228] sm:$0xff]
        %v7069 = vld [vmem:[#allocation2 + $0x230] sm:$0xff]
        %v7070 = vpack.c.bf16 %v7034, %v7034
        %v7071 = vpack.c.bf16 %v7035, %v7035
        %v7072 = vpack.c.bf16 %v7036, %v7036
        %v7073 = vpack.c.bf16 %v7037, %v7037
        %v7074 = vpack.c.bf16 %v7038, %v7038
        %v7075 = vpack.c.bf16 %v7039, %v7039
        %v7076 = vpack.c.bf16 %v7040, %v7040
        %v7077 = vpack.c.bf16 %v7041, %v7041
        %v7078 = vpack.c.bf16 %v7042, %v7042
        %v7079 = vpack.c.bf16 %v7043, %v7043
        %v7080 = vpack.c.bf16 %v7044, %v7044
        %v7081 = vpack.c.bf16 %v7045, %v7045
        %v7082 = vpack.c.bf16 %v7046, %v7046
        %v7083 = vpack.c.bf16 %v7047, %v7047
        %v7084 = vpack.c.bf16 %v7048, %v7048
        %v7085 = vpack.c.bf16 %v7049, %v7049
        %v7086 = vpack.c.bf16 %v7050, %v7050
        %v7087 = vpack.c.bf16 %v7051, %v7051
        %v7088 = vpack.c.bf16 %v7052, %v7052
        %v7089 = vpack.c.bf16 %v7053, %v7053
        %v7090 = vpack.c.bf16 %v7054, %v7054
        %v7091 = vpack.c.bf16 %v7055, %v7055
        %v7092 = vpack.c.bf16 %v7056, %v7056
        %v7093 = vpack.c.bf16 %v7057, %v7057
        %v7094 = vpack.c.bf16 %v7058, %v7058
        %v7095 = vpack.c.bf16 %v7059, %v7059
        %v7096 = vpack.c.bf16 %v7060, %v7060
        %v7097 = vpack.c.bf16 %v7061, %v7061
        %v7098 = vpack.c.bf16 %v7062, %v7062
        %v7099 = vpack.c.bf16 %v7063, %v7063
        %v7100 = vpack.c.bf16 %v7064, %v7064
        %v7101 = vpack.c.bf16 %v7065, %v7065
        %v7102 = vpack.c.bf16 %v7066, %v7066
        %v7103 = vpack.c.bf16 %v7067, %v7067
        %v7104 = vpack.c.bf16 %v7068, %v7068
        %v7105 = vpack.c.bf16 %v7069, %v7069
        %v7106 = vld [vmem:[#allocation2 + $0x9] sm:$0xff]
        %v7107 = vld [vmem:[#allocation2 + $0x11] sm:$0xff]
        %v7108 = vld [vmem:[#allocation2 + $0x29] sm:$0xff]
        %v7109 = vld [vmem:[#allocation2 + $0x31] sm:$0xff]
        %v7110 = vld [vmem:[#allocation2 + $0x49] sm:$0xff]
        %v7111 = vld [vmem:[#allocation2 + $0x51] sm:$0xff]
        %v7112 = vld [vmem:[#allocation2 + $0x69] sm:$0xff]
        %v7113 = vld [vmem:[#allocation2 + $0x71] sm:$0xff]
        %v7114 = vld [vmem:[#allocation2 + $0x89] sm:$0xff]
        %v7115 = vld [vmem:[#allocation2 + $0x91] sm:$0xff]
        %v7116 = vld [vmem:[#allocation2 + $0xa9] sm:$0xff]
        %v7117 = vld [vmem:[#allocation2 + $0xb1] sm:$0xff]
        %v7118 = vld [vmem:[#allocation2 + $0xc9] sm:$0xff]
        %v7119 = vld [vmem:[#allocation2 + $0xd1] sm:$0xff]
        %v7120 = vld [vmem:[#allocation2 + $0xe9] sm:$0xff]
        %v7121 = vld [vmem:[#allocation2 + $0xf1] sm:$0xff]
        %v7122 = vld [vmem:[#allocation2 + $0x109] sm:$0xff]
        %v7123 = vld [vmem:[#allocation2 + $0x111] sm:$0xff]
        %v7124 = vld [vmem:[#allocation2 + $0x129] sm:$0xff]
        %v7125 = vld [vmem:[#allocation2 + $0x131] sm:$0xff]
        %v7126 = vld [vmem:[#allocation2 + $0x149] sm:$0xff]
        %v7127 = vld [vmem:[#allocation2 + $0x151] sm:$0xff]
        %v7128 = vld [vmem:[#allocation2 + $0x169] sm:$0xff]
        %v7129 = vld [vmem:[#allocation2 + $0x171] sm:$0xff]
        %v7130 = vld [vmem:[#allocation2 + $0x189] sm:$0xff]
        %v7131 = vld [vmem:[#allocation2 + $0x191] sm:$0xff]
        %v7132 = vld [vmem:[#allocation2 + $0x1a9] sm:$0xff]
        %v7133 = vld [vmem:[#allocation2 + $0x1b1] sm:$0xff]
        %v7134 = vld [vmem:[#allocation2 + $0x1c9] sm:$0xff]
        %v7135 = vld [vmem:[#allocation2 + $0x1d1] sm:$0xff]
        %v7136 = vld [vmem:[#allocation2 + $0x1e9] sm:$0xff]
        %v7137 = vld [vmem:[#allocation2 + $0x1f1] sm:$0xff]
        %v7138 = vld [vmem:[#allocation2 + $0x209] sm:$0xff]
        %v7139 = vld [vmem:[#allocation2 + $0x211] sm:$0xff]
        %v7140 = vld [vmem:[#allocation2 + $0x229] sm:$0xff]
        %v7141 = vld [vmem:[#allocation2 + $0x231] sm:$0xff]
        %v7142 = vpack.c.bf16 %v7106, %v7106
        %v7143 = vpack.c.bf16 %v7107, %v7107
        %v7144 = vpack.c.bf16 %v7108, %v7108
        %v7145 = vpack.c.bf16 %v7109, %v7109
        %v7146 = vpack.c.bf16 %v7110, %v7110
        %v7147 = vpack.c.bf16 %v7111, %v7111
        %v7148 = vpack.c.bf16 %v7112, %v7112
        %v7149 = vpack.c.bf16 %v7113, %v7113
        %v7150 = vpack.c.bf16 %v7114, %v7114
        %v7151 = vpack.c.bf16 %v7115, %v7115
        %v7152 = vpack.c.bf16 %v7116, %v7116
        %v7153 = vpack.c.bf16 %v7117, %v7117
        %v7154 = vpack.c.bf16 %v7118, %v7118
        %v7155 = vpack.c.bf16 %v7119, %v7119
        %v7156 = vpack.c.bf16 %v7120, %v7120
        %v7157 = vpack.c.bf16 %v7121, %v7121
        %v7158 = vpack.c.bf16 %v7122, %v7122
        %v7159 = vpack.c.bf16 %v7123, %v7123
        %v7160 = vpack.c.bf16 %v7124, %v7124
        %v7161 = vpack.c.bf16 %v7125, %v7125
        %v7162 = vpack.c.bf16 %v7126, %v7126
        %v7163 = vpack.c.bf16 %v7127, %v7127
        %v7164 = vpack.c.bf16 %v7128, %v7128
        %v7165 = vpack.c.bf16 %v7129, %v7129
        %v7166 = vpack.c.bf16 %v7130, %v7130
        %v7167 = vpack.c.bf16 %v7131, %v7131
        %v7168 = vpack.c.bf16 %v7132, %v7132
        %v7169 = vpack.c.bf16 %v7133, %v7133
        %v7170 = vpack.c.bf16 %v7134, %v7134
        %v7171 = vpack.c.bf16 %v7135, %v7135
        %v7172 = vpack.c.bf16 %v7136, %v7136
        %v7173 = vpack.c.bf16 %v7137, %v7137
        %v7174 = vpack.c.bf16 %v7138, %v7138
        %v7175 = vpack.c.bf16 %v7139, %v7139
        %v7176 = vpack.c.bf16 %v7140, %v7140
        %v7177 = vpack.c.bf16 %v7141, %v7141
        %v7210 = vunpack.c.l.b16 %v6998
        %v7211 = vunpack.c.l.b16 %v6999
        %v7212 = vunpack.c.l.b16 %v7000
        %v7213 = vunpack.c.l.b16 %v7001
        %v7214 = vunpack.c.l.b16 %v7002
        %v7215 = vunpack.c.l.b16 %v7003
        %v7216 = vunpack.c.l.b16 %v7004
        %v7217 = vunpack.c.l.b16 %v7005
        %v7218 = vunpack.c.l.b16 %v7006
        %v7219 = vunpack.c.l.b16 %v7007
        %v7220 = vunpack.c.l.b16 %v7008
        %v7221 = vunpack.c.l.b16 %v7009
        %v7222 = vunpack.c.l.b16 %v7010
        %v7223 = vunpack.c.l.b16 %v7011
        %v7224 = vunpack.c.l.b16 %v7012
        %v7225 = vunpack.c.l.b16 %v7013
        %v7226 = vunpack.c.l.b16 %v7014
        %v7227 = vunpack.c.l.b16 %v7015
        %v7228 = vunpack.c.l.b16 %v7016
        %v7229 = vunpack.c.l.b16 %v7017
        %v7230 = vunpack.c.l.b16 %v7018
        %v7231 = vunpack.c.l.b16 %v7019
        %v7232 = vunpack.c.l.b16 %v7020
        %v7233 = vunpack.c.l.b16 %v7021
        %v7234 = vunpack.c.l.b16 %v7022
        %v7235 = vunpack.c.l.b16 %v7023
        %v7236 = vunpack.c.l.b16 %v7024
        %v7237 = vunpack.c.l.b16 %v7025
        %v7238 = vunpack.c.l.b16 %v7026
        %v7239 = vunpack.c.l.b16 %v7027
        %v7240 = vunpack.c.l.b16 %v7028
        %v7241 = vunpack.c.l.b16 %v7029
        %v7242 = vpack.c.b16 %v7211, %v7210
        %v7243 = vpack.c.b16 %v7213, %v7212
        %v7244 = vpack.c.b16 %v7215, %v7214
        %v7245 = vpack.c.b16 %v7217, %v7216
        %v7246 = vpack.c.b16 %v7219, %v7218
        %v7247 = vpack.c.b16 %v7221, %v7220
        %v7248 = vpack.c.b16 %v7223, %v7222
        %v7249 = vpack.c.b16 %v7225, %v7224
        %v7250 = vpack.c.b16 %v7227, %v7226
        %v7251 = vpack.c.b16 %v7229, %v7228
        %v7252 = vpack.c.b16 %v7231, %v7230
        %v7253 = vpack.c.b16 %v7233, %v7232
        %v7254 = vpack.c.b16 %v7235, %v7234
        %v7255 = vpack.c.b16 %v7237, %v7236
        %v7256 = vpack.c.b16 %v7239, %v7238
        %v7257 = vpack.c.b16 %v7241, %v7240
        %v7290 = vunpack.c.l.b16 %v7070
        %v7291 = vunpack.c.l.b16 %v7071
        %v7292 = vunpack.c.l.b16 %v7072
        %v7293 = vunpack.c.l.b16 %v7073
        %v7294 = vunpack.c.l.b16 %v7074
        %v7295 = vunpack.c.l.b16 %v7075
        %v7296 = vunpack.c.l.b16 %v7076
        %v7297 = vunpack.c.l.b16 %v7077
        %v7298 = vunpack.c.l.b16 %v7078
        %v7299 = vunpack.c.l.b16 %v7079
        %v7300 = vunpack.c.l.b16 %v7080
        %v7301 = vunpack.c.l.b16 %v7081
        %v7302 = vunpack.c.l.b16 %v7082
        %v7303 = vunpack.c.l.b16 %v7083
        %v7304 = vunpack.c.l.b16 %v7084
        %v7305 = vunpack.c.l.b16 %v7085
        %v7306 = vunpack.c.l.b16 %v7086
        %v7307 = vunpack.c.l.b16 %v7087
        %v7308 = vunpack.c.l.b16 %v7088
        %v7309 = vunpack.c.l.b16 %v7089
        %v7310 = vunpack.c.l.b16 %v7090
        %v7311 = vunpack.c.l.b16 %v7091
        %v7312 = vunpack.c.l.b16 %v7092
        %v7313 = vunpack.c.l.b16 %v7093
        %v7314 = vunpack.c.l.b16 %v7094
        %v7315 = vunpack.c.l.b16 %v7095
        %v7316 = vunpack.c.l.b16 %v7096
        %v7317 = vunpack.c.l.b16 %v7097
        %v7318 = vunpack.c.l.b16 %v7098
        %v7319 = vunpack.c.l.b16 %v7099
        %v7320 = vunpack.c.l.b16 %v7100
        %v7321 = vunpack.c.l.b16 %v7101
        %v7322 = vpack.c.b16 %v7291, %v7290
        %v7323 = vpack.c.b16 %v7293, %v7292
        %v7324 = vpack.c.b16 %v7295, %v7294
        %v7325 = vpack.c.b16 %v7297, %v7296
        %v7326 = vpack.c.b16 %v7299, %v7298
        %v7327 = vpack.c.b16 %v7301, %v7300
        %v7328 = vpack.c.b16 %v7303, %v7302
        %v7329 = vpack.c.b16 %v7305, %v7304
        %v7330 = vpack.c.b16 %v7307, %v7306
        %v7331 = vpack.c.b16 %v7309, %v7308
        %v7332 = vpack.c.b16 %v7311, %v7310
        %v7333 = vpack.c.b16 %v7313, %v7312
        %v7334 = vpack.c.b16 %v7315, %v7314
        %v7335 = vpack.c.b16 %v7317, %v7316
        %v7336 = vpack.c.b16 %v7319, %v7318
        %v7337 = vpack.c.b16 %v7321, %v7320
        %7338 = vrot.lane.b32.xlu0 %v7322, 32
        %v7339 = vpop.permute.xlu0 %7338
        %7340 = vrot.lane.b32.xlu0 %v7323, 32
        %v7341 = vpop.permute.xlu0 %7340
        %7342 = vrot.lane.b32.xlu0 %v7324, 32
        %v7343 = vpop.permute.xlu0 %7342
        %7344 = vrot.lane.b32.xlu0 %v7325, 32
        %v7345 = vpop.permute.xlu0 %7344
        %7346 = vrot.lane.b32.xlu0 %v7326, 32
        %v7347 = vpop.permute.xlu0 %7346
        %7348 = vrot.lane.b32.xlu0 %v7327, 32
        %v7349 = vpop.permute.xlu0 %7348
        %7350 = vrot.lane.b32.xlu0 %v7328, 32
        %v7351 = vpop.permute.xlu0 %7350
        %7352 = vrot.lane.b32.xlu0 %v7329, 32
        %v7353 = vpop.permute.xlu0 %7352
        %7354 = vrot.lane.b32.xlu0 %v7330, 32
        %v7355 = vpop.permute.xlu0 %7354
        %7356 = vrot.lane.b32.xlu0 %v7331, 32
        %v7357 = vpop.permute.xlu0 %7356
        %7358 = vrot.lane.b32.xlu0 %v7332, 32
        %v7359 = vpop.permute.xlu0 %7358
        %7360 = vrot.lane.b32.xlu0 %v7333, 32
        %v7361 = vpop.permute.xlu0 %7360
        %7362 = vrot.lane.b32.xlu0 %v7334, 32
        %v7363 = vpop.permute.xlu0 %7362
        %7364 = vrot.lane.b32.xlu0 %v7335, 32
        %v7365 = vpop.permute.xlu0 %7364
        %7366 = vrot.lane.b32.xlu0 %v7336, 32
        %v7367 = vpop.permute.xlu0 %7366
        %7368 = vrot.lane.b32.xlu0 %v7337, 32
        %v7369 = vpop.permute.xlu0 %7368
        %v7402 = vunpack.c.l.b16 %v7142
        %v7403 = vunpack.c.l.b16 %v7143
        %v7404 = vunpack.c.l.b16 %v7144
        %v7405 = vunpack.c.l.b16 %v7145
        %v7406 = vunpack.c.l.b16 %v7146
        %v7407 = vunpack.c.l.b16 %v7147
        %v7408 = vunpack.c.l.b16 %v7148
        %v7409 = vunpack.c.l.b16 %v7149
        %v7410 = vunpack.c.l.b16 %v7150
        %v7411 = vunpack.c.l.b16 %v7151
        %v7412 = vunpack.c.l.b16 %v7152
        %v7413 = vunpack.c.l.b16 %v7153
        %v7414 = vunpack.c.l.b16 %v7154
        %v7415 = vunpack.c.l.b16 %v7155
        %v7416 = vunpack.c.l.b16 %v7156
        %v7417 = vunpack.c.l.b16 %v7157
        %v7418 = vunpack.c.l.b16 %v7158
        %v7419 = vunpack.c.l.b16 %v7159
        %v7420 = vunpack.c.l.b16 %v7160
        %v7421 = vunpack.c.l.b16 %v7161
        %v7422 = vunpack.c.l.b16 %v7162
        %v7423 = vunpack.c.l.b16 %v7163
        %v7424 = vunpack.c.l.b16 %v7164
        %v7425 = vunpack.c.l.b16 %v7165
        %v7426 = vunpack.c.l.b16 %v7166
        %v7427 = vunpack.c.l.b16 %v7167
        %v7428 = vunpack.c.l.b16 %v7168
        %v7429 = vunpack.c.l.b16 %v7169
        %v7430 = vunpack.c.l.b16 %v7170
        %v7431 = vunpack.c.l.b16 %v7171
        %v7432 = vunpack.c.l.b16 %v7172
        %v7433 = vunpack.c.l.b16 %v7173
        %v7434 = vpack.c.b16 %v7403, %v7402
        %v7435 = vpack.c.b16 %v7405, %v7404
        %v7436 = vpack.c.b16 %v7407, %v7406
        %v7437 = vpack.c.b16 %v7409, %v7408
        %v7438 = vpack.c.b16 %v7411, %v7410
        %v7439 = vpack.c.b16 %v7413, %v7412
        %v7440 = vpack.c.b16 %v7415, %v7414
        %v7441 = vpack.c.b16 %v7417, %v7416
        %v7442 = vpack.c.b16 %v7419, %v7418
        %v7443 = vpack.c.b16 %v7421, %v7420
        %v7444 = vpack.c.b16 %v7423, %v7422
        %v7445 = vpack.c.b16 %v7425, %v7424
        %v7446 = vpack.c.b16 %v7427, %v7426
        %v7447 = vpack.c.b16 %v7429, %v7428
        %v7448 = vpack.c.b16 %v7431, %v7430
        %v7449 = vpack.c.b16 %v7433, %v7432
        %7450 = vrot.lane.b32.xlu0 %v7434, 64
        %v7451 = vpop.permute.xlu0 %7450
        %7452 = vrot.lane.b32.xlu0 %v7435, 64
        %v7453 = vpop.permute.xlu0 %7452
        %7454 = vrot.lane.b32.xlu0 %v7436, 64
        %v7455 = vpop.permute.xlu0 %7454
        %7456 = vrot.lane.b32.xlu0 %v7437, 64
        %v7457 = vpop.permute.xlu0 %7456
        %7458 = vrot.lane.b32.xlu0 %v7438, 64
        %v7459 = vpop.permute.xlu0 %7458
        %7460 = vrot.lane.b32.xlu0 %v7439, 64
        %v7461 = vpop.permute.xlu0 %7460
        %7462 = vrot.lane.b32.xlu0 %v7440, 64
        %v7463 = vpop.permute.xlu0 %7462
        %7464 = vrot.lane.b32.xlu0 %v7441, 64
        %v7465 = vpop.permute.xlu0 %7464
        %7466 = vrot.lane.b32.xlu0 %v7442, 64
        %v7467 = vpop.permute.xlu0 %7466
        %7468 = vrot.lane.b32.xlu0 %v7443, 64
        %v7469 = vpop.permute.xlu0 %7468
        %7470 = vrot.lane.b32.xlu0 %v7444, 64
        %v7471 = vpop.permute.xlu0 %7470
        %7472 = vrot.lane.b32.xlu0 %v7445, 64
        %v7473 = vpop.permute.xlu0 %7472
        %7474 = vrot.lane.b32.xlu0 %v7446, 64
        %v7475 = vpop.permute.xlu0 %7474
        %7476 = vrot.lane.b32.xlu0 %v7447, 64
        %v7477 = vpop.permute.xlu0 %7476
        %7478 = vrot.lane.b32.xlu0 %v7448, 64
        %v7479 = vpop.permute.xlu0 %7478
        %7480 = vrot.lane.b32.xlu0 %v7449, 64
        %v7481 = vpop.permute.xlu0 %7480
        %v7484 = vunpack.c.l.b16 %v7030
        %v7485 = vunpack.c.l.b16 %v7031
        %v7486 = vpack.c.b16 %v7485, %v7484
        %7487 = vrot.lane.b32.xlu0 %v7243, 96
        %v7488 = vpop.permute.xlu0 %7487
        %7489 = vrot.lane.b32.xlu0 %v7244, 96
        %v7490 = vpop.permute.xlu0 %7489
        %7491 = vrot.lane.b32.xlu0 %v7245, 96
        %v7492 = vpop.permute.xlu0 %7491
        %7493 = vrot.lane.b32.xlu0 %v7246, 96
        %v7494 = vpop.permute.xlu0 %7493
        %7495 = vrot.lane.b32.xlu0 %v7247, 96
        %v7496 = vpop.permute.xlu0 %7495
        %7497 = vrot.lane.b32.xlu0 %v7248, 96
        %v7498 = vpop.permute.xlu0 %7497
        %7499 = vrot.lane.b32.xlu0 %v7249, 96
        %v7500 = vpop.permute.xlu0 %7499
        %7501 = vrot.lane.b32.xlu0 %v7250, 96
        %v7502 = vpop.permute.xlu0 %7501
        %7503 = vrot.lane.b32.xlu0 %v7251, 96
        %v7504 = vpop.permute.xlu0 %7503
        %7505 = vrot.lane.b32.xlu0 %v7252, 96
        %v7506 = vpop.permute.xlu0 %7505
        %7507 = vrot.lane.b32.xlu0 %v7253, 96
        %v7508 = vpop.permute.xlu0 %7507
        %7509 = vrot.lane.b32.xlu0 %v7254, 96
        %v7510 = vpop.permute.xlu0 %7509
        %7511 = vrot.lane.b32.xlu0 %v7255, 96
        %v7512 = vpop.permute.xlu0 %7511
        %7513 = vrot.lane.b32.xlu0 %v7256, 96
        %v7514 = vpop.permute.xlu0 %7513
        %7515 = vrot.lane.b32.xlu0 %v7257, 96
        %v7516 = vpop.permute.xlu0 %7515
        %7517 = vrot.lane.b32.xlu0 %v7486, 96
        %v7518 = vpop.permute.xlu0 %7517
        %v7521 = vunpack.c.l.b16 %v7102
        %v7522 = vunpack.c.l.b16 %v7103
        %v7523 = vpack.c.b16 %v7522, %v7521
        %v7526 = vunpack.c.l.b16 %v7174
        %v7527 = vunpack.c.l.b16 %v7175
        %v7528 = vpack.c.b16 %v7527, %v7526
        %7529 = vrot.lane.b32.xlu0 %v7435, 32
        %v7530 = vpop.permute.xlu0 %7529
        %7531 = vrot.lane.b32.xlu0 %v7436, 32
        %v7532 = vpop.permute.xlu0 %7531
        %7533 = vrot.lane.b32.xlu0 %v7437, 32
        %v7534 = vpop.permute.xlu0 %7533
        %7535 = vrot.lane.b32.xlu0 %v7438, 32
        %v7536 = vpop.permute.xlu0 %7535
        %7537 = vrot.lane.b32.xlu0 %v7439, 32
        %v7538 = vpop.permute.xlu0 %7537
        %7539 = vrot.lane.b32.xlu0 %v7440, 32
        %v7540 = vpop.permute.xlu0 %7539
        %7541 = vrot.lane.b32.xlu0 %v7441, 32
        %v7542 = vpop.permute.xlu0 %7541
        %7543 = vrot.lane.b32.xlu0 %v7442, 32
        %v7544 = vpop.permute.xlu0 %7543
        %7545 = vrot.lane.b32.xlu0 %v7443, 32
        %v7546 = vpop.permute.xlu0 %7545
        %7547 = vrot.lane.b32.xlu0 %v7444, 32
        %v7548 = vpop.permute.xlu0 %7547
        %7549 = vrot.lane.b32.xlu0 %v7445, 32
        %v7550 = vpop.permute.xlu0 %7549
        %7551 = vrot.lane.b32.xlu0 %v7446, 32
        %v7552 = vpop.permute.xlu0 %7551
        %7553 = vrot.lane.b32.xlu0 %v7447, 32
        %v7554 = vpop.permute.xlu0 %7553
        %7555 = vrot.lane.b32.xlu0 %v7448, 32
        %v7556 = vpop.permute.xlu0 %7555
        %7557 = vrot.lane.b32.xlu0 %v7449, 32
        %v7558 = vpop.permute.xlu0 %7557
        %7559 = vrot.lane.b32.xlu0 %v7528, 32
        %v7560 = vpop.permute.xlu0 %7559
        %v7563 = vunpack.c.l.b16 %v7032
        %v7564 = vunpack.c.l.b16 %v7033
        %v7565 = vpack.c.b16 %v7564, %v7563
        %7566 = vrot.lane.b32.xlu0 %v7244, 64
        %v7567 = vpop.permute.xlu0 %7566
        %7568 = vrot.lane.b32.xlu0 %v7245, 64
        %v7569 = vpop.permute.xlu0 %7568
        %7570 = vrot.lane.b32.xlu0 %v7246, 64
        %v7571 = vpop.permute.xlu0 %7570
        %7572 = vrot.lane.b32.xlu0 %v7247, 64
        %v7573 = vpop.permute.xlu0 %7572
        %7574 = vrot.lane.b32.xlu0 %v7248, 64
        %v7575 = vpop.permute.xlu0 %7574
        %7576 = vrot.lane.b32.xlu0 %v7249, 64
        %v7577 = vpop.permute.xlu0 %7576
        %7578 = vrot.lane.b32.xlu0 %v7250, 64
        %v7579 = vpop.permute.xlu0 %7578
        %7580 = vrot.lane.b32.xlu0 %v7251, 64
        %v7581 = vpop.permute.xlu0 %7580
        %7582 = vrot.lane.b32.xlu0 %v7252, 64
        %v7583 = vpop.permute.xlu0 %7582
        %7584 = vrot.lane.b32.xlu0 %v7253, 64
        %v7585 = vpop.permute.xlu0 %7584
        %7586 = vrot.lane.b32.xlu0 %v7254, 64
        %v7587 = vpop.permute.xlu0 %7586
        %7588 = vrot.lane.b32.xlu0 %v7255, 64
        %v7589 = vpop.permute.xlu0 %7588
        %7590 = vrot.lane.b32.xlu0 %v7256, 64
        %v7591 = vpop.permute.xlu0 %7590
        %7592 = vrot.lane.b32.xlu0 %v7257, 64
        %v7593 = vpop.permute.xlu0 %7592
        %7594 = vrot.lane.b32.xlu0 %v7486, 64
        %v7595 = vpop.permute.xlu0 %7594
        %7596 = vrot.lane.b32.xlu0 %v7565, 64
        %v7597 = vpop.permute.xlu0 %7596
        %v7600 = vunpack.c.l.b16 %v7104
        %v7601 = vunpack.c.l.b16 %v7105
        %v7602 = vpack.c.b16 %v7601, %v7600
        %7603 = vrot.lane.b32.xlu0 %v7324, 96
        %v7604 = vpop.permute.xlu0 %7603
        %7605 = vrot.lane.b32.xlu0 %v7325, 96
        %v7606 = vpop.permute.xlu0 %7605
        %7607 = vrot.lane.b32.xlu0 %v7326, 96
        %v7608 = vpop.permute.xlu0 %7607
        %7609 = vrot.lane.b32.xlu0 %v7327, 96
        %v7610 = vpop.permute.xlu0 %7609
        %7611 = vrot.lane.b32.xlu0 %v7328, 96
        %v7612 = vpop.permute.xlu0 %7611
        %7613 = vrot.lane.b32.xlu0 %v7329, 96
        %v7614 = vpop.permute.xlu0 %7613
        %7615 = vrot.lane.b32.xlu0 %v7330, 96
        %v7616 = vpop.permute.xlu0 %7615
        %7617 = vrot.lane.b32.xlu0 %v7331, 96
        %v7618 = vpop.permute.xlu0 %7617
        %7619 = vrot.lane.b32.xlu0 %v7332, 96
        %v7620 = vpop.permute.xlu0 %7619
        %7621 = vrot.lane.b32.xlu0 %v7333, 96
        %v7622 = vpop.permute.xlu0 %7621
        %7623 = vrot.lane.b32.xlu0 %v7334, 96
        %v7624 = vpop.permute.xlu0 %7623
        %7625 = vrot.lane.b32.xlu0 %v7335, 96
        %v7626 = vpop.permute.xlu0 %7625
        %7627 = vrot.lane.b32.xlu0 %v7336, 96
        %v7628 = vpop.permute.xlu0 %7627
        %7629 = vrot.lane.b32.xlu0 %v7337, 96
        %v7630 = vpop.permute.xlu0 %7629
        %7631 = vrot.lane.b32.xlu0 %v7523, 96
        %v7632 = vpop.permute.xlu0 %7631
        %7633 = vrot.lane.b32.xlu0 %v7602, 96
        %v7634 = vpop.permute.xlu0 %7633
        %v7637 = vunpack.c.l.b16 %v7176
        %v7638 = vunpack.c.l.b16 %v7177
        %v7639 = vpack.c.b16 %v7638, %v7637
        %v7642 = vsel %vm440, %v7242, %v7339
        %v7645 = vsel %vm440, %v7243, %v7341
        %v7648 = vsel %vm440, %v7244, %v7343
        %v7651 = vsel %vm440, %v7245, %v7345
        %v7654 = vsel %vm440, %v7246, %v7347
        %v7657 = vsel %vm440, %v7247, %v7349
        %v7660 = vsel %vm440, %v7248, %v7351
        %v7663 = vsel %vm440, %v7249, %v7353
        %v7666 = vsel %vm440, %v7250, %v7355
        %v7669 = vsel %vm440, %v7251, %v7357
        %v7672 = vsel %vm440, %v7252, %v7359
        %v7675 = vsel %vm440, %v7253, %v7361
        %v7678 = vsel %vm440, %v7254, %v7363
        %v7681 = vsel %vm440, %v7255, %v7365
        %v7684 = vsel %vm440, %v7256, %v7367
        %v7687 = vsel %vm440, %v7257, %v7369
        %v7689 = vsel %vm1273, %v7642, %v7451
        %v7691 = vsel %vm1273, %v7645, %v7453
        %v7693 = vsel %vm1273, %v7648, %v7455
        %v7695 = vsel %vm1273, %v7651, %v7457
        %v7697 = vsel %vm1273, %v7654, %v7459
        %v7699 = vsel %vm1273, %v7657, %v7461
        %v7701 = vsel %vm1273, %v7660, %v7463
        %v7703 = vsel %vm1273, %v7663, %v7465
        %v7705 = vsel %vm1273, %v7666, %v7467
        %v7707 = vsel %vm1273, %v7669, %v7469
        %v7709 = vsel %vm1273, %v7672, %v7471
        %v7711 = vsel %vm1273, %v7675, %v7473
        %v7713 = vsel %vm1273, %v7678, %v7475
        %v7715 = vsel %vm1273, %v7681, %v7477
        %v7717 = vsel %vm1273, %v7684, %v7479
        %v7719 = vsel %vm1273, %v7687, %v7481
        %v7721 = vsel %vm1306, %v7689, %v7488
        %v7724 = vsel %vm1306, %v7691, %v7490
        %v7727 = vsel %vm1306, %v7693, %v7492
        %v7730 = vsel %vm1306, %v7695, %v7494
        %v7733 = vsel %vm1306, %v7697, %v7496
        %v7736 = vsel %vm1306, %v7699, %v7498
        %v7739 = vsel %vm1306, %v7701, %v7500
        %v7742 = vsel %vm1306, %v7703, %v7502
        %v7745 = vsel %vm1306, %v7705, %v7504
        %v7748 = vsel %vm1306, %v7707, %v7506
        %v7751 = vsel %vm1306, %v7709, %v7508
        %v7754 = vsel %vm1306, %v7711, %v7510
        %v7757 = vsel %vm1306, %v7713, %v7512
        %v7760 = vsel %vm1306, %v7715, %v7514
        %v7763 = vsel %vm1306, %v7717, %v7516
        %v7766 = vsel %vm1306, %v7719, %v7518
        %v7770 = vsel %vm440, %v7323, %v7530
        %v7773 = vsel %vm440, %v7324, %v7532
        %v7776 = vsel %vm440, %v7325, %v7534
        %v7779 = vsel %vm440, %v7326, %v7536
        %v7782 = vsel %vm440, %v7327, %v7538
        %v7785 = vsel %vm440, %v7328, %v7540
        %v7788 = vsel %vm440, %v7329, %v7542
        %v7791 = vsel %vm440, %v7330, %v7544
        %v7794 = vsel %vm440, %v7331, %v7546
        %v7797 = vsel %vm440, %v7332, %v7548
        %v7800 = vsel %vm440, %v7333, %v7550
        %v7803 = vsel %vm440, %v7334, %v7552
        %v7806 = vsel %vm440, %v7335, %v7554
        %v7809 = vsel %vm440, %v7336, %v7556
        %v7812 = vsel %vm440, %v7337, %v7558
        %v7815 = vsel %vm440, %v7523, %v7560
        %v7817 = vsel %vm1273, %v7770, %v7567
        %v7819 = vsel %vm1273, %v7773, %v7569
        %v7821 = vsel %vm1273, %v7776, %v7571
        %v7823 = vsel %vm1273, %v7779, %v7573
        %v7825 = vsel %vm1273, %v7782, %v7575
        %v7827 = vsel %vm1273, %v7785, %v7577
        %v7829 = vsel %vm1273, %v7788, %v7579
        %v7831 = vsel %vm1273, %v7791, %v7581
        %v7833 = vsel %vm1273, %v7794, %v7583
        %v7835 = vsel %vm1273, %v7797, %v7585
        %v7837 = vsel %vm1273, %v7800, %v7587
        %v7839 = vsel %vm1273, %v7803, %v7589
        %v7841 = vsel %vm1273, %v7806, %v7591
        %v7843 = vsel %vm1273, %v7809, %v7593
        %v7845 = vsel %vm1273, %v7812, %v7595
        %v7847 = vsel %vm1273, %v7815, %v7597
        %v7849 = vsel %vm1306, %v7817, %v7604
        %v7852 = vsel %vm1306, %v7819, %v7606
        %v7855 = vsel %vm1306, %v7821, %v7608
        %v7858 = vsel %vm1306, %v7823, %v7610
        %v7861 = vsel %vm1306, %v7825, %v7612
        %v7864 = vsel %vm1306, %v7827, %v7614
        %v7867 = vsel %vm1306, %v7829, %v7616
        %v7870 = vsel %vm1306, %v7831, %v7618
        %v7873 = vsel %vm1306, %v7833, %v7620
        %v7876 = vsel %vm1306, %v7835, %v7622
        %v7879 = vsel %vm1306, %v7837, %v7624
        %v7882 = vsel %vm1306, %v7839, %v7626
        %v7885 = vsel %vm1306, %v7841, %v7628
        %v7888 = vsel %vm1306, %v7843, %v7630
        %v7891 = vsel %vm1306, %v7845, %v7632
        %v7894 = vsel %vm1306, %v7847, %v7634
        %s7896 = scalar_lea.vmem %s5, 144
        %v7897 = vld [vmem:[%s7896] sm:$0xf]
        %v7898 = vld [vmem:[%s7896 + $0x4] sm:$0xf]
        %v7899 = vld [vmem:[%s7896 + $0x8] sm:$0xf]
        %v7900 = vld [vmem:[%s7896 + $0xc] sm:$0xf]
        %v7901 = vld [vmem:[%s7896 + $0x10] sm:$0xf]
        %v7902 = vld [vmem:[%s7896 + $0x14] sm:$0xf]
        %v7903 = vld [vmem:[%s7896 + $0x18] sm:$0xf]
        %v7904 = vld [vmem:[%s7896 + $0x1c] sm:$0xf]
        %v7905 = vld [vmem:[%s7896 + $0x20] sm:$0xf]
        %v7906 = vld [vmem:[%s7896 + $0x24] sm:$0xf]
        %v7907 = vld [vmem:[%s7896 + $0x28] sm:$0xf]
        %v7908 = vld [vmem:[%s7896 + $0x2c] sm:$0xf]
        %v7909 = vld [vmem:[%s7896 + $0x30] sm:$0xf]
        %v7910 = vld [vmem:[%s7896 + $0x34] sm:$0xf]
        %v7911 = vld [vmem:[%s7896 + $0x38] sm:$0xf]
        %v7912 = vld [vmem:[%s7896 + $0x3c] sm:$0xf]
        %v7913 = vld [vmem:[%s7896 + $0x40] sm:$0xf]
        %v7914 = vld [vmem:[%s7896 + $0x44] sm:$0xf]
        %v7915 = vld [vmem:[%s7896 + $0x48] sm:$0xf]
        %v7916 = vld [vmem:[%s7896 + $0x4c] sm:$0xf]
        %v7917 = vld [vmem:[%s7896 + $0x50] sm:$0xf]
        %v7918 = vld [vmem:[%s7896 + $0x54] sm:$0xf]
        %v7919 = vld [vmem:[%s7896 + $0x58] sm:$0xf]
        %v7920 = vld [vmem:[%s7896 + $0x5c] sm:$0xf]
        %v7921 = vld [vmem:[%s7896 + $0x60] sm:$0xf]
        %v7922 = vld [vmem:[%s7896 + $0x64] sm:$0xf]
        %v7923 = vld [vmem:[%s7896 + $0x68] sm:$0xf]
        %v7924 = vld [vmem:[%s7896 + $0x6c] sm:$0xf]
        %v7925 = vld [vmem:[%s7896 + $0x70] sm:$0xf]
        %v7926 = vld [vmem:[%s7896 + $0x74] sm:$0xf]
        %v7927 = vld [vmem:[%s7896 + $0x78] sm:$0xf]
        %v7928 = vld [vmem:[%s7896 + $0x7c] sm:$0xf]
        %v7929 = vld [vmem:[%s7896 + $0x80] sm:$0xf]
        %v7930 = vld [vmem:[%s7896 + $0x84] sm:$0xf]
        %v7931 = vld [vmem:[%s7896 + $0x88] sm:$0xf]
        %v7932 = vld [vmem:[%s7896 + $0x8c] sm:$0xf]
        %s7933 = scalar_lea.vmem %s6, 1
        %v7934 = vld [vmem:[%s7933] sm:$0x1]
        %v7936 = vperm.slane %v7934, 0
        %v7974 = vunpack.c.l.b16 %v7897
        %v7975 = vunpack.c.l.b16 %v7898
        %v7976 = vunpack.c.l.b16 %v7899
        %v7977 = vunpack.c.l.b16 %v7900
        %v7978 = vunpack.c.l.b16 %v7901
        %v7979 = vunpack.c.l.b16 %v7902
        %v7980 = vunpack.c.l.b16 %v7903
        %v7981 = vunpack.c.l.b16 %v7904
        %v7982 = vunpack.c.l.b16 %v7905
        %v7983 = vunpack.c.l.b16 %v7906
        %v7984 = vunpack.c.l.b16 %v7907
        %v7985 = vunpack.c.l.b16 %v7908
        %v7986 = vunpack.c.l.b16 %v7909
        %v7987 = vunpack.c.l.b16 %v7910
        %v7988 = vunpack.c.l.b16 %v7911
        %v7989 = vunpack.c.l.b16 %v7912
        %v7990 = vunpack.c.l.b16 %v7913
        %v7991 = vunpack.c.l.b16 %v7914
        %v7992 = vunpack.c.l.b16 %v7915
        %v7993 = vunpack.c.l.b16 %v7916
        %v7994 = vunpack.c.l.b16 %v7917
        %v7995 = vunpack.c.l.b16 %v7918
        %v7996 = vunpack.c.l.b16 %v7919
        %v7997 = vunpack.c.l.b16 %v7920
        %v7998 = vunpack.c.l.b16 %v7921
        %v7999 = vunpack.c.l.b16 %v7922
        %v8000 = vunpack.c.l.b16 %v7923
        %v8001 = vunpack.c.l.b16 %v7924
        %v8002 = vunpack.c.l.b16 %v7925
        %v8003 = vunpack.c.l.b16 %v7926
        %v8004 = vunpack.c.l.b16 %v7927
        %v8005 = vunpack.c.l.b16 %v7928
        %v8006 = vunpack.c.l.b16 %v7929
        %v8007 = vunpack.c.l.b16 %v7930
        %v8008 = vunpack.c.l.b16 %v7931
        %v8009 = vunpack.c.l.b16 %v7932
        %v8010 = vpack.c.b16 %v7975, %v7974
        %v8011 = vpack.c.b16 %v7977, %v7976
        %v8012 = vpack.c.b16 %v7979, %v7978
        %v8013 = vpack.c.b16 %v7981, %v7980
        %v8014 = vpack.c.b16 %v7983, %v7982
        %v8015 = vpack.c.b16 %v7985, %v7984
        %v8016 = vpack.c.b16 %v7987, %v7986
        %v8017 = vpack.c.b16 %v7989, %v7988
        %v8018 = vpack.c.b16 %v7991, %v7990
        %v8019 = vpack.c.b16 %v7993, %v7992
        %v8020 = vpack.c.b16 %v7995, %v7994
        %v8021 = vpack.c.b16 %v7997, %v7996
        %v8022 = vpack.c.b16 %v7999, %v7998
        %v8023 = vpack.c.b16 %v8001, %v8000
        %v8024 = vpack.c.b16 %v8003, %v8002
        %v8025 = vpack.c.b16 %v8005, %v8004
        %v8026 = vpack.c.b16 %v8007, %v8006
        %v8027 = vpack.c.b16 %v8009, %v8008
        %v8047 = vsel %vm440, %v7436, 0
        %v8050 = vsel %vm440, %v7437, 0
        %v8053 = vsel %vm440, %v7438, 0
        %v8056 = vsel %vm440, %v7439, 0
        %v8059 = vsel %vm440, %v7440, 0
        %v8062 = vsel %vm440, %v7441, 0
        %v8065 = vsel %vm440, %v7442, 0
        %v8068 = vsel %vm440, %v7443, 0
        %v8071 = vsel %vm440, %v7444, 0
        %v8074 = vsel %vm440, %v7445, 0
        %v8077 = vsel %vm440, %v7446, 0
        %v8080 = vsel %vm440, %v7447, 0
        %v8083 = vsel %vm440, %v7448, 0
        %v8086 = vsel %vm440, %v7449, 0
        %v8089 = vsel %vm440, %v7528, 0
        %v8092 = vsel %vm440, %v7639, 0
        %8094 = vmatpush.bf16.msra.mxu0 %v8017
        %8095 = vmatpush.bf16.msra.mxu0 %v8016
        %8096 = vmatpush.bf16.msra.mxu0 %v8015
        %8097 = vmatpush.bf16.msra.mxu0 %v8014
        %8098 = vmatpush.bf16.msra.mxu0 %v8013
        %8099 = vmatpush.bf16.msra.mxu0 %v8012
        %8100 = vmatpush.bf16.msra.mxu0 %v8011
        %8101 = vmatpush.bf16.msra.mxu0 %v8010
        %8102 = vmatmul.bf16.gmra.mxu0 %v7721
        %v8103 = vpop.f32.mrf.mxu0
        %v8104 = vadd.f32 %v7936, %v8103
        %v8105 = vpop.f32.mrf.mxu0
        %v8106 = vadd.f32 %v7936, %v8105
        %8107 = vmatmul.bf16.gmra.mxu0 %v7724
        %v8108 = vpop.f32.mrf.mxu0
        %v8109 = vadd.f32 %v7936, %v8108
        %v8110 = vpop.f32.mrf.mxu0
        %v8111 = vadd.f32 %v7936, %v8110
        %8112 = vmatmul.bf16.gmra.mxu0 %v7727
        %v8113 = vpop.f32.mrf.mxu0
        %v8114 = vadd.f32 %v7936, %v8113
        %v8115 = vpop.f32.mrf.mxu0
        %v8116 = vadd.f32 %v7936, %v8115
        %8117 = vmatmul.bf16.gmra.mxu0 %v7730
        %v8118 = vpop.f32.mrf.mxu0
        %v8119 = vadd.f32 %v7936, %v8118
        %v8120 = vpop.f32.mrf.mxu0
        %v8121 = vadd.f32 %v7936, %v8120
        %8122 = vmatmul.bf16.gmra.mxu0 %v7733
        %v8123 = vpop.f32.mrf.mxu0
        %v8124 = vadd.f32 %v7936, %v8123
        %v8125 = vpop.f32.mrf.mxu0
        %v8126 = vadd.f32 %v7936, %v8125
        %8127 = vmatmul.bf16.gmra.mxu0 %v7736
        %v8128 = vpop.f32.mrf.mxu0
        %v8129 = vadd.f32 %v7936, %v8128
        %v8130 = vpop.f32.mrf.mxu0
        %v8131 = vadd.f32 %v7936, %v8130
        %8132 = vmatmul.bf16.gmra.mxu0 %v7739
        %v8133 = vpop.f32.mrf.mxu0
        %v8134 = vadd.f32 %v7936, %v8133
        %v8135 = vpop.f32.mrf.mxu0
        %v8136 = vadd.f32 %v7936, %v8135
        %8137 = vmatmul.bf16.gmra.mxu0 %v7742
        %v8138 = vpop.f32.mrf.mxu0
        %v8139 = vadd.f32 %v7936, %v8138
        %v8140 = vpop.f32.mrf.mxu0
        %v8141 = vadd.f32 %v7936, %v8140
        %8142 = vmatmul.bf16.gmra.mxu0 %v7745
        %v8143 = vpop.f32.mrf.mxu0
        %v8144 = vadd.f32 %v7936, %v8143
        %v8145 = vpop.f32.mrf.mxu0
        %v8146 = vadd.f32 %v7936, %v8145
        %8147 = vmatmul.bf16.gmra.mxu0 %v7748
        %v8148 = vpop.f32.mrf.mxu0
        %v8149 = vadd.f32 %v7936, %v8148
        %v8150 = vpop.f32.mrf.mxu0
        %v8151 = vadd.f32 %v7936, %v8150
        %8152 = vmatmul.bf16.gmra.mxu0 %v7751
        %v8153 = vpop.f32.mrf.mxu0
        %v8154 = vadd.f32 %v7936, %v8153
        %v8155 = vpop.f32.mrf.mxu0
        %v8156 = vadd.f32 %v7936, %v8155
        %8157 = vmatmul.bf16.gmra.mxu0 %v7754
        %v8158 = vpop.f32.mrf.mxu0
        %v8159 = vadd.f32 %v7936, %v8158
        %v8160 = vpop.f32.mrf.mxu0
        %v8161 = vadd.f32 %v7936, %v8160
        %8162 = vmatmul.bf16.gmra.mxu0 %v7757
        %v8163 = vpop.f32.mrf.mxu0
        %v8164 = vadd.f32 %v7936, %v8163
        %v8165 = vpop.f32.mrf.mxu0
        %v8166 = vadd.f32 %v7936, %v8165
        %8167 = vmatmul.bf16.gmra.mxu0 %v7760
        %v8168 = vpop.f32.mrf.mxu0
        %v8169 = vadd.f32 %v7936, %v8168
        %v8170 = vpop.f32.mrf.mxu0
        %v8171 = vadd.f32 %v7936, %v8170
        %8172 = vmatmul.bf16.gmra.mxu0 %v7763
        %v8173 = vpop.f32.mrf.mxu0
        %v8174 = vadd.f32 %v7936, %v8173
        %v8175 = vpop.f32.mrf.mxu0
        %v8176 = vadd.f32 %v7936, %v8175
        %8177 = vmatmul.bf16.gmra.mxu0 %v7766
        %v8178 = vpop.f32.mrf.mxu0
        %v8179 = vadd.f32 %v7936, %v8178
        %v8180 = vpop.f32.mrf.mxu0
        %v8181 = vadd.f32 %v7936, %v8180
        %8182 = vdwg.mxu0
        %8183 = vmatpush.bf16.msra.mxu0 %v8025
        %8184 = vmatpush.bf16.msra.mxu0 %v8024
        %8185 = vmatpush.bf16.msra.mxu0 %v8023
        %8186 = vmatpush.bf16.msra.mxu0 %v8022
        %8187 = vmatpush.bf16.msra.mxu0 %v8021
        %8188 = vmatpush.bf16.msra.mxu0 %v8020
        %8189 = vmatpush.bf16.msra.mxu0 %v8019
        %8190 = vmatpush.bf16.msra.mxu0 %v8018
        %8191 = vmatmul.bf16.gmra.mxu0 %v7849
        %v8192 = vpop.f32.mrf.mxu0
        %v8193 = vadd.f32 %v8104, %v8192
        %v8194 = vpop.f32.mrf.mxu0
        %v8195 = vadd.f32 %v8106, %v8194
        %8196 = vmatmul.bf16.gmra.mxu0 %v7852
        %v8197 = vpop.f32.mrf.mxu0
        %v8198 = vadd.f32 %v8109, %v8197
        %v8199 = vpop.f32.mrf.mxu0
        %v8200 = vadd.f32 %v8111, %v8199
        %8201 = vmatmul.bf16.gmra.mxu0 %v7855
        %v8202 = vpop.f32.mrf.mxu0
        %v8203 = vadd.f32 %v8114, %v8202
        %v8204 = vpop.f32.mrf.mxu0
        %v8205 = vadd.f32 %v8116, %v8204
        %8206 = vmatmul.bf16.gmra.mxu0 %v7858
        %v8207 = vpop.f32.mrf.mxu0
        %v8208 = vadd.f32 %v8119, %v8207
        %v8209 = vpop.f32.mrf.mxu0
        %v8210 = vadd.f32 %v8121, %v8209
        %8211 = vmatmul.bf16.gmra.mxu0 %v7861
        %v8212 = vpop.f32.mrf.mxu0
        %v8213 = vadd.f32 %v8124, %v8212
        %v8214 = vpop.f32.mrf.mxu0
        %v8215 = vadd.f32 %v8126, %v8214
        %8216 = vmatmul.bf16.gmra.mxu0 %v7864
        %v8217 = vpop.f32.mrf.mxu0
        %v8218 = vadd.f32 %v8129, %v8217
        %v8219 = vpop.f32.mrf.mxu0
        %v8220 = vadd.f32 %v8131, %v8219
        %8221 = vmatmul.bf16.gmra.mxu0 %v7867
        %v8222 = vpop.f32.mrf.mxu0
        %v8223 = vadd.f32 %v8134, %v8222
        %v8224 = vpop.f32.mrf.mxu0
        %v8225 = vadd.f32 %v8136, %v8224
        %8226 = vmatmul.bf16.gmra.mxu0 %v7870
        %v8227 = vpop.f32.mrf.mxu0
        %v8228 = vadd.f32 %v8139, %v8227
        %v8229 = vpop.f32.mrf.mxu0
        %v8230 = vadd.f32 %v8141, %v8229
        %8231 = vmatmul.bf16.gmra.mxu0 %v7873
        %v8232 = vpop.f32.mrf.mxu0
        %v8233 = vadd.f32 %v8144, %v8232
        %v8234 = vpop.f32.mrf.mxu0
        %v8235 = vadd.f32 %v8146, %v8234
        %8236 = vmatmul.bf16.gmra.mxu0 %v7876
        %v8237 = vpop.f32.mrf.mxu0
        %v8238 = vadd.f32 %v8149, %v8237
        %v8239 = vpop.f32.mrf.mxu0
        %v8240 = vadd.f32 %v8151, %v8239
        %8241 = vmatmul.bf16.gmra.mxu0 %v7879
        %v8242 = vpop.f32.mrf.mxu0
        %v8243 = vadd.f32 %v8154, %v8242
        %v8244 = vpop.f32.mrf.mxu0
        %v8245 = vadd.f32 %v8156, %v8244
        %8246 = vmatmul.bf16.gmra.mxu0 %v7882
        %v8247 = vpop.f32.mrf.mxu0
        %v8248 = vadd.f32 %v8159, %v8247
        %v8249 = vpop.f32.mrf.mxu0
        %v8250 = vadd.f32 %v8161, %v8249
        %8251 = vmatmul.bf16.gmra.mxu0 %v7885
        %v8252 = vpop.f32.mrf.mxu0
        %v8253 = vadd.f32 %v8164, %v8252
        %v8254 = vpop.f32.mrf.mxu0
        %v8255 = vadd.f32 %v8166, %v8254
        %8256 = vmatmul.bf16.gmra.mxu0 %v7888
        %v8257 = vpop.f32.mrf.mxu0
        %v8258 = vadd.f32 %v8169, %v8257
        %v8259 = vpop.f32.mrf.mxu0
        %v8260 = vadd.f32 %v8171, %v8259
        %8261 = vmatmul.bf16.gmra.mxu0 %v7891
        %v8262 = vpop.f32.mrf.mxu0
        %v8263 = vadd.f32 %v8174, %v8262
        %v8264 = vpop.f32.mrf.mxu0
        %v8265 = vadd.f32 %v8176, %v8264
        %8266 = vmatmul.bf16.gmra.mxu0 %v7894
        %v8267 = vpop.f32.mrf.mxu0
        %v8268 = vadd.f32 %v8179, %v8267
        %v8269 = vpop.f32.mrf.mxu0
        %v8270 = vadd.f32 %v8181, %v8269
        %8271 = vdwg.mxu0
        %8272 = vmatpush.bf16.msra.mxu0 0
        %8273 = vmatpush.bf16.msra.mxu0 0
        %8274 = vmatpush.bf16.msra.mxu0 0
        %8275 = vmatpush.bf16.msra.mxu0 0
        %8276 = vmatpush.bf16.msra.mxu0 0
        %8277 = vmatpush.bf16.msra.mxu0 0
        %8278 = vmatpush.bf16.msra.mxu0 %v8027
        %8279 = vmatpush.bf16.msra.mxu0 %v8026
        %8280 = vmatmul.bf16.gmra.mxu0 %v8047
        %v8281 = vpop.f32.mrf.mxu0
        %v8282 = vadd.f32 %v8193, %v8281
        %v8283 = vpop.f32.mrf.mxu0
        %v8284 = vadd.f32 %v8195, %v8283
        %8285 = vmatmul.bf16.gmra.mxu0 %v8050
        %v8286 = vpop.f32.mrf.mxu0
        %v8287 = vadd.f32 %v8198, %v8286
        %v8288 = vpop.f32.mrf.mxu0
        %v8289 = vadd.f32 %v8200, %v8288
        %8290 = vmatmul.bf16.gmra.mxu0 %v8053
        %v8291 = vpop.f32.mrf.mxu0
        %v8292 = vadd.f32 %v8203, %v8291
        %v8293 = vpop.f32.mrf.mxu0
        %v8294 = vadd.f32 %v8205, %v8293
        %8295 = vmatmul.bf16.gmra.mxu0 %v8056
        %v8296 = vpop.f32.mrf.mxu0
        %v8297 = vadd.f32 %v8208, %v8296
        %v8298 = vpop.f32.mrf.mxu0
        %v8299 = vadd.f32 %v8210, %v8298
        %8300 = vmatmul.bf16.gmra.mxu0 %v8059
        %v8301 = vpop.f32.mrf.mxu0
        %v8302 = vadd.f32 %v8213, %v8301
        %v8303 = vpop.f32.mrf.mxu0
        %v8304 = vadd.f32 %v8215, %v8303
        %8305 = vmatmul.bf16.gmra.mxu0 %v8062
        %v8306 = vpop.f32.mrf.mxu0
        %v8307 = vadd.f32 %v8218, %v8306
        %v8308 = vpop.f32.mrf.mxu0
        %v8309 = vadd.f32 %v8220, %v8308
        %8310 = vmatmul.bf16.gmra.mxu0 %v8065
        %v8311 = vpop.f32.mrf.mxu0
        %v8312 = vadd.f32 %v8223, %v8311
        %v8313 = vpop.f32.mrf.mxu0
        %v8314 = vadd.f32 %v8225, %v8313
        %8315 = vmatmul.bf16.gmra.mxu0 %v8068
        %v8316 = vpop.f32.mrf.mxu0
        %v8317 = vadd.f32 %v8228, %v8316
        %v8318 = vpop.f32.mrf.mxu0
        %v8319 = vadd.f32 %v8230, %v8318
        %8320 = vmatmul.bf16.gmra.mxu0 %v8071
        %v8321 = vpop.f32.mrf.mxu0
        %v8322 = vadd.f32 %v8233, %v8321
        %v8323 = vpop.f32.mrf.mxu0
        %v8324 = vadd.f32 %v8235, %v8323
        %8325 = vmatmul.bf16.gmra.mxu0 %v8074
        %v8326 = vpop.f32.mrf.mxu0
        %v8327 = vadd.f32 %v8238, %v8326
        %v8328 = vpop.f32.mrf.mxu0
        %v8329 = vadd.f32 %v8240, %v8328
        %8330 = vmatmul.bf16.gmra.mxu0 %v8077
        %v8331 = vpop.f32.mrf.mxu0
        %v8332 = vadd.f32 %v8243, %v8331
        %v8333 = vpop.f32.mrf.mxu0
        %v8334 = vadd.f32 %v8245, %v8333
        %8335 = vmatmul.bf16.gmra.mxu0 %v8080
        %v8336 = vpop.f32.mrf.mxu0
        %v8337 = vadd.f32 %v8248, %v8336
        %v8338 = vpop.f32.mrf.mxu0
        %v8339 = vadd.f32 %v8250, %v8338
        %8340 = vmatmul.bf16.gmra.mxu0 %v8083
        %v8341 = vpop.f32.mrf.mxu0
        %v8342 = vadd.f32 %v8253, %v8341
        %v8343 = vpop.f32.mrf.mxu0
        %v8344 = vadd.f32 %v8255, %v8343
        %8345 = vmatmul.bf16.gmra.mxu0 %v8086
        %v8346 = vpop.f32.mrf.mxu0
        %v8347 = vadd.f32 %v8258, %v8346
        %v8348 = vpop.f32.mrf.mxu0
        %v8349 = vadd.f32 %v8260, %v8348
        %8350 = vmatmul.bf16.gmra.mxu0 %v8089
        %v8351 = vpop.f32.mrf.mxu0
        %v8352 = vadd.f32 %v8263, %v8351
        %v8353 = vpop.f32.mrf.mxu0
        %v8354 = vadd.f32 %v8265, %v8353
        %8355 = vmatmul.bf16.gmra.mxu0 %v8092
        %v8356 = vpop.f32.mrf.mxu0
        %v8357 = vadd.f32 %v8268, %v8356
        %v8358 = vpop.f32.mrf.mxu0
        %v8359 = vadd.f32 %v8270, %v8358
        %8360 = vdwg.mxu0
        %s8361 = scalar_lea.vmem %s7, 1
        %v8362 = vld [vmem:[%s8361] sm:$0x1]
        %s8363 = scalar_lea.vmem %s8, 1
        %v8364 = vld [vmem:[%s8363] sm:$0x1]
        %v8365 = vsel %vm440, %v8282, 0.0
        %v8366 = vsel %vm440, %v8284, 0.0
        %v8367 = vadd.f32 %v8365, %v8366
        %v8368 = vsel %vm440, %v8287, 0.0
        %v8369 = vadd.f32 %v8367, %v8368
        %v8370 = vsel %vm440, %v8289, 0.0
        %v8371 = vadd.f32 %v8369, %v8370
        %v8372 = vsel %vm440, %v8292, 0.0
        %v8373 = vadd.f32 %v8371, %v8372
        %v8374 = vsel %vm440, %v8294, 0.0
        %v8375 = vadd.f32 %v8373, %v8374
        %v8376 = vsel %vm440, %v8297, 0.0
        %v8377 = vadd.f32 %v8375, %v8376
        %v8378 = vsel %vm440, %v8299, 0.0
        %v8379 = vadd.f32 %v8377, %v8378
        %v8380 = vsel %vm440, %v8302, 0.0
        %v8381 = vadd.f32 %v8379, %v8380
        %v8382 = vsel %vm440, %v8304, 0.0
        %v8383 = vadd.f32 %v8381, %v8382
        %v8384 = vsel %vm440, %v8307, 0.0
        %v8385 = vadd.f32 %v8383, %v8384
        %v8386 = vsel %vm440, %v8309, 0.0
        %v8387 = vadd.f32 %v8385, %v8386
        %v8388 = vsel %vm440, %v8312, 0.0
        %v8389 = vadd.f32 %v8387, %v8388
        %v8390 = vsel %vm440, %v8314, 0.0
        %v8391 = vadd.f32 %v8389, %v8390
        %v8392 = vsel %vm440, %v8317, 0.0
        %v8393 = vadd.f32 %v8391, %v8392
        %v8394 = vsel %vm440, %v8319, 0.0
        %v8395 = vadd.f32 %v8393, %v8394
        %v8396 = vsel %vm440, %v8322, 0.0
        %v8397 = vadd.f32 %v8395, %v8396
        %v8398 = vsel %vm440, %v8324, 0.0
        %v8399 = vadd.f32 %v8397, %v8398
        %v8400 = vsel %vm440, %v8327, 0.0
        %v8401 = vadd.f32 %v8399, %v8400
        %v8402 = vsel %vm440, %v8329, 0.0
        %v8403 = vadd.f32 %v8401, %v8402
        %v8404 = vsel %vm440, %v8332, 0.0
        %v8405 = vadd.f32 %v8403, %v8404
        %v8406 = vsel %vm440, %v8334, 0.0
        %v8407 = vadd.f32 %v8405, %v8406
        %v8408 = vsel %vm440, %v8337, 0.0
        %v8409 = vadd.f32 %v8407, %v8408
        %v8410 = vsel %vm440, %v8339, 0.0
        %v8411 = vadd.f32 %v8409, %v8410
        %v8412 = vsel %vm440, %v8342, 0.0
        %v8413 = vadd.f32 %v8411, %v8412
        %v8414 = vsel %vm440, %v8344, 0.0
        %v8415 = vadd.f32 %v8413, %v8414
        %v8416 = vsel %vm440, %v8347, 0.0
        %v8417 = vadd.f32 %v8415, %v8416
        %v8418 = vsel %vm440, %v8349, 0.0
        %v8419 = vadd.f32 %v8417, %v8418
        %v8420 = vsel %vm440, %v8352, 0.0
        %v8421 = vadd.f32 %v8419, %v8420
        %v8422 = vsel %vm440, %v8354, 0.0
        %v8423 = vadd.f32 %v8421, %v8422
        %v8424 = vsel %vm440, %v8357, 0.0
        %v8425 = vadd.f32 %v8423, %v8424
        %v8426 = vsel %vm440, %v8359, 0.0
        %v8427 = vadd.f32 %v8425, %v8426
        %v8428 = vrot.slane %v8427, 4
        %v8429 = vadd.f32 %v8427, %v8428
        %v8430 = vrot.slane %v8429, 2
        %v8431 = vadd.f32 %v8429, %v8430
        %v8432 = vrot.slane %v8431, 1
        %v8433 = vadd.f32 %v8431, %v8432
        %v8434 = vmul.f32 %v8433, %v2438
        %v8435 = vsub.f32 %v8282, %v8434
        %v8436 = vsub.f32 %v8284, %v8434
        %v8437 = vsub.f32 %v8287, %v8434
        %v8438 = vsub.f32 %v8289, %v8434
        %v8439 = vsub.f32 %v8292, %v8434
        %v8440 = vsub.f32 %v8294, %v8434
        %v8441 = vsub.f32 %v8297, %v8434
        %v8442 = vsub.f32 %v8299, %v8434
        %v8443 = vsub.f32 %v8302, %v8434
        %v8444 = vsub.f32 %v8304, %v8434
        %v8445 = vsub.f32 %v8307, %v8434
        %v8446 = vsub.f32 %v8309, %v8434
        %v8447 = vsub.f32 %v8312, %v8434
        %v8448 = vsub.f32 %v8314, %v8434
        %v8449 = vsub.f32 %v8317, %v8434
        %v8450 = vsub.f32 %v8319, %v8434
        %v8451 = vsub.f32 %v8322, %v8434
        %v8452 = vsub.f32 %v8324, %v8434
        %v8453 = vsub.f32 %v8327, %v8434
        %v8454 = vsub.f32 %v8329, %v8434
        %v8455 = vsub.f32 %v8332, %v8434
        %v8456 = vsub.f32 %v8334, %v8434
        %v8457 = vsub.f32 %v8337, %v8434
        %v8458 = vsub.f32 %v8339, %v8434
        %v8459 = vsub.f32 %v8342, %v8434
        %v8460 = vsub.f32 %v8344, %v8434
        %v8461 = vsub.f32 %v8347, %v8434
        %v8462 = vsub.f32 %v8349, %v8434
        %v8463 = vsub.f32 %v8352, %v8434
        %v8464 = vsub.f32 %v8354, %v8434
        %v8465 = vsub.f32 %v8357, %v8434
        %v8466 = vsub.f32 %v8359, %v8434
        %v8467 = vmul.f32 %v8435, %v8435
        %v8468 = vmul.f32 %v8436, %v8436
        %v8469 = vmul.f32 %v8437, %v8437
        %v8470 = vmul.f32 %v8438, %v8438
        %v8471 = vmul.f32 %v8439, %v8439
        %v8472 = vmul.f32 %v8440, %v8440
        %v8473 = vmul.f32 %v8441, %v8441
        %v8474 = vmul.f32 %v8442, %v8442
        %v8475 = vmul.f32 %v8443, %v8443
        %v8476 = vmul.f32 %v8444, %v8444
        %v8477 = vmul.f32 %v8445, %v8445
        %v8478 = vmul.f32 %v8446, %v8446
        %v8479 = vmul.f32 %v8447, %v8447
        %v8480 = vmul.f32 %v8448, %v8448
        %v8481 = vmul.f32 %v8449, %v8449
        %v8482 = vmul.f32 %v8450, %v8450
        %v8483 = vmul.f32 %v8451, %v8451
        %v8484 = vmul.f32 %v8452, %v8452
        %v8485 = vmul.f32 %v8453, %v8453
        %v8486 = vmul.f32 %v8454, %v8454
        %v8487 = vmul.f32 %v8455, %v8455
        %v8488 = vmul.f32 %v8456, %v8456
        %v8489 = vmul.f32 %v8457, %v8457
        %v8490 = vmul.f32 %v8458, %v8458
        %v8491 = vmul.f32 %v8459, %v8459
        %v8492 = vmul.f32 %v8460, %v8460
        %v8493 = vmul.f32 %v8461, %v8461
        %v8494 = vmul.f32 %v8462, %v8462
        %v8495 = vmul.f32 %v8463, %v8463
        %v8496 = vmul.f32 %v8464, %v8464
        %v8497 = vmul.f32 %v8465, %v8465
        %v8498 = vmul.f32 %v8466, %v8466
        %v8499 = vsel %vm440, %v8467, 0.0
        %v8500 = vsel %vm440, %v8468, 0.0
        %v8501 = vadd.f32 %v8499, %v8500
        %v8502 = vsel %vm440, %v8469, 0.0
        %v8503 = vadd.f32 %v8501, %v8502
        %v8504 = vsel %vm440, %v8470, 0.0
        %v8505 = vadd.f32 %v8503, %v8504
        %v8506 = vsel %vm440, %v8471, 0.0
        %v8507 = vadd.f32 %v8505, %v8506
        %v8508 = vsel %vm440, %v8472, 0.0
        %v8509 = vadd.f32 %v8507, %v8508
        %v8510 = vsel %vm440, %v8473, 0.0
        %v8511 = vadd.f32 %v8509, %v8510
        %v8512 = vsel %vm440, %v8474, 0.0
        %v8513 = vadd.f32 %v8511, %v8512
        %v8514 = vsel %vm440, %v8475, 0.0
        %v8515 = vadd.f32 %v8513, %v8514
        %v8516 = vsel %vm440, %v8476, 0.0
        %v8517 = vadd.f32 %v8515, %v8516
        %v8518 = vsel %vm440, %v8477, 0.0
        %v8519 = vadd.f32 %v8517, %v8518
        %v8520 = vsel %vm440, %v8478, 0.0
        %v8521 = vadd.f32 %v8519, %v8520
        %v8522 = vsel %vm440, %v8479, 0.0
        %v8523 = vadd.f32 %v8521, %v8522
        %v8524 = vsel %vm440, %v8480, 0.0
        %v8525 = vadd.f32 %v8523, %v8524
        %v8526 = vsel %vm440, %v8481, 0.0
        %v8527 = vadd.f32 %v8525, %v8526
        %v8528 = vsel %vm440, %v8482, 0.0
        %v8529 = vadd.f32 %v8527, %v8528
        %v8530 = vsel %vm440, %v8483, 0.0
        %v8531 = vadd.f32 %v8529, %v8530
        %v8532 = vsel %vm440, %v8484, 0.0
        %v8533 = vadd.f32 %v8531, %v8532
        %v8534 = vsel %vm440, %v8485, 0.0
        %v8535 = vadd.f32 %v8533, %v8534
        %v8536 = vsel %vm440, %v8486, 0.0
        %v8537 = vadd.f32 %v8535, %v8536
        %v8538 = vsel %vm440, %v8487, 0.0
        %v8539 = vadd.f32 %v8537, %v8538
        %v8540 = vsel %vm440, %v8488, 0.0
        %v8541 = vadd.f32 %v8539, %v8540
        %v8542 = vsel %vm440, %v8489, 0.0
        %v8543 = vadd.f32 %v8541, %v8542
        %v8544 = vsel %vm440, %v8490, 0.0
        %v8545 = vadd.f32 %v8543, %v8544
        %v8546 = vsel %vm440, %v8491, 0.0
        %v8547 = vadd.f32 %v8545, %v8546
        %v8548 = vsel %vm440, %v8492, 0.0
        %v8549 = vadd.f32 %v8547, %v8548
        %v8550 = vsel %vm440, %v8493, 0.0
        %v8551 = vadd.f32 %v8549, %v8550
        %v8552 = vsel %vm440, %v8494, 0.0
        %v8553 = vadd.f32 %v8551, %v8552
        %v8554 = vsel %vm440, %v8495, 0.0
        %v8555 = vadd.f32 %v8553, %v8554
        %v8556 = vsel %vm440, %v8496, 0.0
        %v8557 = vadd.f32 %v8555, %v8556
        %v8558 = vsel %vm440, %v8497, 0.0
        %v8559 = vadd.f32 %v8557, %v8558
        %v8560 = vsel %vm440, %v8498, 0.0
        %v8561 = vadd.f32 %v8559, %v8560
        %v8562 = vrot.slane %v8561, 4
        %v8563 = vadd.f32 %v8561, %v8562
        %v8564 = vrot.slane %v8563, 2
        %v8565 = vadd.f32 %v8563, %v8564
        %v8566 = vrot.slane %v8565, 1
        %v8567 = vadd.f32 %v8565, %v8566
        %v8568 = vmul.f32 %v8567, %v2438
        %v8569 = vadd.f32 %v8568, 1e-05
        %v8570 = vrsqrt.pop %v8569
        %v8571 = vmul.f32 %v8570, %v8569
        %v8572 = vmul.f32 %v8571, %v8570
        %v8573 = vmul.f32 0.5, %v8572
        %v8574 = vsub.f32 1.5, %v8573
        %v8575 = vmul.f32 %v8570, %v8574
        %vm8576 = vweird.f32 %v8569
        %vm8577 = vweird.f32 %v8570
        %vm8578 = vmor %vm8576, %vm8577
        %v8579 = vsel %vm8578, %v8570, %v8575
        %v8580 = vmul.f32 %v8435, %v8579
        %v8581 = vmul.f32 %v8436, %v8579
        %v8582 = vmul.f32 %v8437, %v8579
        %v8583 = vmul.f32 %v8438, %v8579
        %v8584 = vmul.f32 %v8439, %v8579
        %v8585 = vmul.f32 %v8440, %v8579
        %v8586 = vmul.f32 %v8441, %v8579
        %v8587 = vmul.f32 %v8442, %v8579
        %v8588 = vmul.f32 %v8443, %v8579
        %v8589 = vmul.f32 %v8444, %v8579
        %v8590 = vmul.f32 %v8445, %v8579
        %v8591 = vmul.f32 %v8446, %v8579
        %v8592 = vmul.f32 %v8447, %v8579
        %v8593 = vmul.f32 %v8448, %v8579
        %v8594 = vmul.f32 %v8449, %v8579
        %v8595 = vmul.f32 %v8450, %v8579
        %v8596 = vmul.f32 %v8451, %v8579
        %v8597 = vmul.f32 %v8452, %v8579
        %v8598 = vmul.f32 %v8453, %v8579
        %v8599 = vmul.f32 %v8454, %v8579
        %v8600 = vmul.f32 %v8455, %v8579
        %v8601 = vmul.f32 %v8456, %v8579
        %v8602 = vmul.f32 %v8457, %v8579
        %v8603 = vmul.f32 %v8458, %v8579
        %v8604 = vmul.f32 %v8459, %v8579
        %v8605 = vmul.f32 %v8460, %v8579
        %v8606 = vmul.f32 %v8461, %v8579
        %v8607 = vmul.f32 %v8462, %v8579
        %v8608 = vmul.f32 %v8463, %v8579
        %v8609 = vmul.f32 %v8464, %v8579
        %v8610 = vmul.f32 %v8465, %v8579
        %v8611 = vmul.f32 %v8466, %v8579
        %v8613 = vperm.slane %v8362, 0
        %v8615 = vmul.f32 %v8580, %v8613
        %v8616 = vmul.f32 %v8581, %v8613
        %v8617 = vmul.f32 %v8582, %v8613
        %v8618 = vmul.f32 %v8583, %v8613
        %v8619 = vmul.f32 %v8584, %v8613
        %v8620 = vmul.f32 %v8585, %v8613
        %v8621 = vmul.f32 %v8586, %v8613
        %v8622 = vmul.f32 %v8587, %v8613
        %v8623 = vmul.f32 %v8588, %v8613
        %v8624 = vmul.f32 %v8589, %v8613
        %v8625 = vmul.f32 %v8590, %v8613
        %v8626 = vmul.f32 %v8591, %v8613
        %v8627 = vmul.f32 %v8592, %v8613
        %v8628 = vmul.f32 %v8593, %v8613
        %v8629 = vmul.f32 %v8594, %v8613
        %v8630 = vmul.f32 %v8595, %v8613
        %v8631 = vmul.f32 %v8596, %v8613
        %v8632 = vmul.f32 %v8597, %v8613
        %v8633 = vmul.f32 %v8598, %v8613
        %v8634 = vmul.f32 %v8599, %v8613
        %v8635 = vmul.f32 %v8600, %v8613
        %v8636 = vmul.f32 %v8601, %v8613
        %v8637 = vmul.f32 %v8602, %v8613
        %v8638 = vmul.f32 %v8603, %v8613
        %v8639 = vmul.f32 %v8604, %v8613
        %v8640 = vmul.f32 %v8605, %v8613
        %v8641 = vmul.f32 %v8606, %v8613
        %v8642 = vmul.f32 %v8607, %v8613
        %v8643 = vmul.f32 %v8608, %v8613
        %v8644 = vmul.f32 %v8609, %v8613
        %v8645 = vmul.f32 %v8610, %v8613
        %v8646 = vmul.f32 %v8611, %v8613
        %v8648 = vperm.slane %v8364, 0
        %v8650 = vadd.f32 %v8615, %v8648
        %v8651 = vadd.f32 %v8616, %v8648
        %v8652 = vadd.f32 %v8617, %v8648
        %v8653 = vadd.f32 %v8618, %v8648
        %v8654 = vadd.f32 %v8619, %v8648
        %v8655 = vadd.f32 %v8620, %v8648
        %v8656 = vadd.f32 %v8621, %v8648
        %v8657 = vadd.f32 %v8622, %v8648
        %v8658 = vadd.f32 %v8623, %v8648
        %v8659 = vadd.f32 %v8624, %v8648
        %v8660 = vadd.f32 %v8625, %v8648
        %v8661 = vadd.f32 %v8626, %v8648
        %v8662 = vadd.f32 %v8627, %v8648
        %v8663 = vadd.f32 %v8628, %v8648
        %v8664 = vadd.f32 %v8629, %v8648
        %v8665 = vadd.f32 %v8630, %v8648
        %v8666 = vadd.f32 %v8631, %v8648
        %v8667 = vadd.f32 %v8632, %v8648
        %v8668 = vadd.f32 %v8633, %v8648
        %v8669 = vadd.f32 %v8634, %v8648
        %v8670 = vadd.f32 %v8635, %v8648
        %v8671 = vadd.f32 %v8636, %v8648
        %v8672 = vadd.f32 %v8637, %v8648
        %v8673 = vadd.f32 %v8638, %v8648
        %v8674 = vadd.f32 %v8639, %v8648
        %v8675 = vadd.f32 %v8640, %v8648
        %v8676 = vadd.f32 %v8641, %v8648
        %v8677 = vadd.f32 %v8642, %v8648
        %v8678 = vadd.f32 %v8643, %v8648
        %v8679 = vadd.f32 %v8644, %v8648
        %v8680 = vadd.f32 %v8645, %v8648
        %v8681 = vadd.f32 %v8646, %v8648
        %v8682 = vmax.f32 %v8650, 0.0
        %v8683 = vmax.f32 %v8651, 0.0
        %v8684 = vmax.f32 %v8652, 0.0
        %v8685 = vmax.f32 %v8653, 0.0
        %v8686 = vmax.f32 %v8654, 0.0
        %v8687 = vmax.f32 %v8655, 0.0
        %v8688 = vmax.f32 %v8656, 0.0
        %v8689 = vmax.f32 %v8657, 0.0
        %v8690 = vmax.f32 %v8658, 0.0
        %v8691 = vmax.f32 %v8659, 0.0
        %v8692 = vmax.f32 %v8660, 0.0
        %v8693 = vmax.f32 %v8661, 0.0
        %v8694 = vmax.f32 %v8662, 0.0
        %v8695 = vmax.f32 %v8663, 0.0
        %v8696 = vmax.f32 %v8664, 0.0
        %v8697 = vmax.f32 %v8665, 0.0
        %v8698 = vmax.f32 %v8666, 0.0
        %v8699 = vmax.f32 %v8667, 0.0
        %v8700 = vmax.f32 %v8668, 0.0
        %v8701 = vmax.f32 %v8669, 0.0
        %v8702 = vmax.f32 %v8670, 0.0
        %v8703 = vmax.f32 %v8671, 0.0
        %v8704 = vmax.f32 %v8672, 0.0
        %v8705 = vmax.f32 %v8673, 0.0
        %v8706 = vmax.f32 %v8674, 0.0
        %v8707 = vmax.f32 %v8675, 0.0
        %v8708 = vmax.f32 %v8676, 0.0
        %v8709 = vmax.f32 %v8677, 0.0
        %v8710 = vmax.f32 %v8678, 0.0
        %v8711 = vmax.f32 %v8679, 0.0
        %v8712 = vmax.f32 %v8680, 0.0
        %v8713 = vmax.f32 %v8681, 0.0
        %8714 = vst.msk [vmem:[%s450 + $0x8] sm:$0xff] %vm440, %v8682
        %8715 = vst.msk [vmem:[%s450 + $0x10] sm:$0xff] %vm440, %v8683
        %8716 = vst.msk [vmem:[%s450 + $0x28] sm:$0xff] %vm440, %v8684
        %8717 = vst.msk [vmem:[%s450 + $0x30] sm:$0xff] %vm440, %v8685
        %8718 = vst.msk [vmem:[%s450 + $0x48] sm:$0xff] %vm440, %v8686
        %8719 = vst.msk [vmem:[%s450 + $0x50] sm:$0xff] %vm440, %v8687
        %8720 = vst.msk [vmem:[%s450 + $0x68] sm:$0xff] %vm440, %v8688
        %8721 = vst.msk [vmem:[%s450 + $0x70] sm:$0xff] %vm440, %v8689
        %8722 = vst.msk [vmem:[%s450 + $0x88] sm:$0xff] %vm440, %v8690
        %8723 = vst.msk [vmem:[%s450 + $0x90] sm:$0xff] %vm440, %v8691
        %8724 = vst.msk [vmem:[%s450 + $0xa8] sm:$0xff] %vm440, %v8692
        %8725 = vst.msk [vmem:[%s450 + $0xb0] sm:$0xff] %vm440, %v8693
        %8726 = vst.msk [vmem:[%s450 + $0xc8] sm:$0xff] %vm440, %v8694
        %8727 = vst.msk [vmem:[%s450 + $0xd0] sm:$0xff] %vm440, %v8695
        %8728 = vst.msk [vmem:[%s450 + $0xe8] sm:$0xff] %vm440, %v8696
        %8729 = vst.msk [vmem:[%s450 + $0xf0] sm:$0xff] %vm440, %v8697
        %8730 = vst.msk [vmem:[%s450 + $0x108] sm:$0xff] %vm440, %v8698
        %8731 = vst.msk [vmem:[%s450 + $0x110] sm:$0xff] %vm440, %v8699
        %8732 = vst.msk [vmem:[%s450 + $0x128] sm:$0xff] %vm440, %v8700
        %8733 = vst.msk [vmem:[%s450 + $0x130] sm:$0xff] %vm440, %v8701
        %8734 = vst.msk [vmem:[%s450 + $0x148] sm:$0xff] %vm440, %v8702
        %8735 = vst.msk [vmem:[%s450 + $0x150] sm:$0xff] %vm440, %v8703
        %8736 = vst.msk [vmem:[%s450 + $0x168] sm:$0xff] %vm440, %v8704
        %8737 = vst.msk [vmem:[%s450 + $0x170] sm:$0xff] %vm440, %v8705
        %8738 = vst.msk [vmem:[%s450 + $0x188] sm:$0xff] %vm440, %v8706
        %8739 = vst.msk [vmem:[%s450 + $0x190] sm:$0xff] %vm440, %v8707
        %8740 = vst.msk [vmem:[%s450 + $0x1a8] sm:$0xff] %vm440, %v8708
        %8741 = vst.msk [vmem:[%s450 + $0x1b0] sm:$0xff] %vm440, %v8709
        %8742 = vst.msk [vmem:[%s450 + $0x1c8] sm:$0xff] %vm440, %v8710
        %8743 = vst.msk [vmem:[%s450 + $0x1d0] sm:$0xff] %vm440, %v8711
        %8744 = vst.msk [vmem:[%s450 + $0x1e8] sm:$0xff] %vm440, %v8712
        %8745 = vst.msk [vmem:[%s450 + $0x1f0] sm:$0xff] %vm440, %v8713
        %v8746 = vld [vmem:[#allocation2 + $0x7] sm:$0xff]
        %v8747 = vld [vmem:[#allocation2 + $0xf] sm:$0xff]
        %v8748 = vld [vmem:[#allocation2 + $0x27] sm:$0xff]
        %v8749 = vld [vmem:[#allocation2 + $0x2f] sm:$0xff]
        %v8750 = vld [vmem:[#allocation2 + $0x47] sm:$0xff]
        %v8751 = vld [vmem:[#allocation2 + $0x4f] sm:$0xff]
        %v8752 = vld [vmem:[#allocation2 + $0x67] sm:$0xff]
        %v8753 = vld [vmem:[#allocation2 + $0x6f] sm:$0xff]
        %v8754 = vld [vmem:[#allocation2 + $0x87] sm:$0xff]
        %v8755 = vld [vmem:[#allocation2 + $0x8f] sm:$0xff]
        %v8756 = vld [vmem:[#allocation2 + $0xa7] sm:$0xff]
        %v8757 = vld [vmem:[#allocation2 + $0xaf] sm:$0xff]
        %v8758 = vld [vmem:[#allocation2 + $0xc7] sm:$0xff]
        %v8759 = vld [vmem:[#allocation2 + $0xcf] sm:$0xff]
        %v8760 = vld [vmem:[#allocation2 + $0xe7] sm:$0xff]
        %v8761 = vld [vmem:[#allocation2 + $0xef] sm:$0xff]
        %v8762 = vld [vmem:[#allocation2 + $0x107] sm:$0xff]
        %v8763 = vld [vmem:[#allocation2 + $0x10f] sm:$0xff]
        %v8764 = vld [vmem:[#allocation2 + $0x127] sm:$0xff]
        %v8765 = vld [vmem:[#allocation2 + $0x12f] sm:$0xff]
        %v8766 = vld [vmem:[#allocation2 + $0x147] sm:$0xff]
        %v8767 = vld [vmem:[#allocation2 + $0x14f] sm:$0xff]
        %v8768 = vld [vmem:[#allocation2 + $0x167] sm:$0xff]
        %v8769 = vld [vmem:[#allocation2 + $0x16f] sm:$0xff]
        %v8770 = vld [vmem:[#allocation2 + $0x187] sm:$0xff]
        %v8771 = vld [vmem:[#allocation2 + $0x18f] sm:$0xff]
        %v8772 = vld [vmem:[#allocation2 + $0x1a7] sm:$0xff]
        %v8773 = vld [vmem:[#allocation2 + $0x1af] sm:$0xff]
        %v8774 = vld [vmem:[#allocation2 + $0x1c7] sm:$0xff]
        %v8775 = vld [vmem:[#allocation2 + $0x1cf] sm:$0xff]
        %v8776 = vld [vmem:[#allocation2 + $0x1e7] sm:$0xff]
        %v8777 = vld [vmem:[#allocation2 + $0x1ef] sm:$0xff]
        %v8778 = vld [vmem:[#allocation2 + $0x207] sm:$0xff]
        %v8779 = vld [vmem:[#allocation2 + $0x20f] sm:$0xff]
        %v8780 = vld [vmem:[#allocation2 + $0x227] sm:$0xff]
        %v8781 = vld [vmem:[#allocation2 + $0x22f] sm:$0xff]
        %v8782 = vpack.c.bf16 %v8746, %v8746
        %v8783 = vpack.c.bf16 %v8747, %v8747
        %v8784 = vpack.c.bf16 %v8748, %v8748
        %v8785 = vpack.c.bf16 %v8749, %v8749
        %v8786 = vpack.c.bf16 %v8750, %v8750
        %v8787 = vpack.c.bf16 %v8751, %v8751
        %v8788 = vpack.c.bf16 %v8752, %v8752
        %v8789 = vpack.c.bf16 %v8753, %v8753
        %v8790 = vpack.c.bf16 %v8754, %v8754
        %v8791 = vpack.c.bf16 %v8755, %v8755
        %v8792 = vpack.c.bf16 %v8756, %v8756
        %v8793 = vpack.c.bf16 %v8757, %v8757
        %v8794 = vpack.c.bf16 %v8758, %v8758
        %v8795 = vpack.c.bf16 %v8759, %v8759
        %v8796 = vpack.c.bf16 %v8760, %v8760
        %v8797 = vpack.c.bf16 %v8761, %v8761
        %v8798 = vpack.c.bf16 %v8762, %v8762
        %v8799 = vpack.c.bf16 %v8763, %v8763
        %v8800 = vpack.c.bf16 %v8764, %v8764
        %v8801 = vpack.c.bf16 %v8765, %v8765
        %v8802 = vpack.c.bf16 %v8766, %v8766
        %v8803 = vpack.c.bf16 %v8767, %v8767
        %v8804 = vpack.c.bf16 %v8768, %v8768
        %v8805 = vpack.c.bf16 %v8769, %v8769
        %v8806 = vpack.c.bf16 %v8770, %v8770
        %v8807 = vpack.c.bf16 %v8771, %v8771
        %v8808 = vpack.c.bf16 %v8772, %v8772
        %v8809 = vpack.c.bf16 %v8773, %v8773
        %v8810 = vpack.c.bf16 %v8774, %v8774
        %v8811 = vpack.c.bf16 %v8775, %v8775
        %v8812 = vpack.c.bf16 %v8776, %v8776
        %v8813 = vpack.c.bf16 %v8777, %v8777
        %v8814 = vpack.c.bf16 %v8778, %v8778
        %v8815 = vpack.c.bf16 %v8779, %v8779
        %v8816 = vpack.c.bf16 %v8780, %v8780
        %v8817 = vpack.c.bf16 %v8781, %v8781
        %v8818 = vld [vmem:[#allocation2 + $0x8] sm:$0xff]
        %v8819 = vld [vmem:[#allocation2 + $0x10] sm:$0xff]
        %v8820 = vld [vmem:[#allocation2 + $0x28] sm:$0xff]
        %v8821 = vld [vmem:[#allocation2 + $0x30] sm:$0xff]
        %v8822 = vld [vmem:[#allocation2 + $0x48] sm:$0xff]
        %v8823 = vld [vmem:[#allocation2 + $0x50] sm:$0xff]
        %v8824 = vld [vmem:[#allocation2 + $0x68] sm:$0xff]
        %v8825 = vld [vmem:[#allocation2 + $0x70] sm:$0xff]
        %v8826 = vld [vmem:[#allocation2 + $0x88] sm:$0xff]
        %v8827 = vld [vmem:[#allocation2 + $0x90] sm:$0xff]
        %v8828 = vld [vmem:[#allocation2 + $0xa8] sm:$0xff]
        %v8829 = vld [vmem:[#allocation2 + $0xb0] sm:$0xff]
        %v8830 = vld [vmem:[#allocation2 + $0xc8] sm:$0xff]
        %v8831 = vld [vmem:[#allocation2 + $0xd0] sm:$0xff]
        %v8832 = vld [vmem:[#allocation2 + $0xe8] sm:$0xff]
        %v8833 = vld [vmem:[#allocation2 + $0xf0] sm:$0xff]
        %v8834 = vld [vmem:[#allocation2 + $0x108] sm:$0xff]
        %v8835 = vld [vmem:[#allocation2 + $0x110] sm:$0xff]
        %v8836 = vld [vmem:[#allocation2 + $0x128] sm:$0xff]
        %v8837 = vld [vmem:[#allocation2 + $0x130] sm:$0xff]
        %v8838 = vld [vmem:[#allocation2 + $0x148] sm:$0xff]
        %v8839 = vld [vmem:[#allocation2 + $0x150] sm:$0xff]
        %v8840 = vld [vmem:[#allocation2 + $0x168] sm:$0xff]
        %v8841 = vld [vmem:[#allocation2 + $0x170] sm:$0xff]
        %v8842 = vld [vmem:[#allocation2 + $0x188] sm:$0xff]
        %v8843 = vld [vmem:[#allocation2 + $0x190] sm:$0xff]
        %v8844 = vld [vmem:[#allocation2 + $0x1a8] sm:$0xff]
        %v8845 = vld [vmem:[#allocation2 + $0x1b0] sm:$0xff]
        %v8846 = vld [vmem:[#allocation2 + $0x1c8] sm:$0xff]
        %v8847 = vld [vmem:[#allocation2 + $0x1d0] sm:$0xff]
        %v8848 = vld [vmem:[#allocation2 + $0x1e8] sm:$0xff]
        %v8849 = vld [vmem:[#allocation2 + $0x1f0] sm:$0xff]
        %v8850 = vld [vmem:[#allocation2 + $0x208] sm:$0xff]
        %v8851 = vld [vmem:[#allocation2 + $0x210] sm:$0xff]
        %v8852 = vld [vmem:[#allocation2 + $0x228] sm:$0xff]
        %v8853 = vld [vmem:[#allocation2 + $0x230] sm:$0xff]
        %v8854 = vpack.c.bf16 %v8818, %v8818
        %v8855 = vpack.c.bf16 %v8819, %v8819
        %v8856 = vpack.c.bf16 %v8820, %v8820
        %v8857 = vpack.c.bf16 %v8821, %v8821
        %v8858 = vpack.c.bf16 %v8822, %v8822
        %v8859 = vpack.c.bf16 %v8823, %v8823
        %v8860 = vpack.c.bf16 %v8824, %v8824
        %v8861 = vpack.c.bf16 %v8825, %v8825
        %v8862 = vpack.c.bf16 %v8826, %v8826
        %v8863 = vpack.c.bf16 %v8827, %v8827
        %v8864 = vpack.c.bf16 %v8828, %v8828
        %v8865 = vpack.c.bf16 %v8829, %v8829
        %v8866 = vpack.c.bf16 %v8830, %v8830
        %v8867 = vpack.c.bf16 %v8831, %v8831
        %v8868 = vpack.c.bf16 %v8832, %v8832
        %v8869 = vpack.c.bf16 %v8833, %v8833
        %v8870 = vpack.c.bf16 %v8834, %v8834
        %v8871 = vpack.c.bf16 %v8835, %v8835
        %v8872 = vpack.c.bf16 %v8836, %v8836
        %v8873 = vpack.c.bf16 %v8837, %v8837
        %v8874 = vpack.c.bf16 %v8838, %v8838
        %v8875 = vpack.c.bf16 %v8839, %v8839
        %v8876 = vpack.c.bf16 %v8840, %v8840
        %v8877 = vpack.c.bf16 %v8841, %v8841
        %v8878 = vpack.c.bf16 %v8842, %v8842
        %v8879 = vpack.c.bf16 %v8843, %v8843
        %v8880 = vpack.c.bf16 %v8844, %v8844
        %v8881 = vpack.c.bf16 %v8845, %v8845
        %v8882 = vpack.c.bf16 %v8846, %v8846
        %v8883 = vpack.c.bf16 %v8847, %v8847
        %v8884 = vpack.c.bf16 %v8848, %v8848
        %v8885 = vpack.c.bf16 %v8849, %v8849
        %v8886 = vpack.c.bf16 %v8850, %v8850
        %v8887 = vpack.c.bf16 %v8851, %v8851
        %v8888 = vpack.c.bf16 %v8852, %v8852
        %v8889 = vpack.c.bf16 %v8853, %v8853
        %v8890 = vld [vmem:[#allocation2 + $0x9] sm:$0xff]
        %v8891 = vld [vmem:[#allocation2 + $0x11] sm:$0xff]
        %v8892 = vld [vmem:[#allocation2 + $0x29] sm:$0xff]
        %v8893 = vld [vmem:[#allocation2 + $0x31] sm:$0xff]
        %v8894 = vld [vmem:[#allocation2 + $0x49] sm:$0xff]
        %v8895 = vld [vmem:[#allocation2 + $0x51] sm:$0xff]
        %v8896 = vld [vmem:[#allocation2 + $0x69] sm:$0xff]
        %v8897 = vld [vmem:[#allocation2 + $0x71] sm:$0xff]
        %v8898 = vld [vmem:[#allocation2 + $0x89] sm:$0xff]
        %v8899 = vld [vmem:[#allocation2 + $0x91] sm:$0xff]
        %v8900 = vld [vmem:[#allocation2 + $0xa9] sm:$0xff]
        %v8901 = vld [vmem:[#allocation2 + $0xb1] sm:$0xff]
        %v8902 = vld [vmem:[#allocation2 + $0xc9] sm:$0xff]
        %v8903 = vld [vmem:[#allocation2 + $0xd1] sm:$0xff]
        %v8904 = vld [vmem:[#allocation2 + $0xe9] sm:$0xff]
        %v8905 = vld [vmem:[#allocation2 + $0xf1] sm:$0xff]
        %v8906 = vld [vmem:[#allocation2 + $0x109] sm:$0xff]
        %v8907 = vld [vmem:[#allocation2 + $0x111] sm:$0xff]
        %v8908 = vld [vmem:[#allocation2 + $0x129] sm:$0xff]
        %v8909 = vld [vmem:[#allocation2 + $0x131] sm:$0xff]
        %v8910 = vld [vmem:[#allocation2 + $0x149] sm:$0xff]
        %v8911 = vld [vmem:[#allocation2 + $0x151] sm:$0xff]
        %v8912 = vld [vmem:[#allocation2 + $0x169] sm:$0xff]
        %v8913 = vld [vmem:[#allocation2 + $0x171] sm:$0xff]
        %v8914 = vld [vmem:[#allocation2 + $0x189] sm:$0xff]
        %v8915 = vld [vmem:[#allocation2 + $0x191] sm:$0xff]
        %v8916 = vld [vmem:[#allocation2 + $0x1a9] sm:$0xff]
        %v8917 = vld [vmem:[#allocation2 + $0x1b1] sm:$0xff]
        %v8918 = vld [vmem:[#allocation2 + $0x1c9] sm:$0xff]
        %v8919 = vld [vmem:[#allocation2 + $0x1d1] sm:$0xff]
        %v8920 = vld [vmem:[#allocation2 + $0x1e9] sm:$0xff]
        %v8921 = vld [vmem:[#allocation2 + $0x1f1] sm:$0xff]
        %v8922 = vld [vmem:[#allocation2 + $0x209] sm:$0xff]
        %v8923 = vld [vmem:[#allocation2 + $0x211] sm:$0xff]
        %v8924 = vld [vmem:[#allocation2 + $0x229] sm:$0xff]
        %v8925 = vld [vmem:[#allocation2 + $0x231] sm:$0xff]
        %v8926 = vpack.c.bf16 %v8890, %v8890
        %v8927 = vpack.c.bf16 %v8891, %v8891
        %v8928 = vpack.c.bf16 %v8892, %v8892
        %v8929 = vpack.c.bf16 %v8893, %v8893
        %v8930 = vpack.c.bf16 %v8894, %v8894
        %v8931 = vpack.c.bf16 %v8895, %v8895
        %v8932 = vpack.c.bf16 %v8896, %v8896
        %v8933 = vpack.c.bf16 %v8897, %v8897
        %v8934 = vpack.c.bf16 %v8898, %v8898
        %v8935 = vpack.c.bf16 %v8899, %v8899
        %v8936 = vpack.c.bf16 %v8900, %v8900
        %v8937 = vpack.c.bf16 %v8901, %v8901
        %v8938 = vpack.c.bf16 %v8902, %v8902
        %v8939 = vpack.c.bf16 %v8903, %v8903
        %v8940 = vpack.c.bf16 %v8904, %v8904
        %v8941 = vpack.c.bf16 %v8905, %v8905
        %v8942 = vpack.c.bf16 %v8906, %v8906
        %v8943 = vpack.c.bf16 %v8907, %v8907
        %v8944 = vpack.c.bf16 %v8908, %v8908
        %v8945 = vpack.c.bf16 %v8909, %v8909
        %v8946 = vpack.c.bf16 %v8910, %v8910
        %v8947 = vpack.c.bf16 %v8911, %v8911
        %v8948 = vpack.c.bf16 %v8912, %v8912
        %v8949 = vpack.c.bf16 %v8913, %v8913
        %v8950 = vpack.c.bf16 %v8914, %v8914
        %v8951 = vpack.c.bf16 %v8915, %v8915
        %v8952 = vpack.c.bf16 %v8916, %v8916
        %v8953 = vpack.c.bf16 %v8917, %v8917
        %v8954 = vpack.c.bf16 %v8918, %v8918
        %v8955 = vpack.c.bf16 %v8919, %v8919
        %v8956 = vpack.c.bf16 %v8920, %v8920
        %v8957 = vpack.c.bf16 %v8921, %v8921
        %v8958 = vpack.c.bf16 %v8922, %v8922
        %v8959 = vpack.c.bf16 %v8923, %v8923
        %v8960 = vpack.c.bf16 %v8924, %v8924
        %v8961 = vpack.c.bf16 %v8925, %v8925
        %v8994 = vunpack.c.l.b16 %v8782
        %v8995 = vunpack.c.l.b16 %v8783
        %v8996 = vunpack.c.l.b16 %v8784
        %v8997 = vunpack.c.l.b16 %v8785
        %v8998 = vunpack.c.l.b16 %v8786
        %v8999 = vunpack.c.l.b16 %v8787
        %v9000 = vunpack.c.l.b16 %v8788
        %v9001 = vunpack.c.l.b16 %v8789
        %v9002 = vunpack.c.l.b16 %v8790
        %v9003 = vunpack.c.l.b16 %v8791
        %v9004 = vunpack.c.l.b16 %v8792
        %v9005 = vunpack.c.l.b16 %v8793
        %v9006 = vunpack.c.l.b16 %v8794
        %v9007 = vunpack.c.l.b16 %v8795
        %v9008 = vunpack.c.l.b16 %v8796
        %v9009 = vunpack.c.l.b16 %v8797
        %v9010 = vunpack.c.l.b16 %v8798
        %v9011 = vunpack.c.l.b16 %v8799
        %v9012 = vunpack.c.l.b16 %v8800
        %v9013 = vunpack.c.l.b16 %v8801
        %v9014 = vunpack.c.l.b16 %v8802
        %v9015 = vunpack.c.l.b16 %v8803
        %v9016 = vunpack.c.l.b16 %v8804
        %v9017 = vunpack.c.l.b16 %v8805
        %v9018 = vunpack.c.l.b16 %v8806
        %v9019 = vunpack.c.l.b16 %v8807
        %v9020 = vunpack.c.l.b16 %v8808
        %v9021 = vunpack.c.l.b16 %v8809
        %v9022 = vunpack.c.l.b16 %v8810
        %v9023 = vunpack.c.l.b16 %v8811
        %v9024 = vunpack.c.l.b16 %v8812
        %v9025 = vunpack.c.l.b16 %v8813
        %v9026 = vpack.c.b16 %v8995, %v8994
        %v9027 = vpack.c.b16 %v8997, %v8996
        %v9028 = vpack.c.b16 %v8999, %v8998
        %v9029 = vpack.c.b16 %v9001, %v9000
        %v9030 = vpack.c.b16 %v9003, %v9002
        %v9031 = vpack.c.b16 %v9005, %v9004
        %v9032 = vpack.c.b16 %v9007, %v9006
        %v9033 = vpack.c.b16 %v9009, %v9008
        %v9034 = vpack.c.b16 %v9011, %v9010
        %v9035 = vpack.c.b16 %v9013, %v9012
        %v9036 = vpack.c.b16 %v9015, %v9014
        %v9037 = vpack.c.b16 %v9017, %v9016
        %v9038 = vpack.c.b16 %v9019, %v9018
        %v9039 = vpack.c.b16 %v9021, %v9020
        %v9040 = vpack.c.b16 %v9023, %v9022
        %v9041 = vpack.c.b16 %v9025, %v9024
        %v9074 = vunpack.c.l.b16 %v8854
        %v9075 = vunpack.c.l.b16 %v8855
        %v9076 = vunpack.c.l.b16 %v8856
        %v9077 = vunpack.c.l.b16 %v8857
        %v9078 = vunpack.c.l.b16 %v8858
        %v9079 = vunpack.c.l.b16 %v8859
        %v9080 = vunpack.c.l.b16 %v8860
        %v9081 = vunpack.c.l.b16 %v8861
        %v9082 = vunpack.c.l.b16 %v8862
        %v9083 = vunpack.c.l.b16 %v8863
        %v9084 = vunpack.c.l.b16 %v8864
        %v9085 = vunpack.c.l.b16 %v8865
        %v9086 = vunpack.c.l.b16 %v8866
        %v9087 = vunpack.c.l.b16 %v8867
        %v9088 = vunpack.c.l.b16 %v8868
        %v9089 = vunpack.c.l.b16 %v8869
        %v9090 = vunpack.c.l.b16 %v8870
        %v9091 = vunpack.c.l.b16 %v8871
        %v9092 = vunpack.c.l.b16 %v8872
        %v9093 = vunpack.c.l.b16 %v8873
        %v9094 = vunpack.c.l.b16 %v8874
        %v9095 = vunpack.c.l.b16 %v8875
        %v9096 = vunpack.c.l.b16 %v8876
        %v9097 = vunpack.c.l.b16 %v8877
        %v9098 = vunpack.c.l.b16 %v8878
        %v9099 = vunpack.c.l.b16 %v8879
        %v9100 = vunpack.c.l.b16 %v8880
        %v9101 = vunpack.c.l.b16 %v8881
        %v9102 = vunpack.c.l.b16 %v8882
        %v9103 = vunpack.c.l.b16 %v8883
        %v9104 = vunpack.c.l.b16 %v8884
        %v9105 = vunpack.c.l.b16 %v8885
        %v9106 = vpack.c.b16 %v9075, %v9074
        %v9107 = vpack.c.b16 %v9077, %v9076
        %v9108 = vpack.c.b16 %v9079, %v9078
        %v9109 = vpack.c.b16 %v9081, %v9080
        %v9110 = vpack.c.b16 %v9083, %v9082
        %v9111 = vpack.c.b16 %v9085, %v9084
        %v9112 = vpack.c.b16 %v9087, %v9086
        %v9113 = vpack.c.b16 %v9089, %v9088
        %v9114 = vpack.c.b16 %v9091, %v9090
        %v9115 = vpack.c.b16 %v9093, %v9092
        %v9116 = vpack.c.b16 %v9095, %v9094
        %v9117 = vpack.c.b16 %v9097, %v9096
        %v9118 = vpack.c.b16 %v9099, %v9098
        %v9119 = vpack.c.b16 %v9101, %v9100
        %v9120 = vpack.c.b16 %v9103, %v9102
        %v9121 = vpack.c.b16 %v9105, %v9104
        %9122 = vrot.lane.b32.xlu0 %v9106, 32
        %v9123 = vpop.permute.xlu0 %9122
        %9124 = vrot.lane.b32.xlu0 %v9107, 32
        %v9125 = vpop.permute.xlu0 %9124
        %9126 = vrot.lane.b32.xlu0 %v9108, 32
        %v9127 = vpop.permute.xlu0 %9126
        %9128 = vrot.lane.b32.xlu0 %v9109, 32
        %v9129 = vpop.permute.xlu0 %9128
        %9130 = vrot.lane.b32.xlu0 %v9110, 32
        %v9131 = vpop.permute.xlu0 %9130
        %9132 = vrot.lane.b32.xlu0 %v9111, 32
        %v9133 = vpop.permute.xlu0 %9132
        %9134 = vrot.lane.b32.xlu0 %v9112, 32
        %v9135 = vpop.permute.xlu0 %9134
        %9136 = vrot.lane.b32.xlu0 %v9113, 32
        %v9137 = vpop.permute.xlu0 %9136
        %9138 = vrot.lane.b32.xlu0 %v9114, 32
        %v9139 = vpop.permute.xlu0 %9138
        %9140 = vrot.lane.b32.xlu0 %v9115, 32
        %v9141 = vpop.permute.xlu0 %9140
        %9142 = vrot.lane.b32.xlu0 %v9116, 32
        %v9143 = vpop.permute.xlu0 %9142
        %9144 = vrot.lane.b32.xlu0 %v9117, 32
        %v9145 = vpop.permute.xlu0 %9144
        %9146 = vrot.lane.b32.xlu0 %v9118, 32
        %v9147 = vpop.permute.xlu0 %9146
        %9148 = vrot.lane.b32.xlu0 %v9119, 32
        %v9149 = vpop.permute.xlu0 %9148
        %9150 = vrot.lane.b32.xlu0 %v9120, 32
        %v9151 = vpop.permute.xlu0 %9150
        %9152 = vrot.lane.b32.xlu0 %v9121, 32
        %v9153 = vpop.permute.xlu0 %9152
        %v9186 = vunpack.c.l.b16 %v8926
        %v9187 = vunpack.c.l.b16 %v8927
        %v9188 = vunpack.c.l.b16 %v8928
        %v9189 = vunpack.c.l.b16 %v8929
        %v9190 = vunpack.c.l.b16 %v8930
        %v9191 = vunpack.c.l.b16 %v8931
        %v9192 = vunpack.c.l.b16 %v8932
        %v9193 = vunpack.c.l.b16 %v8933
        %v9194 = vunpack.c.l.b16 %v8934
        %v9195 = vunpack.c.l.b16 %v8935
        %v9196 = vunpack.c.l.b16 %v8936
        %v9197 = vunpack.c.l.b16 %v8937
        %v9198 = vunpack.c.l.b16 %v8938
        %v9199 = vunpack.c.l.b16 %v8939
        %v9200 = vunpack.c.l.b16 %v8940
        %v9201 = vunpack.c.l.b16 %v8941
        %v9202 = vunpack.c.l.b16 %v8942
        %v9203 = vunpack.c.l.b16 %v8943
        %v9204 = vunpack.c.l.b16 %v8944
        %v9205 = vunpack.c.l.b16 %v8945
        %v9206 = vunpack.c.l.b16 %v8946
        %v9207 = vunpack.c.l.b16 %v8947
        %v9208 = vunpack.c.l.b16 %v8948
        %v9209 = vunpack.c.l.b16 %v8949
        %v9210 = vunpack.c.l.b16 %v8950
        %v9211 = vunpack.c.l.b16 %v8951
        %v9212 = vunpack.c.l.b16 %v8952
        %v9213 = vunpack.c.l.b16 %v8953
        %v9214 = vunpack.c.l.b16 %v8954
        %v9215 = vunpack.c.l.b16 %v8955
        %v9216 = vunpack.c.l.b16 %v8956
        %v9217 = vunpack.c.l.b16 %v8957
        %v9218 = vpack.c.b16 %v9187, %v9186
        %v9219 = vpack.c.b16 %v9189, %v9188
        %v9220 = vpack.c.b16 %v9191, %v9190
        %v9221 = vpack.c.b16 %v9193, %v9192
        %v9222 = vpack.c.b16 %v9195, %v9194
        %v9223 = vpack.c.b16 %v9197, %v9196
        %v9224 = vpack.c.b16 %v9199, %v9198
        %v9225 = vpack.c.b16 %v9201, %v9200
        %v9226 = vpack.c.b16 %v9203, %v9202
        %v9227 = vpack.c.b16 %v9205, %v9204
        %v9228 = vpack.c.b16 %v9207, %v9206
        %v9229 = vpack.c.b16 %v9209, %v9208
        %v9230 = vpack.c.b16 %v9211, %v9210
        %v9231 = vpack.c.b16 %v9213, %v9212
        %v9232 = vpack.c.b16 %v9215, %v9214
        %v9233 = vpack.c.b16 %v9217, %v9216
        %9234 = vrot.lane.b32.xlu0 %v9218, 64
        %v9235 = vpop.permute.xlu0 %9234
        %9236 = vrot.lane.b32.xlu0 %v9219, 64
        %v9237 = vpop.permute.xlu0 %9236
        %9238 = vrot.lane.b32.xlu0 %v9220, 64
        %v9239 = vpop.permute.xlu0 %9238
        %9240 = vrot.lane.b32.xlu0 %v9221, 64
        %v9241 = vpop.permute.xlu0 %9240
        %9242 = vrot.lane.b32.xlu0 %v9222, 64
        %v9243 = vpop.permute.xlu0 %9242
        %9244 = vrot.lane.b32.xlu0 %v9223, 64
        %v9245 = vpop.permute.xlu0 %9244
        %9246 = vrot.lane.b32.xlu0 %v9224, 64
        %v9247 = vpop.permute.xlu0 %9246
        %9248 = vrot.lane.b32.xlu0 %v9225, 64
        %v9249 = vpop.permute.xlu0 %9248
        %9250 = vrot.lane.b32.xlu0 %v9226, 64
        %v9251 = vpop.permute.xlu0 %9250
        %9252 = vrot.lane.b32.xlu0 %v9227, 64
        %v9253 = vpop.permute.xlu0 %9252
        %9254 = vrot.lane.b32.xlu0 %v9228, 64
        %v9255 = vpop.permute.xlu0 %9254
        %9256 = vrot.lane.b32.xlu0 %v9229, 64
        %v9257 = vpop.permute.xlu0 %9256
        %9258 = vrot.lane.b32.xlu0 %v9230, 64
        %v9259 = vpop.permute.xlu0 %9258
        %9260 = vrot.lane.b32.xlu0 %v9231, 64
        %v9261 = vpop.permute.xlu0 %9260
        %9262 = vrot.lane.b32.xlu0 %v9232, 64
        %v9263 = vpop.permute.xlu0 %9262
        %9264 = vrot.lane.b32.xlu0 %v9233, 64
        %v9265 = vpop.permute.xlu0 %9264
        %v9268 = vunpack.c.l.b16 %v8814
        %v9269 = vunpack.c.l.b16 %v8815
        %v9270 = vpack.c.b16 %v9269, %v9268
        %9271 = vrot.lane.b32.xlu0 %v9027, 96
        %v9272 = vpop.permute.xlu0 %9271
        %9273 = vrot.lane.b32.xlu0 %v9028, 96
        %v9274 = vpop.permute.xlu0 %9273
        %9275 = vrot.lane.b32.xlu0 %v9029, 96
        %v9276 = vpop.permute.xlu0 %9275
        %9277 = vrot.lane.b32.xlu0 %v9030, 96
        %v9278 = vpop.permute.xlu0 %9277
        %9279 = vrot.lane.b32.xlu0 %v9031, 96
        %v9280 = vpop.permute.xlu0 %9279
        %9281 = vrot.lane.b32.xlu0 %v9032, 96
        %v9282 = vpop.permute.xlu0 %9281
        %9283 = vrot.lane.b32.xlu0 %v9033, 96
        %v9284 = vpop.permute.xlu0 %9283
        %9285 = vrot.lane.b32.xlu0 %v9034, 96
        %v9286 = vpop.permute.xlu0 %9285
        %9287 = vrot.lane.b32.xlu0 %v9035, 96
        %v9288 = vpop.permute.xlu0 %9287
        %9289 = vrot.lane.b32.xlu0 %v9036, 96
        %v9290 = vpop.permute.xlu0 %9289
        %9291 = vrot.lane.b32.xlu0 %v9037, 96
        %v9292 = vpop.permute.xlu0 %9291
        %9293 = vrot.lane.b32.xlu0 %v9038, 96
        %v9294 = vpop.permute.xlu0 %9293
        %9295 = vrot.lane.b32.xlu0 %v9039, 96
        %v9296 = vpop.permute.xlu0 %9295
        %9297 = vrot.lane.b32.xlu0 %v9040, 96
        %v9298 = vpop.permute.xlu0 %9297
        %9299 = vrot.lane.b32.xlu0 %v9041, 96
        %v9300 = vpop.permute.xlu0 %9299
        %9301 = vrot.lane.b32.xlu0 %v9270, 96
        %v9302 = vpop.permute.xlu0 %9301
        %v9305 = vunpack.c.l.b16 %v8886
        %v9306 = vunpack.c.l.b16 %v8887
        %v9307 = vpack.c.b16 %v9306, %v9305
        %v9310 = vunpack.c.l.b16 %v8958
        %v9311 = vunpack.c.l.b16 %v8959
        %v9312 = vpack.c.b16 %v9311, %v9310
        %9313 = vrot.lane.b32.xlu0 %v9219, 32
        %v9314 = vpop.permute.xlu0 %9313
        %9315 = vrot.lane.b32.xlu0 %v9220, 32
        %v9316 = vpop.permute.xlu0 %9315
        %9317 = vrot.lane.b32.xlu0 %v9221, 32
        %v9318 = vpop.permute.xlu0 %9317
        %9319 = vrot.lane.b32.xlu0 %v9222, 32
        %v9320 = vpop.permute.xlu0 %9319
        %9321 = vrot.lane.b32.xlu0 %v9223, 32
        %v9322 = vpop.permute.xlu0 %9321
        %9323 = vrot.lane.b32.xlu0 %v9224, 32
        %v9324 = vpop.permute.xlu0 %9323
        %9325 = vrot.lane.b32.xlu0 %v9225, 32
        %v9326 = vpop.permute.xlu0 %9325
        %9327 = vrot.lane.b32.xlu0 %v9226, 32
        %v9328 = vpop.permute.xlu0 %9327
        %9329 = vrot.lane.b32.xlu0 %v9227, 32
        %v9330 = vpop.permute.xlu0 %9329
        %9331 = vrot.lane.b32.xlu0 %v9228, 32
        %v9332 = vpop.permute.xlu0 %9331
        %9333 = vrot.lane.b32.xlu0 %v9229, 32
        %v9334 = vpop.permute.xlu0 %9333
        %9335 = vrot.lane.b32.xlu0 %v9230, 32
        %v9336 = vpop.permute.xlu0 %9335
        %9337 = vrot.lane.b32.xlu0 %v9231, 32
        %v9338 = vpop.permute.xlu0 %9337
        %9339 = vrot.lane.b32.xlu0 %v9232, 32
        %v9340 = vpop.permute.xlu0 %9339
        %9341 = vrot.lane.b32.xlu0 %v9233, 32
        %v9342 = vpop.permute.xlu0 %9341
        %9343 = vrot.lane.b32.xlu0 %v9312, 32
        %v9344 = vpop.permute.xlu0 %9343
        %v9347 = vunpack.c.l.b16 %v8816
        %v9348 = vunpack.c.l.b16 %v8817
        %v9349 = vpack.c.b16 %v9348, %v9347
        %9350 = vrot.lane.b32.xlu0 %v9028, 64
        %v9351 = vpop.permute.xlu0 %9350
        %9352 = vrot.lane.b32.xlu0 %v9029, 64
        %v9353 = vpop.permute.xlu0 %9352
        %9354 = vrot.lane.b32.xlu0 %v9030, 64
        %v9355 = vpop.permute.xlu0 %9354
        %9356 = vrot.lane.b32.xlu0 %v9031, 64
        %v9357 = vpop.permute.xlu0 %9356
        %9358 = vrot.lane.b32.xlu0 %v9032, 64
        %v9359 = vpop.permute.xlu0 %9358
        %9360 = vrot.lane.b32.xlu0 %v9033, 64
        %v9361 = vpop.permute.xlu0 %9360
        %9362 = vrot.lane.b32.xlu0 %v9034, 64
        %v9363 = vpop.permute.xlu0 %9362
        %9364 = vrot.lane.b32.xlu0 %v9035, 64
        %v9365 = vpop.permute.xlu0 %9364
        %9366 = vrot.lane.b32.xlu0 %v9036, 64
        %v9367 = vpop.permute.xlu0 %9366
        %9368 = vrot.lane.b32.xlu0 %v9037, 64
        %v9369 = vpop.permute.xlu0 %9368
        %9370 = vrot.lane.b32.xlu0 %v9038, 64
        %v9371 = vpop.permute.xlu0 %9370
        %9372 = vrot.lane.b32.xlu0 %v9039, 64
        %v9373 = vpop.permute.xlu0 %9372
        %9374 = vrot.lane.b32.xlu0 %v9040, 64
        %v9375 = vpop.permute.xlu0 %9374
        %9376 = vrot.lane.b32.xlu0 %v9041, 64
        %v9377 = vpop.permute.xlu0 %9376
        %9378 = vrot.lane.b32.xlu0 %v9270, 64
        %v9379 = vpop.permute.xlu0 %9378
        %9380 = vrot.lane.b32.xlu0 %v9349, 64
        %v9381 = vpop.permute.xlu0 %9380
        %v9384 = vunpack.c.l.b16 %v8888
        %v9385 = vunpack.c.l.b16 %v8889
        %v9386 = vpack.c.b16 %v9385, %v9384
        %9387 = vrot.lane.b32.xlu0 %v9108, 96
        %v9388 = vpop.permute.xlu0 %9387
        %9389 = vrot.lane.b32.xlu0 %v9109, 96
        %v9390 = vpop.permute.xlu0 %9389
        %9391 = vrot.lane.b32.xlu0 %v9110, 96
        %v9392 = vpop.permute.xlu0 %9391
        %9393 = vrot.lane.b32.xlu0 %v9111, 96
        %v9394 = vpop.permute.xlu0 %9393
        %9395 = vrot.lane.b32.xlu0 %v9112, 96
        %v9396 = vpop.permute.xlu0 %9395
        %9397 = vrot.lane.b32.xlu0 %v9113, 96
        %v9398 = vpop.permute.xlu0 %9397
        %9399 = vrot.lane.b32.xlu0 %v9114, 96
        %v9400 = vpop.permute.xlu0 %9399
        %9401 = vrot.lane.b32.xlu0 %v9115, 96
        %v9402 = vpop.permute.xlu0 %9401
        %9403 = vrot.lane.b32.xlu0 %v9116, 96
        %v9404 = vpop.permute.xlu0 %9403
        %9405 = vrot.lane.b32.xlu0 %v9117, 96
        %v9406 = vpop.permute.xlu0 %9405
        %9407 = vrot.lane.b32.xlu0 %v9118, 96
        %v9408 = vpop.permute.xlu0 %9407
        %9409 = vrot.lane.b32.xlu0 %v9119, 96
        %v9410 = vpop.permute.xlu0 %9409
        %9411 = vrot.lane.b32.xlu0 %v9120, 96
        %v9412 = vpop.permute.xlu0 %9411
        %9413 = vrot.lane.b32.xlu0 %v9121, 96
        %v9414 = vpop.permute.xlu0 %9413
        %9415 = vrot.lane.b32.xlu0 %v9307, 96
        %v9416 = vpop.permute.xlu0 %9415
        %9417 = vrot.lane.b32.xlu0 %v9386, 96
        %v9418 = vpop.permute.xlu0 %9417
        %v9421 = vunpack.c.l.b16 %v8960
        %v9422 = vunpack.c.l.b16 %v8961
        %v9423 = vpack.c.b16 %v9422, %v9421
        %v9426 = vsel %vm440, %v9026, %v9123
        %v9429 = vsel %vm440, %v9027, %v9125
        %v9432 = vsel %vm440, %v9028, %v9127
        %v9435 = vsel %vm440, %v9029, %v9129
        %v9438 = vsel %vm440, %v9030, %v9131
        %v9441 = vsel %vm440, %v9031, %v9133
        %v9444 = vsel %vm440, %v9032, %v9135
        %v9447 = vsel %vm440, %v9033, %v9137
        %v9450 = vsel %vm440, %v9034, %v9139
        %v9453 = vsel %vm440, %v9035, %v9141
        %v9456 = vsel %vm440, %v9036, %v9143
        %v9459 = vsel %vm440, %v9037, %v9145
        %v9462 = vsel %vm440, %v9038, %v9147
        %v9465 = vsel %vm440, %v9039, %v9149
        %v9468 = vsel %vm440, %v9040, %v9151
        %v9471 = vsel %vm440, %v9041, %v9153
        %v9473 = vsel %vm1273, %v9426, %v9235
        %v9475 = vsel %vm1273, %v9429, %v9237
        %v9477 = vsel %vm1273, %v9432, %v9239
        %v9479 = vsel %vm1273, %v9435, %v9241
        %v9481 = vsel %vm1273, %v9438, %v9243
        %v9483 = vsel %vm1273, %v9441, %v9245
        %v9485 = vsel %vm1273, %v9444, %v9247
        %v9487 = vsel %vm1273, %v9447, %v9249
        %v9489 = vsel %vm1273, %v9450, %v9251
        %v9491 = vsel %vm1273, %v9453, %v9253
        %v9493 = vsel %vm1273, %v9456, %v9255
        %v9495 = vsel %vm1273, %v9459, %v9257
        %v9497 = vsel %vm1273, %v9462, %v9259
        %v9499 = vsel %vm1273, %v9465, %v9261
        %v9501 = vsel %vm1273, %v9468, %v9263
        %v9503 = vsel %vm1273, %v9471, %v9265
        %v9505 = vsel %vm1306, %v9473, %v9272
        %v9508 = vsel %vm1306, %v9475, %v9274
        %v9511 = vsel %vm1306, %v9477, %v9276
        %v9514 = vsel %vm1306, %v9479, %v9278
        %v9517 = vsel %vm1306, %v9481, %v9280
        %v9520 = vsel %vm1306, %v9483, %v9282
        %v9523 = vsel %vm1306, %v9485, %v9284
        %v9526 = vsel %vm1306, %v9487, %v9286
        %v9529 = vsel %vm1306, %v9489, %v9288
        %v9532 = vsel %vm1306, %v9491, %v9290
        %v9535 = vsel %vm1306, %v9493, %v9292
        %v9538 = vsel %vm1306, %v9495, %v9294
        %v9541 = vsel %vm1306, %v9497, %v9296
        %v9544 = vsel %vm1306, %v9499, %v9298
        %v9547 = vsel %vm1306, %v9501, %v9300
        %v9550 = vsel %vm1306, %v9503, %v9302
        %v9554 = vsel %vm440, %v9107, %v9314
        %v9557 = vsel %vm440, %v9108, %v9316
        %v9560 = vsel %vm440, %v9109, %v9318
        %v9563 = vsel %vm440, %v9110, %v9320
        %v9566 = vsel %vm440, %v9111, %v9322
        %v9569 = vsel %vm440, %v9112, %v9324
        %v9572 = vsel %vm440, %v9113, %v9326
        %v9575 = vsel %vm440, %v9114, %v9328
        %v9578 = vsel %vm440, %v9115, %v9330
        %v9581 = vsel %vm440, %v9116, %v9332
        %v9584 = vsel %vm440, %v9117, %v9334
        %v9587 = vsel %vm440, %v9118, %v9336
        %v9590 = vsel %vm440, %v9119, %v9338
        %v9593 = vsel %vm440, %v9120, %v9340
        %v9596 = vsel %vm440, %v9121, %v9342
        %v9599 = vsel %vm440, %v9307, %v9344
        %v9601 = vsel %vm1273, %v9554, %v9351
        %v9603 = vsel %vm1273, %v9557, %v9353
        %v9605 = vsel %vm1273, %v9560, %v9355
        %v9607 = vsel %vm1273, %v9563, %v9357
        %v9609 = vsel %vm1273, %v9566, %v9359
        %v9611 = vsel %vm1273, %v9569, %v9361
        %v9613 = vsel %vm1273, %v9572, %v9363
        %v9615 = vsel %vm1273, %v9575, %v9365
        %v9617 = vsel %vm1273, %v9578, %v9367
        %v9619 = vsel %vm1273, %v9581, %v9369
        %v9621 = vsel %vm1273, %v9584, %v9371
        %v9623 = vsel %vm1273, %v9587, %v9373
        %v9625 = vsel %vm1273, %v9590, %v9375
        %v9627 = vsel %vm1273, %v9593, %v9377
        %v9629 = vsel %vm1273, %v9596, %v9379
        %v9631 = vsel %vm1273, %v9599, %v9381
        %v9633 = vsel %vm1306, %v9601, %v9388
        %v9636 = vsel %vm1306, %v9603, %v9390
        %v9639 = vsel %vm1306, %v9605, %v9392
        %v9642 = vsel %vm1306, %v9607, %v9394
        %v9645 = vsel %vm1306, %v9609, %v9396
        %v9648 = vsel %vm1306, %v9611, %v9398
        %v9651 = vsel %vm1306, %v9613, %v9400
        %v9654 = vsel %vm1306, %v9615, %v9402
        %v9657 = vsel %vm1306, %v9617, %v9404
        %v9660 = vsel %vm1306, %v9619, %v9406
        %v9663 = vsel %vm1306, %v9621, %v9408
        %v9666 = vsel %vm1306, %v9623, %v9410
        %v9669 = vsel %vm1306, %v9625, %v9412
        %v9672 = vsel %vm1306, %v9627, %v9414
        %v9675 = vsel %vm1306, %v9629, %v9416
        %v9678 = vsel %vm1306, %v9631, %v9418
        %v9680 = vld [vmem:[%s11] sm:$0xf]
        %v9681 = vld [vmem:[%s11 + $0x4] sm:$0xf]
        %v9682 = vld [vmem:[%s11 + $0x8] sm:$0xf]
        %v9683 = vld [vmem:[%s11 + $0xc] sm:$0xf]
        %v9684 = vld [vmem:[%s11 + $0x10] sm:$0xf]
        %v9685 = vld [vmem:[%s11 + $0x14] sm:$0xf]
        %v9686 = vld [vmem:[%s11 + $0x18] sm:$0xf]
        %v9687 = vld [vmem:[%s11 + $0x1c] sm:$0xf]
        %v9688 = vld [vmem:[%s11 + $0x20] sm:$0xf]
        %v9689 = vld [vmem:[%s11 + $0x24] sm:$0xf]
        %v9690 = vld [vmem:[%s11 + $0x28] sm:$0xf]
        %v9691 = vld [vmem:[%s11 + $0x2c] sm:$0xf]
        %v9692 = vld [vmem:[%s11 + $0x30] sm:$0xf]
        %v9693 = vld [vmem:[%s11 + $0x34] sm:$0xf]
        %v9694 = vld [vmem:[%s11 + $0x38] sm:$0xf]
        %v9695 = vld [vmem:[%s11 + $0x3c] sm:$0xf]
        %v9696 = vld [vmem:[%s11 + $0x40] sm:$0xf]
        %v9697 = vld [vmem:[%s11 + $0x44] sm:$0xf]
        %v9698 = vld [vmem:[%s11 + $0x48] sm:$0xf]
        %v9699 = vld [vmem:[%s11 + $0x4c] sm:$0xf]
        %v9700 = vld [vmem:[%s11 + $0x50] sm:$0xf]
        %v9701 = vld [vmem:[%s11 + $0x54] sm:$0xf]
        %v9702 = vld [vmem:[%s11 + $0x58] sm:$0xf]
        %v9703 = vld [vmem:[%s11 + $0x5c] sm:$0xf]
        %v9704 = vld [vmem:[%s11 + $0x60] sm:$0xf]
        %v9705 = vld [vmem:[%s11 + $0x64] sm:$0xf]
        %v9706 = vld [vmem:[%s11 + $0x68] sm:$0xf]
        %v9707 = vld [vmem:[%s11 + $0x6c] sm:$0xf]
        %v9708 = vld [vmem:[%s11 + $0x70] sm:$0xf]
        %v9709 = vld [vmem:[%s11 + $0x74] sm:$0xf]
        %v9710 = vld [vmem:[%s11 + $0x78] sm:$0xf]
        %v9711 = vld [vmem:[%s11 + $0x7c] sm:$0xf]
        %v9712 = vld [vmem:[%s11 + $0x80] sm:$0xf]
        %v9713 = vld [vmem:[%s11 + $0x84] sm:$0xf]
        %v9714 = vld [vmem:[%s11 + $0x88] sm:$0xf]
        %v9715 = vld [vmem:[%s11 + $0x8c] sm:$0xf]
        %v9716 = vld [vmem:[%s12] sm:$0x1]
        %v9718 = vperm.slane %v9716, 0
        %v9756 = vunpack.c.l.b16 %v9680
        %v9757 = vunpack.c.l.b16 %v9681
        %v9758 = vunpack.c.l.b16 %v9682
        %v9759 = vunpack.c.l.b16 %v9683
        %v9760 = vunpack.c.l.b16 %v9684
        %v9761 = vunpack.c.l.b16 %v9685
        %v9762 = vunpack.c.l.b16 %v9686
        %v9763 = vunpack.c.l.b16 %v9687
        %v9764 = vunpack.c.l.b16 %v9688
        %v9765 = vunpack.c.l.b16 %v9689
        %v9766 = vunpack.c.l.b16 %v9690
        %v9767 = vunpack.c.l.b16 %v9691
        %v9768 = vunpack.c.l.b16 %v9692
        %v9769 = vunpack.c.l.b16 %v9693
        %v9770 = vunpack.c.l.b16 %v9694
        %v9771 = vunpack.c.l.b16 %v9695
        %v9772 = vunpack.c.l.b16 %v9696
        %v9773 = vunpack.c.l.b16 %v9697
        %v9774 = vunpack.c.l.b16 %v9698
        %v9775 = vunpack.c.l.b16 %v9699
        %v9776 = vunpack.c.l.b16 %v9700
        %v9777 = vunpack.c.l.b16 %v9701
        %v9778 = vunpack.c.l.b16 %v9702
        %v9779 = vunpack.c.l.b16 %v9703
        %v9780 = vunpack.c.l.b16 %v9704
        %v9781 = vunpack.c.l.b16 %v9705
        %v9782 = vunpack.c.l.b16 %v9706
        %v9783 = vunpack.c.l.b16 %v9707
        %v9784 = vunpack.c.l.b16 %v9708
        %v9785 = vunpack.c.l.b16 %v9709
        %v9786 = vunpack.c.l.b16 %v9710
        %v9787 = vunpack.c.l.b16 %v9711
        %v9788 = vunpack.c.l.b16 %v9712
        %v9789 = vunpack.c.l.b16 %v9713
        %v9790 = vunpack.c.l.b16 %v9714
        %v9791 = vunpack.c.l.b16 %v9715
        %v9792 = vpack.c.b16 %v9757, %v9756
        %v9793 = vpack.c.b16 %v9759, %v9758
        %v9794 = vpack.c.b16 %v9761, %v9760
        %v9795 = vpack.c.b16 %v9763, %v9762
        %v9796 = vpack.c.b16 %v9765, %v9764
        %v9797 = vpack.c.b16 %v9767, %v9766
        %v9798 = vpack.c.b16 %v9769, %v9768
        %v9799 = vpack.c.b16 %v9771, %v9770
        %v9800 = vpack.c.b16 %v9773, %v9772
        %v9801 = vpack.c.b16 %v9775, %v9774
        %v9802 = vpack.c.b16 %v9777, %v9776
        %v9803 = vpack.c.b16 %v9779, %v9778
        %v9804 = vpack.c.b16 %v9781, %v9780
        %v9805 = vpack.c.b16 %v9783, %v9782
        %v9806 = vpack.c.b16 %v9785, %v9784
        %v9807 = vpack.c.b16 %v9787, %v9786
        %v9808 = vpack.c.b16 %v9789, %v9788
        %v9809 = vpack.c.b16 %v9791, %v9790
        %v9829 = vsel %vm440, %v9220, 0
        %v9832 = vsel %vm440, %v9221, 0
        %v9835 = vsel %vm440, %v9222, 0
        %v9838 = vsel %vm440, %v9223, 0
        %v9841 = vsel %vm440, %v9224, 0
        %v9844 = vsel %vm440, %v9225, 0
        %v9847 = vsel %vm440, %v9226, 0
        %v9850 = vsel %vm440, %v9227, 0
        %v9853 = vsel %vm440, %v9228, 0
        %v9856 = vsel %vm440, %v9229, 0
        %v9859 = vsel %vm440, %v9230, 0
        %v9862 = vsel %vm440, %v9231, 0
        %v9865 = vsel %vm440, %v9232, 0
        %v9868 = vsel %vm440, %v9233, 0
        %v9871 = vsel %vm440, %v9312, 0
        %v9874 = vsel %vm440, %v9423, 0
        %9876 = vmatpush.bf16.msra.mxu0 %v9799
        %9877 = vmatpush.bf16.msra.mxu0 %v9798
        %9878 = vmatpush.bf16.msra.mxu0 %v9797
        %9879 = vmatpush.bf16.msra.mxu0 %v9796
        %9880 = vmatpush.bf16.msra.mxu0 %v9795
        %9881 = vmatpush.bf16.msra.mxu0 %v9794
        %9882 = vmatpush.bf16.msra.mxu0 %v9793
        %9883 = vmatpush.bf16.msra.mxu0 %v9792
        %9884 = vmatmul.bf16.gmra.mxu0 %v9505
        %v9885 = vpop.f32.mrf.mxu0
        %v9886 = vadd.f32 %v9718, %v9885
        %v9887 = vpop.f32.mrf.mxu0
        %v9888 = vadd.f32 %v9718, %v9887
        %9889 = vmatmul.bf16.gmra.mxu0 %v9508
        %v9890 = vpop.f32.mrf.mxu0
        %v9891 = vadd.f32 %v9718, %v9890
        %v9892 = vpop.f32.mrf.mxu0
        %v9893 = vadd.f32 %v9718, %v9892
        %9894 = vmatmul.bf16.gmra.mxu0 %v9511
        %v9895 = vpop.f32.mrf.mxu0
        %v9896 = vadd.f32 %v9718, %v9895
        %v9897 = vpop.f32.mrf.mxu0
        %v9898 = vadd.f32 %v9718, %v9897
        %9899 = vmatmul.bf16.gmra.mxu0 %v9514
        %v9900 = vpop.f32.mrf.mxu0
        %v9901 = vadd.f32 %v9718, %v9900
        %v9902 = vpop.f32.mrf.mxu0
        %v9903 = vadd.f32 %v9718, %v9902
        %9904 = vmatmul.bf16.gmra.mxu0 %v9517
        %v9905 = vpop.f32.mrf.mxu0
        %v9906 = vadd.f32 %v9718, %v9905
        %v9907 = vpop.f32.mrf.mxu0
        %v9908 = vadd.f32 %v9718, %v9907
        %9909 = vmatmul.bf16.gmra.mxu0 %v9520
        %v9910 = vpop.f32.mrf.mxu0
        %v9911 = vadd.f32 %v9718, %v9910
        %v9912 = vpop.f32.mrf.mxu0
        %v9913 = vadd.f32 %v9718, %v9912
        %9914 = vmatmul.bf16.gmra.mxu0 %v9523
        %v9915 = vpop.f32.mrf.mxu0
        %v9916 = vadd.f32 %v9718, %v9915
        %v9917 = vpop.f32.mrf.mxu0
        %v9918 = vadd.f32 %v9718, %v9917
        %9919 = vmatmul.bf16.gmra.mxu0 %v9526
        %v9920 = vpop.f32.mrf.mxu0
        %v9921 = vadd.f32 %v9718, %v9920
        %v9922 = vpop.f32.mrf.mxu0
        %v9923 = vadd.f32 %v9718, %v9922
        %9924 = vmatmul.bf16.gmra.mxu0 %v9529
        %v9925 = vpop.f32.mrf.mxu0
        %v9926 = vadd.f32 %v9718, %v9925
        %v9927 = vpop.f32.mrf.mxu0
        %v9928 = vadd.f32 %v9718, %v9927
        %9929 = vmatmul.bf16.gmra.mxu0 %v9532
        %v9930 = vpop.f32.mrf.mxu0
        %v9931 = vadd.f32 %v9718, %v9930
        %v9932 = vpop.f32.mrf.mxu0
        %v9933 = vadd.f32 %v9718, %v9932
        %9934 = vmatmul.bf16.gmra.mxu0 %v9535
        %v9935 = vpop.f32.mrf.mxu0
        %v9936 = vadd.f32 %v9718, %v9935
        %v9937 = vpop.f32.mrf.mxu0
        %v9938 = vadd.f32 %v9718, %v9937
        %9939 = vmatmul.bf16.gmra.mxu0 %v9538
        %v9940 = vpop.f32.mrf.mxu0
        %v9941 = vadd.f32 %v9718, %v9940
        %v9942 = vpop.f32.mrf.mxu0
        %v9943 = vadd.f32 %v9718, %v9942
        %9944 = vmatmul.bf16.gmra.mxu0 %v9541
        %v9945 = vpop.f32.mrf.mxu0
        %v9946 = vadd.f32 %v9718, %v9945
        %v9947 = vpop.f32.mrf.mxu0
        %v9948 = vadd.f32 %v9718, %v9947
        %9949 = vmatmul.bf16.gmra.mxu0 %v9544
        %v9950 = vpop.f32.mrf.mxu0
        %v9951 = vadd.f32 %v9718, %v9950
        %v9952 = vpop.f32.mrf.mxu0
        %v9953 = vadd.f32 %v9718, %v9952
        %9954 = vmatmul.bf16.gmra.mxu0 %v9547
        %v9955 = vpop.f32.mrf.mxu0
        %v9956 = vadd.f32 %v9718, %v9955
        %v9957 = vpop.f32.mrf.mxu0
        %v9958 = vadd.f32 %v9718, %v9957
        %9959 = vmatmul.bf16.gmra.mxu0 %v9550
        %v9960 = vpop.f32.mrf.mxu0
        %v9961 = vadd.f32 %v9718, %v9960
        %v9962 = vpop.f32.mrf.mxu0
        %v9963 = vadd.f32 %v9718, %v9962
        %9964 = vdwg.mxu0
        %9965 = vmatpush.bf16.msra.mxu0 %v9807
        %9966 = vmatpush.bf16.msra.mxu0 %v9806
        %9967 = vmatpush.bf16.msra.mxu0 %v9805
        %9968 = vmatpush.bf16.msra.mxu0 %v9804
        %9969 = vmatpush.bf16.msra.mxu0 %v9803
        %9970 = vmatpush.bf16.msra.mxu0 %v9802
        %9971 = vmatpush.bf16.msra.mxu0 %v9801
        %9972 = vmatpush.bf16.msra.mxu0 %v9800
        %9973 = vmatmul.bf16.gmra.mxu0 %v9633
        %v9974 = vpop.f32.mrf.mxu0
        %v9975 = vadd.f32 %v9886, %v9974
        %v9976 = vpop.f32.mrf.mxu0
        %v9977 = vadd.f32 %v9888, %v9976
        %9978 = vmatmul.bf16.gmra.mxu0 %v9636
        %v9979 = vpop.f32.mrf.mxu0
        %v9980 = vadd.f32 %v9891, %v9979
        %v9981 = vpop.f32.mrf.mxu0
        %v9982 = vadd.f32 %v9893, %v9981
        %9983 = vmatmul.bf16.gmra.mxu0 %v9639
        %v9984 = vpop.f32.mrf.mxu0
        %v9985 = vadd.f32 %v9896, %v9984
        %v9986 = vpop.f32.mrf.mxu0
        %v9987 = vadd.f32 %v9898, %v9986
        %9988 = vmatmul.bf16.gmra.mxu0 %v9642
        %v9989 = vpop.f32.mrf.mxu0
        %v9990 = vadd.f32 %v9901, %v9989
        %v9991 = vpop.f32.mrf.mxu0
        %v9992 = vadd.f32 %v9903, %v9991
        %9993 = vmatmul.bf16.gmra.mxu0 %v9645
        %v9994 = vpop.f32.mrf.mxu0
        %v9995 = vadd.f32 %v9906, %v9994
        %v9996 = vpop.f32.mrf.mxu0
        %v9997 = vadd.f32 %v9908, %v9996
        %9998 = vmatmul.bf16.gmra.mxu0 %v9648
        %v9999 = vpop.f32.mrf.mxu0
        %v10000 = vadd.f32 %v9911, %v9999
        %v10001 = vpop.f32.mrf.mxu0
        %v10002 = vadd.f32 %v9913, %v10001
        %10003 = vmatmul.bf16.gmra.mxu0 %v9651
        %v10004 = vpop.f32.mrf.mxu0
        %v10005 = vadd.f32 %v9916, %v10004
        %v10006 = vpop.f32.mrf.mxu0
        %v10007 = vadd.f32 %v9918, %v10006
        %10008 = vmatmul.bf16.gmra.mxu0 %v9654
        %v10009 = vpop.f32.mrf.mxu0
        %v10010 = vadd.f32 %v9921, %v10009
        %v10011 = vpop.f32.mrf.mxu0
        %v10012 = vadd.f32 %v9923, %v10011
        %10013 = vmatmul.bf16.gmra.mxu0 %v9657
        %v10014 = vpop.f32.mrf.mxu0
        %v10015 = vadd.f32 %v9926, %v10014
        %v10016 = vpop.f32.mrf.mxu0
        %v10017 = vadd.f32 %v9928, %v10016
        %10018 = vmatmul.bf16.gmra.mxu0 %v9660
        %v10019 = vpop.f32.mrf.mxu0
        %v10020 = vadd.f32 %v9931, %v10019
        %v10021 = vpop.f32.mrf.mxu0
        %v10022 = vadd.f32 %v9933, %v10021
        %10023 = vmatmul.bf16.gmra.mxu0 %v9663
        %v10024 = vpop.f32.mrf.mxu0
        %v10025 = vadd.f32 %v9936, %v10024
        %v10026 = vpop.f32.mrf.mxu0
        %v10027 = vadd.f32 %v9938, %v10026
        %10028 = vmatmul.bf16.gmra.mxu0 %v9666
        %v10029 = vpop.f32.mrf.mxu0
        %v10030 = vadd.f32 %v9941, %v10029
        %v10031 = vpop.f32.mrf.mxu0
        %v10032 = vadd.f32 %v9943, %v10031
        %10033 = vmatmul.bf16.gmra.mxu0 %v9669
        %v10034 = vpop.f32.mrf.mxu0
        %v10035 = vadd.f32 %v9946, %v10034
        %v10036 = vpop.f32.mrf.mxu0
        %v10037 = vadd.f32 %v9948, %v10036
        %10038 = vmatmul.bf16.gmra.mxu0 %v9672
        %v10039 = vpop.f32.mrf.mxu0
        %v10040 = vadd.f32 %v9951, %v10039
        %v10041 = vpop.f32.mrf.mxu0
        %v10042 = vadd.f32 %v9953, %v10041
        %10043 = vmatmul.bf16.gmra.mxu0 %v9675
        %v10044 = vpop.f32.mrf.mxu0
        %v10045 = vadd.f32 %v9956, %v10044
        %v10046 = vpop.f32.mrf.mxu0
        %v10047 = vadd.f32 %v9958, %v10046
        %10048 = vmatmul.bf16.gmra.mxu0 %v9678
        %v10049 = vpop.f32.mrf.mxu0
        %v10050 = vadd.f32 %v9961, %v10049
        %v10051 = vpop.f32.mrf.mxu0
        %v10052 = vadd.f32 %v9963, %v10051
        %10053 = vdwg.mxu0
        %10054 = vmatpush.bf16.msra.mxu0 0
        %10055 = vmatpush.bf16.msra.mxu0 0
        %10056 = vmatpush.bf16.msra.mxu0 0
        %10057 = vmatpush.bf16.msra.mxu0 0
        %10058 = vmatpush.bf16.msra.mxu0 0
        %10059 = vmatpush.bf16.msra.mxu0 0
        %10060 = vmatpush.bf16.msra.mxu0 %v9809
        %10061 = vmatpush.bf16.msra.mxu0 %v9808
        %10062 = vmatmul.bf16.gmra.mxu0 %v9829
        %v10063 = vpop.f32.mrf.mxu0
        %v10064 = vadd.f32 %v9975, %v10063
        %v10065 = vpop.f32.mrf.mxu0
        %v10066 = vadd.f32 %v9977, %v10065
        %10067 = vmatmul.bf16.gmra.mxu0 %v9832
        %v10068 = vpop.f32.mrf.mxu0
        %v10069 = vadd.f32 %v9980, %v10068
        %v10070 = vpop.f32.mrf.mxu0
        %v10071 = vadd.f32 %v9982, %v10070
        %10072 = vmatmul.bf16.gmra.mxu0 %v9835
        %v10073 = vpop.f32.mrf.mxu0
        %v10074 = vadd.f32 %v9985, %v10073
        %v10075 = vpop.f32.mrf.mxu0
        %v10076 = vadd.f32 %v9987, %v10075
        %10077 = vmatmul.bf16.gmra.mxu0 %v9838
        %v10078 = vpop.f32.mrf.mxu0
        %v10079 = vadd.f32 %v9990, %v10078
        %v10080 = vpop.f32.mrf.mxu0
        %v10081 = vadd.f32 %v9992, %v10080
        %10082 = vmatmul.bf16.gmra.mxu0 %v9841
        %v10083 = vpop.f32.mrf.mxu0
        %v10084 = vadd.f32 %v9995, %v10083
        %v10085 = vpop.f32.mrf.mxu0
        %v10086 = vadd.f32 %v9997, %v10085
        %10087 = vmatmul.bf16.gmra.mxu0 %v9844
        %v10088 = vpop.f32.mrf.mxu0
        %v10089 = vadd.f32 %v10000, %v10088
        %v10090 = vpop.f32.mrf.mxu0
        %v10091 = vadd.f32 %v10002, %v10090
        %10092 = vmatmul.bf16.gmra.mxu0 %v9847
        %v10093 = vpop.f32.mrf.mxu0
        %v10094 = vadd.f32 %v10005, %v10093
        %v10095 = vpop.f32.mrf.mxu0
        %v10096 = vadd.f32 %v10007, %v10095
        %10097 = vmatmul.bf16.gmra.mxu0 %v9850
        %v10098 = vpop.f32.mrf.mxu0
        %v10099 = vadd.f32 %v10010, %v10098
        %v10100 = vpop.f32.mrf.mxu0
        %v10101 = vadd.f32 %v10012, %v10100
        %10102 = vmatmul.bf16.gmra.mxu0 %v9853
        %v10103 = vpop.f32.mrf.mxu0
        %v10104 = vadd.f32 %v10015, %v10103
        %v10105 = vpop.f32.mrf.mxu0
        %v10106 = vadd.f32 %v10017, %v10105
        %10107 = vmatmul.bf16.gmra.mxu0 %v9856
        %v10108 = vpop.f32.mrf.mxu0
        %v10109 = vadd.f32 %v10020, %v10108
        %v10110 = vpop.f32.mrf.mxu0
        %v10111 = vadd.f32 %v10022, %v10110
        %10112 = vmatmul.bf16.gmra.mxu0 %v9859
        %v10113 = vpop.f32.mrf.mxu0
        %v10114 = vadd.f32 %v10025, %v10113
        %v10115 = vpop.f32.mrf.mxu0
        %v10116 = vadd.f32 %v10027, %v10115
        %10117 = vmatmul.bf16.gmra.mxu0 %v9862
        %v10118 = vpop.f32.mrf.mxu0
        %v10119 = vadd.f32 %v10030, %v10118
        %v10120 = vpop.f32.mrf.mxu0
        %v10121 = vadd.f32 %v10032, %v10120
        %10122 = vmatmul.bf16.gmra.mxu0 %v9865
        %v10123 = vpop.f32.mrf.mxu0
        %v10124 = vadd.f32 %v10035, %v10123
        %v10125 = vpop.f32.mrf.mxu0
        %v10126 = vadd.f32 %v10037, %v10125
        %10127 = vmatmul.bf16.gmra.mxu0 %v9868
        %v10128 = vpop.f32.mrf.mxu0
        %v10129 = vadd.f32 %v10040, %v10128
        %v10130 = vpop.f32.mrf.mxu0
        %v10131 = vadd.f32 %v10042, %v10130
        %10132 = vmatmul.bf16.gmra.mxu0 %v9871
        %v10133 = vpop.f32.mrf.mxu0
        %v10134 = vadd.f32 %v10045, %v10133
        %v10135 = vpop.f32.mrf.mxu0
        %v10136 = vadd.f32 %v10047, %v10135
        %10137 = vmatmul.bf16.gmra.mxu0 %v9874
        %v10138 = vpop.f32.mrf.mxu0
        %v10139 = vadd.f32 %v10050, %v10138
        %v10140 = vpop.f32.mrf.mxu0
        %v10141 = vadd.f32 %v10052, %v10140
        %10142 = vdwg.mxu0
        %vm10143 = vcmp.ge.s32.totalorder %v3071, 1
        %vm10144 = vcmp.lt.s32.totalorder %v3071, 17
        %vm10145 = vmand %vm10143, %vm10144
        %v10146 = vmax.f32 %v10064, 0.0
        %v10147 = vmax.f32 %v10066, 0.0
        %v10148 = vmax.f32 %v10069, 0.0
        %v10149 = vmax.f32 %v10071, 0.0
        %v10150 = vmax.f32 %v10074, 0.0
        %v10151 = vmax.f32 %v10076, 0.0
        %v10152 = vmax.f32 %v10079, 0.0
        %v10153 = vmax.f32 %v10081, 0.0
        %v10154 = vmax.f32 %v10084, 0.0
        %v10155 = vmax.f32 %v10086, 0.0
        %v10156 = vmax.f32 %v10089, 0.0
        %v10157 = vmax.f32 %v10091, 0.0
        %v10158 = vmax.f32 %v10094, 0.0
        %v10159 = vmax.f32 %v10096, 0.0
        %v10160 = vmax.f32 %v10099, 0.0
        %v10161 = vmax.f32 %v10101, 0.0
        %v10162 = vmax.f32 %v10104, 0.0
        %v10163 = vmax.f32 %v10106, 0.0
        %v10164 = vmax.f32 %v10109, 0.0
        %v10165 = vmax.f32 %v10111, 0.0
        %v10166 = vmax.f32 %v10114, 0.0
        %v10167 = vmax.f32 %v10116, 0.0
        %v10168 = vmax.f32 %v10119, 0.0
        %v10169 = vmax.f32 %v10121, 0.0
        %v10170 = vmax.f32 %v10124, 0.0
        %v10171 = vmax.f32 %v10126, 0.0
        %v10172 = vmax.f32 %v10129, 0.0
        %v10173 = vmax.f32 %v10131, 0.0
        %v10174 = vmax.f32 %v10134, 0.0
        %v10175 = vmax.f32 %v10136, 0.0
        %v10176 = vmax.f32 %v10139, 0.0
        %v10177 = vmax.f32 %v10141, 0.0
        %v10178 = vsel %vm10145, 1, 0
        %vm10179 = vcmp.eq.s32.totalorder %v10178, 1
        %v10180 = vsel %vm10179, %v10146, %v10064
        %v10181 = vsel %vm10179, %v10147, %v10066
        %v10182 = vsel %vm10179, %v10148, %v10069
        %v10183 = vsel %vm10179, %v10149, %v10071
        %v10184 = vsel %vm10179, %v10150, %v10074
        %v10185 = vsel %vm10179, %v10151, %v10076
        %v10186 = vsel %vm10179, %v10152, %v10079
        %v10187 = vsel %vm10179, %v10153, %v10081
        %v10188 = vsel %vm10179, %v10154, %v10084
        %v10189 = vsel %vm10179, %v10155, %v10086
        %v10190 = vsel %vm10179, %v10156, %v10089
        %v10191 = vsel %vm10179, %v10157, %v10091
        %v10192 = vsel %vm10179, %v10158, %v10094
        %v10193 = vsel %vm10179, %v10159, %v10096
        %v10194 = vsel %vm10179, %v10160, %v10099
        %v10195 = vsel %vm10179, %v10161, %v10101
        %v10196 = vsel %vm10179, %v10162, %v10104
        %v10197 = vsel %vm10179, %v10163, %v10106
        %v10198 = vsel %vm10179, %v10164, %v10109
        %v10199 = vsel %vm10179, %v10165, %v10111
        %v10200 = vsel %vm10179, %v10166, %v10114
        %v10201 = vsel %vm10179, %v10167, %v10116
        %v10202 = vsel %vm10179, %v10168, %v10119
        %v10203 = vsel %vm10179, %v10169, %v10121
        %v10204 = vsel %vm10179, %v10170, %v10124
        %v10205 = vsel %vm10179, %v10171, %v10126
        %v10206 = vsel %vm10179, %v10172, %v10129
        %v10207 = vsel %vm10179, %v10173, %v10131
        %v10208 = vsel %vm10179, %v10174, %v10134
        %v10209 = vsel %vm10179, %v10175, %v10136
        %v10210 = vsel %vm10179, %v10176, %v10139
        %v10211 = vsel %vm10179, %v10177, %v10141
        %10244 = vrot.lane.b32.xlu0 %v10180, 64
        %v10245 = vpop.permute.xlu0 %10244
        %10246 = vrot.lane.b32.xlu0 %v10181, 64
        %v10247 = vpop.permute.xlu0 %10246
        %10248 = vrot.lane.b32.xlu0 %v10182, 64
        %v10249 = vpop.permute.xlu0 %10248
        %10250 = vrot.lane.b32.xlu0 %v10183, 64
        %v10251 = vpop.permute.xlu0 %10250
        %10252 = vrot.lane.b32.xlu0 %v10184, 64
        %v10253 = vpop.permute.xlu0 %10252
        %10254 = vrot.lane.b32.xlu0 %v10185, 64
        %v10255 = vpop.permute.xlu0 %10254
        %10256 = vrot.lane.b32.xlu0 %v10186, 64
        %v10257 = vpop.permute.xlu0 %10256
        %10258 = vrot.lane.b32.xlu0 %v10187, 64
        %v10259 = vpop.permute.xlu0 %10258
        %10260 = vrot.lane.b32.xlu0 %v10188, 64
        %v10261 = vpop.permute.xlu0 %10260
        %10262 = vrot.lane.b32.xlu0 %v10189, 64
        %v10263 = vpop.permute.xlu0 %10262
        %10264 = vrot.lane.b32.xlu0 %v10190, 64
        %v10265 = vpop.permute.xlu0 %10264
        %10266 = vrot.lane.b32.xlu0 %v10191, 64
        %v10267 = vpop.permute.xlu0 %10266
        %10268 = vrot.lane.b32.xlu0 %v10192, 64
        %v10269 = vpop.permute.xlu0 %10268
        %10270 = vrot.lane.b32.xlu0 %v10193, 64
        %v10271 = vpop.permute.xlu0 %10270
        %10272 = vrot.lane.b32.xlu0 %v10194, 64
        %v10273 = vpop.permute.xlu0 %10272
        %10274 = vrot.lane.b32.xlu0 %v10195, 64
        %v10275 = vpop.permute.xlu0 %10274
        %10276 = vrot.lane.b32.xlu0 %v10196, 64
        %v10277 = vpop.permute.xlu0 %10276
        %10278 = vrot.lane.b32.xlu0 %v10197, 64
        %v10279 = vpop.permute.xlu0 %10278
        %10280 = vrot.lane.b32.xlu0 %v10198, 64
        %v10281 = vpop.permute.xlu0 %10280
        %10282 = vrot.lane.b32.xlu0 %v10199, 64
        %v10283 = vpop.permute.xlu0 %10282
        %10284 = vrot.lane.b32.xlu0 %v10200, 64
        %v10285 = vpop.permute.xlu0 %10284
        %10286 = vrot.lane.b32.xlu0 %v10201, 64
        %v10287 = vpop.permute.xlu0 %10286
        %10288 = vrot.lane.b32.xlu0 %v10202, 64
        %v10289 = vpop.permute.xlu0 %10288
        %10290 = vrot.lane.b32.xlu0 %v10203, 64
        %v10291 = vpop.permute.xlu0 %10290
        %10292 = vrot.lane.b32.xlu0 %v10204, 64
        %v10293 = vpop.permute.xlu0 %10292
        %10294 = vrot.lane.b32.xlu0 %v10205, 64
        %v10295 = vpop.permute.xlu0 %10294
        %10296 = vrot.lane.b32.xlu0 %v10206, 64
        %v10297 = vpop.permute.xlu0 %10296
        %10298 = vrot.lane.b32.xlu0 %v10207, 64
        %v10299 = vpop.permute.xlu0 %10298
        %10300 = vrot.lane.b32.xlu0 %v10208, 64
        %v10301 = vpop.permute.xlu0 %10300
        %10302 = vrot.lane.b32.xlu0 %v10209, 64
        %v10303 = vpop.permute.xlu0 %10302
        %10304 = vrot.lane.b32.xlu0 %v10210, 64
        %v10305 = vpop.permute.xlu0 %10304
        %10306 = vrot.lane.b32.xlu0 %v10211, 64
        %v10307 = vpop.permute.xlu0 %10306
        %v10340 = vsel %vm1273, %v6898, %v10245
        %v10341 = vsel %vm1273, %v6899, %v10247
        %v10342 = vsel %vm1273, %v6900, %v10249
        %v10343 = vsel %vm1273, %v6901, %v10251
        %v10344 = vsel %vm1273, %v6902, %v10253
        %v10345 = vsel %vm1273, %v6903, %v10255
        %v10346 = vsel %vm1273, %v6904, %v10257
        %v10347 = vsel %vm1273, %v6905, %v10259
        %v10348 = vsel %vm1273, %v6906, %v10261
        %v10349 = vsel %vm1273, %v6907, %v10263
        %v10350 = vsel %vm1273, %v6908, %v10265
        %v10351 = vsel %vm1273, %v6909, %v10267
        %v10352 = vsel %vm1273, %v6910, %v10269
        %v10353 = vsel %vm1273, %v6911, %v10271
        %v10354 = vsel %vm1273, %v6912, %v10273
        %v10355 = vsel %vm1273, %v6913, %v10275
        %v10356 = vsel %vm1273, %v6914, %v10277
        %v10357 = vsel %vm1273, %v6915, %v10279
        %v10358 = vsel %vm1273, %v6916, %v10281
        %v10359 = vsel %vm1273, %v6917, %v10283
        %v10360 = vsel %vm1273, %v6918, %v10285
        %v10361 = vsel %vm1273, %v6919, %v10287
        %v10362 = vsel %vm1273, %v6920, %v10289
        %v10363 = vsel %vm1273, %v6921, %v10291
        %v10364 = vsel %vm1273, %v6922, %v10293
        %v10365 = vsel %vm1273, %v6923, %v10295
        %v10366 = vsel %vm1273, %v6924, %v10297
        %v10367 = vsel %vm1273, %v6925, %v10299
        %v10368 = vsel %vm1273, %v6926, %v10301
        %v10369 = vsel %vm1273, %v6927, %v10303
        %v10370 = vsel %vm1273, %v6928, %v10305
        %v10371 = vsel %vm1273, %v6929, %v10307
        %10372 = vst [vmem:[%s433] sm:$0xff] %v10340
        %10373 = vst [vmem:[%s433 + $0x8] sm:$0xff] %v10341
        %10374 = vst [vmem:[%s433 + $0x10] sm:$0xff] %v10342
        %10375 = vst [vmem:[%s433 + $0x18] sm:$0xff] %v10343
        %10376 = vst [vmem:[%s433 + $0x20] sm:$0xff] %v10344
        %10377 = vst [vmem:[%s433 + $0x28] sm:$0xff] %v10345
        %10378 = vst [vmem:[%s433 + $0x30] sm:$0xff] %v10346
        %10379 = vst [vmem:[%s433 + $0x38] sm:$0xff] %v10347
        %10380 = vst [vmem:[%s433 + $0x40] sm:$0xff] %v10348
        %10381 = vst [vmem:[%s433 + $0x48] sm:$0xff] %v10349
        %10382 = vst [vmem:[%s433 + $0x50] sm:$0xff] %v10350
        %10383 = vst [vmem:[%s433 + $0x58] sm:$0xff] %v10351
        %10384 = vst [vmem:[%s433 + $0x60] sm:$0xff] %v10352
        %10385 = vst [vmem:[%s433 + $0x68] sm:$0xff] %v10353
        %10386 = vst [vmem:[%s433 + $0x70] sm:$0xff] %v10354
        %10387 = vst [vmem:[%s433 + $0x78] sm:$0xff] %v10355
        %10388 = vst [vmem:[%s433 + $0x80] sm:$0xff] %v10356
        %10389 = vst [vmem:[%s433 + $0x88] sm:$0xff] %v10357
        %10390 = vst [vmem:[%s433 + $0x90] sm:$0xff] %v10358
        %10391 = vst [vmem:[%s433 + $0x98] sm:$0xff] %v10359
        %10392 = vst [vmem:[%s433 + $0xa0] sm:$0xff] %v10360
        %10393 = vst [vmem:[%s433 + $0xa8] sm:$0xff] %v10361
        %10394 = vst [vmem:[%s433 + $0xb0] sm:$0xff] %v10362
        %10395 = vst [vmem:[%s433 + $0xb8] sm:$0xff] %v10363
        %10396 = vst [vmem:[%s433 + $0xc0] sm:$0xff] %v10364
        %10397 = vst [vmem:[%s433 + $0xc8] sm:$0xff] %v10365
        %10398 = vst [vmem:[%s433 + $0xd0] sm:$0xff] %v10366
        %10399 = vst [vmem:[%s433 + $0xd8] sm:$0xff] %v10367
        %10400 = vst [vmem:[%s433 + $0xe0] sm:$0xff] %v10368
        %10401 = vst [vmem:[%s433 + $0xe8] sm:$0xff] %v10369
        %10402 = vst [vmem:[%s433 + $0xf0] sm:$0xff] %v10370
        %10403 = vst [vmem:[%s433 + $0xf8] sm:$0xff] %v10371
        %s10404 = sand.u32 %s313, 1
        %s10405 = scalar_lea.sflag [#allocation4], %s10404
        %s10406 = sand.u32 %s313, 1
        %s10407 = smul.addr %s10406, 256
        %s10408 = scalar_lea.vmem [#allocation3], %s10407
        // Predicated region
        $region73: #{tpu_custom_call.1} parent=71 // pred_check
          %p10409 = pneg %p323
        $region74: #{tpu_custom_call.1} parent=71 // pred_check_branch
          %10411 = sbr.rel (%p10409) target = $region76
        $region75: #{tpu_custom_call.1} parent=71 // pred_region
          %10413 = vsyncadd %s10405, 0
          %s10414 = smul.addr %s27, 32
          %s10415 = smul.addr %s10414, 8
          %s10416 = scalar_lea.hbm %s13, %s10415
          %s10417 = sshll.u32 %s10408, 4
          %s10418 = int_to_ptr.vmem [resolvable:$true] %s10417
          %s10419 = sshll.u32 %s10416, 4
          %s10420 = int_to_ptr.hbm [resolvable:$true] %s10419
          %10425 = dma.vmem_to_hbm [thread:$0]  %s10418, 4096, %s10420, %s10405, 128, 128, 8
        $region76: #{tpu_custom_call.1} parent=71 // pred_fallthru
          _
      $region72: #{tpu_custom_call.1} parent=5 // pred_fallthru
        _
      %p10426 = scmp.le.s32.totalorder 2, %s22
      // Predicated region
      $region77: #{tpu_custom_call.1} parent=5 // pred_check
        %p10427 = pneg %p10426
      $region78: #{tpu_custom_call.1} parent=5 // pred_check_branch
        %10429 = sbr.rel (%p10427) target = $region80
      $region79: #{tpu_custom_call.1} parent=5 // pred_region
        %s10430 = ssub.s32 %s22, 2
        // Predicated region
        $region81: #{tpu_custom_call.1} parent=79 // pred_check
          %p10431 = pneg %p329
        $region82: #{tpu_custom_call.1} parent=79 // pred_check_branch
          %10433 = sbr.rel (%p10431) target = $region84
        $region83: #{tpu_custom_call.1} parent=79 // pred_region
          %s10434 = sand.u32 %s314, 1
          %s10435 = scalar_lea.sflag [#allocation4], %s10434
          %s10436 = sand.u32 %s314, 1
          %s10437 = smul.addr %s10436, 256
          %s10438 = scalar_lea.vmem [#allocation3], %s10437
          %10440 = dma.done %s10435, 4096
        $region84: #{tpu_custom_call.1} parent=79 // pred_fallthru
          _
      $region80: #{tpu_custom_call.1} parent=5 // pred_fallthru
        _
    $region6: #{tpu_custom_call.1} parent=1 // loop_footer
      %s26 = sadd.s32 1, %s22
    $region7: #{tpu_custom_call.1} parent=1 // loop_footer_branch
      %21 = sbr.rel target = $region3
    $region8: #{tpu_custom_call.1} parent=1 // loop_exit
      _
    %10441 = vsyncpa [#allocation4], 1
    %s10442 = scalar_lea.sflag [#allocation4], 1
    %10443 = vsyncpa %s10442, 1

</llo_original>
